<compile_context>
chip_gen: v5e
topology: v5e:2x2
jax: 0.10.0
libtpu: 0.0.40
codegen_flags: <defaults>
</compile_context>

<pallas_src>
import jax
import jax.numpy as jnp
from jax.experimental import pallas as pl
from jax.experimental.pallas import tpu as pltpu

# ----------------------------- config --------------------------------------
HIDDEN = 32          # config.hidden_size
HEADS = 4            # config.num_attention_heads
HEAD_DIM = HIDDEN // HEADS
INTER = 64           # config.intermediate_size
VOCAB = 64           # config.vocab_size
LAYERS = 2           # config.num_hidden_layers
MAX_POS = 32         # config.max_position_embeddings
LN_EPS = 1e-12       # BERT layer_norm_eps
MXU_DTYPE = jnp.bfloat16   # MXU input dtype (accumulation stays f32)


# ------------------------- in-kernel helpers --------------------------------

def _mm(a, b):
    """a @ b with bf16 MXU inputs, f32 accumulation."""
    return jnp.dot(a.astype(MXU_DTYPE), b.astype(MXU_DTYPE),
                   preferred_element_type=jnp.float32)


def _mm_t(a, b):
    """a @ b.T (contract last dims, no materialized transpose)."""
    return jax.lax.dot_general(a.astype(MXU_DTYPE), b.astype(MXU_DTYPE),
                               (((1,), (1,)), ((), ())),
                               preferred_element_type=jnp.float32)


def _layernorm(x, g, b, eps=LN_EPS):
    mu = jnp.mean(x, axis=-1, keepdims=True)
    xc = x - mu
    var = jnp.mean(xc * xc, axis=-1, keepdims=True)
    return xc * jax.lax.rsqrt(var + eps) * g + b


def _gelu(x):
    # TODO(synk): HF BERT "gelu" is erf-based; tanh approximation used here.
    return 0.5 * x * (1.0 + jnp.tanh(0.7978845608028654 *
                                     (x + 0.044715 * x * x * x)))


def _attention(q, k, v, mask, wo, bo):
    """Multi-head attention with fused output projection.

    q:[Sq,H]  k,v:[Sk,H]  mask:[Sq,Sk] additive or None  wo:[H,H]  bo:[1,H]
    Returns context @ wo + bo : [Sq,H].  Heads statically unrolled; the output
    projection is folded into the loop (out = sum_h ctx_h @ wo[hD:(h+1)D, :]).
    """
    scale = HEAD_DIM ** -0.5
    acc = None
    for h in range(HEADS):
        lo = h * HEAD_DIM
        hi = lo + HEAD_DIM
        s = _mm_t(q[:, lo:hi], k[:, lo:hi]) * scale            # [Sq, Sk] f32
        if mask is not None:
            s = s + mask
        s = s - jnp.max(s, axis=-1, keepdims=True)
        p = jnp.exp(s)
        p = p * pl.reciprocal(jnp.sum(p, axis=-1, keepdims=True), approx=True)
        ctx = _mm(p, v[:, lo:hi])                              # [Sq, D]
        part = _mm(ctx, wo[lo:hi, :])                          # [Sq, H]
        acc = part if acc is None else acc + part
    return acc + bo


def _self_attn_block(h, mask, wqkv, bqkv, wo, bo, ln_g, ln_b):
    qkv = _mm(h, wqkv) + bqkv                                  # [S, 3H]
    out = _attention(qkv[:, :HIDDEN], qkv[:, HIDDEN:2 * HIDDEN],
                     qkv[:, 2 * HIDDEN:], mask, wo, bo)
    return _layernorm(out + h, ln_g, ln_b)


def _ffn_block(h, w1, b1, w2, b2, ln_g, ln_b):
    inter = _gelu(_mm(h, w1) + b1)                             # [S, I]
    out = _mm(inter, w2) + b2                                  # [S, H]
    return _layernorm(out + h, ln_g, ln_b)


# --------------------------- fused stack kernels -----------------------------

def _encoder_kernel(h0_ref, mask_ref,
                    emb_g_ref, emb_b_ref,
                    wqkv_ref, bqkv_ref, wo_ref, bo_ref, ag_ref, ab_ref,
                    w1_ref, b1_ref, w2_ref, b2_ref, fg_ref, fb_ref,
                    out_ref):
    mask = mask_ref[0]                                         # [S, S]
    h = _layernorm(h0_ref[...], emb_g_ref[...], emb_b_ref[...])
    for l in range(LAYERS):
        h = _self_attn_block(h, mask, wqkv_ref[l], bqkv_ref[l],
                             wo_ref[l], bo_ref[l], ag_ref[l], ab_ref[l])
        h = _ffn_block(h, w1_ref[l], b1_ref[l], w2_ref[l], b2_ref[l],
                       fg_ref[l], fb_ref[l])
    out_ref[...] = h.astype(out_ref.dtype)


def _decoder_kernel(h0_ref, mask_ref, enc_ref,
                    emb_g_ref, emb_b_ref,
                    wqkv_ref, bqkv_ref, wo_ref, bo_ref, ag_ref, ab_ref,
                    xq_w_ref, xq_b_ref, xkv_w_ref, xkv_b_ref,
                    xo_w_ref, xo_b_ref, xg_ref, xb_ref,
                    w1_ref, b1_ref, w2_ref, b2_ref, fg_ref, fb_ref,
                    head_w_ref, head_b_ref,
                    out_ref):
    mask = mask_ref[0]                                         # [S, S] causal+pad
    enc = enc_ref[...]                                         # [S_enc, H]
    h = _layernorm(h0_ref[...], emb_g_ref[...], emb_b_ref[...])
    for l in range(LAYERS):
        # causal self-attention
        h = _self_attn_block(h, mask, wqkv_ref[l], bqkv_ref[l],
                             wo_ref[l], bo_ref[l], ag_ref[l], ab_ref[l])
        # cross-attention (HF: no encoder_attention_mask -> additive mask == 0)
        q = _mm(h, xq_w_ref[l]) + xq_b_ref[l]                  # [S, H]
        kv = _mm(enc, xkv_w_ref[l]) + xkv_b_ref[l]             # [S_enc, 2H]
        x_out = _attention(q, kv[:, :HIDDEN], kv[:, HIDDEN:], None,
                           xo_w_ref[l], xo_b_ref[l])
        h = _layernorm(x_out + h, xg_ref[l], xb_ref[l])
        # FFN
        h = _ffn_block(h, w1_ref[l], b1_ref[l], w2_ref[l], b2_ref[l],
                       fg_ref[l], fb_ref[l])
    # vocab head fused into the same kernel
    out_ref[...] = (_mm(h, head_w_ref[...]) + head_b_ref[...]).astype(out_ref.dtype)


# --------------------------- parameter init ---------------------------------

def _rand(key, shape):
    return jax.random.normal(key, shape, jnp.float32) * 0.02


def init_bert(key, *, cross_attention):
    ks = iter(jax.random.split(key, 32))
    L, H, I = LAYERS, HIDDEN, INTER
    p = {
        "word_emb": _rand(next(ks), (VOCAB, H)),
        "pos_emb": _rand(next(ks), (MAX_POS, H)),
        "type_emb": _rand(next(ks), (2, H)),
        "emb_ln_g": jnp.ones((1, H), jnp.float32),
        "emb_ln_b": jnp.zeros((1, H), jnp.float32),
        # fused Q|K|V projection
        "wqkv": _rand(next(ks), (L, H, 3 * H)),
        "bqkv": jnp.zeros((L, 1, 3 * H), jnp.float32),
        "wo": _rand(next(ks), (L, H, H)),
        "bo": jnp.zeros((L, 1, H), jnp.float32),
        "attn_ln_g": jnp.ones((L, 1, H), jnp.float32),
        "attn_ln_b": jnp.zeros((L, 1, H), jnp.float32),
        "ffn_w1": _rand(next(ks), (L, H, I)),
        "ffn_b1": jnp.zeros((L, 1, I), jnp.float32),
        "ffn_w2": _rand(next(ks), (L, I, H)),
        "ffn_b2": jnp.zeros((L, 1, H), jnp.float32),
        "ffn_ln_g": jnp.ones((L, 1, H), jnp.float32),
        "ffn_ln_b": jnp.zeros((L, 1, H), jnp.float32),
    }
    if cross_attention:
        p.update({
            "xq_w": _rand(next(ks), (L, H, H)),
            "xq_b": jnp.zeros((L, 1, H), jnp.float32),
            # fused K|V cross projection
            "xkv_w": _rand(next(ks), (L, H, 2 * H)),
            "xkv_b": jnp.zeros((L, 1, 2 * H), jnp.float32),
            "xo_w": _rand(next(ks), (L, H, H)),
            "xo_b": jnp.zeros((L, 1, H), jnp.float32),
            "x_ln_g": jnp.ones((L, 1, H), jnp.float32),
            "x_ln_b": jnp.zeros((L, 1, H), jnp.float32),
        })
    return p


# --------------------------- host-side wrappers ------------------------------

def _full_spec(shape):
    zeros = (0,) * len(shape)
    return pl.BlockSpec(shape, lambda i, _z=zeros: _z)


_ENC_WEIGHTS = ("emb_ln_g", "emb_ln_b", "wqkv", "bqkv", "wo", "bo",
                "attn_ln_g", "attn_ln_b", "ffn_w1", "ffn_b1",
                "ffn_w2", "ffn_b2", "ffn_ln_g", "ffn_ln_b")

_DEC_WEIGHTS = ("emb_ln_g", "emb_ln_b", "wqkv", "bqkv", "wo", "bo",
                "attn_ln_g", "attn_ln_b",
                "xq_w", "xq_b", "xkv_w", "xkv_b", "xo_w", "xo_b",
                "x_ln_g", "x_ln_b",
                "ffn_w1", "ffn_b1", "ffn_w2", "ffn_b2",
                "ffn_ln_g", "ffn_ln_b")


def _embed(p, ids):
    B, S = ids.shape
    word = jnp.take(p["word_emb"], ids, axis=0)                # [B, S, H]
    pos = p["pos_emb"][:S][None, :, :]
    # TODO(synk): token_type_ids assumed all-zero (HF default when not passed).
    tok = p["type_emb"][0][None, None, :]
    return (word + pos + tok).reshape(B * S, HIDDEN)


def _additive_mask(attention_mask, causal):
    B, S = attention_mask.shape
    am = attention_mask.astype(jnp.float32)
    comb = jnp.broadcast_to(am[:, None, :], (B, S, S))
    if causal:
        comb = comb * jnp.tril(jnp.ones((S, S), jnp.float32))[None, :, :]
    return (1.0 - comb) * -10000.0                             # [B, S, S]


def encoder_forward(p, input_ids, attention_mask):
    B, S = input_ids.shape
    h0 = _embed(p, input_ids)                                  # [B*S, H]
    mask = _additive_mask(attention_mask, causal=False)        # [B, S, S]
    weights = [p[n] for n in _ENC_WEIGHTS]
    in_specs = ([pl.BlockSpec((S, HIDDEN), lambda i: (i, 0)),
                 pl.BlockSpec((1, S, S), lambda i: (i, 0, 0))]
                + [_full_spec(w.shape) for w in weights])
    return pl.pallas_call(
        _encoder_kernel,
        grid=(B,),
        in_specs=in_specs,
        out_specs=pl.BlockSpec((S, HIDDEN), lambda i: (i, 0)),
        out_shape=jax.ShapeDtypeStruct((B * S, HIDDEN), jnp.float32),
        compiler_params=pltpu.CompilerParams(dimension_semantics=("parallel",)),
    )(h0, mask, *weights)


def decoder_forward(p, head, decoder_input_ids, decoder_attention_mask, enc_h):
    B, S = decoder_input_ids.shape
    S_enc = enc_h.shape[0] // B
    h0 = _embed(p, decoder_input_ids)                          # [B*S, H]
    mask = _additive_mask(decoder_attention_mask, causal=True) # [B, S, S]
    weights = [p[n] for n in _DEC_WEIGHTS] + [head["w"], head["b"]]
    in_specs = ([pl.BlockSpec((S, HIDDEN), lambda i: (i, 0)),
                 pl.BlockSpec((1, S, S), lambda i: (i, 0, 0)),
                 pl.BlockSpec((S_enc, HIDDEN), lambda i: (i, 0))]
                + [_full_spec(w.shape) for w in weights])
    return pl.pallas_call(
        _decoder_kernel,
        grid=(B,),
        in_specs=in_specs,
        out_specs=pl.BlockSpec((S, VOCAB), lambda i: (i, 0)),
        out_shape=jax.ShapeDtypeStruct((B * S, VOCAB), jnp.float32),
        compiler_params=pltpu.CompilerParams(dimension_semantics=("parallel",)),
    )(h0, mask, enc_h, *weights)


def code_translator_forward(params, input_ids, attention_mask,
                            decoder_input_ids, decoder_attention_mask):
    B, S_dec = decoder_input_ids.shape
    enc_h = encoder_forward(params["encoder"], input_ids, attention_mask)
    logits = decoder_forward(params["decoder"], params["head"],
                             decoder_input_ids, decoder_attention_mask, enc_h)
    return logits.reshape(B, S_dec, VOCAB)


# --------------------------------- main --------------------------------------

if __name__ == "__main__":
    key = jax.random.PRNGKey(0)
    k_enc, k_dec, k_head, k_in, k_din = jax.random.split(key, 5)

    params = {
        "encoder": init_bert(k_enc, cross_attention=False),
        "decoder": init_bert(k_dec, cross_attention=True),
        "head": {"w": _rand(k_head, (HIDDEN, VOCAB)),
                 "b": jnp.zeros((1, VOCAB), jnp.float32)},
    }

    B, S_ENC, S_DEC = 2, 8, 8
    input_ids = jax.random.randint(k_in, (B, S_ENC), 0, VOCAB)
    attention_mask = jnp.ones((B, S_ENC), jnp.int32).at[1, 6:].set(0)
    decoder_input_ids = jax.random.randint(k_din, (B, S_DEC), 0, VOCAB)
    decoder_attention_mask = jnp.ones((B, S_DEC), jnp.int32).at[0, 7:].set(0)

    logits = jax.jit(code_translator_forward)(
        params, input_ids, attention_mask,
        decoder_input_ids, decoder_attention_mask)
    jax.block_until_ready(logits)

    assert logits.shape == (B, S_DEC, VOCAB)
    assert bool(jnp.all(jnp.isfinite(logits)))
    print("KERNEL_OK")
</pallas_src>

<mosaic_0001>
module attributes {stable_mosaic.version = 11 : i64} {
  func.func @_encoder_kernel(%arg0: i32, %arg1: memref<8x32xf32, #tpu.memory_space<vmem>>, %arg2: memref<1x8x8xf32, #tpu.memory_space<vmem>>, %arg3: memref<1x32xf32, #tpu.memory_space<vmem>>, %arg4: memref<1x32xf32, #tpu.memory_space<vmem>>, %arg5: memref<2x32x96xf32, #tpu.memory_space<vmem>>, %arg6: memref<2x1x96xf32, #tpu.memory_space<vmem>>, %arg7: memref<2x32x32xf32, #tpu.memory_space<vmem>>, %arg8: memref<2x1x32xf32, #tpu.memory_space<vmem>>, %arg9: memref<2x1x32xf32, #tpu.memory_space<vmem>>, %arg10: memref<2x1x32xf32, #tpu.memory_space<vmem>>, %arg11: memref<2x32x64xf32, #tpu.memory_space<vmem>>, %arg12: memref<2x1x64xf32, #tpu.memory_space<vmem>>, %arg13: memref<2x64x32xf32, #tpu.memory_space<vmem>>, %arg14: memref<2x1x32xf32, #tpu.memory_space<vmem>>, %arg15: memref<2x1x32xf32, #tpu.memory_space<vmem>>, %arg16: memref<2x1x32xf32, #tpu.memory_space<vmem>>, %arg17: memref<8x32xf32, #tpu.memory_space<vmem>>) attributes {dimension_semantics = [#tpu.dimension_semantics<parallel>], iteration_bounds = array<i64: 2>, scalar_prefetch = 0 : i64, scratch_operands = 0 : i64, tpu.core_type = #tpu.core_type<tc>, window_params = [{transform_indices = @transform_0, window_bounds = array<i64: 8, 32>}, {transform_indices = @transform_1, window_bounds = array<i64: 1, 8, 8>}, {pipeline_mode = #tpu.pipeline_mode<synchronous>, transform_indices = @transform_2, window_bounds = array<i64: 1, 32>}, {pipeline_mode = #tpu.pipeline_mode<synchronous>, transform_indices = @transform_3, window_bounds = array<i64: 1, 32>}, {pipeline_mode = #tpu.pipeline_mode<synchronous>, transform_indices = @transform_4, window_bounds = array<i64: 2, 32, 96>}, {pipeline_mode = #tpu.pipeline_mode<synchronous>, transform_indices = @transform_5, window_bounds = array<i64: 2, 1, 96>}, {pipeline_mode = #tpu.pipeline_mode<synchronous>, transform_indices = @transform_6, window_bounds = array<i64: 2, 32, 32>}, {pipeline_mode = #tpu.pipeline_mode<synchronous>, transform_indices = @transform_7, window_bounds = array<i64: 2, 1, 32>}, {pipeline_mode = #tpu.pipeline_mode<synchronous>, transform_indices = @transform_8, window_bounds = array<i64: 2, 1, 32>}, {pipeline_mode = #tpu.pipeline_mode<synchronous>, transform_indices = @transform_9, window_bounds = array<i64: 2, 1, 32>}, {pipeline_mode = #tpu.pipeline_mode<synchronous>, transform_indices = @transform_10, window_bounds = array<i64: 2, 32, 64>}, {pipeline_mode = #tpu.pipeline_mode<synchronous>, transform_indices = @transform_11, window_bounds = array<i64: 2, 1, 64>}, {pipeline_mode = #tpu.pipeline_mode<synchronous>, transform_indices = @transform_12, window_bounds = array<i64: 2, 64, 32>}, {pipeline_mode = #tpu.pipeline_mode<synchronous>, transform_indices = @transform_13, window_bounds = array<i64: 2, 1, 32>}, {pipeline_mode = #tpu.pipeline_mode<synchronous>, transform_indices = @transform_14, window_bounds = array<i64: 2, 1, 32>}, {pipeline_mode = #tpu.pipeline_mode<synchronous>, transform_indices = @transform_15, window_bounds = array<i64: 2, 1, 32>}, {transform_indices = @transform_16, window_bounds = array<i64: 8, 32>}]} {
    %c0 = arith.constant 0 : index
    %c0_0 = arith.constant 0 : index
    %c0_1 = arith.constant 0 : index
    %0 = vector.load %arg2[%c0, %c0_0, %c0_1] : memref<1x8x8xf32, #tpu.memory_space<vmem>>, vector<1x8x8xf32>
    %1 = vector.shape_cast %0 : vector<1x8x8xf32> to vector<8x8xf32>
    %c0_2 = arith.constant 0 : index
    %c0_3 = arith.constant 0 : index
    %2 = vector.load %arg1[%c0_2, %c0_3] : memref<8x32xf32, #tpu.memory_space<vmem>>, vector<8x32xf32>
    %c0_4 = arith.constant 0 : index
    %c0_5 = arith.constant 0 : index
    %3 = vector.load %arg3[%c0_4, %c0_5] : memref<1x32xf32, #tpu.memory_space<vmem>>, vector<1x32xf32>
    %c0_6 = arith.constant 0 : index
    %c0_7 = arith.constant 0 : index
    %4 = vector.load %arg4[%c0_6, %c0_7] : memref<1x32xf32, #tpu.memory_space<vmem>>, vector<1x32xf32>
    %cst = arith.constant dense<0.000000e+00> : vector<8xf32>
    %5 = vector.multi_reduction <add>, %2, %cst [1] : vector<8x32xf32> to vector<8xf32>
    %6 = vector.shape_cast %5 : vector<8xf32> to vector<8x1xf32>
    %cst_8 = arith.constant 3.200000e+01 : f32
    %7 = vector.broadcast %cst_8 : f32 to vector<8x1xf32>
    %8 = arith.divf %6, %7 : vector<8x1xf32>
    %9 = vector.broadcast %8 : vector<8x1xf32> to vector<8x32xf32>
    %10 = arith.subf %2, %9 : vector<8x32xf32>
    %11 = arith.mulf %10, %10 : vector<8x32xf32>
    %cst_9 = arith.constant dense<0.000000e+00> : vector<8xf32>
    %12 = vector.multi_reduction <add>, %11, %cst_9 [1] : vector<8x32xf32> to vector<8xf32>
    %13 = vector.shape_cast %12 : vector<8xf32> to vector<8x1xf32>
    %cst_10 = arith.constant 3.200000e+01 : f32
    %14 = vector.broadcast %cst_10 : f32 to vector<8x1xf32>
    %15 = arith.divf %13, %14 : vector<8x1xf32>
    %cst_11 = arith.constant 9.99999996E-13 : f32
    %16 = vector.broadcast %cst_11 : f32 to vector<8x1xf32>
    %17 = arith.addf %15, %16 : vector<8x1xf32>
    %18 = math.rsqrt %17 : vector<8x1xf32>
    %19 = vector.broadcast %18 : vector<8x1xf32> to vector<8x32xf32>
    %20 = arith.mulf %10, %19 : vector<8x32xf32>
    %21 = vector.broadcast %3 : vector<1x32xf32> to vector<8x32xf32>
    %22 = arith.mulf %20, %21 : vector<8x32xf32>
    %23 = vector.broadcast %4 : vector<1x32xf32> to vector<8x32xf32>
    %24 = arith.addf %22, %23 : vector<8x32xf32>
    %c0_12 = arith.constant 0 : index
    %c0_13 = arith.constant 0 : index
    %c0_14 = arith.constant 0 : index
    %25 = vector.load %arg5[%c0_12, %c0_13, %c0_14] : memref<2x32x96xf32, #tpu.memory_space<vmem>>, vector<1x32x96xf32>
    %26 = vector.shape_cast %25 : vector<1x32x96xf32> to vector<32x96xf32>
    %c0_15 = arith.constant 0 : index
    %c0_16 = arith.constant 0 : index
    %c0_17 = arith.constant 0 : index
    %27 = vector.load %arg6[%c0_15, %c0_16, %c0_17] : memref<2x1x96xf32, #tpu.memory_space<vmem>>, vector<1x1x96xf32>
    %28 = vector.shape_cast %27 : vector<1x1x96xf32> to vector<1x96xf32>
    %c0_18 = arith.constant 0 : index
    %c0_19 = arith.constant 0 : index
    %c0_20 = arith.constant 0 : index
    %29 = vector.load %arg7[%c0_18, %c0_19, %c0_20] : memref<2x32x32xf32, #tpu.memory_space<vmem>>, vector<1x32x32xf32>
    %30 = vector.shape_cast %29 : vector<1x32x32xf32> to vector<32x32xf32>
    %c0_21 = arith.constant 0 : index
    %c0_22 = arith.constant 0 : index
    %c0_23 = arith.constant 0 : index
    %31 = vector.load %arg8[%c0_21, %c0_22, %c0_23] : memref<2x1x32xf32, #tpu.memory_space<vmem>>, vector<1x1x32xf32>
    %32 = vector.shape_cast %31 : vector<1x1x32xf32> to vector<1x32xf32>
    %c0_24 = arith.constant 0 : index
    %c0_25 = arith.constant 0 : index
    %c0_26 = arith.constant 0 : index
    %33 = vector.load %arg9[%c0_24, %c0_25, %c0_26] : memref<2x1x32xf32, #tpu.memory_space<vmem>>, vector<1x1x32xf32>
    %34 = vector.shape_cast %33 : vector<1x1x32xf32> to vector<1x32xf32>
    %c0_27 = arith.constant 0 : index
    %c0_28 = arith.constant 0 : index
    %c0_29 = arith.constant 0 : index
    %35 = vector.load %arg10[%c0_27, %c0_28, %c0_29] : memref<2x1x32xf32, #tpu.memory_space<vmem>>, vector<1x1x32xf32>
    %36 = vector.shape_cast %35 : vector<1x1x32xf32> to vector<1x32xf32>
    %37 = arith.truncf %24 : vector<8x32xf32> to vector<8x32xbf16>
    %38 = arith.truncf %26 : vector<32x96xf32> to vector<32x96xbf16>
    %cst_30 = arith.constant dense<0.000000e+00> : vector<8x96xf32>
    %39 = tpu.matmul %37, %38, %cst_30 {dimension_numbers = #tpu.dot_dimension_numbers<[1], [0], [0], [1], [0, 0, 1, 1], [], []>} : vector<8x32xbf16>, vector<32x96xbf16>, vector<8x96xf32> -> vector<8x96xf32>
    %40 = vector.broadcast %28 : vector<1x96xf32> to vector<8x96xf32>
    %41 = arith.addf %39, %40 : vector<8x96xf32>
    %42 = vector.extract_strided_slice %41 {offsets = [0, 0], sizes = [8, 32], strides = [1, 1]} : vector<8x96xf32> to vector<8x32xf32>
    %43 = vector.extract_strided_slice %41 {offsets = [0, 32], sizes = [8, 32], strides = [1, 1]} : vector<8x96xf32> to vector<8x32xf32>
    %44 = vector.extract_strided_slice %41 {offsets = [0, 64], sizes = [8, 32], strides = [1, 1]} : vector<8x96xf32> to vector<8x32xf32>
    %45 = vector.extract_strided_slice %42 {offsets = [0, 0], sizes = [8, 8], strides = [1, 1]} : vector<8x32xf32> to vector<8x8xf32>
    %46 = vector.extract_strided_slice %43 {offsets = [0, 0], sizes = [8, 8], strides = [1, 1]} : vector<8x32xf32> to vector<8x8xf32>
    %47 = arith.truncf %45 : vector<8x8xf32> to vector<8x8xbf16>
    %48 = arith.truncf %46 : vector<8x8xf32> to vector<8x8xbf16>
    %cst_31 = arith.constant dense<0.000000e+00> : vector<8x8xf32>
    %49 = tpu.matmul %47, %48, %cst_31 {dimension_numbers = #tpu.dot_dimension_numbers<[1], [1], [0], [0], [0, 0, 1, 0], [], []>} : vector<8x8xbf16>, vector<8x8xbf16>, vector<8x8xf32> -> vector<8x8xf32>
    %cst_32 = arith.constant 0.353553385 : f32
    %50 = vector.broadcast %cst_32 : f32 to vector<8x8xf32>
    %51 = arith.mulf %49, %50 : vector<8x8xf32>
    %52 = arith.addf %51, %1 : vector<8x8xf32>
    %cst_33 = arith.constant dense<0xFF800000> : vector<8xf32>
    %53 = vector.multi_reduction <maximumf>, %52, %cst_33 [1] : vector<8x8xf32> to vector<8xf32>
    %54 = vector.shape_cast %53 : vector<8xf32> to vector<8x1xf32>
    %55 = vector.broadcast %54 : vector<8x1xf32> to vector<8x8xf32>
    %56 = arith.subf %52, %55 : vector<8x8xf32>
    %57 = math.exp %56 : vector<8x8xf32>
    %cst_34 = arith.constant dense<0.000000e+00> : vector<8xf32>
    %58 = vector.multi_reduction <add>, %57, %cst_34 [1] : vector<8x8xf32> to vector<8xf32>
    %59 = vector.shape_cast %58 : vector<8xf32> to vector<8x1xf32>
    %60 = tpu.reciprocal %59 {approx = true} : vector<8x1xf32> -> vector<8x1xf32>
    %61 = vector.broadcast %60 : vector<8x1xf32> to vector<8x8xf32>
    %62 = arith.mulf %57, %61 : vector<8x8xf32>
    %63 = vector.extract_strided_slice %44 {offsets = [0, 0], sizes = [8, 8], strides = [1, 1]} : vector<8x32xf32> to vector<8x8xf32>
    %64 = arith.truncf %62 : vector<8x8xf32> to vector<8x8xbf16>
    %65 = arith.truncf %63 : vector<8x8xf32> to vector<8x8xbf16>
    %cst_35 = arith.constant dense<0.000000e+00> : vector<8x8xf32>
    %66 = tpu.matmul %64, %65, %cst_35 {dimension_numbers = #tpu.dot_dimension_numbers<[1], [0], [0], [1], [0, 0, 1, 1], [], []>} : vector<8x8xbf16>, vector<8x8xbf16>, vector<8x8xf32> -> vector<8x8xf32>
    %67 = vector.extract_strided_slice %30 {offsets = [0, 0], sizes = [8, 32], strides = [1, 1]} : vector<32x32xf32> to vector<8x32xf32>
    %68 = arith.truncf %66 : vector<8x8xf32> to vector<8x8xbf16>
    %69 = arith.truncf %67 : vector<8x32xf32> to vector<8x32xbf16>
    %cst_36 = arith.constant dense<0.000000e+00> : vector<8x32xf32>
    %70 = tpu.matmul %68, %69, %cst_36 {dimension_numbers = #tpu.dot_dimension_numbers<[1], [0], [0], [1], [0, 0, 1, 1], [], []>} : vector<8x8xbf16>, vector<8x32xbf16>, vector<8x32xf32> -> vector<8x32xf32>
    %71 = vector.extract_strided_slice %42 {offsets = [0, 8], sizes = [8, 8], strides = [1, 1]} : vector<8x32xf32> to vector<8x8xf32>
    %72 = vector.extract_strided_slice %43 {offsets = [0, 8], sizes = [8, 8], strides = [1, 1]} : vector<8x32xf32> to vector<8x8xf32>
    %73 = arith.truncf %71 : vector<8x8xf32> to vector<8x8xbf16>
    %74 = arith.truncf %72 : vector<8x8xf32> to vector<8x8xbf16>
    %cst_37 = arith.constant dense<0.000000e+00> : vector<8x8xf32>
    %75 = tpu.matmul %73, %74, %cst_37 {dimension_numbers = #tpu.dot_dimension_numbers<[1], [1], [0], [0], [0, 0, 1, 0], [], []>} : vector<8x8xbf16>, vector<8x8xbf16>, vector<8x8xf32> -> vector<8x8xf32>
    %cst_38 = arith.constant 0.353553385 : f32
    %76 = vector.broadcast %cst_38 : f32 to vector<8x8xf32>
    %77 = arith.mulf %75, %76 : vector<8x8xf32>
    %78 = arith.addf %77, %1 : vector<8x8xf32>
    %cst_39 = arith.constant dense<0xFF800000> : vector<8xf32>
    %79 = vector.multi_reduction <maximumf>, %78, %cst_39 [1] : vector<8x8xf32> to vector<8xf32>
    %80 = vector.shape_cast %79 : vector<8xf32> to vector<8x1xf32>
    %81 = vector.broadcast %80 : vector<8x1xf32> to vector<8x8xf32>
    %82 = arith.subf %78, %81 : vector<8x8xf32>
    %83 = math.exp %82 : vector<8x8xf32>
    %cst_40 = arith.constant dense<0.000000e+00> : vector<8xf32>
    %84 = vector.multi_reduction <add>, %83, %cst_40 [1] : vector<8x8xf32> to vector<8xf32>
    %85 = vector.shape_cast %84 : vector<8xf32> to vector<8x1xf32>
    %86 = tpu.reciprocal %85 {approx = true} : vector<8x1xf32> -> vector<8x1xf32>
    %87 = vector.broadcast %86 : vector<8x1xf32> to vector<8x8xf32>
    %88 = arith.mulf %83, %87 : vector<8x8xf32>
    %89 = vector.extract_strided_slice %44 {offsets = [0, 8], sizes = [8, 8], strides = [1, 1]} : vector<8x32xf32> to vector<8x8xf32>
    %90 = arith.truncf %88 : vector<8x8xf32> to vector<8x8xbf16>
    %91 = arith.truncf %89 : vector<8x8xf32> to vector<8x8xbf16>
    %cst_41 = arith.constant dense<0.000000e+00> : vector<8x8xf32>
    %92 = tpu.matmul %90, %91, %cst_41 {dimension_numbers = #tpu.dot_dimension_numbers<[1], [0], [0], [1], [0, 0, 1, 1], [], []>} : vector<8x8xbf16>, vector<8x8xbf16>, vector<8x8xf32> -> vector<8x8xf32>
    %93 = vector.extract_strided_slice %30 {offsets = [8, 0], sizes = [8, 32], strides = [1, 1]} : vector<32x32xf32> to vector<8x32xf32>
    %94 = arith.truncf %92 : vector<8x8xf32> to vector<8x8xbf16>
    %95 = arith.truncf %93 : vector<8x32xf32> to vector<8x32xbf16>
    %cst_42 = arith.constant dense<0.000000e+00> : vector<8x32xf32>
    %96 = tpu.matmul %94, %95, %cst_42 {dimension_numbers = #tpu.dot_dimension_numbers<[1], [0], [0], [1], [0, 0, 1, 1], [], []>} : vector<8x8xbf16>, vector<8x32xbf16>, vector<8x32xf32> -> vector<8x32xf32>
    %97 = arith.addf %70, %96 : vector<8x32xf32>
    %98 = vector.extract_strided_slice %42 {offsets = [0, 16], sizes = [8, 8], strides = [1, 1]} : vector<8x32xf32> to vector<8x8xf32>
    %99 = vector.extract_strided_slice %43 {offsets = [0, 16], sizes = [8, 8], strides = [1, 1]} : vector<8x32xf32> to vector<8x8xf32>
    %100 = arith.truncf %98 : vector<8x8xf32> to vector<8x8xbf16>
    %101 = arith.truncf %99 : vector<8x8xf32> to vector<8x8xbf16>
    %cst_43 = arith.constant dense<0.000000e+00> : vector<8x8xf32>
    %102 = tpu.matmul %100, %101, %cst_43 {dimension_numbers = #tpu.dot_dimension_numbers<[1], [1], [0], [0], [0, 0, 1, 0], [], []>} : vector<8x8xbf16>, vector<8x8xbf16>, vector<8x8xf32> -> vector<8x8xf32>
    %cst_44 = arith.constant 0.353553385 : f32
    %103 = vector.broadcast %cst_44 : f32 to vector<8x8xf32>
    %104 = arith.mulf %102, %103 : vector<8x8xf32>
    %105 = arith.addf %104, %1 : vector<8x8xf32>
    %cst_45 = arith.constant dense<0xFF800000> : vector<8xf32>
    %106 = vector.multi_reduction <maximumf>, %105, %cst_45 [1] : vector<8x8xf32> to vector<8xf32>
    %107 = vector.shape_cast %106 : vector<8xf32> to vector<8x1xf32>
    %108 = vector.broadcast %107 : vector<8x1xf32> to vector<8x8xf32>
    %109 = arith.subf %105, %108 : vector<8x8xf32>
    %110 = math.exp %109 : vector<8x8xf32>
    %cst_46 = arith.constant dense<0.000000e+00> : vector<8xf32>
    %111 = vector.multi_reduction <add>, %110, %cst_46 [1] : vector<8x8xf32> to vector<8xf32>
    %112 = vector.shape_cast %111 : vector<8xf32> to vector<8x1xf32>
    %113 = tpu.reciprocal %112 {approx = true} : vector<8x1xf32> -> vector<8x1xf32>
    %114 = vector.broadcast %113 : vector<8x1xf32> to vector<8x8xf32>
    %115 = arith.mulf %110, %114 : vector<8x8xf32>
    %116 = vector.extract_strided_slice %44 {offsets = [0, 16], sizes = [8, 8], strides = [1, 1]} : vector<8x32xf32> to vector<8x8xf32>
    %117 = arith.truncf %115 : vector<8x8xf32> to vector<8x8xbf16>
    %118 = arith.truncf %116 : vector<8x8xf32> to vector<8x8xbf16>
    %cst_47 = arith.constant dense<0.000000e+00> : vector<8x8xf32>
    %119 = tpu.matmul %117, %118, %cst_47 {dimension_numbers = #tpu.dot_dimension_numbers<[1], [0], [0], [1], [0, 0, 1, 1], [], []>} : vector<8x8xbf16>, vector<8x8xbf16>, vector<8x8xf32> -> vector<8x8xf32>
    %120 = vector.extract_strided_slice %30 {offsets = [16, 0], sizes = [8, 32], strides = [1, 1]} : vector<32x32xf32> to vector<8x32xf32>
    %121 = arith.truncf %119 : vector<8x8xf32> to vector<8x8xbf16>
    %122 = arith.truncf %120 : vector<8x32xf32> to vector<8x32xbf16>
    %cst_48 = arith.constant dense<0.000000e+00> : vector<8x32xf32>
    %123 = tpu.matmul %121, %122, %cst_48 {dimension_numbers = #tpu.dot_dimension_numbers<[1], [0], [0], [1], [0, 0, 1, 1], [], []>} : vector<8x8xbf16>, vector<8x32xbf16>, vector<8x32xf32> -> vector<8x32xf32>
    %124 = arith.addf %97, %123 : vector<8x32xf32>
    %125 = vector.extract_strided_slice %42 {offsets = [0, 24], sizes = [8, 8], strides = [1, 1]} : vector<8x32xf32> to vector<8x8xf32>
    %126 = vector.extract_strided_slice %43 {offsets = [0, 24], sizes = [8, 8], strides = [1, 1]} : vector<8x32xf32> to vector<8x8xf32>
    %127 = arith.truncf %125 : vector<8x8xf32> to vector<8x8xbf16>
    %128 = arith.truncf %126 : vector<8x8xf32> to vector<8x8xbf16>
    %cst_49 = arith.constant dense<0.000000e+00> : vector<8x8xf32>
    %129 = tpu.matmul %127, %128, %cst_49 {dimension_numbers = #tpu.dot_dimension_numbers<[1], [1], [0], [0], [0, 0, 1, 0], [], []>} : vector<8x8xbf16>, vector<8x8xbf16>, vector<8x8xf32> -> vector<8x8xf32>
    %cst_50 = arith.constant 0.353553385 : f32
    %130 = vector.broadcast %cst_50 : f32 to vector<8x8xf32>
    %131 = arith.mulf %129, %130 : vector<8x8xf32>
    %132 = arith.addf %131, %1 : vector<8x8xf32>
    %cst_51 = arith.constant dense<0xFF800000> : vector<8xf32>
    %133 = vector.multi_reduction <maximumf>, %132, %cst_51 [1] : vector<8x8xf32> to vector<8xf32>
    %134 = vector.shape_cast %133 : vector<8xf32> to vector<8x1xf32>
    %135 = vector.broadcast %134 : vector<8x1xf32> to vector<8x8xf32>
    %136 = arith.subf %132, %135 : vector<8x8xf32>
    %137 = math.exp %136 : vector<8x8xf32>
    %cst_52 = arith.constant dense<0.000000e+00> : vector<8xf32>
    %138 = vector.multi_reduction <add>, %137, %cst_52 [1] : vector<8x8xf32> to vector<8xf32>
    %139 = vector.shape_cast %138 : vector<8xf32> to vector<8x1xf32>
    %140 = tpu.reciprocal %139 {approx = true} : vector<8x1xf32> -> vector<8x1xf32>
    %141 = vector.broadcast %140 : vector<8x1xf32> to vector<8x8xf32>
    %142 = arith.mulf %137, %141 : vector<8x8xf32>
    %143 = vector.extract_strided_slice %44 {offsets = [0, 24], sizes = [8, 8], strides = [1, 1]} : vector<8x32xf32> to vector<8x8xf32>
    %144 = arith.truncf %142 : vector<8x8xf32> to vector<8x8xbf16>
    %145 = arith.truncf %143 : vector<8x8xf32> to vector<8x8xbf16>
    %cst_53 = arith.constant dense<0.000000e+00> : vector<8x8xf32>
    %146 = tpu.matmul %144, %145, %cst_53 {dimension_numbers = #tpu.dot_dimension_numbers<[1], [0], [0], [1], [0, 0, 1, 1], [], []>} : vector<8x8xbf16>, vector<8x8xbf16>, vector<8x8xf32> -> vector<8x8xf32>
    %147 = vector.extract_strided_slice %30 {offsets = [24, 0], sizes = [8, 32], strides = [1, 1]} : vector<32x32xf32> to vector<8x32xf32>
    %148 = arith.truncf %146 : vector<8x8xf32> to vector<8x8xbf16>
    %149 = arith.truncf %147 : vector<8x32xf32> to vector<8x32xbf16>
    %cst_54 = arith.constant dense<0.000000e+00> : vector<8x32xf32>
    %150 = tpu.matmul %148, %149, %cst_54 {dimension_numbers = #tpu.dot_dimension_numbers<[1], [0], [0], [1], [0, 0, 1, 1], [], []>} : vector<8x8xbf16>, vector<8x32xbf16>, vector<8x32xf32> -> vector<8x32xf32>
    %151 = arith.addf %124, %150 : vector<8x32xf32>
    %152 = vector.broadcast %32 : vector<1x32xf32> to vector<8x32xf32>
    %153 = arith.addf %151, %152 : vector<8x32xf32>
    %154 = arith.addf %153, %24 : vector<8x32xf32>
    %cst_55 = arith.constant dense<0.000000e+00> : vector<8xf32>
    %155 = vector.multi_reduction <add>, %154, %cst_55 [1] : vector<8x32xf32> to vector<8xf32>
    %156 = vector.shape_cast %155 : vector<8xf32> to vector<8x1xf32>
    %cst_56 = arith.constant 3.200000e+01 : f32
    %157 = vector.broadcast %cst_56 : f32 to vector<8x1xf32>
    %158 = arith.divf %156, %157 : vector<8x1xf32>
    %159 = vector.broadcast %158 : vector<8x1xf32> to vector<8x32xf32>
    %160 = arith.subf %154, %159 : vector<8x32xf32>
    %161 = arith.mulf %160, %160 : vector<8x32xf32>
    %cst_57 = arith.constant dense<0.000000e+00> : vector<8xf32>
    %162 = vector.multi_reduction <add>, %161, %cst_57 [1] : vector<8x32xf32> to vector<8xf32>
    %163 = vector.shape_cast %162 : vector<8xf32> to vector<8x1xf32>
    %cst_58 = arith.constant 3.200000e+01 : f32
    %164 = vector.broadcast %cst_58 : f32 to vector<8x1xf32>
    %165 = arith.divf %163, %164 : vector<8x1xf32>
    %cst_59 = arith.constant 9.99999996E-13 : f32
    %166 = vector.broadcast %cst_59 : f32 to vector<8x1xf32>
    %167 = arith.addf %165, %166 : vector<8x1xf32>
    %168 = math.rsqrt %167 : vector<8x1xf32>
    %169 = vector.broadcast %168 : vector<8x1xf32> to vector<8x32xf32>
    %170 = arith.mulf %160, %169 : vector<8x32xf32>
    %171 = vector.broadcast %34 : vector<1x32xf32> to vector<8x32xf32>
    %172 = arith.mulf %170, %171 : vector<8x32xf32>
    %173 = vector.broadcast %36 : vector<1x32xf32> to vector<8x32xf32>
    %174 = arith.addf %172, %173 : vector<8x32xf32>
    %c0_60 = arith.constant 0 : index
    %c0_61 = arith.constant 0 : index
    %c0_62 = arith.constant 0 : index
    %175 = vector.load %arg11[%c0_60, %c0_61, %c0_62] : memref<2x32x64xf32, #tpu.memory_space<vmem>>, vector<1x32x64xf32>
    %176 = vector.shape_cast %175 : vector<1x32x64xf32> to vector<32x64xf32>
    %c0_63 = arith.constant 0 : index
    %c0_64 = arith.constant 0 : index
    %c0_65 = arith.constant 0 : index
    %177 = vector.load %arg12[%c0_63, %c0_64, %c0_65] : memref<2x1x64xf32, #tpu.memory_space<vmem>>, vector<1x1x64xf32>
    %178 = vector.shape_cast %177 : vector<1x1x64xf32> to vector<1x64xf32>
    %c0_66 = arith.constant 0 : index
    %c0_67 = arith.constant 0 : index
    %c0_68 = arith.constant 0 : index
    %179 = vector.load %arg13[%c0_66, %c0_67, %c0_68] : memref<2x64x32xf32, #tpu.memory_space<vmem>>, vector<1x64x32xf32>
    %180 = vector.shape_cast %179 : vector<1x64x32xf32> to vector<64x32xf32>
    %c0_69 = arith.constant 0 : index
    %c0_70 = arith.constant 0 : index
    %c0_71 = arith.constant 0 : index
    %181 = vector.load %arg14[%c0_69, %c0_70, %c0_71] : memref<2x1x32xf32, #tpu.memory_space<vmem>>, vector<1x1x32xf32>
    %182 = vector.shape_cast %181 : vector<1x1x32xf32> to vector<1x32xf32>
    %c0_72 = arith.constant 0 : index
    %c0_73 = arith.constant 0 : index
    %c0_74 = arith.constant 0 : index
    %183 = vector.load %arg15[%c0_72, %c0_73, %c0_74] : memref<2x1x32xf32, #tpu.memory_space<vmem>>, vector<1x1x32xf32>
    %184 = vector.shape_cast %183 : vector<1x1x32xf32> to vector<1x32xf32>
    %c0_75 = arith.constant 0 : index
    %c0_76 = arith.constant 0 : index
    %c0_77 = arith.constant 0 : index
    %185 = vector.load %arg16[%c0_75, %c0_76, %c0_77] : memref<2x1x32xf32, #tpu.memory_space<vmem>>, vector<1x1x32xf32>
    %186 = vector.shape_cast %185 : vector<1x1x32xf32> to vector<1x32xf32>
    %187 = arith.truncf %174 : vector<8x32xf32> to vector<8x32xbf16>
    %188 = arith.truncf %176 : vector<32x64xf32> to vector<32x64xbf16>
    %cst_78 = arith.constant dense<0.000000e+00> : vector<8x64xf32>
    %189 = tpu.matmul %187, %188, %cst_78 {dimension_numbers = #tpu.dot_dimension_numbers<[1], [0], [0], [1], [0, 0, 1, 1], [], []>} : vector<8x32xbf16>, vector<32x64xbf16>, vector<8x64xf32> -> vector<8x64xf32>
    %190 = vector.broadcast %178 : vector<1x64xf32> to vector<8x64xf32>
    %191 = arith.addf %189, %190 : vector<8x64xf32>
    %cst_79 = arith.constant 5.000000e-01 : f32
    %192 = vector.broadcast %cst_79 : f32 to vector<8x64xf32>
    %193 = arith.mulf %192, %191 : vector<8x64xf32>
    %cst_80 = arith.constant 4.471500e-02 : f32
    %194 = vector.broadcast %cst_80 : f32 to vector<8x64xf32>
    %195 = arith.mulf %194, %191 : vector<8x64xf32>
    %196 = arith.mulf %195, %191 : vector<8x64xf32>
    %197 = arith.mulf %196, %191 : vector<8x64xf32>
    %198 = arith.addf %191, %197 : vector<8x64xf32>
    %cst_81 = arith.constant 0.797884583 : f32
    %199 = vector.broadcast %cst_81 : f32 to vector<8x64xf32>
    %200 = arith.mulf %199, %198 : vector<8x64xf32>
    %201 = math.tanh %200 : vector<8x64xf32>
    %cst_82 = arith.constant 1.000000e+00 : f32
    %202 = vector.broadcast %cst_82 : f32 to vector<8x64xf32>
    %203 = arith.addf %202, %201 : vector<8x64xf32>
    %204 = arith.mulf %193, %203 : vector<8x64xf32>
    %205 = arith.truncf %204 : vector<8x64xf32> to vector<8x64xbf16>
    %206 = arith.truncf %180 : vector<64x32xf32> to vector<64x32xbf16>
    %cst_83 = arith.constant dense<0.000000e+00> : vector<8x32xf32>
    %207 = tpu.matmul %205, %206, %cst_83 {dimension_numbers = #tpu.dot_dimension_numbers<[1], [0], [0], [1], [0, 0, 1, 1], [], []>} : vector<8x64xbf16>, vector<64x32xbf16>, vector<8x32xf32> -> vector<8x32xf32>
    %208 = vector.broadcast %182 : vector<1x32xf32> to vector<8x32xf32>
    %209 = arith.addf %207, %208 : vector<8x32xf32>
    %210 = arith.addf %209, %174 : vector<8x32xf32>
    %cst_84 = arith.constant dense<0.000000e+00> : vector<8xf32>
    %211 = vector.multi_reduction <add>, %210, %cst_84 [1] : vector<8x32xf32> to vector<8xf32>
    %212 = vector.shape_cast %211 : vector<8xf32> to vector<8x1xf32>
    %cst_85 = arith.constant 3.200000e+01 : f32
    %213 = vector.broadcast %cst_85 : f32 to vector<8x1xf32>
    %214 = arith.divf %212, %213 : vector<8x1xf32>
    %215 = vector.broadcast %214 : vector<8x1xf32> to vector<8x32xf32>
    %216 = arith.subf %210, %215 : vector<8x32xf32>
    %217 = arith.mulf %216, %216 : vector<8x32xf32>
    %cst_86 = arith.constant dense<0.000000e+00> : vector<8xf32>
    %218 = vector.multi_reduction <add>, %217, %cst_86 [1] : vector<8x32xf32> to vector<8xf32>
    %219 = vector.shape_cast %218 : vector<8xf32> to vector<8x1xf32>
    %cst_87 = arith.constant 3.200000e+01 : f32
    %220 = vector.broadcast %cst_87 : f32 to vector<8x1xf32>
    %221 = arith.divf %219, %220 : vector<8x1xf32>
    %cst_88 = arith.constant 9.99999996E-13 : f32
    %222 = vector.broadcast %cst_88 : f32 to vector<8x1xf32>
    %223 = arith.addf %221, %222 : vector<8x1xf32>
    %224 = math.rsqrt %223 : vector<8x1xf32>
    %225 = vector.broadcast %224 : vector<8x1xf32> to vector<8x32xf32>
    %226 = arith.mulf %216, %225 : vector<8x32xf32>
    %227 = vector.broadcast %184 : vector<1x32xf32> to vector<8x32xf32>
    %228 = arith.mulf %226, %227 : vector<8x32xf32>
    %229 = vector.broadcast %186 : vector<1x32xf32> to vector<8x32xf32>
    %230 = arith.addf %228, %229 : vector<8x32xf32>
    %c1 = arith.constant 1 : index
    %c0_89 = arith.constant 0 : index
    %c0_90 = arith.constant 0 : index
    %231 = vector.load %arg5[%c1, %c0_89, %c0_90] : memref<2x32x96xf32, #tpu.memory_space<vmem>>, vector<1x32x96xf32>
    %232 = vector.shape_cast %231 : vector<1x32x96xf32> to vector<32x96xf32>
    %c1_91 = arith.constant 1 : index
    %c0_92 = arith.constant 0 : index
    %c0_93 = arith.constant 0 : index
    %233 = vector.load %arg6[%c1_91, %c0_92, %c0_93] : memref<2x1x96xf32, #tpu.memory_space<vmem>>, vector<1x1x96xf32>
    %234 = vector.shape_cast %233 : vector<1x1x96xf32> to vector<1x96xf32>
    %c1_94 = arith.constant 1 : index
    %c0_95 = arith.constant 0 : index
    %c0_96 = arith.constant 0 : index
    %235 = vector.load %arg7[%c1_94, %c0_95, %c0_96] : memref<2x32x32xf32, #tpu.memory_space<vmem>>, vector<1x32x32xf32>
    %236 = vector.shape_cast %235 : vector<1x32x32xf32> to vector<32x32xf32>
    %c1_97 = arith.constant 1 : index
    %c0_98 = arith.constant 0 : index
    %c0_99 = arith.constant 0 : index
    %237 = vector.load %arg8[%c1_97, %c0_98, %c0_99] : memref<2x1x32xf32, #tpu.memory_space<vmem>>, vector<1x1x32xf32>
    %238 = vector.shape_cast %237 : vector<1x1x32xf32> to vector<1x32xf32>
    %c1_100 = arith.constant 1 : index
    %c0_101 = arith.constant 0 : index
    %c0_102 = arith.constant 0 : index
    %239 = vector.load %arg9[%c1_100, %c0_101, %c0_102] : memref<2x1x32xf32, #tpu.memory_space<vmem>>, vector<1x1x32xf32>
    %240 = vector.shape_cast %239 : vector<1x1x32xf32> to vector<1x32xf32>
    %c1_103 = arith.constant 1 : index
    %c0_104 = arith.constant 0 : index
    %c0_105 = arith.constant 0 : index
    %241 = vector.load %arg10[%c1_103, %c0_104, %c0_105] : memref<2x1x32xf32, #tpu.memory_space<vmem>>, vector<1x1x32xf32>
    %242 = vector.shape_cast %241 : vector<1x1x32xf32> to vector<1x32xf32>
    %243 = arith.truncf %230 : vector<8x32xf32> to vector<8x32xbf16>
    %244 = arith.truncf %232 : vector<32x96xf32> to vector<32x96xbf16>
    %cst_106 = arith.constant dense<0.000000e+00> : vector<8x96xf32>
    %245 = tpu.matmul %243, %244, %cst_106 {dimension_numbers = #tpu.dot_dimension_numbers<[1], [0], [0], [1], [0, 0, 1, 1], [], []>} : vector<8x32xbf16>, vector<32x96xbf16>, vector<8x96xf32> -> vector<8x96xf32>
    %246 = vector.broadcast %234 : vector<1x96xf32> to vector<8x96xf32>
    %247 = arith.addf %245, %246 : vector<8x96xf32>
    %248 = vector.extract_strided_slice %247 {offsets = [0, 0], sizes = [8, 32], strides = [1, 1]} : vector<8x96xf32> to vector<8x32xf32>
    %249 = vector.extract_strided_slice %247 {offsets = [0, 32], sizes = [8, 32], strides = [1, 1]} : vector<8x96xf32> to vector<8x32xf32>
    %250 = vector.extract_strided_slice %247 {offsets = [0, 64], sizes = [8, 32], strides = [1, 1]} : vector<8x96xf32> to vector<8x32xf32>
    %251 = vector.extract_strided_slice %248 {offsets = [0, 0], sizes = [8, 8], strides = [1, 1]} : vector<8x32xf32> to vector<8x8xf32>
    %252 = vector.extract_strided_slice %249 {offsets = [0, 0], sizes = [8, 8], strides = [1, 1]} : vector<8x32xf32> to vector<8x8xf32>
    %253 = arith.truncf %251 : vector<8x8xf32> to vector<8x8xbf16>
    %254 = arith.truncf %252 : vector<8x8xf32> to vector<8x8xbf16>
    %cst_107 = arith.constant dense<0.000000e+00> : vector<8x8xf32>
    %255 = tpu.matmul %253, %254, %cst_107 {dimension_numbers = #tpu.dot_dimension_numbers<[1], [1], [0], [0], [0, 0, 1, 0], [], []>} : vector<8x8xbf16>, vector<8x8xbf16>, vector<8x8xf32> -> vector<8x8xf32>
    %cst_108 = arith.constant 0.353553385 : f32
    %256 = vector.broadcast %cst_108 : f32 to vector<8x8xf32>
    %257 = arith.mulf %255, %256 : vector<8x8xf32>
    %258 = arith.addf %257, %1 : vector<8x8xf32>
    %cst_109 = arith.constant dense<0xFF800000> : vector<8xf32>
    %259 = vector.multi_reduction <maximumf>, %258, %cst_109 [1] : vector<8x8xf32> to vector<8xf32>
    %260 = vector.shape_cast %259 : vector<8xf32> to vector<8x1xf32>
    %261 = vector.broadcast %260 : vector<8x1xf32> to vector<8x8xf32>
    %262 = arith.subf %258, %261 : vector<8x8xf32>
    %263 = math.exp %262 : vector<8x8xf32>
    %cst_110 = arith.constant dense<0.000000e+00> : vector<8xf32>
    %264 = vector.multi_reduction <add>, %263, %cst_110 [1] : vector<8x8xf32> to vector<8xf32>
    %265 = vector.shape_cast %264 : vector<8xf32> to vector<8x1xf32>
    %266 = tpu.reciprocal %265 {approx = true} : vector<8x1xf32> -> vector<8x1xf32>
    %267 = vector.broadcast %266 : vector<8x1xf32> to vector<8x8xf32>
    %268 = arith.mulf %263, %267 : vector<8x8xf32>
    %269 = vector.extract_strided_slice %250 {offsets = [0, 0], sizes = [8, 8], strides = [1, 1]} : vector<8x32xf32> to vector<8x8xf32>
    %270 = arith.truncf %268 : vector<8x8xf32> to vector<8x8xbf16>
    %271 = arith.truncf %269 : vector<8x8xf32> to vector<8x8xbf16>
    %cst_111 = arith.constant dense<0.000000e+00> : vector<8x8xf32>
    %272 = tpu.matmul %270, %271, %cst_111 {dimension_numbers = #tpu.dot_dimension_numbers<[1], [0], [0], [1], [0, 0, 1, 1], [], []>} : vector<8x8xbf16>, vector<8x8xbf16>, vector<8x8xf32> -> vector<8x8xf32>
    %273 = vector.extract_strided_slice %236 {offsets = [0, 0], sizes = [8, 32], strides = [1, 1]} : vector<32x32xf32> to vector<8x32xf32>
    %274 = arith.truncf %272 : vector<8x8xf32> to vector<8x8xbf16>
    %275 = arith.truncf %273 : vector<8x32xf32> to vector<8x32xbf16>
    %cst_112 = arith.constant dense<0.000000e+00> : vector<8x32xf32>
    %276 = tpu.matmul %274, %275, %cst_112 {dimension_numbers = #tpu.dot_dimension_numbers<[1], [0], [0], [1], [0, 0, 1, 1], [], []>} : vector<8x8xbf16>, vector<8x32xbf16>, vector<8x32xf32> -> vector<8x32xf32>
    %277 = vector.extract_strided_slice %248 {offsets = [0, 8], sizes = [8, 8], strides = [1, 1]} : vector<8x32xf32> to vector<8x8xf32>
    %278 = vector.extract_strided_slice %249 {offsets = [0, 8], sizes = [8, 8], strides = [1, 1]} : vector<8x32xf32> to vector<8x8xf32>
    %279 = arith.truncf %277 : vector<8x8xf32> to vector<8x8xbf16>
    %280 = arith.truncf %278 : vector<8x8xf32> to vector<8x8xbf16>
    %cst_113 = arith.constant dense<0.000000e+00> : vector<8x8xf32>
    %281 = tpu.matmul %279, %280, %cst_113 {dimension_numbers = #tpu.dot_dimension_numbers<[1], [1], [0], [0], [0, 0, 1, 0], [], []>} : vector<8x8xbf16>, vector<8x8xbf16>, vector<8x8xf32> -> vector<8x8xf32>
    %cst_114 = arith.constant 0.353553385 : f32
    %282 = vector.broadcast %cst_114 : f32 to vector<8x8xf32>
    %283 = arith.mulf %281, %282 : vector<8x8xf32>
    %284 = arith.addf %283, %1 : vector<8x8xf32>
    %cst_115 = arith.constant dense<0xFF800000> : vector<8xf32>
    %285 = vector.multi_reduction <maximumf>, %284, %cst_115 [1] : vector<8x8xf32> to vector<8xf32>
    %286 = vector.shape_cast %285 : vector<8xf32> to vector<8x1xf32>
    %287 = vector.broadcast %286 : vector<8x1xf32> to vector<8x8xf32>
    %288 = arith.subf %284, %287 : vector<8x8xf32>
    %289 = math.exp %288 : vector<8x8xf32>
    %cst_116 = arith.constant dense<0.000000e+00> : vector<8xf32>
    %290 = vector.multi_reduction <add>, %289, %cst_116 [1] : vector<8x8xf32> to vector<8xf32>
    %291 = vector.shape_cast %290 : vector<8xf32> to vector<8x1xf32>
    %292 = tpu.reciprocal %291 {approx = true} : vector<8x1xf32> -> vector<8x1xf32>
    %293 = vector.broadcast %292 : vector<8x1xf32> to vector<8x8xf32>
    %294 = arith.mulf %289, %293 : vector<8x8xf32>
    %295 = vector.extract_strided_slice %250 {offsets = [0, 8], sizes = [8, 8], strides = [1, 1]} : vector<8x32xf32> to vector<8x8xf32>
    %296 = arith.truncf %294 : vector<8x8xf32> to vector<8x8xbf16>
    %297 = arith.truncf %295 : vector<8x8xf32> to vector<8x8xbf16>
    %cst_117 = arith.constant dense<0.000000e+00> : vector<8x8xf32>
    %298 = tpu.matmul %296, %297, %cst_117 {dimension_numbers = #tpu.dot_dimension_numbers<[1], [0], [0], [1], [0, 0, 1, 1], [], []>} : vector<8x8xbf16>, vector<8x8xbf16>, vector<8x8xf32> -> vector<8x8xf32>
    %299 = vector.extract_strided_slice %236 {offsets = [8, 0], sizes = [8, 32], strides = [1, 1]} : vector<32x32xf32> to vector<8x32xf32>
    %300 = arith.truncf %298 : vector<8x8xf32> to vector<8x8xbf16>
    %301 = arith.truncf %299 : vector<8x32xf32> to vector<8x32xbf16>
    %cst_118 = arith.constant dense<0.000000e+00> : vector<8x32xf32>
    %302 = tpu.matmul %300, %301, %cst_118 {dimension_numbers = #tpu.dot_dimension_numbers<[1], [0], [0], [1], [0, 0, 1, 1], [], []>} : vector<8x8xbf16>, vector<8x32xbf16>, vector<8x32xf32> -> vector<8x32xf32>
    %303 = arith.addf %276, %302 : vector<8x32xf32>
    %304 = vector.extract_strided_slice %248 {offsets = [0, 16], sizes = [8, 8], strides = [1, 1]} : vector<8x32xf32> to vector<8x8xf32>
    %305 = vector.extract_strided_slice %249 {offsets = [0, 16], sizes = [8, 8], strides = [1, 1]} : vector<8x32xf32> to vector<8x8xf32>
    %306 = arith.truncf %304 : vector<8x8xf32> to vector<8x8xbf16>
    %307 = arith.truncf %305 : vector<8x8xf32> to vector<8x8xbf16>
    %cst_119 = arith.constant dense<0.000000e+00> : vector<8x8xf32>
    %308 = tpu.matmul %306, %307, %cst_119 {dimension_numbers = #tpu.dot_dimension_numbers<[1], [1], [0], [0], [0, 0, 1, 0], [], []>} : vector<8x8xbf16>, vector<8x8xbf16>, vector<8x8xf32> -> vector<8x8xf32>
    %cst_120 = arith.constant 0.353553385 : f32
    %309 = vector.broadcast %cst_120 : f32 to vector<8x8xf32>
    %310 = arith.mulf %308, %309 : vector<8x8xf32>
    %311 = arith.addf %310, %1 : vector<8x8xf32>
    %cst_121 = arith.constant dense<0xFF800000> : vector<8xf32>
    %312 = vector.multi_reduction <maximumf>, %311, %cst_121 [1] : vector<8x8xf32> to vector<8xf32>
    %313 = vector.shape_cast %312 : vector<8xf32> to vector<8x1xf32>
    %314 = vector.broadcast %313 : vector<8x1xf32> to vector<8x8xf32>
    %315 = arith.subf %311, %314 : vector<8x8xf32>
    %316 = math.exp %315 : vector<8x8xf32>
    %cst_122 = arith.constant dense<0.000000e+00> : vector<8xf32>
    %317 = vector.multi_reduction <add>, %316, %cst_122 [1] : vector<8x8xf32> to vector<8xf32>
    %318 = vector.shape_cast %317 : vector<8xf32> to vector<8x1xf32>
    %319 = tpu.reciprocal %318 {approx = true} : vector<8x1xf32> -> vector<8x1xf32>
    %320 = vector.broadcast %319 : vector<8x1xf32> to vector<8x8xf32>
    %321 = arith.mulf %316, %320 : vector<8x8xf32>
    %322 = vector.extract_strided_slice %250 {offsets = [0, 16], sizes = [8, 8], strides = [1, 1]} : vector<8x32xf32> to vector<8x8xf32>
    %323 = arith.truncf %321 : vector<8x8xf32> to vector<8x8xbf16>
    %324 = arith.truncf %322 : vector<8x8xf32> to vector<8x8xbf16>
    %cst_123 = arith.constant dense<0.000000e+00> : vector<8x8xf32>
    %325 = tpu.matmul %323, %324, %cst_123 {dimension_numbers = #tpu.dot_dimension_numbers<[1], [0], [0], [1], [0, 0, 1, 1], [], []>} : vector<8x8xbf16>, vector<8x8xbf16>, vector<8x8xf32> -> vector<8x8xf32>
    %326 = vector.extract_strided_slice %236 {offsets = [16, 0], sizes = [8, 32], strides = [1, 1]} : vector<32x32xf32> to vector<8x32xf32>
    %327 = arith.truncf %325 : vector<8x8xf32> to vector<8x8xbf16>
    %328 = arith.truncf %326 : vector<8x32xf32> to vector<8x32xbf16>
    %cst_124 = arith.constant dense<0.000000e+00> : vector<8x32xf32>
    %329 = tpu.matmul %327, %328, %cst_124 {dimension_numbers = #tpu.dot_dimension_numbers<[1], [0], [0], [1], [0, 0, 1, 1], [], []>} : vector<8x8xbf16>, vector<8x32xbf16>, vector<8x32xf32> -> vector<8x32xf32>
    %330 = arith.addf %303, %329 : vector<8x32xf32>
    %331 = vector.extract_strided_slice %248 {offsets = [0, 24], sizes = [8, 8], strides = [1, 1]} : vector<8x32xf32> to vector<8x8xf32>
    %332 = vector.extract_strided_slice %249 {offsets = [0, 24], sizes = [8, 8], strides = [1, 1]} : vector<8x32xf32> to vector<8x8xf32>
    %333 = arith.truncf %331 : vector<8x8xf32> to vector<8x8xbf16>
    %334 = arith.truncf %332 : vector<8x8xf32> to vector<8x8xbf16>
    %cst_125 = arith.constant dense<0.000000e+00> : vector<8x8xf32>
    %335 = tpu.matmul %333, %334, %cst_125 {dimension_numbers = #tpu.dot_dimension_numbers<[1], [1], [0], [0], [0, 0, 1, 0], [], []>} : vector<8x8xbf16>, vector<8x8xbf16>, vector<8x8xf32> -> vector<8x8xf32>
    %cst_126 = arith.constant 0.353553385 : f32
    %336 = vector.broadcast %cst_126 : f32 to vector<8x8xf32>
    %337 = arith.mulf %335, %336 : vector<8x8xf32>
    %338 = arith.addf %337, %1 : vector<8x8xf32>
    %cst_127 = arith.constant dense<0xFF800000> : vector<8xf32>
    %339 = vector.multi_reduction <maximumf>, %338, %cst_127 [1] : vector<8x8xf32> to vector<8xf32>
    %340 = vector.shape_cast %339 : vector<8xf32> to vector<8x1xf32>
    %341 = vector.broadcast %340 : vector<8x1xf32> to vector<8x8xf32>
    %342 = arith.subf %338, %341 : vector<8x8xf32>
    %343 = math.exp %342 : vector<8x8xf32>
    %cst_128 = arith.constant dense<0.000000e+00> : vector<8xf32>
    %344 = vector.multi_reduction <add>, %343, %cst_128 [1] : vector<8x8xf32> to vector<8xf32>
    %345 = vector.shape_cast %344 : vector<8xf32> to vector<8x1xf32>
    %346 = tpu.reciprocal %345 {approx = true} : vector<8x1xf32> -> vector<8x1xf32>
    %347 = vector.broadcast %346 : vector<8x1xf32> to vector<8x8xf32>
    %348 = arith.mulf %343, %347 : vector<8x8xf32>
    %349 = vector.extract_strided_slice %250 {offsets = [0, 24], sizes = [8, 8], strides = [1, 1]} : vector<8x32xf32> to vector<8x8xf32>
    %350 = arith.truncf %348 : vector<8x8xf32> to vector<8x8xbf16>
    %351 = arith.truncf %349 : vector<8x8xf32> to vector<8x8xbf16>
    %cst_129 = arith.constant dense<0.000000e+00> : vector<8x8xf32>
    %352 = tpu.matmul %350, %351, %cst_129 {dimension_numbers = #tpu.dot_dimension_numbers<[1], [0], [0], [1], [0, 0, 1, 1], [], []>} : vector<8x8xbf16>, vector<8x8xbf16>, vector<8x8xf32> -> vector<8x8xf32>
    %353 = vector.extract_strided_slice %236 {offsets = [24, 0], sizes = [8, 32], strides = [1, 1]} : vector<32x32xf32> to vector<8x32xf32>
    %354 = arith.truncf %352 : vector<8x8xf32> to vector<8x8xbf16>
    %355 = arith.truncf %353 : vector<8x32xf32> to vector<8x32xbf16>
    %cst_130 = arith.constant dense<0.000000e+00> : vector<8x32xf32>
    %356 = tpu.matmul %354, %355, %cst_130 {dimension_numbers = #tpu.dot_dimension_numbers<[1], [0], [0], [1], [0, 0, 1, 1], [], []>} : vector<8x8xbf16>, vector<8x32xbf16>, vector<8x32xf32> -> vector<8x32xf32>
    %357 = arith.addf %330, %356 : vector<8x32xf32>
    %358 = vector.broadcast %238 : vector<1x32xf32> to vector<8x32xf32>
    %359 = arith.addf %357, %358 : vector<8x32xf32>
    %360 = arith.addf %359, %230 : vector<8x32xf32>
    %cst_131 = arith.constant dense<0.000000e+00> : vector<8xf32>
    %361 = vector.multi_reduction <add>, %360, %cst_131 [1] : vector<8x32xf32> to vector<8xf32>
    %362 = vector.shape_cast %361 : vector<8xf32> to vector<8x1xf32>
    %cst_132 = arith.constant 3.200000e+01 : f32
    %363 = vector.broadcast %cst_132 : f32 to vector<8x1xf32>
    %364 = arith.divf %362, %363 : vector<8x1xf32>
    %365 = vector.broadcast %364 : vector<8x1xf32> to vector<8x32xf32>
    %366 = arith.subf %360, %365 : vector<8x32xf32>
    %367 = arith.mulf %366, %366 : vector<8x32xf32>
    %cst_133 = arith.constant dense<0.000000e+00> : vector<8xf32>
    %368 = vector.multi_reduction <add>, %367, %cst_133 [1] : vector<8x32xf32> to vector<8xf32>
    %369 = vector.shape_cast %368 : vector<8xf32> to vector<8x1xf32>
    %cst_134 = arith.constant 3.200000e+01 : f32
    %370 = vector.broadcast %cst_134 : f32 to vector<8x1xf32>
    %371 = arith.divf %369, %370 : vector<8x1xf32>
    %cst_135 = arith.constant 9.99999996E-13 : f32
    %372 = vector.broadcast %cst_135 : f32 to vector<8x1xf32>
    %373 = arith.addf %371, %372 : vector<8x1xf32>
    %374 = math.rsqrt %373 : vector<8x1xf32>
    %375 = vector.broadcast %374 : vector<8x1xf32> to vector<8x32xf32>
    %376 = arith.mulf %366, %375 : vector<8x32xf32>
    %377 = vector.broadcast %240 : vector<1x32xf32> to vector<8x32xf32>
    %378 = arith.mulf %376, %377 : vector<8x32xf32>
    %379 = vector.broadcast %242 : vector<1x32xf32> to vector<8x32xf32>
    %380 = arith.addf %378, %379 : vector<8x32xf32>
    %c1_136 = arith.constant 1 : index
    %c0_137 = arith.constant 0 : index
    %c0_138 = arith.constant 0 : index
    %381 = vector.load %arg11[%c1_136, %c0_137, %c0_138] : memref<2x32x64xf32, #tpu.memory_space<vmem>>, vector<1x32x64xf32>
    %382 = vector.shape_cast %381 : vector<1x32x64xf32> to vector<32x64xf32>
    %c1_139 = arith.constant 1 : index
    %c0_140 = arith.constant 0 : index
    %c0_141 = arith.constant 0 : index
    %383 = vector.load %arg12[%c1_139, %c0_140, %c0_141] : memref<2x1x64xf32, #tpu.memory_space<vmem>>, vector<1x1x64xf32>
    %384 = vector.shape_cast %383 : vector<1x1x64xf32> to vector<1x64xf32>
    %c1_142 = arith.constant 1 : index
    %c0_143 = arith.constant 0 : index
    %c0_144 = arith.constant 0 : index
    %385 = vector.load %arg13[%c1_142, %c0_143, %c0_144] : memref<2x64x32xf32, #tpu.memory_space<vmem>>, vector<1x64x32xf32>
    %386 = vector.shape_cast %385 : vector<1x64x32xf32> to vector<64x32xf32>
    %c1_145 = arith.constant 1 : index
    %c0_146 = arith.constant 0 : index
    %c0_147 = arith.constant 0 : index
    %387 = vector.load %arg14[%c1_145, %c0_146, %c0_147] : memref<2x1x32xf32, #tpu.memory_space<vmem>>, vector<1x1x32xf32>
    %388 = vector.shape_cast %387 : vector<1x1x32xf32> to vector<1x32xf32>
    %c1_148 = arith.constant 1 : index
    %c0_149 = arith.constant 0 : index
    %c0_150 = arith.constant 0 : index
    %389 = vector.load %arg15[%c1_148, %c0_149, %c0_150] : memref<2x1x32xf32, #tpu.memory_space<vmem>>, vector<1x1x32xf32>
    %390 = vector.shape_cast %389 : vector<1x1x32xf32> to vector<1x32xf32>
    %c1_151 = arith.constant 1 : index
    %c0_152 = arith.constant 0 : index
    %c0_153 = arith.constant 0 : index
    %391 = vector.load %arg16[%c1_151, %c0_152, %c0_153] : memref<2x1x32xf32, #tpu.memory_space<vmem>>, vector<1x1x32xf32>
    %392 = vector.shape_cast %391 : vector<1x1x32xf32> to vector<1x32xf32>
    %393 = arith.truncf %380 : vector<8x32xf32> to vector<8x32xbf16>
    %394 = arith.truncf %382 : vector<32x64xf32> to vector<32x64xbf16>
    %cst_154 = arith.constant dense<0.000000e+00> : vector<8x64xf32>
    %395 = tpu.matmul %393, %394, %cst_154 {dimension_numbers = #tpu.dot_dimension_numbers<[1], [0], [0], [1], [0, 0, 1, 1], [], []>} : vector<8x32xbf16>, vector<32x64xbf16>, vector<8x64xf32> -> vector<8x64xf32>
    %396 = vector.broadcast %384 : vector<1x64xf32> to vector<8x64xf32>
    %397 = arith.addf %395, %396 : vector<8x64xf32>
    %cst_155 = arith.constant 5.000000e-01 : f32
    %398 = vector.broadcast %cst_155 : f32 to vector<8x64xf32>
    %399 = arith.mulf %398, %397 : vector<8x64xf32>
    %cst_156 = arith.constant 4.471500e-02 : f32
    %400 = vector.broadcast %cst_156 : f32 to vector<8x64xf32>
    %401 = arith.mulf %400, %397 : vector<8x64xf32>
    %402 = arith.mulf %401, %397 : vector<8x64xf32>
    %403 = arith.mulf %402, %397 : vector<8x64xf32>
    %404 = arith.addf %397, %403 : vector<8x64xf32>
    %cst_157 = arith.constant 0.797884583 : f32
    %405 = vector.broadcast %cst_157 : f32 to vector<8x64xf32>
    %406 = arith.mulf %405, %404 : vector<8x64xf32>
    %407 = math.tanh %406 : vector<8x64xf32>
    %cst_158 = arith.constant 1.000000e+00 : f32
    %408 = vector.broadcast %cst_158 : f32 to vector<8x64xf32>
    %409 = arith.addf %408, %407 : vector<8x64xf32>
    %410 = arith.mulf %399, %409 : vector<8x64xf32>
    %411 = arith.truncf %410 : vector<8x64xf32> to vector<8x64xbf16>
    %412 = arith.truncf %386 : vector<64x32xf32> to vector<64x32xbf16>
    %cst_159 = arith.constant dense<0.000000e+00> : vector<8x32xf32>
    %413 = tpu.matmul %411, %412, %cst_159 {dimension_numbers = #tpu.dot_dimension_numbers<[1], [0], [0], [1], [0, 0, 1, 1], [], []>} : vector<8x64xbf16>, vector<64x32xbf16>, vector<8x32xf32> -> vector<8x32xf32>
    %414 = vector.broadcast %388 : vector<1x32xf32> to vector<8x32xf32>
    %415 = arith.addf %413, %414 : vector<8x32xf32>
    %416 = arith.addf %415, %380 : vector<8x32xf32>
    %cst_160 = arith.constant dense<0.000000e+00> : vector<8xf32>
    %417 = vector.multi_reduction <add>, %416, %cst_160 [1] : vector<8x32xf32> to vector<8xf32>
    %418 = vector.shape_cast %417 : vector<8xf32> to vector<8x1xf32>
    %cst_161 = arith.constant 3.200000e+01 : f32
    %419 = vector.broadcast %cst_161 : f32 to vector<8x1xf32>
    %420 = arith.divf %418, %419 : vector<8x1xf32>
    %421 = vector.broadcast %420 : vector<8x1xf32> to vector<8x32xf32>
    %422 = arith.subf %416, %421 : vector<8x32xf32>
    %423 = arith.mulf %422, %422 : vector<8x32xf32>
    %cst_162 = arith.constant dense<0.000000e+00> : vector<8xf32>
    %424 = vector.multi_reduction <add>, %423, %cst_162 [1] : vector<8x32xf32> to vector<8xf32>
    %425 = vector.shape_cast %424 : vector<8xf32> to vector<8x1xf32>
    %cst_163 = arith.constant 3.200000e+01 : f32
    %426 = vector.broadcast %cst_163 : f32 to vector<8x1xf32>
    %427 = arith.divf %425, %426 : vector<8x1xf32>
    %cst_164 = arith.constant 9.99999996E-13 : f32
    %428 = vector.broadcast %cst_164 : f32 to vector<8x1xf32>
    %429 = arith.addf %427, %428 : vector<8x1xf32>
    %430 = math.rsqrt %429 : vector<8x1xf32>
    %431 = vector.broadcast %430 : vector<8x1xf32> to vector<8x32xf32>
    %432 = arith.mulf %422, %431 : vector<8x32xf32>
    %433 = vector.broadcast %390 : vector<1x32xf32> to vector<8x32xf32>
    %434 = arith.mulf %432, %433 : vector<8x32xf32>
    %435 = vector.broadcast %392 : vector<1x32xf32> to vector<8x32xf32>
    %436 = arith.addf %434, %435 : vector<8x32xf32>
    %c0_165 = arith.constant 0 : index
    %c0_166 = arith.constant 0 : index
    %437 = vector.load %arg17[%c0_165, %c0_166] : memref<8x32xf32, #tpu.memory_space<vmem>>, vector<8x32xf32>
    tpu.vector_store %arg17[%c0_165, %c0_166], %436 {strides = array<i32>} : memref<8x32xf32, #tpu.memory_space<vmem>>, vector<8x32xf32>,
    return
  }
  func.func @transform_0(%arg0: i32) -> (i32, i32) {
    %c0_i32 = arith.constant 0 : i32
    %c0_i32_0 = arith.constant 0 : i32
    return %arg0, %c0_i32 : i32, i32
  }
  func.func @transform_1(%arg0: i32) -> (i32, i32, i32) {
    %c0_i32 = arith.constant 0 : i32
    %c0_i32_0 = arith.constant 0 : i32
    %c0_i32_1 = arith.constant 0 : i32
    return %arg0, %c0_i32, %c0_i32_0 : i32, i32, i32
  }
  func.func @transform_2(%arg0: i32) -> (i32, i32) {
    %c0_i32 = arith.constant 0 : i32
    %c0_i32_0 = arith.constant 0 : i32
    %c0_i32_1 = arith.constant 0 : i32
    return %c0_i32, %c0_i32_0 : i32, i32
  }
  func.func @transform_3(%arg0: i32) -> (i32, i32) {
    %c0_i32 = arith.constant 0 : i32
    %c0_i32_0 = arith.constant 0 : i32
    %c0_i32_1 = arith.constant 0 : i32
    return %c0_i32, %c0_i32_0 : i32, i32
  }
  func.func @transform_4(%arg0: i32) -> (i32, i32, i32) {
    %c0_i32 = arith.constant 0 : i32
    %c0_i32_0 = arith.constant 0 : i32
    %c0_i32_1 = arith.constant 0 : i32
    %c0_i32_2 = arith.constant 0 : i32
    return %c0_i32, %c0_i32_0, %c0_i32_1 : i32, i32, i32
  }
  func.func @transform_5(%arg0: i32) -> (i32, i32, i32) {
    %c0_i32 = arith.constant 0 : i32
    %c0_i32_0 = arith.constant 0 : i32
    %c0_i32_1 = arith.constant 0 : i32
    %c0_i32_2 = arith.constant 0 : i32
    return %c0_i32, %c0_i32_0, %c0_i32_1 : i32, i32, i32
  }
  func.func @transform_6(%arg0: i32) -> (i32, i32, i32) {
    %c0_i32 = arith.constant 0 : i32
    %c0_i32_0 = arith.constant 0 : i32
    %c0_i32_1 = arith.constant 0 : i32
    %c0_i32_2 = arith.constant 0 : i32
    return %c0_i32, %c0_i32_0, %c0_i32_1 : i32, i32, i32
  }
  func.func @transform_7(%arg0: i32) -> (i32, i32, i32) {
    %c0_i32 = arith.constant 0 : i32
    %c0_i32_0 = arith.constant 0 : i32
    %c0_i32_1 = arith.constant 0 : i32
    %c0_i32_2 = arith.constant 0 : i32
    return %c0_i32, %c0_i32_0, %c0_i32_1 : i32, i32, i32
  }
  func.func @transform_8(%arg0: i32) -> (i32, i32, i32) {
    %c0_i32 = arith.constant 0 : i32
    %c0_i32_0 = arith.constant 0 : i32
    %c0_i32_1 = arith.constant 0 : i32
    %c0_i32_2 = arith.constant 0 : i32
    return %c0_i32, %c0_i32_0, %c0_i32_1 : i32, i32, i32
  }
  func.func @transform_9(%arg0: i32) -> (i32, i32, i32) {
    %c0_i32 = arith.constant 0 : i32
    %c0_i32_0 = arith.constant 0 : i32
    %c0_i32_1 = arith.constant 0 : i32
    %c0_i32_2 = arith.constant 0 : i32
    return %c0_i32, %c0_i32_0, %c0_i32_1 : i32, i32, i32
  }
  func.func @transform_10(%arg0: i32) -> (i32, i32, i32) {
    %c0_i32 = arith.constant 0 : i32
    %c0_i32_0 = arith.constant 0 : i32
    %c0_i32_1 = arith.constant 0 : i32
    %c0_i32_2 = arith.constant 0 : i32
    return %c0_i32, %c0_i32_0, %c0_i32_1 : i32, i32, i32
  }
  func.func @transform_11(%arg0: i32) -> (i32, i32, i32) {
    %c0_i32 = arith.constant 0 : i32
    %c0_i32_0 = arith.constant 0 : i32
    %c0_i32_1 = arith.constant 0 : i32
    %c0_i32_2 = arith.constant 0 : i32
    return %c0_i32, %c0_i32_0, %c0_i32_1 : i32, i32, i32
  }
  func.func @transform_12(%arg0: i32) -> (i32, i32, i32) {
    %c0_i32 = arith.constant 0 : i32
    %c0_i32_0 = arith.constant 0 : i32
    %c0_i32_1 = arith.constant 0 : i32
    %c0_i32_2 = arith.constant 0 : i32
    return %c0_i32, %c0_i32_0, %c0_i32_1 : i32, i32, i32
  }
  func.func @transform_13(%arg0: i32) -> (i32, i32, i32) {
    %c0_i32 = arith.constant 0 : i32
    %c0_i32_0 = arith.constant 0 : i32
    %c0_i32_1 = arith.constant 0 : i32
    %c0_i32_2 = arith.constant 0 : i32
    return %c0_i32, %c0_i32_0, %c0_i32_1 : i32, i32, i32
  }
  func.func @transform_14(%arg0: i32) -> (i32, i32, i32) {
    %c0_i32 = arith.constant 0 : i32
    %c0_i32_0 = arith.constant 0 : i32
    %c0_i32_1 = arith.constant 0 : i32
    %c0_i32_2 = arith.constant 0 : i32
    return %c0_i32, %c0_i32_0, %c0_i32_1 : i32, i32, i32
  }
  func.func @transform_15(%arg0: i32) -> (i32, i32, i32) {
    %c0_i32 = arith.constant 0 : i32
    %c0_i32_0 = arith.constant 0 : i32
    %c0_i32_1 = arith.constant 0 : i32
    %c0_i32_2 = arith.constant 0 : i32
    return %c0_i32, %c0_i32_0, %c0_i32_1 : i32, i32, i32
  }
  func.func @transform_16(%arg0: i32) -> (i32, i32) {
    %c0_i32 = arith.constant 0 : i32
    %c0_i32_0 = arith.constant 0 : i32
    return %arg0, %c0_i32 : i32, i32
  }
}

module attributes {stable_mosaic.version = 11 : i64} {
  func.func @_decoder_kernel(%arg0: i32, %arg1: memref<8x32xf32, #tpu.memory_space<vmem>>, %arg2: memref<1x8x8xf32, #tpu.memory_space<vmem>>, %arg3: memref<8x32xf32, #tpu.memory_space<vmem>>, %arg4: memref<1x32xf32, #tpu.memory_space<vmem>>, %arg5: memref<1x32xf32, #tpu.memory_space<vmem>>, %arg6: memref<2x32x96xf32, #tpu.memory_space<vmem>>, %arg7: memref<2x1x96xf32, #tpu.memory_space<vmem>>, %arg8: memref<2x32x32xf32, #tpu.memory_space<vmem>>, %arg9: memref<2x1x32xf32, #tpu.memory_space<vmem>>, %arg10: memref<2x1x32xf32, #tpu.memory_space<vmem>>, %arg11: memref<2x1x32xf32, #tpu.memory_space<vmem>>, %arg12: memref<2x32x32xf32, #tpu.memory_space<vmem>>, %arg13: memref<2x1x32xf32, #tpu.memory_space<vmem>>, %arg14: memref<2x32x64xf32, #tpu.memory_space<vmem>>, %arg15: memref<2x1x64xf32, #tpu.memory_space<vmem>>, %arg16: memref<2x32x32xf32, #tpu.memory_space<vmem>>, %arg17: memref<2x1x32xf32, #tpu.memory_space<vmem>>, %arg18: memref<2x1x32xf32, #tpu.memory_space<vmem>>, %arg19: memref<2x1x32xf32, #tpu.memory_space<vmem>>, %arg20: memref<2x32x64xf32, #tpu.memory_space<vmem>>, %arg21: memref<2x1x64xf32, #tpu.memory_space<vmem>>, %arg22: memref<2x64x32xf32, #tpu.memory_space<vmem>>, %arg23: memref<2x1x32xf32, #tpu.memory_space<vmem>>, %arg24: memref<2x1x32xf32, #tpu.memory_space<vmem>>, %arg25: memref<2x1x32xf32, #tpu.memory_space<vmem>>, %arg26: memref<32x64xf32, #tpu.memory_space<vmem>>, %arg27: memref<1x64xf32, #tpu.memory_space<vmem>>, %arg28: memref<8x64xf32, #tpu.memory_space<vmem>>) attributes {dimension_semantics = [#tpu.dimension_semantics<parallel>], iteration_bounds = array<i64: 2>, scalar_prefetch = 0 : i64, scratch_operands = 0 : i64, tpu.core_type = #tpu.core_type<tc>, window_params = [{transform_indices = @transform_0, window_bounds = array<i64: 8, 32>}, {transform_indices = @transform_1, window_bounds = array<i64: 1, 8, 8>}, {transform_indices = @transform_2, window_bounds = array<i64: 8, 32>}, {pipeline_mode = #tpu.pipeline_mode<synchronous>, transform_indices = @transform_3, window_bounds = array<i64: 1, 32>}, {pipeline_mode = #tpu.pipeline_mode<synchronous>, transform_indices = @transform_4, window_bounds = array<i64: 1, 32>}, {pipeline_mode = #tpu.pipeline_mode<synchronous>, transform_indices = @transform_5, window_bounds = array<i64: 2, 32, 96>}, {pipeline_mode = #tpu.pipeline_mode<synchronous>, transform_indices = @transform_6, window_bounds = array<i64: 2, 1, 96>}, {pipeline_mode = #tpu.pipeline_mode<synchronous>, transform_indices = @transform_7, window_bounds = array<i64: 2, 32, 32>}, {pipeline_mode = #tpu.pipeline_mode<synchronous>, transform_indices = @transform_8, window_bounds = array<i64: 2, 1, 32>}, {pipeline_mode = #tpu.pipeline_mode<synchronous>, transform_indices = @transform_9, window_bounds = array<i64: 2, 1, 32>}, {pipeline_mode = #tpu.pipeline_mode<synchronous>, transform_indices = @transform_10, window_bounds = array<i64: 2, 1, 32>}, {pipeline_mode = #tpu.pipeline_mode<synchronous>, transform_indices = @transform_11, window_bounds = array<i64: 2, 32, 32>}, {pipeline_mode = #tpu.pipeline_mode<synchronous>, transform_indices = @transform_12, window_bounds = array<i64: 2, 1, 32>}, {pipeline_mode = #tpu.pipeline_mode<synchronous>, transform_indices = @transform_13, window_bounds = array<i64: 2, 32, 64>}, {pipeline_mode = #tpu.pipeline_mode<synchronous>, transform_indices = @transform_14, window_bounds = array<i64: 2, 1, 64>}, {pipeline_mode = #tpu.pipeline_mode<synchronous>, transform_indices = @transform_15, window_bounds = array<i64: 2, 32, 32>}, {pipeline_mode = #tpu.pipeline_mode<synchronous>, transform_indices = @transform_16, window_bounds = array<i64: 2, 1, 32>}, {pipeline_mode = #tpu.pipeline_mode<synchronous>, transform_indices = @transform_17, window_bounds = array<i64: 2, 1, 32>}, {pipeline_mode = #tpu.pipeline_mode<synchronous>, transform_indices = @transform_18, window_bounds = array<i64: 2, 1, 32>}, {pipeline_mode = #tpu.pipeline_mode<synchronous>, transform_indices = @transform_19, window_bounds = array<i64: 2, 32, 64>}, {pipeline_mode = #tpu.pipeline_mode<synchronous>, transform_indices = @transform_20, window_bounds = array<i64: 2, 1, 64>}, {pipeline_mode = #tpu.pipeline_mode<synchronous>, transform_indices = @transform_21, window_bounds = array<i64: 2, 64, 32>}, {pipeline_mode = #tpu.pipeline_mode<synchronous>, transform_indices = @transform_22, window_bounds = array<i64: 2, 1, 32>}, {pipeline_mode = #tpu.pipeline_mode<synchronous>, transform_indices = @transform_23, window_bounds = array<i64: 2, 1, 32>}, {pipeline_mode = #tpu.pipeline_mode<synchronous>, transform_indices = @transform_24, window_bounds = array<i64: 2, 1, 32>}, {pipeline_mode = #tpu.pipeline_mode<synchronous>, transform_indices = @transform_25, window_bounds = array<i64: 32, 64>}, {pipeline_mode = #tpu.pipeline_mode<synchronous>, transform_indices = @transform_26, window_bounds = array<i64: 1, 64>}, {transform_indices = @transform_27, window_bounds = array<i64: 8, 64>}]} {
    %c0 = arith.constant 0 : index
    %c0_0 = arith.constant 0 : index
    %c0_1 = arith.constant 0 : index
    %0 = vector.load %arg2[%c0, %c0_0, %c0_1] : memref<1x8x8xf32, #tpu.memory_space<vmem>>, vector<1x8x8xf32>
    %1 = vector.shape_cast %0 : vector<1x8x8xf32> to vector<8x8xf32>
    %c0_2 = arith.constant 0 : index
    %c0_3 = arith.constant 0 : index
    %2 = vector.load %arg3[%c0_2, %c0_3] : memref<8x32xf32, #tpu.memory_space<vmem>>, vector<8x32xf32>
    %c0_4 = arith.constant 0 : index
    %c0_5 = arith.constant 0 : index
    %3 = vector.load %arg1[%c0_4, %c0_5] : memref<8x32xf32, #tpu.memory_space<vmem>>, vector<8x32xf32>
    %c0_6 = arith.constant 0 : index
    %c0_7 = arith.constant 0 : index
    %4 = vector.load %arg4[%c0_6, %c0_7] : memref<1x32xf32, #tpu.memory_space<vmem>>, vector<1x32xf32>
    %c0_8 = arith.constant 0 : index
    %c0_9 = arith.constant 0 : index
    %5 = vector.load %arg5[%c0_8, %c0_9] : memref<1x32xf32, #tpu.memory_space<vmem>>, vector<1x32xf32>
    %cst = arith.constant dense<0.000000e+00> : vector<8xf32>
    %6 = vector.multi_reduction <add>, %3, %cst [1] : vector<8x32xf32> to vector<8xf32>
    %7 = vector.shape_cast %6 : vector<8xf32> to vector<8x1xf32>
    %cst_10 = arith.constant 3.200000e+01 : f32
    %8 = vector.broadcast %cst_10 : f32 to vector<8x1xf32>
    %9 = arith.divf %7, %8 : vector<8x1xf32>
    %10 = vector.broadcast %9 : vector<8x1xf32> to vector<8x32xf32>
    %11 = arith.subf %3, %10 : vector<8x32xf32>
    %12 = arith.mulf %11, %11 : vector<8x32xf32>
    %cst_11 = arith.constant dense<0.000000e+00> : vector<8xf32>
    %13 = vector.multi_reduction <add>, %12, %cst_11 [1] : vector<8x32xf32> to vector<8xf32>
    %14 = vector.shape_cast %13 : vector<8xf32> to vector<8x1xf32>
    %cst_12 = arith.constant 3.200000e+01 : f32
    %15 = vector.broadcast %cst_12 : f32 to vector<8x1xf32>
    %16 = arith.divf %14, %15 : vector<8x1xf32>
    %cst_13 = arith.constant 9.99999996E-13 : f32
    %17 = vector.broadcast %cst_13 : f32 to vector<8x1xf32>
    %18 = arith.addf %16, %17 : vector<8x1xf32>
    %19 = math.rsqrt %18 : vector<8x1xf32>
    %20 = vector.broadcast %19 : vector<8x1xf32> to vector<8x32xf32>
    %21 = arith.mulf %11, %20 : vector<8x32xf32>
    %22 = vector.broadcast %4 : vector<1x32xf32> to vector<8x32xf32>
    %23 = arith.mulf %21, %22 : vector<8x32xf32>
    %24 = vector.broadcast %5 : vector<1x32xf32> to vector<8x32xf32>
    %25 = arith.addf %23, %24 : vector<8x32xf32>
    %c0_14 = arith.constant 0 : index
    %c0_15 = arith.constant 0 : index
    %c0_16 = arith.constant 0 : index
    %26 = vector.load %arg6[%c0_14, %c0_15, %c0_16] : memref<2x32x96xf32, #tpu.memory_space<vmem>>, vector<1x32x96xf32>
    %27 = vector.shape_cast %26 : vector<1x32x96xf32> to vector<32x96xf32>
    %c0_17 = arith.constant 0 : index
    %c0_18 = arith.constant 0 : index
    %c0_19 = arith.constant 0 : index
    %28 = vector.load %arg7[%c0_17, %c0_18, %c0_19] : memref<2x1x96xf32, #tpu.memory_space<vmem>>, vector<1x1x96xf32>
    %29 = vector.shape_cast %28 : vector<1x1x96xf32> to vector<1x96xf32>
    %c0_20 = arith.constant 0 : index
    %c0_21 = arith.constant 0 : index
    %c0_22 = arith.constant 0 : index
    %30 = vector.load %arg8[%c0_20, %c0_21, %c0_22] : memref<2x32x32xf32, #tpu.memory_space<vmem>>, vector<1x32x32xf32>
    %31 = vector.shape_cast %30 : vector<1x32x32xf32> to vector<32x32xf32>
    %c0_23 = arith.constant 0 : index
    %c0_24 = arith.constant 0 : index
    %c0_25 = arith.constant 0 : index
    %32 = vector.load %arg9[%c0_23, %c0_24, %c0_25] : memref<2x1x32xf32, #tpu.memory_space<vmem>>, vector<1x1x32xf32>
    %33 = vector.shape_cast %32 : vector<1x1x32xf32> to vector<1x32xf32>
    %c0_26 = arith.constant 0 : index
    %c0_27 = arith.constant 0 : index
    %c0_28 = arith.constant 0 : index
    %34 = vector.load %arg10[%c0_26, %c0_27, %c0_28] : memref<2x1x32xf32, #tpu.memory_space<vmem>>, vector<1x1x32xf32>
    %35 = vector.shape_cast %34 : vector<1x1x32xf32> to vector<1x32xf32>
    %c0_29 = arith.constant 0 : index
    %c0_30 = arith.constant 0 : index
    %c0_31 = arith.constant 0 : index
    %36 = vector.load %arg11[%c0_29, %c0_30, %c0_31] : memref<2x1x32xf32, #tpu.memory_space<vmem>>, vector<1x1x32xf32>
    %37 = vector.shape_cast %36 : vector<1x1x32xf32> to vector<1x32xf32>
    %38 = arith.truncf %25 : vector<8x32xf32> to vector<8x32xbf16>
    %39 = arith.truncf %27 : vector<32x96xf32> to vector<32x96xbf16>
    %cst_32 = arith.constant dense<0.000000e+00> : vector<8x96xf32>
    %40 = tpu.matmul %38, %39, %cst_32 {dimension_numbers = #tpu.dot_dimension_numbers<[1], [0], [0], [1], [0, 0, 1, 1], [], []>} : vector<8x32xbf16>, vector<32x96xbf16>, vector<8x96xf32> -> vector<8x96xf32>
    %41 = vector.broadcast %29 : vector<1x96xf32> to vector<8x96xf32>
    %42 = arith.addf %40, %41 : vector<8x96xf32>
    %43 = vector.extract_strided_slice %42 {offsets = [0, 0], sizes = [8, 32], strides = [1, 1]} : vector<8x96xf32> to vector<8x32xf32>
    %44 = vector.extract_strided_slice %42 {offsets = [0, 32], sizes = [8, 32], strides = [1, 1]} : vector<8x96xf32> to vector<8x32xf32>
    %45 = vector.extract_strided_slice %42 {offsets = [0, 64], sizes = [8, 32], strides = [1, 1]} : vector<8x96xf32> to vector<8x32xf32>
    %46 = vector.extract_strided_slice %43 {offsets = [0, 0], sizes = [8, 8], strides = [1, 1]} : vector<8x32xf32> to vector<8x8xf32>
    %47 = vector.extract_strided_slice %44 {offsets = [0, 0], sizes = [8, 8], strides = [1, 1]} : vector<8x32xf32> to vector<8x8xf32>
    %48 = arith.truncf %46 : vector<8x8xf32> to vector<8x8xbf16>
    %49 = arith.truncf %47 : vector<8x8xf32> to vector<8x8xbf16>
    %cst_33 = arith.constant dense<0.000000e+00> : vector<8x8xf32>
    %50 = tpu.matmul %48, %49, %cst_33 {dimension_numbers = #tpu.dot_dimension_numbers<[1], [1], [0], [0], [0, 0, 1, 0], [], []>} : vector<8x8xbf16>, vector<8x8xbf16>, vector<8x8xf32> -> vector<8x8xf32>
    %cst_34 = arith.constant 0.353553385 : f32
    %51 = vector.broadcast %cst_34 : f32 to vector<8x8xf32>
    %52 = arith.mulf %50, %51 : vector<8x8xf32>
    %53 = arith.addf %52, %1 : vector<8x8xf32>
    %cst_35 = arith.constant dense<0xFF800000> : vector<8xf32>
    %54 = vector.multi_reduction <maximumf>, %53, %cst_35 [1] : vector<8x8xf32> to vector<8xf32>
    %55 = vector.shape_cast %54 : vector<8xf32> to vector<8x1xf32>
    %56 = vector.broadcast %55 : vector<8x1xf32> to vector<8x8xf32>
    %57 = arith.subf %53, %56 : vector<8x8xf32>
    %58 = math.exp %57 : vector<8x8xf32>
    %cst_36 = arith.constant dense<0.000000e+00> : vector<8xf32>
    %59 = vector.multi_reduction <add>, %58, %cst_36 [1] : vector<8x8xf32> to vector<8xf32>
    %60 = vector.shape_cast %59 : vector<8xf32> to vector<8x1xf32>
    %61 = tpu.reciprocal %60 {approx = true} : vector<8x1xf32> -> vector<8x1xf32>
    %62 = vector.broadcast %61 : vector<8x1xf32> to vector<8x8xf32>
    %63 = arith.mulf %58, %62 : vector<8x8xf32>
    %64 = vector.extract_strided_slice %45 {offsets = [0, 0], sizes = [8, 8], strides = [1, 1]} : vector<8x32xf32> to vector<8x8xf32>
    %65 = arith.truncf %63 : vector<8x8xf32> to vector<8x8xbf16>
    %66 = arith.truncf %64 : vector<8x8xf32> to vector<8x8xbf16>
    %cst_37 = arith.constant dense<0.000000e+00> : vector<8x8xf32>
    %67 = tpu.matmul %65, %66, %cst_37 {dimension_numbers = #tpu.dot_dimension_numbers<[1], [0], [0], [1], [0, 0, 1, 1], [], []>} : vector<8x8xbf16>, vector<8x8xbf16>, vector<8x8xf32> -> vector<8x8xf32>
    %68 = vector.extract_strided_slice %31 {offsets = [0, 0], sizes = [8, 32], strides = [1, 1]} : vector<32x32xf32> to vector<8x32xf32>
    %69 = arith.truncf %67 : vector<8x8xf32> to vector<8x8xbf16>
    %70 = arith.truncf %68 : vector<8x32xf32> to vector<8x32xbf16>
    %cst_38 = arith.constant dense<0.000000e+00> : vector<8x32xf32>
    %71 = tpu.matmul %69, %70, %cst_38 {dimension_numbers = #tpu.dot_dimension_numbers<[1], [0], [0], [1], [0, 0, 1, 1], [], []>} : vector<8x8xbf16>, vector<8x32xbf16>, vector<8x32xf32> -> vector<8x32xf32>
    %72 = vector.extract_strided_slice %43 {offsets = [0, 8], sizes = [8, 8], strides = [1, 1]} : vector<8x32xf32> to vector<8x8xf32>
    %73 = vector.extract_strided_slice %44 {offsets = [0, 8], sizes = [8, 8], strides = [1, 1]} : vector<8x32xf32> to vector<8x8xf32>
    %74 = arith.truncf %72 : vector<8x8xf32> to vector<8x8xbf16>
    %75 = arith.truncf %73 : vector<8x8xf32> to vector<8x8xbf16>
    %cst_39 = arith.constant dense<0.000000e+00> : vector<8x8xf32>
    %76 = tpu.matmul %74, %75, %cst_39 {dimension_numbers = #tpu.dot_dimension_numbers<[1], [1], [0], [0], [0, 0, 1, 0], [], []>} : vector<8x8xbf16>, vector<8x8xbf16>, vector<8x8xf32> -> vector<8x8xf32>
    %cst_40 = arith.constant 0.353553385 : f32
    %77 = vector.broadcast %cst_40 : f32 to vector<8x8xf32>
    %78 = arith.mulf %76, %77 : vector<8x8xf32>
    %79 = arith.addf %78, %1 : vector<8x8xf32>
    %cst_41 = arith.constant dense<0xFF800000> : vector<8xf32>
    %80 = vector.multi_reduction <maximumf>, %79, %cst_41 [1] : vector<8x8xf32> to vector<8xf32>
    %81 = vector.shape_cast %80 : vector<8xf32> to vector<8x1xf32>
    %82 = vector.broadcast %81 : vector<8x1xf32> to vector<8x8xf32>
    %83 = arith.subf %79, %82 : vector<8x8xf32>
    %84 = math.exp %83 : vector<8x8xf32>
    %cst_42 = arith.constant dense<0.000000e+00> : vector<8xf32>
    %85 = vector.multi_reduction <add>, %84, %cst_42 [1] : vector<8x8xf32> to vector<8xf32>
    %86 = vector.shape_cast %85 : vector<8xf32> to vector<8x1xf32>
    %87 = tpu.reciprocal %86 {approx = true} : vector<8x1xf32> -> vector<8x1xf32>
    %88 = vector.broadcast %87 : vector<8x1xf32> to vector<8x8xf32>
    %89 = arith.mulf %84, %88 : vector<8x8xf32>
    %90 = vector.extract_strided_slice %45 {offsets = [0, 8], sizes = [8, 8], strides = [1, 1]} : vector<8x32xf32> to vector<8x8xf32>
    %91 = arith.truncf %89 : vector<8x8xf32> to vector<8x8xbf16>
    %92 = arith.truncf %90 : vector<8x8xf32> to vector<8x8xbf16>
    %cst_43 = arith.constant dense<0.000000e+00> : vector<8x8xf32>
    %93 = tpu.matmul %91, %92, %cst_43 {dimension_numbers = #tpu.dot_dimension_numbers<[1], [0], [0], [1], [0, 0, 1, 1], [], []>} : vector<8x8xbf16>, vector<8x8xbf16>, vector<8x8xf32> -> vector<8x8xf32>
    %94 = vector.extract_strided_slice %31 {offsets = [8, 0], sizes = [8, 32], strides = [1, 1]} : vector<32x32xf32> to vector<8x32xf32>
    %95 = arith.truncf %93 : vector<8x8xf32> to vector<8x8xbf16>
    %96 = arith.truncf %94 : vector<8x32xf32> to vector<8x32xbf16>
    %cst_44 = arith.constant dense<0.000000e+00> : vector<8x32xf32>
    %97 = tpu.matmul %95, %96, %cst_44 {dimension_numbers = #tpu.dot_dimension_numbers<[1], [0], [0], [1], [0, 0, 1, 1], [], []>} : vector<8x8xbf16>, vector<8x32xbf16>, vector<8x32xf32> -> vector<8x32xf32>
    %98 = arith.addf %71, %97 : vector<8x32xf32>
    %99 = vector.extract_strided_slice %43 {offsets = [0, 16], sizes = [8, 8], strides = [1, 1]} : vector<8x32xf32> to vector<8x8xf32>
    %100 = vector.extract_strided_slice %44 {offsets = [0, 16], sizes = [8, 8], strides = [1, 1]} : vector<8x32xf32> to vector<8x8xf32>
    %101 = arith.truncf %99 : vector<8x8xf32> to vector<8x8xbf16>
    %102 = arith.truncf %100 : vector<8x8xf32> to vector<8x8xbf16>
    %cst_45 = arith.constant dense<0.000000e+00> : vector<8x8xf32>
    %103 = tpu.matmul %101, %102, %cst_45 {dimension_numbers = #tpu.dot_dimension_numbers<[1], [1], [0], [0], [0, 0, 1, 0], [], []>} : vector<8x8xbf16>, vector<8x8xbf16>, vector<8x8xf32> -> vector<8x8xf32>
    %cst_46 = arith.constant 0.353553385 : f32
    %104 = vector.broadcast %cst_46 : f32 to vector<8x8xf32>
    %105 = arith.mulf %103, %104 : vector<8x8xf32>
    %106 = arith.addf %105, %1 : vector<8x8xf32>
    %cst_47 = arith.constant dense<0xFF800000> : vector<8xf32>
    %107 = vector.multi_reduction <maximumf>, %106, %cst_47 [1] : vector<8x8xf32> to vector<8xf32>
    %108 = vector.shape_cast %107 : vector<8xf32> to vector<8x1xf32>
    %109 = vector.broadcast %108 : vector<8x1xf32> to vector<8x8xf32>
    %110 = arith.subf %106, %109 : vector<8x8xf32>
    %111 = math.exp %110 : vector<8x8xf32>
    %cst_48 = arith.constant dense<0.000000e+00> : vector<8xf32>
    %112 = vector.multi_reduction <add>, %111, %cst_48 [1] : vector<8x8xf32> to vector<8xf32>
    %113 = vector.shape_cast %112 : vector<8xf32> to vector<8x1xf32>
    %114 = tpu.reciprocal %113 {approx = true} : vector<8x1xf32> -> vector<8x1xf32>
    %115 = vector.broadcast %114 : vector<8x1xf32> to vector<8x8xf32>
    %116 = arith.mulf %111, %115 : vector<8x8xf32>
    %117 = vector.extract_strided_slice %45 {offsets = [0, 16], sizes = [8, 8], strides = [1, 1]} : vector<8x32xf32> to vector<8x8xf32>
    %118 = arith.truncf %116 : vector<8x8xf32> to vector<8x8xbf16>
    %119 = arith.truncf %117 : vector<8x8xf32> to vector<8x8xbf16>
    %cst_49 = arith.constant dense<0.000000e+00> : vector<8x8xf32>
    %120 = tpu.matmul %118, %119, %cst_49 {dimension_numbers = #tpu.dot_dimension_numbers<[1], [0], [0], [1], [0, 0, 1, 1], [], []>} : vector<8x8xbf16>, vector<8x8xbf16>, vector<8x8xf32> -> vector<8x8xf32>
    %121 = vector.extract_strided_slice %31 {offsets = [16, 0], sizes = [8, 32], strides = [1, 1]} : vector<32x32xf32> to vector<8x32xf32>
    %122 = arith.truncf %120 : vector<8x8xf32> to vector<8x8xbf16>
    %123 = arith.truncf %121 : vector<8x32xf32> to vector<8x32xbf16>
    %cst_50 = arith.constant dense<0.000000e+00> : vector<8x32xf32>
    %124 = tpu.matmul %122, %123, %cst_50 {dimension_numbers = #tpu.dot_dimension_numbers<[1], [0], [0], [1], [0, 0, 1, 1], [], []>} : vector<8x8xbf16>, vector<8x32xbf16>, vector<8x32xf32> -> vector<8x32xf32>
    %125 = arith.addf %98, %124 : vector<8x32xf32>
    %126 = vector.extract_strided_slice %43 {offsets = [0, 24], sizes = [8, 8], strides = [1, 1]} : vector<8x32xf32> to vector<8x8xf32>
    %127 = vector.extract_strided_slice %44 {offsets = [0, 24], sizes = [8, 8], strides = [1, 1]} : vector<8x32xf32> to vector<8x8xf32>
    %128 = arith.truncf %126 : vector<8x8xf32> to vector<8x8xbf16>
    %129 = arith.truncf %127 : vector<8x8xf32> to vector<8x8xbf16>
    %cst_51 = arith.constant dense<0.000000e+00> : vector<8x8xf32>
    %130 = tpu.matmul %128, %129, %cst_51 {dimension_numbers = #tpu.dot_dimension_numbers<[1], [1], [0], [0], [0, 0, 1, 0], [], []>} : vector<8x8xbf16>, vector<8x8xbf16>, vector<8x8xf32> -> vector<8x8xf32>
    %cst_52 = arith.constant 0.353553385 : f32
    %131 = vector.broadcast %cst_52 : f32 to vector<8x8xf32>
    %132 = arith.mulf %130, %131 : vector<8x8xf32>
    %133 = arith.addf %132, %1 : vector<8x8xf32>
    %cst_53 = arith.constant dense<0xFF800000> : vector<8xf32>
    %134 = vector.multi_reduction <maximumf>, %133, %cst_53 [1] : vector<8x8xf32> to vector<8xf32>
    %135 = vector.shape_cast %134 : vector<8xf32> to vector<8x1xf32>
    %136 = vector.broadcast %135 : vector<8x1xf32> to vector<8x8xf32>
    %137 = arith.subf %133, %136 : vector<8x8xf32>
    %138 = math.exp %137 : vector<8x8xf32>
    %cst_54 = arith.constant dense<0.000000e+00> : vector<8xf32>
    %139 = vector.multi_reduction <add>, %138, %cst_54 [1] : vector<8x8xf32> to vector<8xf32>
    %140 = vector.shape_cast %139 : vector<8xf32> to vector<8x1xf32>
    %141 = tpu.reciprocal %140 {approx = true} : vector<8x1xf32> -> vector<8x1xf32>
    %142 = vector.broadcast %141 : vector<8x1xf32> to vector<8x8xf32>
    %143 = arith.mulf %138, %142 : vector<8x8xf32>
    %144 = vector.extract_strided_slice %45 {offsets = [0, 24], sizes = [8, 8], strides = [1, 1]} : vector<8x32xf32> to vector<8x8xf32>
    %145 = arith.truncf %143 : vector<8x8xf32> to vector<8x8xbf16>
    %146 = arith.truncf %144 : vector<8x8xf32> to vector<8x8xbf16>
    %cst_55 = arith.constant dense<0.000000e+00> : vector<8x8xf32>
    %147 = tpu.matmul %145, %146, %cst_55 {dimension_numbers = #tpu.dot_dimension_numbers<[1], [0], [0], [1], [0, 0, 1, 1], [], []>} : vector<8x8xbf16>, vector<8x8xbf16>, vector<8x8xf32> -> vector<8x8xf32>
    %148 = vector.extract_strided_slice %31 {offsets = [24, 0], sizes = [8, 32], strides = [1, 1]} : vector<32x32xf32> to vector<8x32xf32>
    %149 = arith.truncf %147 : vector<8x8xf32> to vector<8x8xbf16>
    %150 = arith.truncf %148 : vector<8x32xf32> to vector<8x32xbf16>
    %cst_56 = arith.constant dense<0.000000e+00> : vector<8x32xf32>
    %151 = tpu.matmul %149, %150, %cst_56 {dimension_numbers = #tpu.dot_dimension_numbers<[1], [0], [0], [1], [0, 0, 1, 1], [], []>} : vector<8x8xbf16>, vector<8x32xbf16>, vector<8x32xf32> -> vector<8x32xf32>
    %152 = arith.addf %125, %151 : vector<8x32xf32>
    %153 = vector.broadcast %33 : vector<1x32xf32> to vector<8x32xf32>
    %154 = arith.addf %152, %153 : vector<8x32xf32>
    %155 = arith.addf %154, %25 : vector<8x32xf32>
    %cst_57 = arith.constant dense<0.000000e+00> : vector<8xf32>
    %156 = vector.multi_reduction <add>, %155, %cst_57 [1] : vector<8x32xf32> to vector<8xf32>
    %157 = vector.shape_cast %156 : vector<8xf32> to vector<8x1xf32>
    %cst_58 = arith.constant 3.200000e+01 : f32
    %158 = vector.broadcast %cst_58 : f32 to vector<8x1xf32>
    %159 = arith.divf %157, %158 : vector<8x1xf32>
    %160 = vector.broadcast %159 : vector<8x1xf32> to vector<8x32xf32>
    %161 = arith.subf %155, %160 : vector<8x32xf32>
    %162 = arith.mulf %161, %161 : vector<8x32xf32>
    %cst_59 = arith.constant dense<0.000000e+00> : vector<8xf32>
    %163 = vector.multi_reduction <add>, %162, %cst_59 [1] : vector<8x32xf32> to vector<8xf32>
    %164 = vector.shape_cast %163 : vector<8xf32> to vector<8x1xf32>
    %cst_60 = arith.constant 3.200000e+01 : f32
    %165 = vector.broadcast %cst_60 : f32 to vector<8x1xf32>
    %166 = arith.divf %164, %165 : vector<8x1xf32>
    %cst_61 = arith.constant 9.99999996E-13 : f32
    %167 = vector.broadcast %cst_61 : f32 to vector<8x1xf32>
    %168 = arith.addf %166, %167 : vector<8x1xf32>
    %169 = math.rsqrt %168 : vector<8x1xf32>
    %170 = vector.broadcast %169 : vector<8x1xf32> to vector<8x32xf32>
    %171 = arith.mulf %161, %170 : vector<8x32xf32>
    %172 = vector.broadcast %35 : vector<1x32xf32> to vector<8x32xf32>
    %173 = arith.mulf %171, %172 : vector<8x32xf32>
    %174 = vector.broadcast %37 : vector<1x32xf32> to vector<8x32xf32>
    %175 = arith.addf %173, %174 : vector<8x32xf32>
    %c0_62 = arith.constant 0 : index
    %c0_63 = arith.constant 0 : index
    %c0_64 = arith.constant 0 : index
    %176 = vector.load %arg12[%c0_62, %c0_63, %c0_64] : memref<2x32x32xf32, #tpu.memory_space<vmem>>, vector<1x32x32xf32>
    %177 = vector.shape_cast %176 : vector<1x32x32xf32> to vector<32x32xf32>
    %178 = arith.truncf %175 : vector<8x32xf32> to vector<8x32xbf16>
    %179 = arith.truncf %177 : vector<32x32xf32> to vector<32x32xbf16>
    %cst_65 = arith.constant dense<0.000000e+00> : vector<8x32xf32>
    %180 = tpu.matmul %178, %179, %cst_65 {dimension_numbers = #tpu.dot_dimension_numbers<[1], [0], [0], [1], [0, 0, 1, 1], [], []>} : vector<8x32xbf16>, vector<32x32xbf16>, vector<8x32xf32> -> vector<8x32xf32>
    %c0_66 = arith.constant 0 : index
    %c0_67 = arith.constant 0 : index
    %c0_68 = arith.constant 0 : index
    %181 = vector.load %arg13[%c0_66, %c0_67, %c0_68] : memref<2x1x32xf32, #tpu.memory_space<vmem>>, vector<1x1x32xf32>
    %182 = vector.shape_cast %181 : vector<1x1x32xf32> to vector<1x32xf32>
    %183 = vector.broadcast %182 : vector<1x32xf32> to vector<8x32xf32>
    %184 = arith.addf %180, %183 : vector<8x32xf32>
    %c0_69 = arith.constant 0 : index
    %c0_70 = arith.constant 0 : index
    %c0_71 = arith.constant 0 : index
    %185 = vector.load %arg14[%c0_69, %c0_70, %c0_71] : memref<2x32x64xf32, #tpu.memory_space<vmem>>, vector<1x32x64xf32>
    %186 = vector.shape_cast %185 : vector<1x32x64xf32> to vector<32x64xf32>
    %187 = arith.truncf %2 : vector<8x32xf32> to vector<8x32xbf16>
    %188 = arith.truncf %186 : vector<32x64xf32> to vector<32x64xbf16>
    %cst_72 = arith.constant dense<0.000000e+00> : vector<8x64xf32>
    %189 = tpu.matmul %187, %188, %cst_72 {dimension_numbers = #tpu.dot_dimension_numbers<[1], [0], [0], [1], [0, 0, 1, 1], [], []>} : vector<8x32xbf16>, vector<32x64xbf16>, vector<8x64xf32> -> vector<8x64xf32>
    %c0_73 = arith.constant 0 : index
    %c0_74 = arith.constant 0 : index
    %c0_75 = arith.constant 0 : index
    %190 = vector.load %arg15[%c0_73, %c0_74, %c0_75] : memref<2x1x64xf32, #tpu.memory_space<vmem>>, vector<1x1x64xf32>
    %191 = vector.shape_cast %190 : vector<1x1x64xf32> to vector<1x64xf32>
    %192 = vector.broadcast %191 : vector<1x64xf32> to vector<8x64xf32>
    %193 = arith.addf %189, %192 : vector<8x64xf32>
    %194 = vector.extract_strided_slice %193 {offsets = [0, 0], sizes = [8, 32], strides = [1, 1]} : vector<8x64xf32> to vector<8x32xf32>
    %195 = vector.extract_strided_slice %193 {offsets = [0, 32], sizes = [8, 32], strides = [1, 1]} : vector<8x64xf32> to vector<8x32xf32>
    %c0_76 = arith.constant 0 : index
    %c0_77 = arith.constant 0 : index
    %c0_78 = arith.constant 0 : index
    %196 = vector.load %arg16[%c0_76, %c0_77, %c0_78] : memref<2x32x32xf32, #tpu.memory_space<vmem>>, vector<1x32x32xf32>
    %197 = vector.shape_cast %196 : vector<1x32x32xf32> to vector<32x32xf32>
    %c0_79 = arith.constant 0 : index
    %c0_80 = arith.constant 0 : index
    %c0_81 = arith.constant 0 : index
    %198 = vector.load %arg17[%c0_79, %c0_80, %c0_81] : memref<2x1x32xf32, #tpu.memory_space<vmem>>, vector<1x1x32xf32>
    %199 = vector.shape_cast %198 : vector<1x1x32xf32> to vector<1x32xf32>
    %200 = vector.extract_strided_slice %184 {offsets = [0, 0], sizes = [8, 8], strides = [1, 1]} : vector<8x32xf32> to vector<8x8xf32>
    %201 = vector.extract_strided_slice %194 {offsets = [0, 0], sizes = [8, 8], strides = [1, 1]} : vector<8x32xf32> to vector<8x8xf32>
    %202 = arith.truncf %200 : vector<8x8xf32> to vector<8x8xbf16>
    %203 = arith.truncf %201 : vector<8x8xf32> to vector<8x8xbf16>
    %cst_82 = arith.constant dense<0.000000e+00> : vector<8x8xf32>
    %204 = tpu.matmul %202, %203, %cst_82 {dimension_numbers = #tpu.dot_dimension_numbers<[1], [1], [0], [0], [0, 0, 1, 0], [], []>} : vector<8x8xbf16>, vector<8x8xbf16>, vector<8x8xf32> -> vector<8x8xf32>
    %cst_83 = arith.constant 0.353553385 : f32
    %205 = vector.broadcast %cst_83 : f32 to vector<8x8xf32>
    %206 = arith.mulf %204, %205 : vector<8x8xf32>
    %cst_84 = arith.constant dense<0xFF800000> : vector<8xf32>
    %207 = vector.multi_reduction <maximumf>, %206, %cst_84 [1] : vector<8x8xf32> to vector<8xf32>
    %208 = vector.shape_cast %207 : vector<8xf32> to vector<8x1xf32>
    %209 = vector.broadcast %208 : vector<8x1xf32> to vector<8x8xf32>
    %210 = arith.subf %206, %209 : vector<8x8xf32>
    %211 = math.exp %210 : vector<8x8xf32>
    %cst_85 = arith.constant dense<0.000000e+00> : vector<8xf32>
    %212 = vector.multi_reduction <add>, %211, %cst_85 [1] : vector<8x8xf32> to vector<8xf32>
    %213 = vector.shape_cast %212 : vector<8xf32> to vector<8x1xf32>
    %214 = tpu.reciprocal %213 {approx = true} : vector<8x1xf32> -> vector<8x1xf32>
    %215 = vector.broadcast %214 : vector<8x1xf32> to vector<8x8xf32>
    %216 = arith.mulf %211, %215 : vector<8x8xf32>
    %217 = vector.extract_strided_slice %195 {offsets = [0, 0], sizes = [8, 8], strides = [1, 1]} : vector<8x32xf32> to vector<8x8xf32>
    %218 = arith.truncf %216 : vector<8x8xf32> to vector<8x8xbf16>
    %219 = arith.truncf %217 : vector<8x8xf32> to vector<8x8xbf16>
    %cst_86 = arith.constant dense<0.000000e+00> : vector<8x8xf32>
    %220 = tpu.matmul %218, %219, %cst_86 {dimension_numbers = #tpu.dot_dimension_numbers<[1], [0], [0], [1], [0, 0, 1, 1], [], []>} : vector<8x8xbf16>, vector<8x8xbf16>, vector<8x8xf32> -> vector<8x8xf32>
    %221 = vector.extract_strided_slice %197 {offsets = [0, 0], sizes = [8, 32], strides = [1, 1]} : vector<32x32xf32> to vector<8x32xf32>
    %222 = arith.truncf %220 : vector<8x8xf32> to vector<8x8xbf16>
    %223 = arith.truncf %221 : vector<8x32xf32> to vector<8x32xbf16>
    %cst_87 = arith.constant dense<0.000000e+00> : vector<8x32xf32>
    %224 = tpu.matmul %222, %223, %cst_87 {dimension_numbers = #tpu.dot_dimension_numbers<[1], [0], [0], [1], [0, 0, 1, 1], [], []>} : vector<8x8xbf16>, vector<8x32xbf16>, vector<8x32xf32> -> vector<8x32xf32>
    %225 = vector.extract_strided_slice %184 {offsets = [0, 8], sizes = [8, 8], strides = [1, 1]} : vector<8x32xf32> to vector<8x8xf32>
    %226 = vector.extract_strided_slice %194 {offsets = [0, 8], sizes = [8, 8], strides = [1, 1]} : vector<8x32xf32> to vector<8x8xf32>
    %227 = arith.truncf %225 : vector<8x8xf32> to vector<8x8xbf16>
    %228 = arith.truncf %226 : vector<8x8xf32> to vector<8x8xbf16>
    %cst_88 = arith.constant dense<0.000000e+00> : vector<8x8xf32>
    %229 = tpu.matmul %227, %228, %cst_88 {dimension_numbers = #tpu.dot_dimension_numbers<[1], [1], [0], [0], [0, 0, 1, 0], [], []>} : vector<8x8xbf16>, vector<8x8xbf16>, vector<8x8xf32> -> vector<8x8xf32>
    %cst_89 = arith.constant 0.353553385 : f32
    %230 = vector.broadcast %cst_89 : f32 to vector<8x8xf32>
    %231 = arith.mulf %229, %230 : vector<8x8xf32>
    %cst_90 = arith.constant dense<0xFF800000> : vector<8xf32>
    %232 = vector.multi_reduction <maximumf>, %231, %cst_90 [1] : vector<8x8xf32> to vector<8xf32>
    %233 = vector.shape_cast %232 : vector<8xf32> to vector<8x1xf32>
    %234 = vector.broadcast %233 : vector<8x1xf32> to vector<8x8xf32>
    %235 = arith.subf %231, %234 : vector<8x8xf32>
    %236 = math.exp %235 : vector<8x8xf32>
    %cst_91 = arith.constant dense<0.000000e+00> : vector<8xf32>
    %237 = vector.multi_reduction <add>, %236, %cst_91 [1] : vector<8x8xf32> to vector<8xf32>
    %238 = vector.shape_cast %237 : vector<8xf32> to vector<8x1xf32>
    %239 = tpu.reciprocal %238 {approx = true} : vector<8x1xf32> -> vector<8x1xf32>
    %240 = vector.broadcast %239 : vector<8x1xf32> to vector<8x8xf32>
    %241 = arith.mulf %236, %240 : vector<8x8xf32>
    %242 = vector.extract_strided_slice %195 {offsets = [0, 8], sizes = [8, 8], strides = [1, 1]} : vector<8x32xf32> to vector<8x8xf32>
    %243 = arith.truncf %241 : vector<8x8xf32> to vector<8x8xbf16>
    %244 = arith.truncf %242 : vector<8x8xf32> to vector<8x8xbf16>
    %cst_92 = arith.constant dense<0.000000e+00> : vector<8x8xf32>
    %245 = tpu.matmul %243, %244, %cst_92 {dimension_numbers = #tpu.dot_dimension_numbers<[1], [0], [0], [1], [0, 0, 1, 1], [], []>} : vector<8x8xbf16>, vector<8x8xbf16>, vector<8x8xf32> -> vector<8x8xf32>
    %246 = vector.extract_strided_slice %197 {offsets = [8, 0], sizes = [8, 32], strides = [1, 1]} : vector<32x32xf32> to vector<8x32xf32>
    %247 = arith.truncf %245 : vector<8x8xf32> to vector<8x8xbf16>
    %248 = arith.truncf %246 : vector<8x32xf32> to vector<8x32xbf16>
    %cst_93 = arith.constant dense<0.000000e+00> : vector<8x32xf32>
    %249 = tpu.matmul %247, %248, %cst_93 {dimension_numbers = #tpu.dot_dimension_numbers<[1], [0], [0], [1], [0, 0, 1, 1], [], []>} : vector<8x8xbf16>, vector<8x32xbf16>, vector<8x32xf32> -> vector<8x32xf32>
    %250 = arith.addf %224, %249 : vector<8x32xf32>
    %251 = vector.extract_strided_slice %184 {offsets = [0, 16], sizes = [8, 8], strides = [1, 1]} : vector<8x32xf32> to vector<8x8xf32>
    %252 = vector.extract_strided_slice %194 {offsets = [0, 16], sizes = [8, 8], strides = [1, 1]} : vector<8x32xf32> to vector<8x8xf32>
    %253 = arith.truncf %251 : vector<8x8xf32> to vector<8x8xbf16>
    %254 = arith.truncf %252 : vector<8x8xf32> to vector<8x8xbf16>
    %cst_94 = arith.constant dense<0.000000e+00> : vector<8x8xf32>
    %255 = tpu.matmul %253, %254, %cst_94 {dimension_numbers = #tpu.dot_dimension_numbers<[1], [1], [0], [0], [0, 0, 1, 0], [], []>} : vector<8x8xbf16>, vector<8x8xbf16>, vector<8x8xf32> -> vector<8x8xf32>
    %cst_95 = arith.constant 0.353553385 : f32
    %256 = vector.broadcast %cst_95 : f32 to vector<8x8xf32>
    %257 = arith.mulf %255, %256 : vector<8x8xf32>
    %cst_96 = arith.constant dense<0xFF800000> : vector<8xf32>
    %258 = vector.multi_reduction <maximumf>, %257, %cst_96 [1] : vector<8x8xf32> to vector<8xf32>
    %259 = vector.shape_cast %258 : vector<8xf32> to vector<8x1xf32>
    %260 = vector.broadcast %259 : vector<8x1xf32> to vector<8x8xf32>
    %261 = arith.subf %257, %260 : vector<8x8xf32>
    %262 = math.exp %261 : vector<8x8xf32>
    %cst_97 = arith.constant dense<0.000000e+00> : vector<8xf32>
    %263 = vector.multi_reduction <add>, %262, %cst_97 [1] : vector<8x8xf32> to vector<8xf32>
    %264 = vector.shape_cast %263 : vector<8xf32> to vector<8x1xf32>
    %265 = tpu.reciprocal %264 {approx = true} : vector<8x1xf32> -> vector<8x1xf32>
    %266 = vector.broadcast %265 : vector<8x1xf32> to vector<8x8xf32>
    %267 = arith.mulf %262, %266 : vector<8x8xf32>
    %268 = vector.extract_strided_slice %195 {offsets = [0, 16], sizes = [8, 8], strides = [1, 1]} : vector<8x32xf32> to vector<8x8xf32>
    %269 = arith.truncf %267 : vector<8x8xf32> to vector<8x8xbf16>
    %270 = arith.truncf %268 : vector<8x8xf32> to vector<8x8xbf16>
    %cst_98 = arith.constant dense<0.000000e+00> : vector<8x8xf32>
    %271 = tpu.matmul %269, %270, %cst_98 {dimension_numbers = #tpu.dot_dimension_numbers<[1], [0], [0], [1], [0, 0, 1, 1], [], []>} : vector<8x8xbf16>, vector<8x8xbf16>, vector<8x8xf32> -> vector<8x8xf32>
    %272 = vector.extract_strided_slice %197 {offsets = [16, 0], sizes = [8, 32], strides = [1, 1]} : vector<32x32xf32> to vector<8x32xf32>
    %273 = arith.truncf %271 : vector<8x8xf32> to vector<8x8xbf16>
    %274 = arith.truncf %272 : vector<8x32xf32> to vector<8x32xbf16>
    %cst_99 = arith.constant dense<0.000000e+00> : vector<8x32xf32>
    %275 = tpu.matmul %273, %274, %cst_99 {dimension_numbers = #tpu.dot_dimension_numbers<[1], [0], [0], [1], [0, 0, 1, 1], [], []>} : vector<8x8xbf16>, vector<8x32xbf16>, vector<8x32xf32> -> vector<8x32xf32>
    %276 = arith.addf %250, %275 : vector<8x32xf32>
    %277 = vector.extract_strided_slice %184 {offsets = [0, 24], sizes = [8, 8], strides = [1, 1]} : vector<8x32xf32> to vector<8x8xf32>
    %278 = vector.extract_strided_slice %194 {offsets = [0, 24], sizes = [8, 8], strides = [1, 1]} : vector<8x32xf32> to vector<8x8xf32>
    %279 = arith.truncf %277 : vector<8x8xf32> to vector<8x8xbf16>
    %280 = arith.truncf %278 : vector<8x8xf32> to vector<8x8xbf16>
    %cst_100 = arith.constant dense<0.000000e+00> : vector<8x8xf32>
    %281 = tpu.matmul %279, %280, %cst_100 {dimension_numbers = #tpu.dot_dimension_numbers<[1], [1], [0], [0], [0, 0, 1, 0], [], []>} : vector<8x8xbf16>, vector<8x8xbf16>, vector<8x8xf32> -> vector<8x8xf32>
    %cst_101 = arith.constant 0.353553385 : f32
    %282 = vector.broadcast %cst_101 : f32 to vector<8x8xf32>
    %283 = arith.mulf %281, %282 : vector<8x8xf32>
    %cst_102 = arith.constant dense<0xFF800000> : vector<8xf32>
    %284 = vector.multi_reduction <maximumf>, %283, %cst_102 [1] : vector<8x8xf32> to vector<8xf32>
    %285 = vector.shape_cast %284 : vector<8xf32> to vector<8x1xf32>
    %286 = vector.broadcast %285 : vector<8x1xf32> to vector<8x8xf32>
    %287 = arith.subf %283, %286 : vector<8x8xf32>
    %288 = math.exp %287 : vector<8x8xf32>
    %cst_103 = arith.constant dense<0.000000e+00> : vector<8xf32>
    %289 = vector.multi_reduction <add>, %288, %cst_103 [1] : vector<8x8xf32> to vector<8xf32>
    %290 = vector.shape_cast %289 : vector<8xf32> to vector<8x1xf32>
    %291 = tpu.reciprocal %290 {approx = true} : vector<8x1xf32> -> vector<8x1xf32>
    %292 = vector.broadcast %291 : vector<8x1xf32> to vector<8x8xf32>
    %293 = arith.mulf %288, %292 : vector<8x8xf32>
    %294 = vector.extract_strided_slice %195 {offsets = [0, 24], sizes = [8, 8], strides = [1, 1]} : vector<8x32xf32> to vector<8x8xf32>
    %295 = arith.truncf %293 : vector<8x8xf32> to vector<8x8xbf16>
    %296 = arith.truncf %294 : vector<8x8xf32> to vector<8x8xbf16>
    %cst_104 = arith.constant dense<0.000000e+00> : vector<8x8xf32>
    %297 = tpu.matmul %295, %296, %cst_104 {dimension_numbers = #tpu.dot_dimension_numbers<[1], [0], [0], [1], [0, 0, 1, 1], [], []>} : vector<8x8xbf16>, vector<8x8xbf16>, vector<8x8xf32> -> vector<8x8xf32>
    %298 = vector.extract_strided_slice %197 {offsets = [24, 0], sizes = [8, 32], strides = [1, 1]} : vector<32x32xf32> to vector<8x32xf32>
    %299 = arith.truncf %297 : vector<8x8xf32> to vector<8x8xbf16>
    %300 = arith.truncf %298 : vector<8x32xf32> to vector<8x32xbf16>
    %cst_105 = arith.constant dense<0.000000e+00> : vector<8x32xf32>
    %301 = tpu.matmul %299, %300, %cst_105 {dimension_numbers = #tpu.dot_dimension_numbers<[1], [0], [0], [1], [0, 0, 1, 1], [], []>} : vector<8x8xbf16>, vector<8x32xbf16>, vector<8x32xf32> -> vector<8x32xf32>
    %302 = arith.addf %276, %301 : vector<8x32xf32>
    %303 = vector.broadcast %199 : vector<1x32xf32> to vector<8x32xf32>
    %304 = arith.addf %302, %303 : vector<8x32xf32>
    %305 = arith.addf %304, %175 : vector<8x32xf32>
    %c0_106 = arith.constant 0 : index
    %c0_107 = arith.constant 0 : index
    %c0_108 = arith.constant 0 : index
    %306 = vector.load %arg18[%c0_106, %c0_107, %c0_108] : memref<2x1x32xf32, #tpu.memory_space<vmem>>, vector<1x1x32xf32>
    %307 = vector.shape_cast %306 : vector<1x1x32xf32> to vector<1x32xf32>
    %c0_109 = arith.constant 0 : index
    %c0_110 = arith.constant 0 : index
    %c0_111 = arith.constant 0 : index
    %308 = vector.load %arg19[%c0_109, %c0_110, %c0_111] : memref<2x1x32xf32, #tpu.memory_space<vmem>>, vector<1x1x32xf32>
    %309 = vector.shape_cast %308 : vector<1x1x32xf32> to vector<1x32xf32>
    %cst_112 = arith.constant dense<0.000000e+00> : vector<8xf32>
    %310 = vector.multi_reduction <add>, %305, %cst_112 [1] : vector<8x32xf32> to vector<8xf32>
    %311 = vector.shape_cast %310 : vector<8xf32> to vector<8x1xf32>
    %cst_113 = arith.constant 3.200000e+01 : f32
    %312 = vector.broadcast %cst_113 : f32 to vector<8x1xf32>
    %313 = arith.divf %311, %312 : vector<8x1xf32>
    %314 = vector.broadcast %313 : vector<8x1xf32> to vector<8x32xf32>
    %315 = arith.subf %305, %314 : vector<8x32xf32>
    %316 = arith.mulf %315, %315 : vector<8x32xf32>
    %cst_114 = arith.constant dense<0.000000e+00> : vector<8xf32>
    %317 = vector.multi_reduction <add>, %316, %cst_114 [1] : vector<8x32xf32> to vector<8xf32>
    %318 = vector.shape_cast %317 : vector<8xf32> to vector<8x1xf32>
    %cst_115 = arith.constant 3.200000e+01 : f32
    %319 = vector.broadcast %cst_115 : f32 to vector<8x1xf32>
    %320 = arith.divf %318, %319 : vector<8x1xf32>
    %cst_116 = arith.constant 9.99999996E-13 : f32
    %321 = vector.broadcast %cst_116 : f32 to vector<8x1xf32>
    %322 = arith.addf %320, %321 : vector<8x1xf32>
    %323 = math.rsqrt %322 : vector<8x1xf32>
    %324 = vector.broadcast %323 : vector<8x1xf32> to vector<8x32xf32>
    %325 = arith.mulf %315, %324 : vector<8x32xf32>
    %326 = vector.broadcast %307 : vector<1x32xf32> to vector<8x32xf32>
    %327 = arith.mulf %325, %326 : vector<8x32xf32>
    %328 = vector.broadcast %309 : vector<1x32xf32> to vector<8x32xf32>
    %329 = arith.addf %327, %328 : vector<8x32xf32>
    %c0_117 = arith.constant 0 : index
    %c0_118 = arith.constant 0 : index
    %c0_119 = arith.constant 0 : index
    %330 = vector.load %arg20[%c0_117, %c0_118, %c0_119] : memref<2x32x64xf32, #tpu.memory_space<vmem>>, vector<1x32x64xf32>
    %331 = vector.shape_cast %330 : vector<1x32x64xf32> to vector<32x64xf32>
    %c0_120 = arith.constant 0 : index
    %c0_121 = arith.constant 0 : index
    %c0_122 = arith.constant 0 : index
    %332 = vector.load %arg21[%c0_120, %c0_121, %c0_122] : memref<2x1x64xf32, #tpu.memory_space<vmem>>, vector<1x1x64xf32>
    %333 = vector.shape_cast %332 : vector<1x1x64xf32> to vector<1x64xf32>
    %c0_123 = arith.constant 0 : index
    %c0_124 = arith.constant 0 : index
    %c0_125 = arith.constant 0 : index
    %334 = vector.load %arg22[%c0_123, %c0_124, %c0_125] : memref<2x64x32xf32, #tpu.memory_space<vmem>>, vector<1x64x32xf32>
    %335 = vector.shape_cast %334 : vector<1x64x32xf32> to vector<64x32xf32>
    %c0_126 = arith.constant 0 : index
    %c0_127 = arith.constant 0 : index
    %c0_128 = arith.constant 0 : index
    %336 = vector.load %arg23[%c0_126, %c0_127, %c0_128] : memref<2x1x32xf32, #tpu.memory_space<vmem>>, vector<1x1x32xf32>
    %337 = vector.shape_cast %336 : vector<1x1x32xf32> to vector<1x32xf32>
    %c0_129 = arith.constant 0 : index
    %c0_130 = arith.constant 0 : index
    %c0_131 = arith.constant 0 : index
    %338 = vector.load %arg24[%c0_129, %c0_130, %c0_131] : memref<2x1x32xf32, #tpu.memory_space<vmem>>, vector<1x1x32xf32>
    %339 = vector.shape_cast %338 : vector<1x1x32xf32> to vector<1x32xf32>
    %c0_132 = arith.constant 0 : index
    %c0_133 = arith.constant 0 : index
    %c0_134 = arith.constant 0 : index
    %340 = vector.load %arg25[%c0_132, %c0_133, %c0_134] : memref<2x1x32xf32, #tpu.memory_space<vmem>>, vector<1x1x32xf32>
    %341 = vector.shape_cast %340 : vector<1x1x32xf32> to vector<1x32xf32>
    %342 = arith.truncf %329 : vector<8x32xf32> to vector<8x32xbf16>
    %343 = arith.truncf %331 : vector<32x64xf32> to vector<32x64xbf16>
    %cst_135 = arith.constant dense<0.000000e+00> : vector<8x64xf32>
    %344 = tpu.matmul %342, %343, %cst_135 {dimension_numbers = #tpu.dot_dimension_numbers<[1], [0], [0], [1], [0, 0, 1, 1], [], []>} : vector<8x32xbf16>, vector<32x64xbf16>, vector<8x64xf32> -> vector<8x64xf32>
    %345 = vector.broadcast %333 : vector<1x64xf32> to vector<8x64xf32>
    %346 = arith.addf %344, %345 : vector<8x64xf32>
    %cst_136 = arith.constant 5.000000e-01 : f32
    %347 = vector.broadcast %cst_136 : f32 to vector<8x64xf32>
    %348 = arith.mulf %347, %346 : vector<8x64xf32>
    %cst_137 = arith.constant 4.471500e-02 : f32
    %349 = vector.broadcast %cst_137 : f32 to vector<8x64xf32>
    %350 = arith.mulf %349, %346 : vector<8x64xf32>
    %351 = arith.mulf %350, %346 : vector<8x64xf32>
    %352 = arith.mulf %351, %346 : vector<8x64xf32>
    %353 = arith.addf %346, %352 : vector<8x64xf32>
    %cst_138 = arith.constant 0.797884583 : f32
    %354 = vector.broadcast %cst_138 : f32 to vector<8x64xf32>
    %355 = arith.mulf %354, %353 : vector<8x64xf32>
    %356 = math.tanh %355 : vector<8x64xf32>
    %cst_139 = arith.constant 1.000000e+00 : f32
    %357 = vector.broadcast %cst_139 : f32 to vector<8x64xf32>
    %358 = arith.addf %357, %356 : vector<8x64xf32>
    %359 = arith.mulf %348, %358 : vector<8x64xf32>
    %360 = arith.truncf %359 : vector<8x64xf32> to vector<8x64xbf16>
    %361 = arith.truncf %335 : vector<64x32xf32> to vector<64x32xbf16>
    %cst_140 = arith.constant dense<0.000000e+00> : vector<8x32xf32>
    %362 = tpu.matmul %360, %361, %cst_140 {dimension_numbers = #tpu.dot_dimension_numbers<[1], [0], [0], [1], [0, 0, 1, 1], [], []>} : vector<8x64xbf16>, vector<64x32xbf16>, vector<8x32xf32> -> vector<8x32xf32>
    %363 = vector.broadcast %337 : vector<1x32xf32> to vector<8x32xf32>
    %364 = arith.addf %362, %363 : vector<8x32xf32>
    %365 = arith.addf %364, %329 : vector<8x32xf32>
    %cst_141 = arith.constant dense<0.000000e+00> : vector<8xf32>
    %366 = vector.multi_reduction <add>, %365, %cst_141 [1] : vector<8x32xf32> to vector<8xf32>
    %367 = vector.shape_cast %366 : vector<8xf32> to vector<8x1xf32>
    %cst_142 = arith.constant 3.200000e+01 : f32
    %368 = vector.broadcast %cst_142 : f32 to vector<8x1xf32>
    %369 = arith.divf %367, %368 : vector<8x1xf32>
    %370 = vector.broadcast %369 : vector<8x1xf32> to vector<8x32xf32>
    %371 = arith.subf %365, %370 : vector<8x32xf32>
    %372 = arith.mulf %371, %371 : vector<8x32xf32>
    %cst_143 = arith.constant dense<0.000000e+00> : vector<8xf32>
    %373 = vector.multi_reduction <add>, %372, %cst_143 [1] : vector<8x32xf32> to vector<8xf32>
    %374 = vector.shape_cast %373 : vector<8xf32> to vector<8x1xf32>
    %cst_144 = arith.constant 3.200000e+01 : f32
    %375 = vector.broadcast %cst_144 : f32 to vector<8x1xf32>
    %376 = arith.divf %374, %375 : vector<8x1xf32>
    %cst_145 = arith.constant 9.99999996E-13 : f32
    %377 = vector.broadcast %cst_145 : f32 to vector<8x1xf32>
    %378 = arith.addf %376, %377 : vector<8x1xf32>
    %379 = math.rsqrt %378 : vector<8x1xf32>
    %380 = vector.broadcast %379 : vector<8x1xf32> to vector<8x32xf32>
    %381 = arith.mulf %371, %380 : vector<8x32xf32>
    %382 = vector.broadcast %339 : vector<1x32xf32> to vector<8x32xf32>
    %383 = arith.mulf %381, %382 : vector<8x32xf32>
    %384 = vector.broadcast %341 : vector<1x32xf32> to vector<8x32xf32>
    %385 = arith.addf %383, %384 : vector<8x32xf32>
    %c1 = arith.constant 1 : index
    %c0_146 = arith.constant 0 : index
    %c0_147 = arith.constant 0 : index
    %386 = vector.load %arg6[%c1, %c0_146, %c0_147] : memref<2x32x96xf32, #tpu.memory_space<vmem>>, vector<1x32x96xf32>
    %387 = vector.shape_cast %386 : vector<1x32x96xf32> to vector<32x96xf32>
    %c1_148 = arith.constant 1 : index
    %c0_149 = arith.constant 0 : index
    %c0_150 = arith.constant 0 : index
    %388 = vector.load %arg7[%c1_148, %c0_149, %c0_150] : memref<2x1x96xf32, #tpu.memory_space<vmem>>, vector<1x1x96xf32>
    %389 = vector.shape_cast %388 : vector<1x1x96xf32> to vector<1x96xf32>
    %c1_151 = arith.constant 1 : index
    %c0_152 = arith.constant 0 : index
    %c0_153 = arith.constant 0 : index
    %390 = vector.load %arg8[%c1_151, %c0_152, %c0_153] : memref<2x32x32xf32, #tpu.memory_space<vmem>>, vector<1x32x32xf32>
    %391 = vector.shape_cast %390 : vector<1x32x32xf32> to vector<32x32xf32>
    %c1_154 = arith.constant 1 : index
    %c0_155 = arith.constant 0 : index
    %c0_156 = arith.constant 0 : index
    %392 = vector.load %arg9[%c1_154, %c0_155, %c0_156] : memref<2x1x32xf32, #tpu.memory_space<vmem>>, vector<1x1x32xf32>
    %393 = vector.shape_cast %392 : vector<1x1x32xf32> to vector<1x32xf32>
    %c1_157 = arith.constant 1 : index
    %c0_158 = arith.constant 0 : index
    %c0_159 = arith.constant 0 : index
    %394 = vector.load %arg10[%c1_157, %c0_158, %c0_159] : memref<2x1x32xf32, #tpu.memory_space<vmem>>, vector<1x1x32xf32>
    %395 = vector.shape_cast %394 : vector<1x1x32xf32> to vector<1x32xf32>
    %c1_160 = arith.constant 1 : index
    %c0_161 = arith.constant 0 : index
    %c0_162 = arith.constant 0 : index
    %396 = vector.load %arg11[%c1_160, %c0_161, %c0_162] : memref<2x1x32xf32, #tpu.memory_space<vmem>>, vector<1x1x32xf32>
    %397 = vector.shape_cast %396 : vector<1x1x32xf32> to vector<1x32xf32>
    %398 = arith.truncf %385 : vector<8x32xf32> to vector<8x32xbf16>
    %399 = arith.truncf %387 : vector<32x96xf32> to vector<32x96xbf16>
    %cst_163 = arith.constant dense<0.000000e+00> : vector<8x96xf32>
    %400 = tpu.matmul %398, %399, %cst_163 {dimension_numbers = #tpu.dot_dimension_numbers<[1], [0], [0], [1], [0, 0, 1, 1], [], []>} : vector<8x32xbf16>, vector<32x96xbf16>, vector<8x96xf32> -> vector<8x96xf32>
    %401 = vector.broadcast %389 : vector<1x96xf32> to vector<8x96xf32>
    %402 = arith.addf %400, %401 : vector<8x96xf32>
    %403 = vector.extract_strided_slice %402 {offsets = [0, 0], sizes = [8, 32], strides = [1, 1]} : vector<8x96xf32> to vector<8x32xf32>
    %404 = vector.extract_strided_slice %402 {offsets = [0, 32], sizes = [8, 32], strides = [1, 1]} : vector<8x96xf32> to vector<8x32xf32>
    %405 = vector.extract_strided_slice %402 {offsets = [0, 64], sizes = [8, 32], strides = [1, 1]} : vector<8x96xf32> to vector<8x32xf32>
    %406 = vector.extract_strided_slice %403 {offsets = [0, 0], sizes = [8, 8], strides = [1, 1]} : vector<8x32xf32> to vector<8x8xf32>
    %407 = vector.extract_strided_slice %404 {offsets = [0, 0], sizes = [8, 8], strides = [1, 1]} : vector<8x32xf32> to vector<8x8xf32>
    %408 = arith.truncf %406 : vector<8x8xf32> to vector<8x8xbf16>
    %409 = arith.truncf %407 : vector<8x8xf32> to vector<8x8xbf16>
    %cst_164 = arith.constant dense<0.000000e+00> : vector<8x8xf32>
    %410 = tpu.matmul %408, %409, %cst_164 {dimension_numbers = #tpu.dot_dimension_numbers<[1], [1], [0], [0], [0, 0, 1, 0], [], []>} : vector<8x8xbf16>, vector<8x8xbf16>, vector<8x8xf32> -> vector<8x8xf32>
    %cst_165 = arith.constant 0.353553385 : f32
    %411 = vector.broadcast %cst_165 : f32 to vector<8x8xf32>
    %412 = arith.mulf %410, %411 : vector<8x8xf32>
    %413 = arith.addf %412, %1 : vector<8x8xf32>
    %cst_166 = arith.constant dense<0xFF800000> : vector<8xf32>
    %414 = vector.multi_reduction <maximumf>, %413, %cst_166 [1] : vector<8x8xf32> to vector<8xf32>
    %415 = vector.shape_cast %414 : vector<8xf32> to vector<8x1xf32>
    %416 = vector.broadcast %415 : vector<8x1xf32> to vector<8x8xf32>
    %417 = arith.subf %413, %416 : vector<8x8xf32>
    %418 = math.exp %417 : vector<8x8xf32>
    %cst_167 = arith.constant dense<0.000000e+00> : vector<8xf32>
    %419 = vector.multi_reduction <add>, %418, %cst_167 [1] : vector<8x8xf32> to vector<8xf32>
    %420 = vector.shape_cast %419 : vector<8xf32> to vector<8x1xf32>
    %421 = tpu.reciprocal %420 {approx = true} : vector<8x1xf32> -> vector<8x1xf32>
    %422 = vector.broadcast %421 : vector<8x1xf32> to vector<8x8xf32>
    %423 = arith.mulf %418, %422 : vector<8x8xf32>
    %424 = vector.extract_strided_slice %405 {offsets = [0, 0], sizes = [8, 8], strides = [1, 1]} : vector<8x32xf32> to vector<8x8xf32>
    %425 = arith.truncf %423 : vector<8x8xf32> to vector<8x8xbf16>
    %426 = arith.truncf %424 : vector<8x8xf32> to vector<8x8xbf16>
    %cst_168 = arith.constant dense<0.000000e+00> : vector<8x8xf32>
    %427 = tpu.matmul %425, %426, %cst_168 {dimension_numbers = #tpu.dot_dimension_numbers<[1], [0], [0], [1], [0, 0, 1, 1], [], []>} : vector<8x8xbf16>, vector<8x8xbf16>, vector<8x8xf32> -> vector<8x8xf32>
    %428 = vector.extract_strided_slice %391 {offsets = [0, 0], sizes = [8, 32], strides = [1, 1]} : vector<32x32xf32> to vector<8x32xf32>
    %429 = arith.truncf %427 : vector<8x8xf32> to vector<8x8xbf16>
    %430 = arith.truncf %428 : vector<8x32xf32> to vector<8x32xbf16>
    %cst_169 = arith.constant dense<0.000000e+00> : vector<8x32xf32>
    %431 = tpu.matmul %429, %430, %cst_169 {dimension_numbers = #tpu.dot_dimension_numbers<[1], [0], [0], [1], [0, 0, 1, 1], [], []>} : vector<8x8xbf16>, vector<8x32xbf16>, vector<8x32xf32> -> vector<8x32xf32>
    %432 = vector.extract_strided_slice %403 {offsets = [0, 8], sizes = [8, 8], strides = [1, 1]} : vector<8x32xf32> to vector<8x8xf32>
    %433 = vector.extract_strided_slice %404 {offsets = [0, 8], sizes = [8, 8], strides = [1, 1]} : vector<8x32xf32> to vector<8x8xf32>
    %434 = arith.truncf %432 : vector<8x8xf32> to vector<8x8xbf16>
    %435 = arith.truncf %433 : vector<8x8xf32> to vector<8x8xbf16>
    %cst_170 = arith.constant dense<0.000000e+00> : vector<8x8xf32>
    %436 = tpu.matmul %434, %435, %cst_170 {dimension_numbers = #tpu.dot_dimension_numbers<[1], [1], [0], [0], [0, 0, 1, 0], [], []>} : vector<8x8xbf16>, vector<8x8xbf16>, vector<8x8xf32> -> vector<8x8xf32>
    %cst_171 = arith.constant 0.353553385 : f32
    %437 = vector.broadcast %cst_171 : f32 to vector<8x8xf32>
    %438 = arith.mulf %436, %437 : vector<8x8xf32>
    %439 = arith.addf %438, %1 : vector<8x8xf32>
    %cst_172 = arith.constant dense<0xFF800000> : vector<8xf32>
    %440 = vector.multi_reduction <maximumf>, %439, %cst_172 [1] : vector<8x8xf32> to vector<8xf32>
    %441 = vector.shape_cast %440 : vector<8xf32> to vector<8x1xf32>
    %442 = vector.broadcast %441 : vector<8x1xf32> to vector<8x8xf32>
    %443 = arith.subf %439, %442 : vector<8x8xf32>
    %444 = math.exp %443 : vector<8x8xf32>
    %cst_173 = arith.constant dense<0.000000e+00> : vector<8xf32>
    %445 = vector.multi_reduction <add>, %444, %cst_173 [1] : vector<8x8xf32> to vector<8xf32>
    %446 = vector.shape_cast %445 : vector<8xf32> to vector<8x1xf32>
    %447 = tpu.reciprocal %446 {approx = true} : vector<8x1xf32> -> vector<8x1xf32>
    %448 = vector.broadcast %447 : vector<8x1xf32> to vector<8x8xf32>
    %449 = arith.mulf %444, %448 : vector<8x8xf32>
    %450 = vector.extract_strided_slice %405 {offsets = [0, 8], sizes = [8, 8], strides = [1, 1]} : vector<8x32xf32> to vector<8x8xf32>
    %451 = arith.truncf %449 : vector<8x8xf32> to vector<8x8xbf16>
    %452 = arith.truncf %450 : vector<8x8xf32> to vector<8x8xbf16>
    %cst_174 = arith.constant dense<0.000000e+00> : vector<8x8xf32>
    %453 = tpu.matmul %451, %452, %cst_174 {dimension_numbers = #tpu.dot_dimension_numbers<[1], [0], [0], [1], [0, 0, 1, 1], [], []>} : vector<8x8xbf16>, vector<8x8xbf16>, vector<8x8xf32> -> vector<8x8xf32>
    %454 = vector.extract_strided_slice %391 {offsets = [8, 0], sizes = [8, 32], strides = [1, 1]} : vector<32x32xf32> to vector<8x32xf32>
    %455 = arith.truncf %453 : vector<8x8xf32> to vector<8x8xbf16>
    %456 = arith.truncf %454 : vector<8x32xf32> to vector<8x32xbf16>
    %cst_175 = arith.constant dense<0.000000e+00> : vector<8x32xf32>
    %457 = tpu.matmul %455, %456, %cst_175 {dimension_numbers = #tpu.dot_dimension_numbers<[1], [0], [0], [1], [0, 0, 1, 1], [], []>} : vector<8x8xbf16>, vector<8x32xbf16>, vector<8x32xf32> -> vector<8x32xf32>
    %458 = arith.addf %431, %457 : vector<8x32xf32>
    %459 = vector.extract_strided_slice %403 {offsets = [0, 16], sizes = [8, 8], strides = [1, 1]} : vector<8x32xf32> to vector<8x8xf32>
    %460 = vector.extract_strided_slice %404 {offsets = [0, 16], sizes = [8, 8], strides = [1, 1]} : vector<8x32xf32> to vector<8x8xf32>
    %461 = arith.truncf %459 : vector<8x8xf32> to vector<8x8xbf16>
    %462 = arith.truncf %460 : vector<8x8xf32> to vector<8x8xbf16>
    %cst_176 = arith.constant dense<0.000000e+00> : vector<8x8xf32>
    %463 = tpu.matmul %461, %462, %cst_176 {dimension_numbers = #tpu.dot_dimension_numbers<[1], [1], [0], [0], [0, 0, 1, 0], [], []>} : vector<8x8xbf16>, vector<8x8xbf16>, vector<8x8xf32> -> vector<8x8xf32>
    %cst_177 = arith.constant 0.353553385 : f32
    %464 = vector.broadcast %cst_177 : f32 to vector<8x8xf32>
    %465 = arith.mulf %463, %464 : vector<8x8xf32>
    %466 = arith.addf %465, %1 : vector<8x8xf32>
    %cst_178 = arith.constant dense<0xFF800000> : vector<8xf32>
    %467 = vector.multi_reduction <maximumf>, %466, %cst_178 [1] : vector<8x8xf32> to vector<8xf32>
    %468 = vector.shape_cast %467 : vector<8xf32> to vector<8x1xf32>
    %469 = vector.broadcast %468 : vector<8x1xf32> to vector<8x8xf32>
    %470 = arith.subf %466, %469 : vector<8x8xf32>
    %471 = math.exp %470 : vector<8x8xf32>
    %cst_179 = arith.constant dense<0.000000e+00> : vector<8xf32>
    %472 = vector.multi_reduction <add>, %471, %cst_179 [1] : vector<8x8xf32> to vector<8xf32>
    %473 = vector.shape_cast %472 : vector<8xf32> to vector<8x1xf32>
    %474 = tpu.reciprocal %473 {approx = true} : vector<8x1xf32> -> vector<8x1xf32>
    %475 = vector.broadcast %474 : vector<8x1xf32> to vector<8x8xf32>
    %476 = arith.mulf %471, %475 : vector<8x8xf32>
    %477 = vector.extract_strided_slice %405 {offsets = [0, 16], sizes = [8, 8], strides = [1, 1]} : vector<8x32xf32> to vector<8x8xf32>
    %478 = arith.truncf %476 : vector<8x8xf32> to vector<8x8xbf16>
    %479 = arith.truncf %477 : vector<8x8xf32> to vector<8x8xbf16>
    %cst_180 = arith.constant dense<0.000000e+00> : vector<8x8xf32>
    %480 = tpu.matmul %478, %479, %cst_180 {dimension_numbers = #tpu.dot_dimension_numbers<[1], [0], [0], [1], [0, 0, 1, 1], [], []>} : vector<8x8xbf16>, vector<8x8xbf16>, vector<8x8xf32> -> vector<8x8xf32>
    %481 = vector.extract_strided_slice %391 {offsets = [16, 0], sizes = [8, 32], strides = [1, 1]} : vector<32x32xf32> to vector<8x32xf32>
    %482 = arith.truncf %480 : vector<8x8xf32> to vector<8x8xbf16>
    %483 = arith.truncf %481 : vector<8x32xf32> to vector<8x32xbf16>
    %cst_181 = arith.constant dense<0.000000e+00> : vector<8x32xf32>
    %484 = tpu.matmul %482, %483, %cst_181 {dimension_numbers = #tpu.dot_dimension_numbers<[1], [0], [0], [1], [0, 0, 1, 1], [], []>} : vector<8x8xbf16>, vector<8x32xbf16>, vector<8x32xf32> -> vector<8x32xf32>
    %485 = arith.addf %458, %484 : vector<8x32xf32>
    %486 = vector.extract_strided_slice %403 {offsets = [0, 24], sizes = [8, 8], strides = [1, 1]} : vector<8x32xf32> to vector<8x8xf32>
    %487 = vector.extract_strided_slice %404 {offsets = [0, 24], sizes = [8, 8], strides = [1, 1]} : vector<8x32xf32> to vector<8x8xf32>
    %488 = arith.truncf %486 : vector<8x8xf32> to vector<8x8xbf16>
    %489 = arith.truncf %487 : vector<8x8xf32> to vector<8x8xbf16>
    %cst_182 = arith.constant dense<0.000000e+00> : vector<8x8xf32>
    %490 = tpu.matmul %488, %489, %cst_182 {dimension_numbers = #tpu.dot_dimension_numbers<[1], [1], [0], [0], [0, 0, 1, 0], [], []>} : vector<8x8xbf16>, vector<8x8xbf16>, vector<8x8xf32> -> vector<8x8xf32>
    %cst_183 = arith.constant 0.353553385 : f32
    %491 = vector.broadcast %cst_183 : f32 to vector<8x8xf32>
    %492 = arith.mulf %490, %491 : vector<8x8xf32>
    %493 = arith.addf %492, %1 : vector<8x8xf32>
    %cst_184 = arith.constant dense<0xFF800000> : vector<8xf32>
    %494 = vector.multi_reduction <maximumf>, %493, %cst_184 [1] : vector<8x8xf32> to vector<8xf32>
    %495 = vector.shape_cast %494 : vector<8xf32> to vector<8x1xf32>
    %496 = vector.broadcast %495 : vector<8x1xf32> to vector<8x8xf32>
    %497 = arith.subf %493, %496 : vector<8x8xf32>
    %498 = math.exp %497 : vector<8x8xf32>
    %cst_185 = arith.constant dense<0.000000e+00> : vector<8xf32>
    %499 = vector.multi_reduction <add>, %498, %cst_185 [1] : vector<8x8xf32> to vector<8xf32>
    %500 = vector.shape_cast %499 : vector<8xf32> to vector<8x1xf32>
    %501 = tpu.reciprocal %500 {approx = true} : vector<8x1xf32> -> vector<8x1xf32>
    %502 = vector.broadcast %501 : vector<8x1xf32> to vector<8x8xf32>
    %503 = arith.mulf %498, %502 : vector<8x8xf32>
    %504 = vector.extract_strided_slice %405 {offsets = [0, 24], sizes = [8, 8], strides = [1, 1]} : vector<8x32xf32> to vector<8x8xf32>
    %505 = arith.truncf %503 : vector<8x8xf32> to vector<8x8xbf16>
    %506 = arith.truncf %504 : vector<8x8xf32> to vector<8x8xbf16>
    %cst_186 = arith.constant dense<0.000000e+00> : vector<8x8xf32>
    %507 = tpu.matmul %505, %506, %cst_186 {dimension_numbers = #tpu.dot_dimension_numbers<[1], [0], [0], [1], [0, 0, 1, 1], [], []>} : vector<8x8xbf16>, vector<8x8xbf16>, vector<8x8xf32> -> vector<8x8xf32>
    %508 = vector.extract_strided_slice %391 {offsets = [24, 0], sizes = [8, 32], strides = [1, 1]} : vector<32x32xf32> to vector<8x32xf32>
    %509 = arith.truncf %507 : vector<8x8xf32> to vector<8x8xbf16>
    %510 = arith.truncf %508 : vector<8x32xf32> to vector<8x32xbf16>
    %cst_187 = arith.constant dense<0.000000e+00> : vector<8x32xf32>
    %511 = tpu.matmul %509, %510, %cst_187 {dimension_numbers = #tpu.dot_dimension_numbers<[1], [0], [0], [1], [0, 0, 1, 1], [], []>} : vector<8x8xbf16>, vector<8x32xbf16>, vector<8x32xf32> -> vector<8x32xf32>
    %512 = arith.addf %485, %511 : vector<8x32xf32>
    %513 = vector.broadcast %393 : vector<1x32xf32> to vector<8x32xf32>
    %514 = arith.addf %512, %513 : vector<8x32xf32>
    %515 = arith.addf %514, %385 : vector<8x32xf32>
    %cst_188 = arith.constant dense<0.000000e+00> : vector<8xf32>
    %516 = vector.multi_reduction <add>, %515, %cst_188 [1] : vector<8x32xf32> to vector<8xf32>
    %517 = vector.shape_cast %516 : vector<8xf32> to vector<8x1xf32>
    %cst_189 = arith.constant 3.200000e+01 : f32
    %518 = vector.broadcast %cst_189 : f32 to vector<8x1xf32>
    %519 = arith.divf %517, %518 : vector<8x1xf32>
    %520 = vector.broadcast %519 : vector<8x1xf32> to vector<8x32xf32>
    %521 = arith.subf %515, %520 : vector<8x32xf32>
    %522 = arith.mulf %521, %521 : vector<8x32xf32>
    %cst_190 = arith.constant dense<0.000000e+00> : vector<8xf32>
    %523 = vector.multi_reduction <add>, %522, %cst_190 [1] : vector<8x32xf32> to vector<8xf32>
    %524 = vector.shape_cast %523 : vector<8xf32> to vector<8x1xf32>
    %cst_191 = arith.constant 3.200000e+01 : f32
    %525 = vector.broadcast %cst_191 : f32 to vector<8x1xf32>
    %526 = arith.divf %524, %525 : vector<8x1xf32>
    %cst_192 = arith.constant 9.99999996E-13 : f32
    %527 = vector.broadcast %cst_192 : f32 to vector<8x1xf32>
    %528 = arith.addf %526, %527 : vector<8x1xf32>
    %529 = math.rsqrt %528 : vector<8x1xf32>
    %530 = vector.broadcast %529 : vector<8x1xf32> to vector<8x32xf32>
    %531 = arith.mulf %521, %530 : vector<8x32xf32>
    %532 = vector.broadcast %395 : vector<1x32xf32> to vector<8x32xf32>
    %533 = arith.mulf %531, %532 : vector<8x32xf32>
    %534 = vector.broadcast %397 : vector<1x32xf32> to vector<8x32xf32>
    %535 = arith.addf %533, %534 : vector<8x32xf32>
    %c1_193 = arith.constant 1 : index
    %c0_194 = arith.constant 0 : index
    %c0_195 = arith.constant 0 : index
    %536 = vector.load %arg12[%c1_193, %c0_194, %c0_195] : memref<2x32x32xf32, #tpu.memory_space<vmem>>, vector<1x32x32xf32>
    %537 = vector.shape_cast %536 : vector<1x32x32xf32> to vector<32x32xf32>
    %538 = arith.truncf %535 : vector<8x32xf32> to vector<8x32xbf16>
    %539 = arith.truncf %537 : vector<32x32xf32> to vector<32x32xbf16>
    %cst_196 = arith.constant dense<0.000000e+00> : vector<8x32xf32>
    %540 = tpu.matmul %538, %539, %cst_196 {dimension_numbers = #tpu.dot_dimension_numbers<[1], [0], [0], [1], [0, 0, 1, 1], [], []>} : vector<8x32xbf16>, vector<32x32xbf16>, vector<8x32xf32> -> vector<8x32xf32>
    %c1_197 = arith.constant 1 : index
    %c0_198 = arith.constant 0 : index
    %c0_199 = arith.constant 0 : index
    %541 = vector.load %arg13[%c1_197, %c0_198, %c0_199] : memref<2x1x32xf32, #tpu.memory_space<vmem>>, vector<1x1x32xf32>
    %542 = vector.shape_cast %541 : vector<1x1x32xf32> to vector<1x32xf32>
    %543 = vector.broadcast %542 : vector<1x32xf32> to vector<8x32xf32>
    %544 = arith.addf %540, %543 : vector<8x32xf32>
    %c1_200 = arith.constant 1 : index
    %c0_201 = arith.constant 0 : index
    %c0_202 = arith.constant 0 : index
    %545 = vector.load %arg14[%c1_200, %c0_201, %c0_202] : memref<2x32x64xf32, #tpu.memory_space<vmem>>, vector<1x32x64xf32>
    %546 = vector.shape_cast %545 : vector<1x32x64xf32> to vector<32x64xf32>
    %547 = arith.truncf %2 : vector<8x32xf32> to vector<8x32xbf16>
    %548 = arith.truncf %546 : vector<32x64xf32> to vector<32x64xbf16>
    %cst_203 = arith.constant dense<0.000000e+00> : vector<8x64xf32>
    %549 = tpu.matmul %547, %548, %cst_203 {dimension_numbers = #tpu.dot_dimension_numbers<[1], [0], [0], [1], [0, 0, 1, 1], [], []>} : vector<8x32xbf16>, vector<32x64xbf16>, vector<8x64xf32> -> vector<8x64xf32>
    %c1_204 = arith.constant 1 : index
    %c0_205 = arith.constant 0 : index
    %c0_206 = arith.constant 0 : index
    %550 = vector.load %arg15[%c1_204, %c0_205, %c0_206] : memref<2x1x64xf32, #tpu.memory_space<vmem>>, vector<1x1x64xf32>
    %551 = vector.shape_cast %550 : vector<1x1x64xf32> to vector<1x64xf32>
    %552 = vector.broadcast %551 : vector<1x64xf32> to vector<8x64xf32>
    %553 = arith.addf %549, %552 : vector<8x64xf32>
    %554 = vector.extract_strided_slice %553 {offsets = [0, 0], sizes = [8, 32], strides = [1, 1]} : vector<8x64xf32> to vector<8x32xf32>
    %555 = vector.extract_strided_slice %553 {offsets = [0, 32], sizes = [8, 32], strides = [1, 1]} : vector<8x64xf32> to vector<8x32xf32>
    %c1_207 = arith.constant 1 : index
    %c0_208 = arith.constant 0 : index
    %c0_209 = arith.constant 0 : index
    %556 = vector.load %arg16[%c1_207, %c0_208, %c0_209] : memref<2x32x32xf32, #tpu.memory_space<vmem>>, vector<1x32x32xf32>
    %557 = vector.shape_cast %556 : vector<1x32x32xf32> to vector<32x32xf32>
    %c1_210 = arith.constant 1 : index
    %c0_211 = arith.constant 0 : index
    %c0_212 = arith.constant 0 : index
    %558 = vector.load %arg17[%c1_210, %c0_211, %c0_212] : memref<2x1x32xf32, #tpu.memory_space<vmem>>, vector<1x1x32xf32>
    %559 = vector.shape_cast %558 : vector<1x1x32xf32> to vector<1x32xf32>
    %560 = vector.extract_strided_slice %544 {offsets = [0, 0], sizes = [8, 8], strides = [1, 1]} : vector<8x32xf32> to vector<8x8xf32>
    %561 = vector.extract_strided_slice %554 {offsets = [0, 0], sizes = [8, 8], strides = [1, 1]} : vector<8x32xf32> to vector<8x8xf32>
    %562 = arith.truncf %560 : vector<8x8xf32> to vector<8x8xbf16>
    %563 = arith.truncf %561 : vector<8x8xf32> to vector<8x8xbf16>
    %cst_213 = arith.constant dense<0.000000e+00> : vector<8x8xf32>
    %564 = tpu.matmul %562, %563, %cst_213 {dimension_numbers = #tpu.dot_dimension_numbers<[1], [1], [0], [0], [0, 0, 1, 0], [], []>} : vector<8x8xbf16>, vector<8x8xbf16>, vector<8x8xf32> -> vector<8x8xf32>
    %cst_214 = arith.constant 0.353553385 : f32
    %565 = vector.broadcast %cst_214 : f32 to vector<8x8xf32>
    %566 = arith.mulf %564, %565 : vector<8x8xf32>
    %cst_215 = arith.constant dense<0xFF800000> : vector<8xf32>
    %567 = vector.multi_reduction <maximumf>, %566, %cst_215 [1] : vector<8x8xf32> to vector<8xf32>
    %568 = vector.shape_cast %567 : vector<8xf32> to vector<8x1xf32>
    %569 = vector.broadcast %568 : vector<8x1xf32> to vector<8x8xf32>
    %570 = arith.subf %566, %569 : vector<8x8xf32>
    %571 = math.exp %570 : vector<8x8xf32>
    %cst_216 = arith.constant dense<0.000000e+00> : vector<8xf32>
    %572 = vector.multi_reduction <add>, %571, %cst_216 [1] : vector<8x8xf32> to vector<8xf32>
    %573 = vector.shape_cast %572 : vector<8xf32> to vector<8x1xf32>
    %574 = tpu.reciprocal %573 {approx = true} : vector<8x1xf32> -> vector<8x1xf32>
    %575 = vector.broadcast %574 : vector<8x1xf32> to vector<8x8xf32>
    %576 = arith.mulf %571, %575 : vector<8x8xf32>
    %577 = vector.extract_strided_slice %555 {offsets = [0, 0], sizes = [8, 8], strides = [1, 1]} : vector<8x32xf32> to vector<8x8xf32>
    %578 = arith.truncf %576 : vector<8x8xf32> to vector<8x8xbf16>
    %579 = arith.truncf %577 : vector<8x8xf32> to vector<8x8xbf16>
    %cst_217 = arith.constant dense<0.000000e+00> : vector<8x8xf32>
    %580 = tpu.matmul %578, %579, %cst_217 {dimension_numbers = #tpu.dot_dimension_numbers<[1], [0], [0], [1], [0, 0, 1, 1], [], []>} : vector<8x8xbf16>, vector<8x8xbf16>, vector<8x8xf32> -> vector<8x8xf32>
    %581 = vector.extract_strided_slice %557 {offsets = [0, 0], sizes = [8, 32], strides = [1, 1]} : vector<32x32xf32> to vector<8x32xf32>
    %582 = arith.truncf %580 : vector<8x8xf32> to vector<8x8xbf16>
    %583 = arith.truncf %581 : vector<8x32xf32> to vector<8x32xbf16>
    %cst_218 = arith.constant dense<0.000000e+00> : vector<8x32xf32>
    %584 = tpu.matmul %582, %583, %cst_218 {dimension_numbers = #tpu.dot_dimension_numbers<[1], [0], [0], [1], [0, 0, 1, 1], [], []>} : vector<8x8xbf16>, vector<8x32xbf16>, vector<8x32xf32> -> vector<8x32xf32>
    %585 = vector.extract_strided_slice %544 {offsets = [0, 8], sizes = [8, 8], strides = [1, 1]} : vector<8x32xf32> to vector<8x8xf32>
    %586 = vector.extract_strided_slice %554 {offsets = [0, 8], sizes = [8, 8], strides = [1, 1]} : vector<8x32xf32> to vector<8x8xf32>
    %587 = arith.truncf %585 : vector<8x8xf32> to vector<8x8xbf16>
    %588 = arith.truncf %586 : vector<8x8xf32> to vector<8x8xbf16>
    %cst_219 = arith.constant dense<0.000000e+00> : vector<8x8xf32>
    %589 = tpu.matmul %587, %588, %cst_219 {dimension_numbers = #tpu.dot_dimension_numbers<[1], [1], [0], [0], [0, 0, 1, 0], [], []>} : vector<8x8xbf16>, vector<8x8xbf16>, vector<8x8xf32> -> vector<8x8xf32>
    %cst_220 = arith.constant 0.353553385 : f32
    %590 = vector.broadcast %cst_220 : f32 to vector<8x8xf32>
    %591 = arith.mulf %589, %590 : vector<8x8xf32>
    %cst_221 = arith.constant dense<0xFF800000> : vector<8xf32>
    %592 = vector.multi_reduction <maximumf>, %591, %cst_221 [1] : vector<8x8xf32> to vector<8xf32>
    %593 = vector.shape_cast %592 : vector<8xf32> to vector<8x1xf32>
    %594 = vector.broadcast %593 : vector<8x1xf32> to vector<8x8xf32>
    %595 = arith.subf %591, %594 : vector<8x8xf32>
    %596 = math.exp %595 : vector<8x8xf32>
    %cst_222 = arith.constant dense<0.000000e+00> : vector<8xf32>
    %597 = vector.multi_reduction <add>, %596, %cst_222 [1] : vector<8x8xf32> to vector<8xf32>
    %598 = vector.shape_cast %597 : vector<8xf32> to vector<8x1xf32>
    %599 = tpu.reciprocal %598 {approx = true} : vector<8x1xf32> -> vector<8x1xf32>
    %600 = vector.broadcast %599 : vector<8x1xf32> to vector<8x8xf32>
    %601 = arith.mulf %596, %600 : vector<8x8xf32>
    %602 = vector.extract_strided_slice %555 {offsets = [0, 8], sizes = [8, 8], strides = [1, 1]} : vector<8x32xf32> to vector<8x8xf32>
    %603 = arith.truncf %601 : vector<8x8xf32> to vector<8x8xbf16>
    %604 = arith.truncf %602 : vector<8x8xf32> to vector<8x8xbf16>
    %cst_223 = arith.constant dense<0.000000e+00> : vector<8x8xf32>
    %605 = tpu.matmul %603, %604, %cst_223 {dimension_numbers = #tpu.dot_dimension_numbers<[1], [0], [0], [1], [0, 0, 1, 1], [], []>} : vector<8x8xbf16>, vector<8x8xbf16>, vector<8x8xf32> -> vector<8x8xf32>
    %606 = vector.extract_strided_slice %557 {offsets = [8, 0], sizes = [8, 32], strides = [1, 1]} : vector<32x32xf32> to vector<8x32xf32>
    %607 = arith.truncf %605 : vector<8x8xf32> to vector<8x8xbf16>
    %608 = arith.truncf %606 : vector<8x32xf32> to vector<8x32xbf16>
    %cst_224 = arith.constant dense<0.000000e+00> : vector<8x32xf32>
    %609 = tpu.matmul %607, %608, %cst_224 {dimension_numbers = #tpu.dot_dimension_numbers<[1], [0], [0], [1], [0, 0, 1, 1], [], []>} : vector<8x8xbf16>, vector<8x32xbf16>, vector<8x32xf32> -> vector<8x32xf32>
    %610 = arith.addf %584, %609 : vector<8x32xf32>
    %611 = vector.extract_strided_slice %544 {offsets = [0, 16], sizes = [8, 8], strides = [1, 1]} : vector<8x32xf32> to vector<8x8xf32>
    %612 = vector.extract_strided_slice %554 {offsets = [0, 16], sizes = [8, 8], strides = [1, 1]} : vector<8x32xf32> to vector<8x8xf32>
    %613 = arith.truncf %611 : vector<8x8xf32> to vector<8x8xbf16>
    %614 = arith.truncf %612 : vector<8x8xf32> to vector<8x8xbf16>
    %cst_225 = arith.constant dense<0.000000e+00> : vector<8x8xf32>
    %615 = tpu.matmul %613, %614, %cst_225 {dimension_numbers = #tpu.dot_dimension_numbers<[1], [1], [0], [0], [0, 0, 1, 0], [], []>} : vector<8x8xbf16>, vector<8x8xbf16>, vector<8x8xf32> -> vector<8x8xf32>
    %cst_226 = arith.constant 0.353553385 : f32
    %616 = vector.broadcast %cst_226 : f32 to vector<8x8xf32>
    %617 = arith.mulf %615, %616 : vector<8x8xf32>
    %cst_227 = arith.constant dense<0xFF800000> : vector<8xf32>
    %618 = vector.multi_reduction <maximumf>, %617, %cst_227 [1] : vector<8x8xf32> to vector<8xf32>
    %619 = vector.shape_cast %618 : vector<8xf32> to vector<8x1xf32>
    %620 = vector.broadcast %619 : vector<8x1xf32> to vector<8x8xf32>
    %621 = arith.subf %617, %620 : vector<8x8xf32>
    %622 = math.exp %621 : vector<8x8xf32>
    %cst_228 = arith.constant dense<0.000000e+00> : vector<8xf32>
    %623 = vector.multi_reduction <add>, %622, %cst_228 [1] : vector<8x8xf32> to vector<8xf32>
    %624 = vector.shape_cast %623 : vector<8xf32> to vector<8x1xf32>
    %625 = tpu.reciprocal %624 {approx = true} : vector<8x1xf32> -> vector<8x1xf32>
    %626 = vector.broadcast %625 : vector<8x1xf32> to vector<8x8xf32>
    %627 = arith.mulf %622, %626 : vector<8x8xf32>
    %628 = vector.extract_strided_slice %555 {offsets = [0, 16], sizes = [8, 8], strides = [1, 1]} : vector<8x32xf32> to vector<8x8xf32>
    %629 = arith.truncf %627 : vector<8x8xf32> to vector<8x8xbf16>
    %630 = arith.truncf %628 : vector<8x8xf32> to vector<8x8xbf16>
    %cst_229 = arith.constant dense<0.000000e+00> : vector<8x8xf32>
    %631 = tpu.matmul %629, %630, %cst_229 {dimension_numbers = #tpu.dot_dimension_numbers<[1], [0], [0], [1], [0, 0, 1, 1], [], []>} : vector<8x8xbf16>, vector<8x8xbf16>, vector<8x8xf32> -> vector<8x8xf32>
    %632 = vector.extract_strided_slice %557 {offsets = [16, 0], sizes = [8, 32], strides = [1, 1]} : vector<32x32xf32> to vector<8x32xf32>
    %633 = arith.truncf %631 : vector<8x8xf32> to vector<8x8xbf16>
    %634 = arith.truncf %632 : vector<8x32xf32> to vector<8x32xbf16>
    %cst_230 = arith.constant dense<0.000000e+00> : vector<8x32xf32>
    %635 = tpu.matmul %633, %634, %cst_230 {dimension_numbers = #tpu.dot_dimension_numbers<[1], [0], [0], [1], [0, 0, 1, 1], [], []>} : vector<8x8xbf16>, vector<8x32xbf16>, vector<8x32xf32> -> vector<8x32xf32>
    %636 = arith.addf %610, %635 : vector<8x32xf32>
    %637 = vector.extract_strided_slice %544 {offsets = [0, 24], sizes = [8, 8], strides = [1, 1]} : vector<8x32xf32> to vector<8x8xf32>
    %638 = vector.extract_strided_slice %554 {offsets = [0, 24], sizes = [8, 8], strides = [1, 1]} : vector<8x32xf32> to vector<8x8xf32>
    %639 = arith.truncf %637 : vector<8x8xf32> to vector<8x8xbf16>
    %640 = arith.truncf %638 : vector<8x8xf32> to vector<8x8xbf16>
    %cst_231 = arith.constant dense<0.000000e+00> : vector<8x8xf32>
    %641 = tpu.matmul %639, %640, %cst_231 {dimension_numbers = #tpu.dot_dimension_numbers<[1], [1], [0], [0], [0, 0, 1, 0], [], []>} : vector<8x8xbf16>, vector<8x8xbf16>, vector<8x8xf32> -> vector<8x8xf32>
    %cst_232 = arith.constant 0.353553385 : f32
    %642 = vector.broadcast %cst_232 : f32 to vector<8x8xf32>
    %643 = arith.mulf %641, %642 : vector<8x8xf32>
    %cst_233 = arith.constant dense<0xFF800000> : vector<8xf32>
    %644 = vector.multi_reduction <maximumf>, %643, %cst_233 [1] : vector<8x8xf32> to vector<8xf32>
    %645 = vector.shape_cast %644 : vector<8xf32> to vector<8x1xf32>
    %646 = vector.broadcast %645 : vector<8x1xf32> to vector<8x8xf32>
    %647 = arith.subf %643, %646 : vector<8x8xf32>
    %648 = math.exp %647 : vector<8x8xf32>
    %cst_234 = arith.constant dense<0.000000e+00> : vector<8xf32>
    %649 = vector.multi_reduction <add>, %648, %cst_234 [1] : vector<8x8xf32> to vector<8xf32>
    %650 = vector.shape_cast %649 : vector<8xf32> to vector<8x1xf32>
    %651 = tpu.reciprocal %650 {approx = true} : vector<8x1xf32> -> vector<8x1xf32>
    %652 = vector.broadcast %651 : vector<8x1xf32> to vector<8x8xf32>
    %653 = arith.mulf %648, %652 : vector<8x8xf32>
    %654 = vector.extract_strided_slice %555 {offsets = [0, 24], sizes = [8, 8], strides = [1, 1]} : vector<8x32xf32> to vector<8x8xf32>
    %655 = arith.truncf %653 : vector<8x8xf32> to vector<8x8xbf16>
    %656 = arith.truncf %654 : vector<8x8xf32> to vector<8x8xbf16>
    %cst_235 = arith.constant dense<0.000000e+00> : vector<8x8xf32>
    %657 = tpu.matmul %655, %656, %cst_235 {dimension_numbers = #tpu.dot_dimension_numbers<[1], [0], [0], [1], [0, 0, 1, 1], [], []>} : vector<8x8xbf16>, vector<8x8xbf16>, vector<8x8xf32> -> vector<8x8xf32>
    %658 = vector.extract_strided_slice %557 {offsets = [24, 0], sizes = [8, 32], strides = [1, 1]} : vector<32x32xf32> to vector<8x32xf32>
    %659 = arith.truncf %657 : vector<8x8xf32> to vector<8x8xbf16>
    %660 = arith.truncf %658 : vector<8x32xf32> to vector<8x32xbf16>
    %cst_236 = arith.constant dense<0.000000e+00> : vector<8x32xf32>
    %661 = tpu.matmul %659, %660, %cst_236 {dimension_numbers = #tpu.dot_dimension_numbers<[1], [0], [0], [1], [0, 0, 1, 1], [], []>} : vector<8x8xbf16>, vector<8x32xbf16>, vector<8x32xf32> -> vector<8x32xf32>
    %662 = arith.addf %636, %661 : vector<8x32xf32>
    %663 = vector.broadcast %559 : vector<1x32xf32> to vector<8x32xf32>
    %664 = arith.addf %662, %663 : vector<8x32xf32>
    %665 = arith.addf %664, %535 : vector<8x32xf32>
    %c1_237 = arith.constant 1 : index
    %c0_238 = arith.constant 0 : index
    %c0_239 = arith.constant 0 : index
    %666 = vector.load %arg18[%c1_237, %c0_238, %c0_239] : memref<2x1x32xf32, #tpu.memory_space<vmem>>, vector<1x1x32xf32>
    %667 = vector.shape_cast %666 : vector<1x1x32xf32> to vector<1x32xf32>
    %c1_240 = arith.constant 1 : index
    %c0_241 = arith.constant 0 : index
    %c0_242 = arith.constant 0 : index
    %668 = vector.load %arg19[%c1_240, %c0_241, %c0_242] : memref<2x1x32xf32, #tpu.memory_space<vmem>>, vector<1x1x32xf32>
    %669 = vector.shape_cast %668 : vector<1x1x32xf32> to vector<1x32xf32>
    %cst_243 = arith.constant dense<0.000000e+00> : vector<8xf32>
    %670 = vector.multi_reduction <add>, %665, %cst_243 [1] : vector<8x32xf32> to vector<8xf32>
    %671 = vector.shape_cast %670 : vector<8xf32> to vector<8x1xf32>
    %cst_244 = arith.constant 3.200000e+01 : f32
    %672 = vector.broadcast %cst_244 : f32 to vector<8x1xf32>
    %673 = arith.divf %671, %672 : vector<8x1xf32>
    %674 = vector.broadcast %673 : vector<8x1xf32> to vector<8x32xf32>
    %675 = arith.subf %665, %674 : vector<8x32xf32>
    %676 = arith.mulf %675, %675 : vector<8x32xf32>
    %cst_245 = arith.constant dense<0.000000e+00> : vector<8xf32>
    %677 = vector.multi_reduction <add>, %676, %cst_245 [1] : vector<8x32xf32> to vector<8xf32>
    %678 = vector.shape_cast %677 : vector<8xf32> to vector<8x1xf32>
    %cst_246 = arith.constant 3.200000e+01 : f32
    %679 = vector.broadcast %cst_246 : f32 to vector<8x1xf32>
    %680 = arith.divf %678, %679 : vector<8x1xf32>
    %cst_247 = arith.constant 9.99999996E-13 : f32
    %681 = vector.broadcast %cst_247 : f32 to vector<8x1xf32>
    %682 = arith.addf %680, %681 : vector<8x1xf32>
    %683 = math.rsqrt %682 : vector<8x1xf32>
    %684 = vector.broadcast %683 : vector<8x1xf32> to vector<8x32xf32>
    %685 = arith.mulf %675, %684 : vector<8x32xf32>
    %686 = vector.broadcast %667 : vector<1x32xf32> to vector<8x32xf32>
    %687 = arith.mulf %685, %686 : vector<8x32xf32>
    %688 = vector.broadcast %669 : vector<1x32xf32> to vector<8x32xf32>
    %689 = arith.addf %687, %688 : vector<8x32xf32>
    %c1_248 = arith.constant 1 : index
    %c0_249 = arith.constant 0 : index
    %c0_250 = arith.constant 0 : index
    %690 = vector.load %arg20[%c1_248, %c0_249, %c0_250] : memref<2x32x64xf32, #tpu.memory_space<vmem>>, vector<1x32x64xf32>
    %691 = vector.shape_cast %690 : vector<1x32x64xf32> to vector<32x64xf32>
    %c1_251 = arith.constant 1 : index
    %c0_252 = arith.constant 0 : index
    %c0_253 = arith.constant 0 : index
    %692 = vector.load %arg21[%c1_251, %c0_252, %c0_253] : memref<2x1x64xf32, #tpu.memory_space<vmem>>, vector<1x1x64xf32>
    %693 = vector.shape_cast %692 : vector<1x1x64xf32> to vector<1x64xf32>
    %c1_254 = arith.constant 1 : index
    %c0_255 = arith.constant 0 : index
    %c0_256 = arith.constant 0 : index
    %694 = vector.load %arg22[%c1_254, %c0_255, %c0_256] : memref<2x64x32xf32, #tpu.memory_space<vmem>>, vector<1x64x32xf32>
    %695 = vector.shape_cast %694 : vector<1x64x32xf32> to vector<64x32xf32>
    %c1_257 = arith.constant 1 : index
    %c0_258 = arith.constant 0 : index
    %c0_259 = arith.constant 0 : index
    %696 = vector.load %arg23[%c1_257, %c0_258, %c0_259] : memref<2x1x32xf32, #tpu.memory_space<vmem>>, vector<1x1x32xf32>
    %697 = vector.shape_cast %696 : vector<1x1x32xf32> to vector<1x32xf32>
    %c1_260 = arith.constant 1 : index
    %c0_261 = arith.constant 0 : index
    %c0_262 = arith.constant 0 : index
    %698 = vector.load %arg24[%c1_260, %c0_261, %c0_262] : memref<2x1x32xf32, #tpu.memory_space<vmem>>, vector<1x1x32xf32>
    %699 = vector.shape_cast %698 : vector<1x1x32xf32> to vector<1x32xf32>
    %c1_263 = arith.constant 1 : index
    %c0_264 = arith.constant 0 : index
    %c0_265 = arith.constant 0 : index
    %700 = vector.load %arg25[%c1_263, %c0_264, %c0_265] : memref<2x1x32xf32, #tpu.memory_space<vmem>>, vector<1x1x32xf32>
    %701 = vector.shape_cast %700 : vector<1x1x32xf32> to vector<1x32xf32>
    %702 = arith.truncf %689 : vector<8x32xf32> to vector<8x32xbf16>
    %703 = arith.truncf %691 : vector<32x64xf32> to vector<32x64xbf16>
    %cst_266 = arith.constant dense<0.000000e+00> : vector<8x64xf32>
    %704 = tpu.matmul %702, %703, %cst_266 {dimension_numbers = #tpu.dot_dimension_numbers<[1], [0], [0], [1], [0, 0, 1, 1], [], []>} : vector<8x32xbf16>, vector<32x64xbf16>, vector<8x64xf32> -> vector<8x64xf32>
    %705 = vector.broadcast %693 : vector<1x64xf32> to vector<8x64xf32>
    %706 = arith.addf %704, %705 : vector<8x64xf32>
    %cst_267 = arith.constant 5.000000e-01 : f32
    %707 = vector.broadcast %cst_267 : f32 to vector<8x64xf32>
    %708 = arith.mulf %707, %706 : vector<8x64xf32>
    %cst_268 = arith.constant 4.471500e-02 : f32
    %709 = vector.broadcast %cst_268 : f32 to vector<8x64xf32>
    %710 = arith.mulf %709, %706 : vector<8x64xf32>
    %711 = arith.mulf %710, %706 : vector<8x64xf32>
    %712 = arith.mulf %711, %706 : vector<8x64xf32>
    %713 = arith.addf %706, %712 : vector<8x64xf32>
    %cst_269 = arith.constant 0.797884583 : f32
    %714 = vector.broadcast %cst_269 : f32 to vector<8x64xf32>
    %715 = arith.mulf %714, %713 : vector<8x64xf32>
    %716 = math.tanh %715 : vector<8x64xf32>
    %cst_270 = arith.constant 1.000000e+00 : f32
    %717 = vector.broadcast %cst_270 : f32 to vector<8x64xf32>
    %718 = arith.addf %717, %716 : vector<8x64xf32>
    %719 = arith.mulf %708, %718 : vector<8x64xf32>
    %720 = arith.truncf %719 : vector<8x64xf32> to vector<8x64xbf16>
    %721 = arith.truncf %695 : vector<64x32xf32> to vector<64x32xbf16>
    %cst_271 = arith.constant dense<0.000000e+00> : vector<8x32xf32>
    %722 = tpu.matmul %720, %721, %cst_271 {dimension_numbers = #tpu.dot_dimension_numbers<[1], [0], [0], [1], [0, 0, 1, 1], [], []>} : vector<8x64xbf16>, vector<64x32xbf16>, vector<8x32xf32> -> vector<8x32xf32>
    %723 = vector.broadcast %697 : vector<1x32xf32> to vector<8x32xf32>
    %724 = arith.addf %722, %723 : vector<8x32xf32>
    %725 = arith.addf %724, %689 : vector<8x32xf32>
    %cst_272 = arith.constant dense<0.000000e+00> : vector<8xf32>
    %726 = vector.multi_reduction <add>, %725, %cst_272 [1] : vector<8x32xf32> to vector<8xf32>
    %727 = vector.shape_cast %726 : vector<8xf32> to vector<8x1xf32>
    %cst_273 = arith.constant 3.200000e+01 : f32
    %728 = vector.broadcast %cst_273 : f32 to vector<8x1xf32>
    %729 = arith.divf %727, %728 : vector<8x1xf32>
    %730 = vector.broadcast %729 : vector<8x1xf32> to vector<8x32xf32>
    %731 = arith.subf %725, %730 : vector<8x32xf32>
    %732 = arith.mulf %731, %731 : vector<8x32xf32>
    %cst_274 = arith.constant dense<0.000000e+00> : vector<8xf32>
    %733 = vector.multi_reduction <add>, %732, %cst_274 [1] : vector<8x32xf32> to vector<8xf32>
    %734 = vector.shape_cast %733 : vector<8xf32> to vector<8x1xf32>
    %cst_275 = arith.constant 3.200000e+01 : f32
    %735 = vector.broadcast %cst_275 : f32 to vector<8x1xf32>
    %736 = arith.divf %734, %735 : vector<8x1xf32>
    %cst_276 = arith.constant 9.99999996E-13 : f32
    %737 = vector.broadcast %cst_276 : f32 to vector<8x1xf32>
    %738 = arith.addf %736, %737 : vector<8x1xf32>
    %739 = math.rsqrt %738 : vector<8x1xf32>
    %740 = vector.broadcast %739 : vector<8x1xf32> to vector<8x32xf32>
    %741 = arith.mulf %731, %740 : vector<8x32xf32>
    %742 = vector.broadcast %699 : vector<1x32xf32> to vector<8x32xf32>
    %743 = arith.mulf %741, %742 : vector<8x32xf32>
    %744 = vector.broadcast %701 : vector<1x32xf32> to vector<8x32xf32>
    %745 = arith.addf %743, %744 : vector<8x32xf32>
    %c0_277 = arith.constant 0 : index
    %c0_278 = arith.constant 0 : index
    %746 = vector.load %arg26[%c0_277, %c0_278] : memref<32x64xf32, #tpu.memory_space<vmem>>, vector<32x64xf32>
    %747 = arith.truncf %745 : vector<8x32xf32> to vector<8x32xbf16>
    %748 = arith.truncf %746 : vector<32x64xf32> to vector<32x64xbf16>
    %cst_279 = arith.constant dense<0.000000e+00> : vector<8x64xf32>
    %749 = tpu.matmul %747, %748, %cst_279 {dimension_numbers = #tpu.dot_dimension_numbers<[1], [0], [0], [1], [0, 0, 1, 1], [], []>} : vector<8x32xbf16>, vector<32x64xbf16>, vector<8x64xf32> -> vector<8x64xf32>
    %c0_280 = arith.constant 0 : index
    %c0_281 = arith.constant 0 : index
    %750 = vector.load %arg27[%c0_280, %c0_281] : memref<1x64xf32, #tpu.memory_space<vmem>>, vector<1x64xf32>
    %751 = vector.broadcast %750 : vector<1x64xf32> to vector<8x64xf32>
    %752 = arith.addf %749, %751 : vector<8x64xf32>
    %c0_282 = arith.constant 0 : index
    %c0_283 = arith.constant 0 : index
    %753 = vector.load %arg28[%c0_282, %c0_283] : memref<8x64xf32, #tpu.memory_space<vmem>>, vector<8x64xf32>
    tpu.vector_store %arg28[%c0_282, %c0_283], %752 {strides = array<i32>} : memref<8x64xf32, #tpu.memory_space<vmem>>, vector<8x64xf32>,
    return
  }
  func.func @transform_0(%arg0: i32) -> (i32, i32) {
    %c0_i32 = arith.constant 0 : i32
    %c0_i32_0 = arith.constant 0 : i32
    return %arg0, %c0_i32 : i32, i32
  }
  func.func @transform_1(%arg0: i32) -> (i32, i32, i32) {
    %c0_i32 = arith.constant 0 : i32
    %c0_i32_0 = arith.constant 0 : i32
    %c0_i32_1 = arith.constant 0 : i32
    return %arg0, %c0_i32, %c0_i32_0 : i32, i32, i32
  }
  func.func @transform_2(%arg0: i32) -> (i32, i32) {
    %c0_i32 = arith.constant 0 : i32
    %c0_i32_0 = arith.constant 0 : i32
    return %arg0, %c0_i32 : i32, i32
  }
  func.func @transform_3(%arg0: i32) -> (i32, i32) {
    %c0_i32 = arith.constant 0 : i32
    %c0_i32_0 = arith.constant 0 : i32
    %c0_i32_1 = arith.constant 0 : i32
    return %c0_i32, %c0_i32_0 : i32, i32
  }
  func.func @transform_4(%arg0: i32) -> (i32, i32) {
    %c0_i32 = arith.constant 0 : i32
    %c0_i32_0 = arith.constant 0 : i32
    %c0_i32_1 = arith.constant 0 : i32
    return %c0_i32, %c0_i32_0 : i32, i32
  }
  func.func @transform_5(%arg0: i32) -> (i32, i32, i32) {
    %c0_i32 = arith.constant 0 : i32
    %c0_i32_0 = arith.constant 0 : i32
    %c0_i32_1 = arith.constant 0 : i32
    %c0_i32_2 = arith.constant 0 : i32
    return %c0_i32, %c0_i32_0, %c0_i32_1 : i32, i32, i32
  }
  func.func @transform_6(%arg0: i32) -> (i32, i32, i32) {
    %c0_i32 = arith.constant 0 : i32
    %c0_i32_0 = arith.constant 0 : i32
    %c0_i32_1 = arith.constant 0 : i32
    %c0_i32_2 = arith.constant 0 : i32
    return %c0_i32, %c0_i32_0, %c0_i32_1 : i32, i32, i32
  }
  func.func @transform_7(%arg0: i32) -> (i32, i32, i32) {
    %c0_i32 = arith.constant 0 : i32
    %c0_i32_0 = arith.constant 0 : i32
    %c0_i32_1 = arith.constant 0 : i32
    %c0_i32_2 = arith.constant 0 : i32
    return %c0_i32, %c0_i32_0, %c0_i32_1 : i32, i32, i32
  }
  func.func @transform_8(%arg0: i32) -> (i32, i32, i32) {
    %c0_i32 = arith.constant 0 : i32
    %c0_i32_0 = arith.constant 0 : i32
    %c0_i32_1 = arith.constant 0 : i32
    %c0_i32_2 = arith.constant 0 : i32
    return %c0_i32, %c0_i32_0, %c0_i32_1 : i32, i32, i32
  }
  func.func @transform_9(%arg0: i32) -> (i32, i32, i32) {
    %c0_i32 = arith.constant 0 : i32
    %c0_i32_0 = arith.constant 0 : i32
    %c0_i32_1 = arith.constant 0 : i32
    %c0_i32_2 = arith.constant 0 : i32
    return %c0_i32, %c0_i32_0, %c0_i32_1 : i32, i32, i32
  }
  func.func @transform_10(%arg0: i32) -> (i32, i32, i32) {
    %c0_i32 = arith.constant 0 : i32
    %c0_i32_0 = arith.constant 0 : i32
    %c0_i32_1 = arith.constant 0 : i32
    %c0_i32_2 = arith.constant 0 : i32
    return %c0_i32, %c0_i32_0, %c0_i32_1 : i32, i32, i32
  }
  func.func @transform_11(%arg0: i32) -> (i32, i32, i32) {
    %c0_i32 = arith.constant 0 : i32
    %c0_i32_0 = arith.constant 0 : i32
    %c0_i32_1 = arith.constant 0 : i32
    %c0_i32_2 = arith.constant 0 : i32
    return %c0_i32, %c0_i32_0, %c0_i32_1 : i32, i32, i32
  }
  func.func @transform_12(%arg0: i32) -> (i32, i32, i32) {
    %c0_i32 = arith.constant 0 : i32
    %c0_i32_0 = arith.constant 0 : i32
    %c0_i32_1 = arith.constant 0 : i32
    %c0_i32_2 = arith.constant 0 : i32
    return %c0_i32, %c0_i32_0, %c0_i32_1 : i32, i32, i32
  }
  func.func @transform_13(%arg0: i32) -> (i32, i32, i32) {
    %c0_i32 = arith.constant 0 : i32
    %c0_i32_0 = arith.constant 0 : i32
    %c0_i32_1 = arith.constant 0 : i32
    %c0_i32_2 = arith.constant 0 : i32
    return %c0_i32, %c0_i32_0, %c0_i32_1 : i32, i32, i32
  }
  func.func @transform_14(%arg0: i32) -> (i32, i32, i32) {
    %c0_i32 = arith.constant 0 : i32
    %c0_i32_0 = arith.constant 0 : i32
    %c0_i32_1 = arith.constant 0 : i32
    %c0_i32_2 = arith.constant 0 : i32
    return %c0_i32, %c0_i32_0, %c0_i32_1 : i32, i32, i32
  }
  func.func @transform_15(%arg0: i32) -> (i32, i32, i32) {
    %c0_i32 = arith.constant 0 : i32
    %c0_i32_0 = arith.constant 0 : i32
    %c0_i32_1 = arith.constant 0 : i32
    %c0_i32_2 = arith.constant 0 : i32
    return %c0_i32, %c0_i32_0, %c0_i32_1 : i32, i32, i32
  }
  func.func @transform_16(%arg0: i32) -> (i32, i32, i32) {
    %c0_i32 = arith.constant 0 : i32
    %c0_i32_0 = arith.constant 0 : i32
    %c0_i32_1 = arith.constant 0 : i32
    %c0_i32_2 = arith.constant 0 : i32
    return %c0_i32, %c0_i32_0, %c0_i32_1 : i32, i32, i32
  }
  func.func @transform_17(%arg0: i32) -> (i32, i32, i32) {
    %c0_i32 = arith.constant 0 : i32
    %c0_i32_0 = arith.constant 0 : i32
    %c0_i32_1 = arith.constant 0 : i32
    %c0_i32_2 = arith.constant 0 : i32
    return %c0_i32, %c0_i32_0, %c0_i32_1 : i32, i32, i32
  }
  func.func @transform_18(%arg0: i32) -> (i32, i32, i32) {
    %c0_i32 = arith.constant 0 : i32
    %c0_i32_0 = arith.constant 0 : i32
    %c0_i32_1 = arith.constant 0 : i32
    %c0_i32_2 = arith.constant 0 : i32
    return %c0_i32, %c0_i32_0, %c0_i32_1 : i32, i32, i32
  }
  func.func @transform_19(%arg0: i32) -> (i32, i32, i32) {
    %c0_i32 = arith.constant 0 : i32
    %c0_i32_0 = arith.constant 0 : i32
    %c0_i32_1 = arith.constant 0 : i32
    %c0_i32_2 = arith.constant 0 : i32
    return %c0_i32, %c0_i32_0, %c0_i32_1 : i32, i32, i32
  }
  func.func @transform_20(%arg0: i32) -> (i32, i32, i32) {
    %c0_i32 = arith.constant 0 : i32
    %c0_i32_0 = arith.constant 0 : i32
    %c0_i32_1 = arith.constant 0 : i32
    %c0_i32_2 = arith.constant 0 : i32
    return %c0_i32, %c0_i32_0, %c0_i32_1 : i32, i32, i32
  }
  func.func @transform_21(%arg0: i32) -> (i32, i32, i32) {
    %c0_i32 = arith.constant 0 : i32
    %c0_i32_0 = arith.constant 0 : i32
    %c0_i32_1 = arith.constant 0 : i32
    %c0_i32_2 = arith.constant 0 : i32
    return %c0_i32, %c0_i32_0, %c0_i32_1 : i32, i32, i32
  }
  func.func @transform_22(%arg0: i32) -> (i32, i32, i32) {
    %c0_i32 = arith.constant 0 : i32
    %c0_i32_0 = arith.constant 0 : i32
    %c0_i32_1 = arith.constant 0 : i32
    %c0_i32_2 = arith.constant 0 : i32
    return %c0_i32, %c0_i32_0, %c0_i32_1 : i32, i32, i32
  }
  func.func @transform_23(%arg0: i32) -> (i32, i32, i32) {
    %c0_i32 = arith.constant 0 : i32
    %c0_i32_0 = arith.constant 0 : i32
    %c0_i32_1 = arith.constant 0 : i32
    %c0_i32_2 = arith.constant 0 : i32
    return %c0_i32, %c0_i32_0, %c0_i32_1 : i32, i32, i32
  }
  func.func @transform_24(%arg0: i32) -> (i32, i32, i32) {
    %c0_i32 = arith.constant 0 : i32
    %c0_i32_0 = arith.constant 0 : i32
    %c0_i32_1 = arith.constant 0 : i32
    %c0_i32_2 = arith.constant 0 : i32
    return %c0_i32, %c0_i32_0, %c0_i32_1 : i32, i32, i32
  }
  func.func @transform_25(%arg0: i32) -> (i32, i32) {
    %c0_i32 = arith.constant 0 : i32
    %c0_i32_0 = arith.constant 0 : i32
    %c0_i32_1 = arith.constant 0 : i32
    return %c0_i32, %c0_i32_0 : i32, i32
  }
  func.func @transform_26(%arg0: i32) -> (i32, i32) {
    %c0_i32 = arith.constant 0 : i32
    %c0_i32_0 = arith.constant 0 : i32
    %c0_i32_1 = arith.constant 0 : i32
    return %c0_i32, %c0_i32_0 : i32, i32
  }
  func.func @transform_27(%arg0: i32) -> (i32, i32) {
    %c0_i32 = arith.constant 0 : i32
    %c0_i32_0 = arith.constant 0 : i32
    return %arg0, %c0_i32 : i32, i32
  }
}

</mosaic_0001>

<llo_original>
// kernel: code_translator_forward.2
$region0: #{code_translator_forward.2}
  #allocation0 [shape = 'u32[]', space=smem, size = 0x4, offset = 0x4, fixed_abs, tag = 'smem constant byte address 0x4 - core index']
  #allocation1 [shape = 'u32[72,128]{1,0:T(1,128)}', space=vmem, size = 0x9000, scoped, tag = 'internal scratch']
  %s0 = inlined_call_operand.vmem [shape: f32[16,32], index: 0, kind: input, shape index: {}]
  %s1 = inlined_call_operand.vmem [shape: f32[2,8,8], index: 1, kind: input, shape index: {}]
  %s2 = inlined_call_operand.vmem [shape: f32[1,32], index: 2, kind: input, shape index: {}]
  %s3 = inlined_call_operand.vmem [shape: f32[1,32], index: 3, kind: input, shape index: {}]
  %s4 = inlined_call_operand.vmem [shape: f32[2,32,96], index: 4, kind: input, shape index: {}]
  %s5 = inlined_call_operand.vmem [shape: f32[2,1,96], index: 5, kind: input, shape index: {}]
  %s6 = inlined_call_operand.vmem [shape: f32[2,32,32], index: 6, kind: input, shape index: {}]
  %s7 = inlined_call_operand.vmem [shape: f32[2,1,32], index: 7, kind: input, shape index: {}]
  %s8 = inlined_call_operand.vmem [shape: f32[2,1,32], index: 8, kind: input, shape index: {}]
  %s9 = inlined_call_operand.vmem [shape: f32[2,1,32], index: 9, kind: input, shape index: {}]
  %s10 = inlined_call_operand.vmem [shape: f32[2,32,64], index: 10, kind: input, shape index: {}]
  %s11 = inlined_call_operand.vmem [shape: f32[2,1,64], index: 11, kind: input, shape index: {}]
  %s12 = inlined_call_operand.vmem [shape: f32[2,64,32], index: 12, kind: input, shape index: {}]
  %s13 = inlined_call_operand.vmem [shape: f32[2,1,32], index: 13, kind: input, shape index: {}]
  %s14 = inlined_call_operand.vmem [shape: f32[2,1,32], index: 14, kind: input, shape index: {}]
  %s15 = inlined_call_operand.vmem [shape: f32[2,1,32], index: 15, kind: input, shape index: {}]
  %s16 = inlined_call_operand.vmem [shape: f32[16,32], index: 16, kind: output, shape index: {}]
  %s17 = sld [smem:[#allocation0]]
  $region97: #{code_translator_forward.2} parent=0
    _
  %s19 = ssub.s32 1, %s17
  %s20 = scalar_select 0, %s19, %s17
  loop: start=0, step=1, limit=4
  $region2: #{code_translator_forward.2} parent=0 // loop_pre_header
    _
  $region3: #{code_translator_forward.2} parent=0 // loop_header
    %s22 = sphi 0, %s26
    %p23 = scmp.ge.s32.totalorder %s22, 4
    %s32 = sphi 0, %s34
    %s35 = sphi 0, %s32
    %s36 = sphi 0, %s35
    %s52 = sphi 0, %s36
    %s58 = sphi 0, %s60
    %s61 = sphi 0, %s58
    %s62 = sphi 0, %s61
    %s78 = sphi 0, %s62
    %s82 = sphi 0, %s82
    %s84 = sphi 0, %s82
    %s85 = sphi 0, %s84
    %s99 = sphi 0, %s85
    %s103 = sphi 0, %s103
    %s105 = sphi 0, %s103
    %s106 = sphi 0, %s105
    %s120 = sphi 0, %s106
    %s124 = sphi 0, %s124
    %s126 = sphi 0, %s124
    %s127 = sphi 0, %s126
    %s141 = sphi 0, %s127
    %s145 = sphi 0, %s145
    %s147 = sphi 0, %s145
    %s148 = sphi 0, %s147
    %s162 = sphi 0, %s148
    %s166 = sphi 0, %s166
    %s168 = sphi 0, %s166
    %s169 = sphi 0, %s168
    %s183 = sphi 0, %s169
    %s187 = sphi 0, %s187
    %s189 = sphi 0, %s187
    %s190 = sphi 0, %s189
    %s204 = sphi 0, %s190
    %s208 = sphi 0, %s208
    %s210 = sphi 0, %s208
    %s211 = sphi 0, %s210
    %s225 = sphi 0, %s211
    %s229 = sphi 0, %s229
    %s231 = sphi 0, %s229
    %s232 = sphi 0, %s231
    %s246 = sphi 0, %s232
    %s250 = sphi 0, %s250
    %s252 = sphi 0, %s250
    %s253 = sphi 0, %s252
    %s267 = sphi 0, %s253
    %s271 = sphi 0, %s271
    %s273 = sphi 0, %s271
    %s274 = sphi 0, %s273
    %s288 = sphi 0, %s274
    %s292 = sphi 0, %s292
    %s294 = sphi 0, %s292
    %s295 = sphi 0, %s294
    %s309 = sphi 0, %s295
    %s313 = sphi 0, %s313
    %s315 = sphi 0, %s313
    %s316 = sphi 0, %s315
    %s330 = sphi 0, %s316
    %s334 = sphi 0, %s334
    %s336 = sphi 0, %s334
    %s337 = sphi 0, %s336
    %s351 = sphi 0, %s337
    %s355 = sphi 0, %s355
    %s357 = sphi 0, %s355
    %s358 = sphi 0, %s357
    %s372 = sphi 0, %s358
    %s378 = sphi 0, %s380
    %s381 = sphi 0, %s378
    %s382 = sphi 0, %s381
    %s398 = sphi 0, %s382
  $region4: #{code_translator_forward.2} parent=0 // loop_header_branch
    %25 = sbr.rel (%p23) target = $region8
  $region5: #{code_translator_forward.2} parent=0 // loop_body
    %s27 = ssub.s32 %s22, 1
    %s28 = ssub.s32 %s22, 2
    %s29 = sadd.s32 %s22, 1
    %s30 = ssub.s32 %s22, %s29
    %p31 = scmp.eq.s32.totalorder %s30, 0
    %s33 = sadd.s32 %s32, 1
    %s34 = scalar_select %p31, %s32, %s33
    %p37 = pneg %p31
    %p38 = scmp.eq.s32.totalorder %s22, 1
    %p39 = por %p37, %p38
    %p40 = scmp.ne.s32.totalorder %s32, %s35
    %p41 = scmp.eq.s32.totalorder %s22, 0
    %p42 = por %p40, %p41
    %p43 = scmp.ne.s32.totalorder %s32, %s35
    %p44 = scmp.eq.s32.totalorder %s27, 1
    %p45 = por %p43, %p44
    %p46 = scmp.ne.s32.totalorder %s35, %s36
    %p47 = scmp.eq.s32.totalorder %s27, 0
    %p48 = por %p46, %p47
    %p49 = scmp.ne.s32.totalorder %s35, %s36
    %p50 = scmp.eq.s32.totalorder %s28, 1
    %p51 = por %p49, %p50
    %p53 = scmp.ne.s32.totalorder %s36, %s52
    %p54 = scmp.eq.s32.totalorder %s28, 0
    %p55 = por %p53, %p54
    %s56 = ssub.s32 %s22, %s29
    %p57 = scmp.eq.s32.totalorder %s56, 0
    %s59 = sadd.s32 %s58, 1
    %s60 = scalar_select %p57, %s58, %s59
    %p63 = pneg %p57
    %p64 = scmp.eq.s32.totalorder %s22, 1
    %p65 = por %p63, %p64
    %p66 = scmp.ne.s32.totalorder %s58, %s61
    %p67 = scmp.eq.s32.totalorder %s22, 0
    %p68 = por %p66, %p67
    %p69 = scmp.ne.s32.totalorder %s58, %s61
    %p70 = scmp.eq.s32.totalorder %s27, 1
    %p71 = por %p69, %p70
    %p72 = scmp.ne.s32.totalorder %s61, %s62
    %p73 = scmp.eq.s32.totalorder %s27, 0
    %p74 = por %p72, %p73
    %p75 = scmp.ne.s32.totalorder %s61, %s62
    %p76 = scmp.eq.s32.totalorder %s28, 1
    %p77 = por %p75, %p76
    %p79 = scmp.ne.s32.totalorder %s62, %s78
    %p80 = scmp.eq.s32.totalorder %s28, 0
    %p81 = por %p79, %p80
    %s83 = sadd.s32 %s82, 1
    %p86 = scmp.eq.s32.totalorder %s22, 1
    %p87 = scmp.ne.s32.totalorder %s82, %s84
    %p88 = scmp.eq.s32.totalorder %s22, 0
    %p89 = por %p87, %p88
    %p90 = scmp.ne.s32.totalorder %s82, %s84
    %p91 = scmp.eq.s32.totalorder %s27, 1
    %p92 = por %p90, %p91
    %p93 = scmp.ne.s32.totalorder %s84, %s85
    %p94 = scmp.eq.s32.totalorder %s27, 0
    %p95 = por %p93, %p94
    %p96 = scmp.ne.s32.totalorder %s84, %s85
    %p97 = scmp.eq.s32.totalorder %s28, 1
    %p98 = por %p96, %p97
    %p100 = scmp.ne.s32.totalorder %s85, %s99
    %p101 = scmp.eq.s32.totalorder %s28, 0
    %p102 = por %p100, %p101
    %s104 = sadd.s32 %s103, 1
    %p107 = scmp.eq.s32.totalorder %s22, 1
    %p108 = scmp.ne.s32.totalorder %s103, %s105
    %p109 = scmp.eq.s32.totalorder %s22, 0
    %p110 = por %p108, %p109
    %p111 = scmp.ne.s32.totalorder %s103, %s105
    %p112 = scmp.eq.s32.totalorder %s27, 1
    %p113 = por %p111, %p112
    %p114 = scmp.ne.s32.totalorder %s105, %s106
    %p115 = scmp.eq.s32.totalorder %s27, 0
    %p116 = por %p114, %p115
    %p117 = scmp.ne.s32.totalorder %s105, %s106
    %p118 = scmp.eq.s32.totalorder %s28, 1
    %p119 = por %p117, %p118
    %p121 = scmp.ne.s32.totalorder %s106, %s120
    %p122 = scmp.eq.s32.totalorder %s28, 0
    %p123 = por %p121, %p122
    %s125 = sadd.s32 %s124, 1
    %p128 = scmp.eq.s32.totalorder %s22, 1
    %p129 = scmp.ne.s32.totalorder %s124, %s126
    %p130 = scmp.eq.s32.totalorder %s22, 0
    %p131 = por %p129, %p130
    %p132 = scmp.ne.s32.totalorder %s124, %s126
    %p133 = scmp.eq.s32.totalorder %s27, 1
    %p134 = por %p132, %p133
    %p135 = scmp.ne.s32.totalorder %s126, %s127
    %p136 = scmp.eq.s32.totalorder %s27, 0
    %p137 = por %p135, %p136
    %p138 = scmp.ne.s32.totalorder %s126, %s127
    %p139 = scmp.eq.s32.totalorder %s28, 1
    %p140 = por %p138, %p139
    %p142 = scmp.ne.s32.totalorder %s127, %s141
    %p143 = scmp.eq.s32.totalorder %s28, 0
    %p144 = por %p142, %p143
    %s146 = sadd.s32 %s145, 1
    %p149 = scmp.eq.s32.totalorder %s22, 1
    %p150 = scmp.ne.s32.totalorder %s145, %s147
    %p151 = scmp.eq.s32.totalorder %s22, 0
    %p152 = por %p150, %p151
    %p153 = scmp.ne.s32.totalorder %s145, %s147
    %p154 = scmp.eq.s32.totalorder %s27, 1
    %p155 = por %p153, %p154
    %p156 = scmp.ne.s32.totalorder %s147, %s148
    %p157 = scmp.eq.s32.totalorder %s27, 0
    %p158 = por %p156, %p157
    %p159 = scmp.ne.s32.totalorder %s147, %s148
    %p160 = scmp.eq.s32.totalorder %s28, 1
    %p161 = por %p159, %p160
    %p163 = scmp.ne.s32.totalorder %s148, %s162
    %p164 = scmp.eq.s32.totalorder %s28, 0
    %p165 = por %p163, %p164
    %s167 = sadd.s32 %s166, 1
    %p170 = scmp.eq.s32.totalorder %s22, 1
    %p171 = scmp.ne.s32.totalorder %s166, %s168
    %p172 = scmp.eq.s32.totalorder %s22, 0
    %p173 = por %p171, %p172
    %p174 = scmp.ne.s32.totalorder %s166, %s168
    %p175 = scmp.eq.s32.totalorder %s27, 1
    %p176 = por %p174, %p175
    %p177 = scmp.ne.s32.totalorder %s168, %s169
    %p178 = scmp.eq.s32.totalorder %s27, 0
    %p179 = por %p177, %p178
    %p180 = scmp.ne.s32.totalorder %s168, %s169
    %p181 = scmp.eq.s32.totalorder %s28, 1
    %p182 = por %p180, %p181
    %p184 = scmp.ne.s32.totalorder %s169, %s183
    %p185 = scmp.eq.s32.totalorder %s28, 0
    %p186 = por %p184, %p185
    %s188 = sadd.s32 %s187, 1
    %p191 = scmp.eq.s32.totalorder %s22, 1
    %p192 = scmp.ne.s32.totalorder %s187, %s189
    %p193 = scmp.eq.s32.totalorder %s22, 0
    %p194 = por %p192, %p193
    %p195 = scmp.ne.s32.totalorder %s187, %s189
    %p196 = scmp.eq.s32.totalorder %s27, 1
    %p197 = por %p195, %p196
    %p198 = scmp.ne.s32.totalorder %s189, %s190
    %p199 = scmp.eq.s32.totalorder %s27, 0
    %p200 = por %p198, %p199
    %p201 = scmp.ne.s32.totalorder %s189, %s190
    %p202 = scmp.eq.s32.totalorder %s28, 1
    %p203 = por %p201, %p202
    %p205 = scmp.ne.s32.totalorder %s190, %s204
    %p206 = scmp.eq.s32.totalorder %s28, 0
    %p207 = por %p205, %p206
    %s209 = sadd.s32 %s208, 1
    %p212 = scmp.eq.s32.totalorder %s22, 1
    %p213 = scmp.ne.s32.totalorder %s208, %s210
    %p214 = scmp.eq.s32.totalorder %s22, 0
    %p215 = por %p213, %p214
    %p216 = scmp.ne.s32.totalorder %s208, %s210
    %p217 = scmp.eq.s32.totalorder %s27, 1
    %p218 = por %p216, %p217
    %p219 = scmp.ne.s32.totalorder %s210, %s211
    %p220 = scmp.eq.s32.totalorder %s27, 0
    %p221 = por %p219, %p220
    %p222 = scmp.ne.s32.totalorder %s210, %s211
    %p223 = scmp.eq.s32.totalorder %s28, 1
    %p224 = por %p222, %p223
    %p226 = scmp.ne.s32.totalorder %s211, %s225
    %p227 = scmp.eq.s32.totalorder %s28, 0
    %p228 = por %p226, %p227
    %s230 = sadd.s32 %s229, 1
    %p233 = scmp.eq.s32.totalorder %s22, 1
    %p234 = scmp.ne.s32.totalorder %s229, %s231
    %p235 = scmp.eq.s32.totalorder %s22, 0
    %p236 = por %p234, %p235
    %p237 = scmp.ne.s32.totalorder %s229, %s231
    %p238 = scmp.eq.s32.totalorder %s27, 1
    %p239 = por %p237, %p238
    %p240 = scmp.ne.s32.totalorder %s231, %s232
    %p241 = scmp.eq.s32.totalorder %s27, 0
    %p242 = por %p240, %p241
    %p243 = scmp.ne.s32.totalorder %s231, %s232
    %p244 = scmp.eq.s32.totalorder %s28, 1
    %p245 = por %p243, %p244
    %p247 = scmp.ne.s32.totalorder %s232, %s246
    %p248 = scmp.eq.s32.totalorder %s28, 0
    %p249 = por %p247, %p248
    %s251 = sadd.s32 %s250, 1
    %p254 = scmp.eq.s32.totalorder %s22, 1
    %p255 = scmp.ne.s32.totalorder %s250, %s252
    %p256 = scmp.eq.s32.totalorder %s22, 0
    %p257 = por %p255, %p256
    %p258 = scmp.ne.s32.totalorder %s250, %s252
    %p259 = scmp.eq.s32.totalorder %s27, 1
    %p260 = por %p258, %p259
    %p261 = scmp.ne.s32.totalorder %s252, %s253
    %p262 = scmp.eq.s32.totalorder %s27, 0
    %p263 = por %p261, %p262
    %p264 = scmp.ne.s32.totalorder %s252, %s253
    %p265 = scmp.eq.s32.totalorder %s28, 1
    %p266 = por %p264, %p265
    %p268 = scmp.ne.s32.totalorder %s253, %s267
    %p269 = scmp.eq.s32.totalorder %s28, 0
    %p270 = por %p268, %p269
    %s272 = sadd.s32 %s271, 1
    %p275 = scmp.eq.s32.totalorder %s22, 1
    %p276 = scmp.ne.s32.totalorder %s271, %s273
    %p277 = scmp.eq.s32.totalorder %s22, 0
    %p278 = por %p276, %p277
    %p279 = scmp.ne.s32.totalorder %s271, %s273
    %p280 = scmp.eq.s32.totalorder %s27, 1
    %p281 = por %p279, %p280
    %p282 = scmp.ne.s32.totalorder %s273, %s274
    %p283 = scmp.eq.s32.totalorder %s27, 0
    %p284 = por %p282, %p283
    %p285 = scmp.ne.s32.totalorder %s273, %s274
    %p286 = scmp.eq.s32.totalorder %s28, 1
    %p287 = por %p285, %p286
    %p289 = scmp.ne.s32.totalorder %s274, %s288
    %p290 = scmp.eq.s32.totalorder %s28, 0
    %p291 = por %p289, %p290
    %s293 = sadd.s32 %s292, 1
    %p296 = scmp.eq.s32.totalorder %s22, 1
    %p297 = scmp.ne.s32.totalorder %s292, %s294
    %p298 = scmp.eq.s32.totalorder %s22, 0
    %p299 = por %p297, %p298
    %p300 = scmp.ne.s32.totalorder %s292, %s294
    %p301 = scmp.eq.s32.totalorder %s27, 1
    %p302 = por %p300, %p301
    %p303 = scmp.ne.s32.totalorder %s294, %s295
    %p304 = scmp.eq.s32.totalorder %s27, 0
    %p305 = por %p303, %p304
    %p306 = scmp.ne.s32.totalorder %s294, %s295
    %p307 = scmp.eq.s32.totalorder %s28, 1
    %p308 = por %p306, %p307
    %p310 = scmp.ne.s32.totalorder %s295, %s309
    %p311 = scmp.eq.s32.totalorder %s28, 0
    %p312 = por %p310, %p311
    %s314 = sadd.s32 %s313, 1
    %p317 = scmp.eq.s32.totalorder %s22, 1
    %p318 = scmp.ne.s32.totalorder %s313, %s315
    %p319 = scmp.eq.s32.totalorder %s22, 0
    %p320 = por %p318, %p319
    %p321 = scmp.ne.s32.totalorder %s313, %s315
    %p322 = scmp.eq.s32.totalorder %s27, 1
    %p323 = por %p321, %p322
    %p324 = scmp.ne.s32.totalorder %s315, %s316
    %p325 = scmp.eq.s32.totalorder %s27, 0
    %p326 = por %p324, %p325
    %p327 = scmp.ne.s32.totalorder %s315, %s316
    %p328 = scmp.eq.s32.totalorder %s28, 1
    %p329 = por %p327, %p328
    %p331 = scmp.ne.s32.totalorder %s316, %s330
    %p332 = scmp.eq.s32.totalorder %s28, 0
    %p333 = por %p331, %p332
    %s335 = sadd.s32 %s334, 1
    %p338 = scmp.eq.s32.totalorder %s22, 1
    %p339 = scmp.ne.s32.totalorder %s334, %s336
    %p340 = scmp.eq.s32.totalorder %s22, 0
    %p341 = por %p339, %p340
    %p342 = scmp.ne.s32.totalorder %s334, %s336
    %p343 = scmp.eq.s32.totalorder %s27, 1
    %p344 = por %p342, %p343
    %p345 = scmp.ne.s32.totalorder %s336, %s337
    %p346 = scmp.eq.s32.totalorder %s27, 0
    %p347 = por %p345, %p346
    %p348 = scmp.ne.s32.totalorder %s336, %s337
    %p349 = scmp.eq.s32.totalorder %s28, 1
    %p350 = por %p348, %p349
    %p352 = scmp.ne.s32.totalorder %s337, %s351
    %p353 = scmp.eq.s32.totalorder %s28, 0
    %p354 = por %p352, %p353
    %s356 = sadd.s32 %s355, 1
    %p359 = scmp.eq.s32.totalorder %s22, 1
    %p360 = scmp.ne.s32.totalorder %s355, %s357
    %p361 = scmp.eq.s32.totalorder %s22, 0
    %p362 = por %p360, %p361
    %p363 = scmp.ne.s32.totalorder %s355, %s357
    %p364 = scmp.eq.s32.totalorder %s27, 1
    %p365 = por %p363, %p364
    %p366 = scmp.ne.s32.totalorder %s357, %s358
    %p367 = scmp.eq.s32.totalorder %s27, 0
    %p368 = por %p366, %p367
    %p369 = scmp.ne.s32.totalorder %s357, %s358
    %p370 = scmp.eq.s32.totalorder %s28, 1
    %p371 = por %p369, %p370
    %p373 = scmp.ne.s32.totalorder %s358, %s372
    %p374 = scmp.eq.s32.totalorder %s28, 0
    %p375 = por %p373, %p374
    %s376 = ssub.s32 %s22, %s29
    %p377 = scmp.eq.s32.totalorder %s376, 0
    %s379 = sadd.s32 %s378, 1
    %s380 = scalar_select %p377, %s378, %s379
    %p383 = pneg %p377
    %p384 = scmp.eq.s32.totalorder %s22, 1
    %p385 = por %p383, %p384
    %p386 = scmp.ne.s32.totalorder %s378, %s381
    %p387 = scmp.eq.s32.totalorder %s22, 0
    %p388 = por %p386, %p387
    %p389 = scmp.ne.s32.totalorder %s378, %s381
    %p390 = scmp.eq.s32.totalorder %s27, 1
    %p391 = por %p389, %p390
    %p392 = scmp.ne.s32.totalorder %s381, %s382
    %p393 = scmp.eq.s32.totalorder %s27, 0
    %p394 = por %p392, %p393
    %p395 = scmp.ne.s32.totalorder %s381, %s382
    %p396 = scmp.eq.s32.totalorder %s28, 1
    %p397 = por %p395, %p396
    %p399 = scmp.ne.s32.totalorder %s382, %s398
    %p400 = scmp.eq.s32.totalorder %s28, 0
    %p401 = por %p399, %p400
    %p402 = scmp.le.s32.totalorder 1, %s22
    %p403 = scmp.lt.s32.totalorder %s22, 3
    %p404 = pnand %p402, %p403
    %p405 = pneg %p404
    // Predicated region
    $region9: #{code_translator_forward.2} parent=5 // pred_check
      _
    $region10: #{code_translator_forward.2} parent=5 // pred_check_branch
      %407 = sbr.rel (%p404) target = $region12
    $region11: #{code_translator_forward.2} parent=5 // pred_region
      %s408 = ssub.s32 %s22, 1
      // Predicated region
      $region13: #{code_translator_forward.2} parent=11 // pred_check
        %p409 = pneg %p95
      $region14: #{code_translator_forward.2} parent=11 // pred_check_branch
        %411 = sbr.rel (%p409) target = $region16
      $region15: #{code_translator_forward.2} parent=11 // pred_region
        _
      $region16: #{code_translator_forward.2} parent=11 // pred_fallthru
        _
      // Predicated region
      $region17: #{code_translator_forward.2} parent=11 // pred_check
        %p412 = pneg %p116
      $region18: #{code_translator_forward.2} parent=11 // pred_check_branch
        %414 = sbr.rel (%p412) target = $region20
      $region19: #{code_translator_forward.2} parent=11 // pred_region
        _
      $region20: #{code_translator_forward.2} parent=11 // pred_fallthru
        _
      // Predicated region
      $region21: #{code_translator_forward.2} parent=11 // pred_check
        %p415 = pneg %p137
      $region22: #{code_translator_forward.2} parent=11 // pred_check_branch
        %417 = sbr.rel (%p415) target = $region24
      $region23: #{code_translator_forward.2} parent=11 // pred_region
        _
      $region24: #{code_translator_forward.2} parent=11 // pred_fallthru
        _
      // Predicated region
      $region25: #{code_translator_forward.2} parent=11 // pred_check
        %p418 = pneg %p158
      $region26: #{code_translator_forward.2} parent=11 // pred_check_branch
        %420 = sbr.rel (%p418) target = $region28
      $region27: #{code_translator_forward.2} parent=11 // pred_region
        _
      $region28: #{code_translator_forward.2} parent=11 // pred_fallthru
        _
      // Predicated region
      $region29: #{code_translator_forward.2} parent=11 // pred_check
        %p421 = pneg %p179
      $region30: #{code_translator_forward.2} parent=11 // pred_check_branch
        %423 = sbr.rel (%p421) target = $region32
      $region31: #{code_translator_forward.2} parent=11 // pred_region
        _
      $region32: #{code_translator_forward.2} parent=11 // pred_fallthru
        _
      // Predicated region
      $region33: #{code_translator_forward.2} parent=11 // pred_check
        %p424 = pneg %p200
      $region34: #{code_translator_forward.2} parent=11 // pred_check_branch
        %426 = sbr.rel (%p424) target = $region36
      $region35: #{code_translator_forward.2} parent=11 // pred_region
        _
      $region36: #{code_translator_forward.2} parent=11 // pred_fallthru
        _
      // Predicated region
      $region37: #{code_translator_forward.2} parent=11 // pred_check
        %p427 = pneg %p221
      $region38: #{code_translator_forward.2} parent=11 // pred_check_branch
        %429 = sbr.rel (%p427) target = $region40
      $region39: #{code_translator_forward.2} parent=11 // pred_region
        _
      $region40: #{code_translator_forward.2} parent=11 // pred_fallthru
        _
      // Predicated region
      $region41: #{code_translator_forward.2} parent=11 // pred_check
        %p430 = pneg %p242
      $region42: #{code_translator_forward.2} parent=11 // pred_check_branch
        %432 = sbr.rel (%p430) target = $region44
      $region43: #{code_translator_forward.2} parent=11 // pred_region
        _
      $region44: #{code_translator_forward.2} parent=11 // pred_fallthru
        _
      // Predicated region
      $region45: #{code_translator_forward.2} parent=11 // pred_check
        %p433 = pneg %p263
      $region46: #{code_translator_forward.2} parent=11 // pred_check_branch
        %435 = sbr.rel (%p433) target = $region48
      $region47: #{code_translator_forward.2} parent=11 // pred_region
        _
      $region48: #{code_translator_forward.2} parent=11 // pred_fallthru
        _
      // Predicated region
      $region49: #{code_translator_forward.2} parent=11 // pred_check
        %p436 = pneg %p284
      $region50: #{code_translator_forward.2} parent=11 // pred_check_branch
        %438 = sbr.rel (%p436) target = $region52
      $region51: #{code_translator_forward.2} parent=11 // pred_region
        _
      $region52: #{code_translator_forward.2} parent=11 // pred_fallthru
        _
      // Predicated region
      $region53: #{code_translator_forward.2} parent=11 // pred_check
        %p439 = pneg %p305
      $region54: #{code_translator_forward.2} parent=11 // pred_check_branch
        %441 = sbr.rel (%p439) target = $region56
      $region55: #{code_translator_forward.2} parent=11 // pred_region
        _
      $region56: #{code_translator_forward.2} parent=11 // pred_fallthru
        _
      // Predicated region
      $region57: #{code_translator_forward.2} parent=11 // pred_check
        %p442 = pneg %p326
      $region58: #{code_translator_forward.2} parent=11 // pred_check_branch
        %444 = sbr.rel (%p442) target = $region60
      $region59: #{code_translator_forward.2} parent=11 // pred_region
        _
      $region60: #{code_translator_forward.2} parent=11 // pred_fallthru
        _
      // Predicated region
      $region61: #{code_translator_forward.2} parent=11 // pred_check
        %p445 = pneg %p347
      $region62: #{code_translator_forward.2} parent=11 // pred_check_branch
        %447 = sbr.rel (%p445) target = $region64
      $region63: #{code_translator_forward.2} parent=11 // pred_region
        _
      $region64: #{code_translator_forward.2} parent=11 // pred_fallthru
        _
      // Predicated region
      $region65: #{code_translator_forward.2} parent=11 // pred_check
        %p448 = pneg %p368
      $region66: #{code_translator_forward.2} parent=11 // pred_check_branch
        %450 = sbr.rel (%p448) target = $region68
      $region67: #{code_translator_forward.2} parent=11 // pred_region
        _
      $region68: #{code_translator_forward.2} parent=11 // pred_fallthru
        _
    $region12: #{code_translator_forward.2} parent=5 // pred_fallthru
      _
    %p451 = scmp.lt.s32.totalorder %s22, 2
    // Predicated region
    $region69: #{code_translator_forward.2} parent=5 // pred_check
      %p452 = pneg %p451
    $region70: #{code_translator_forward.2} parent=5 // pred_check_branch
      %454 = sbr.rel (%p452) target = $region72
    $region71: #{code_translator_forward.2} parent=5 // pred_region
      // Predicated region
      $region73: #{code_translator_forward.2} parent=71 // pred_check
        %p455 = pneg %p42
      $region74: #{code_translator_forward.2} parent=71 // pred_check_branch
        %457 = sbr.rel (%p455) target = $region76
      $region75: #{code_translator_forward.2} parent=71 // pred_region
        %p458 = scmp.lt.s32.totalorder %s22, 1
        %s459 = scalar_select %p458, %s22, 1
        %s460 = smul.addr %s459, 8
        %s461 = scalar_lea.vmem %s0, %s460
      $region76: #{code_translator_forward.2} parent=71 // pred_fallthru
        _
      // Predicated region
      $region77: #{code_translator_forward.2} parent=71 // pred_check
        %p462 = pneg %p68
      $region78: #{code_translator_forward.2} parent=71 // pred_check_branch
        %464 = sbr.rel (%p462) target = $region80
      $region79: #{code_translator_forward.2} parent=71 // pred_region
        %p465 = scmp.lt.s32.totalorder %s22, 1
        %s466 = scalar_select %p465, %s22, 1
        %s467 = smul.addr %s466, 8
        %s468 = scalar_lea.vmem %s1, %s467
      $region80: #{code_translator_forward.2} parent=71 // pred_fallthru
        _
    $region72: #{code_translator_forward.2} parent=5 // pred_fallthru
      _
    %p469 = scmp.le.s32.totalorder 1, %s22
    %p470 = scmp.lt.s32.totalorder %s22, 3
    %p471 = pnand %p469, %p470
    %p472 = pneg %p471
    // Predicated region
    $region81: #{code_translator_forward.2} parent=5 // pred_check
      _
    $region82: #{code_translator_forward.2} parent=5 // pred_check_branch
      %474 = sbr.rel (%p471) target = $region84
    $region83: #{code_translator_forward.2} parent=5 // pred_region
      %s475 = ssub.s32 %s22, 1
      %p476 = scmp.lt.s32.totalorder %s27, 1
      %s477 = scalar_select %p476, %s27, 1
      %s478 = smul.addr %s477, 8
      %s479 = scalar_lea.vmem %s0, %s478
      %p480 = pneg %p48
      %p481 = pneg %p45
      %p482 = scmp.lt.s32.totalorder %s27, 1
      %s483 = scalar_select %p482, %s27, 1
      %s484 = smul.addr %s483, 8
      %s485 = scalar_lea.vmem %s1, %s484
      %p486 = pneg %p74
      %p487 = pneg %p71
      %p488 = pneg %p95
      %p489 = pneg %p92
      %p490 = pneg %p116
      %p491 = pneg %p113
      %p492 = pneg %p137
      %p493 = pneg %p134
      %p494 = pneg %p158
      %p495 = pneg %p155
      %p496 = pneg %p179
      %p497 = pneg %p176
      %p498 = pneg %p200
      %p499 = pneg %p197
      %p500 = pneg %p221
      %p501 = pneg %p218
      %p502 = pneg %p242
      %p503 = pneg %p239
      %p504 = pneg %p263
      %p505 = pneg %p260
      %p506 = pneg %p284
      %p507 = pneg %p281
      %p508 = pneg %p305
      %p509 = pneg %p302
      %p510 = pneg %p326
      %p511 = pneg %p323
      %p512 = pneg %p347
      %p513 = pneg %p344
      %p514 = pneg %p368
      %p515 = pneg %p365
      %p516 = pneg %p394
      %p517 = pneg %p391
      %p518 = scmp.lt.s32.totalorder %s27, 1
      %s519 = scalar_select %p518, %s27, 1
      %s520 = smul.addr %s519, 8
      %s521 = scalar_lea.vmem %s16, %s520
      %p522 = scmp.lt.s32.totalorder %s27, 1
      %s523 = scalar_select %p522, %s27, 1
      %s524 = smul.addr %s523, 8
      %s525 = scalar_lea.vmem %s0, %s524
      %p526 = scmp.lt.s32.totalorder %s27, 1
      %s527 = scalar_select %p526, %s27, 1
      %s528 = smul.addr %s527, 8
      %s529 = scalar_lea.vmem %s1, %s528
      %p530 = scmp.lt.s32.totalorder %s27, 1
      %s531 = scalar_select %p530, %s27, 1
      %s532 = smul.addr %s531, 8
      %s533 = scalar_lea.vmem %s16, %s532
      %v535 = vld [vmem:[%s529] sm:$0xff]
      %v536 = vld [vmem:[%s525] sm:$0xff]
      %v537 = vld [vmem:[%s2] sm:$0x1]
      %v538 = vld [vmem:[%s3] sm:$0x1]
      %vm539 = vcmask 261120
      %v540 = vsel %vm539, %v536, 0.0
      %541 = vadd.xlane.f32.xlu0 %v540
      %v542 = vpop.xlane.xlu0 %541
      %v543 = vrcp.pop 32.0
      %v544 = vmul.f32 32.0, %v543
      %v545 = vsub.f32 1.0, %v544
      %v546 = vmul.f32 %v543, %v545
      %v547 = vadd.f32 %v543, %v546
      %vm548 = vweird.f32 %v543
      %v549 = vsel %vm548, %v543, %v547
      %v550 = vmul.f32 %v542, %v549
      %v551 = vsub.f32 %v536, %v550
      %v552 = vmul.f32 %v551, %v551
      %v553 = vsel %vm539, %v552, 0.0
      %554 = vadd.xlane.f32.xlu0 %v553
      %v555 = vpop.xlane.xlu0 %554
      %v556 = vmul.f32 %v555, %v549
      %v557 = vadd.f32 %v556, 1e-12
      %v558 = vrsqrt.pop %v557
      %v559 = vmul.f32 %v558, %v557
      %v560 = vmul.f32 %v559, %v558
      %v561 = vmul.f32 0.5, %v560
      %v562 = vsub.f32 1.5, %v561
      %v563 = vmul.f32 %v558, %v562
      %vm564 = vweird.f32 %v557
      %vm565 = vweird.f32 %v558
      %vm566 = vmor %vm564, %vm565
      %v567 = vsel %vm566, %v558, %v563
      %v568 = vmul.f32 %v551, %v567
      %v570 = vperm.slane %v537, 0
      %v572 = vmul.f32 %v568, %v570
      %v574 = vperm.slane %v538, 0
      %v576 = vadd.f32 %v572, %v574
      %v577 = vld [vmem:[%s4] sm:$0xff]
      %v578 = vld [vmem:[%s4 + $0x8] sm:$0xff]
      %v579 = vld [vmem:[%s4 + $0x10] sm:$0xff]
      %v580 = vld [vmem:[%s4 + $0x18] sm:$0xff]
      %v581 = vld [vmem:[%s5] sm:$0x1]
      %v582 = vld [vmem:[%s6] sm:$0xff]
      %v583 = vld [vmem:[%s6 + $0x8] sm:$0xff]
      %v584 = vld [vmem:[%s6 + $0x10] sm:$0xff]
      %v585 = vld [vmem:[%s6 + $0x18] sm:$0xff]
      %v586 = vld [vmem:[%s7] sm:$0x1]
      %v587 = vld [vmem:[%s8] sm:$0x1]
      %v588 = vld [vmem:[%s9] sm:$0x1]
      %v589 = vpack.c.bf16 %v576, %v576
      %v590 = vpack.c.bf16 %v578, %v577
      %v591 = vpack.c.bf16 %v580, %v579
      %v593 = vperm.slane %v581, 0
      %v596 = vsel %vm539, %v589, 0
      %598 = vmatpush.bf16.msra.mxu0 0
      %599 = vmatpush.bf16.msra.mxu0 0
      %600 = vmatpush.bf16.msra.mxu0 0
      %601 = vmatpush.bf16.msra.mxu0 0
      %602 = vmatpush.bf16.msra.mxu0 0
      %603 = vmatpush.bf16.msra.mxu0 0
      %604 = vmatpush.bf16.msra.mxu0 %v591
      %605 = vmatpush.bf16.msra.mxu0 %v590
      %606 = vmatmul.bf16.gmra.mxu0 %v596
      %v607 = vpop.f32.mrf.mxu0
      %v608 = vadd.f32 %v593, %v607
      %v609 = vpop.f32.mrf.mxu0
      %610 = vdwg.mxu0
      %v611 = vpack.c.bf16 %v608, %v608
      %613 = vrot.lane.b32.xlu0 %v611, 96
      %v614 = vpop.permute.xlu0 %613
      %vm615 = vcmask 64512
      %v617 = vsel %vm615, %v611, 0
      %v620 = vsel %vm615, %v614, 0
      %622 = vmatpush.bf16.xpose.msra.mxu0 0
      %623 = vmatpush.bf16.xpose.msra.mxu0 0
      %624 = vmatpush.bf16.xpose.msra.mxu0 0
      %625 = vmatpush.bf16.xpose.msra.mxu0 0
      %626 = vmatpush.bf16.xpose.msra.mxu0 0
      %627 = vmatpush.bf16.xpose.msra.mxu0 0
      %628 = vmatpush.bf16.xpose.msra.mxu0 0
      %629 = vmatpush.bf16.xpose.msra.mxu0 %v620
      %630 = vmatmul.bf16.gmra.mxu0 %v617
      %v631 = vpop.f32.mrf.mxu0
      %v632 = vadd.f32 0.0, %v631
      %v633 = vpop.f32.mrf.mxu0
      %634 = vdwg.mxu0
      %v635 = vmul.f32 %v632, 0.35355338
      %v636 = vadd.f32 %v635, %v535
      %v637 = vsel %vm615, %v636, -inf
      %638 = vmax.xlane.f32.xlu0 %v637
      %v639 = vpop.xlane.xlu0 %638
      %v640 = vsub.f32 %v636, %v639
      %v641 = vmul.f32 %v640, 1.442695
      %v642 = vpow.pop %v641
      %v643 = vsel %vm615, %v642, 0.0
      %644 = vadd.xlane.f32.xlu0 %v643
      %v645 = vpop.xlane.xlu0 %644
      %v646 = vrcp.pop %v645
      %v647 = vmul.f32 %v642, %v646
      %v648 = vpack.c.bf16 %v647, %v647
      %649 = vrot.lane.b32.xlu0 %v611, 64
      %v650 = vpop.permute.xlu0 %649
      %v652 = vsel %vm615, %v648, 0
      %vm654 = vcmask 1043456
      %v656 = vsel %vm654, %v650, 0
      %658 = vmatpush.bf16.msra.mxu0 0
      %659 = vmatpush.bf16.msra.mxu0 0
      %660 = vmatpush.bf16.msra.mxu0 0
      %661 = vmatpush.bf16.msra.mxu0 0
      %662 = vmatpush.bf16.msra.mxu0 0
      %663 = vmatpush.bf16.msra.mxu0 0
      %664 = vmatpush.bf16.msra.mxu0 0
      %665 = vmatpush.bf16.msra.mxu0 %v656
      %666 = vmatmul.bf16.gmra.mxu0 %v652
      %v667 = vpop.f32.mrf.mxu0
      %v668 = vadd.f32 0.0, %v667
      %v669 = vpop.f32.mrf.mxu0
      %670 = vdwg.mxu0
      %v671 = vpack.c.bf16 %v668, %v668
      %v672 = vpack.c.bf16 %v582, %v582
      %673 = vrot.lane.b32.xlu0 %v611, 120
      %v674 = vpop.permute.xlu0 %673
      %675 = vrot.lane.b32.xlu0 %v611, 88
      %v676 = vpop.permute.xlu0 %675
      %v678 = vsel %vm615, %v674, 0
      %v681 = vsel %vm615, %v676, 0
      %683 = vmatpush.bf16.xpose.msra.mxu0 0
      %684 = vmatpush.bf16.xpose.msra.mxu0 0
      %685 = vmatpush.bf16.xpose.msra.mxu0 0
      %686 = vmatpush.bf16.xpose.msra.mxu0 0
      %687 = vmatpush.bf16.xpose.msra.mxu0 0
      %688 = vmatpush.bf16.xpose.msra.mxu0 0
      %689 = vmatpush.bf16.xpose.msra.mxu0 0
      %690 = vmatpush.bf16.xpose.msra.mxu0 %v681
      %691 = vmatmul.bf16.gmra.mxu0 %v678
      %v692 = vpop.f32.mrf.mxu0
      %v693 = vadd.f32 0.0, %v692
      %v694 = vpop.f32.mrf.mxu0
      %695 = vdwg.mxu0
      %v696 = vmul.f32 %v693, 0.35355338
      %v697 = vadd.f32 %v696, %v535
      %v698 = vsel %vm615, %v697, -inf
      %699 = vmax.xlane.f32.xlu0 %v698
      %v700 = vpop.xlane.xlu0 %699
      %v701 = vsub.f32 %v697, %v700
      %v702 = vmul.f32 %v701, 1.442695
      %v703 = vpow.pop %v702
      %v704 = vsel %vm615, %v703, 0.0
      %705 = vadd.xlane.f32.xlu0 %v704
      %v706 = vpop.xlane.xlu0 %705
      %v707 = vrcp.pop %v706
      %v708 = vmul.f32 %v703, %v707
      %v709 = vpack.c.bf16 %v708, %v708
      %710 = vrot.lane.b32.xlu0 %v611, 56
      %v711 = vpop.permute.xlu0 %710
      %v713 = vsel %vm615, %v709, 0
      %v716 = vsel %vm654, %v711, 0
      %718 = vmatpush.bf16.msra.mxu0 0
      %719 = vmatpush.bf16.msra.mxu0 0
      %720 = vmatpush.bf16.msra.mxu0 0
      %721 = vmatpush.bf16.msra.mxu0 0
      %722 = vmatpush.bf16.msra.mxu0 0
      %723 = vmatpush.bf16.msra.mxu0 0
      %724 = vmatpush.bf16.msra.mxu0 0
      %725 = vmatpush.bf16.msra.mxu0 %v716
      %726 = vmatmul.bf16.gmra.mxu0 %v713
      %v727 = vpop.f32.mrf.mxu0
      %v728 = vadd.f32 0.0, %v727
      %v729 = vpop.f32.mrf.mxu0
      %730 = vdwg.mxu0
      %v731 = vpack.c.bf16 %v728, %v728
      %v732 = vpack.c.bf16 %v583, %v583
      %v734 = vsel %vm615, %v731, 0
      %v737 = vsel %vm654, %v732, 0
      %739 = vmatpush.bf16.msra.mxu0 0
      %740 = vmatpush.bf16.msra.mxu0 0
      %741 = vmatpush.bf16.msra.mxu0 0
      %742 = vmatpush.bf16.msra.mxu0 0
      %743 = vmatpush.bf16.msra.mxu0 0
      %744 = vmatpush.bf16.msra.mxu0 0
      %745 = vmatpush.bf16.msra.mxu0 0
      %746 = vmatpush.bf16.msra.mxu0 %v737
      %747 = vmatmul.bf16.gmra.mxu0 %v734
      %v748 = vpop.f32.mrf.mxu0
      %v749 = vadd.f32 0.0, %v748
      %v750 = vpop.f32.mrf.mxu0
      %751 = vdwg.mxu0
      %v753 = vsel %vm615, %v671, 0
      %v756 = vsel %vm654, %v672, 0
      %758 = vmatpush.bf16.msra.mxu0 0
      %759 = vmatpush.bf16.msra.mxu0 0
      %760 = vmatpush.bf16.msra.mxu0 0
      %761 = vmatpush.bf16.msra.mxu0 0
      %762 = vmatpush.bf16.msra.mxu0 0
      %763 = vmatpush.bf16.msra.mxu0 0
      %764 = vmatpush.bf16.msra.mxu0 0
      %765 = vmatpush.bf16.msra.mxu0 %v756
      %766 = vmatmul.bf16.gmra.mxu0 %v753
      %v767 = vpop.f32.mrf.mxu0
      %v768 = vadd.f32 %v749, %v767
      %v769 = vpop.f32.mrf.mxu0
      %770 = vdwg.mxu0
      %771 = vrot.lane.b32.xlu0 %v611, 112
      %v772 = vpop.permute.xlu0 %771
      %773 = vrot.lane.b32.xlu0 %v611, 80
      %v774 = vpop.permute.xlu0 %773
      %v776 = vsel %vm615, %v772, 0
      %v779 = vsel %vm615, %v774, 0
      %781 = vmatpush.bf16.xpose.msra.mxu0 0
      %782 = vmatpush.bf16.xpose.msra.mxu0 0
      %783 = vmatpush.bf16.xpose.msra.mxu0 0
      %784 = vmatpush.bf16.xpose.msra.mxu0 0
      %785 = vmatpush.bf16.xpose.msra.mxu0 0
      %786 = vmatpush.bf16.xpose.msra.mxu0 0
      %787 = vmatpush.bf16.xpose.msra.mxu0 0
      %788 = vmatpush.bf16.xpose.msra.mxu0 %v779
      %789 = vmatmul.bf16.gmra.mxu0 %v776
      %v790 = vpop.f32.mrf.mxu0
      %v791 = vadd.f32 0.0, %v790
      %v792 = vpop.f32.mrf.mxu0
      %793 = vdwg.mxu0
      %v794 = vmul.f32 %v791, 0.35355338
      %v795 = vadd.f32 %v794, %v535
      %v796 = vsel %vm615, %v795, -inf
      %797 = vmax.xlane.f32.xlu0 %v796
      %v798 = vpop.xlane.xlu0 %797
      %v799 = vsub.f32 %v795, %v798
      %v800 = vmul.f32 %v799, 1.442695
      %v801 = vpow.pop %v800
      %v802 = vsel %vm615, %v801, 0.0
      %803 = vadd.xlane.f32.xlu0 %v802
      %v804 = vpop.xlane.xlu0 %803
      %v805 = vrcp.pop %v804
      %v806 = vmul.f32 %v801, %v805
      %v807 = vpack.c.bf16 %v806, %v806
      %808 = vrot.lane.b32.xlu0 %v611, 48
      %v809 = vpop.permute.xlu0 %808
      %v811 = vsel %vm615, %v807, 0
      %v814 = vsel %vm654, %v809, 0
      %816 = vmatpush.bf16.msra.mxu0 0
      %817 = vmatpush.bf16.msra.mxu0 0
      %818 = vmatpush.bf16.msra.mxu0 0
      %819 = vmatpush.bf16.msra.mxu0 0
      %820 = vmatpush.bf16.msra.mxu0 0
      %821 = vmatpush.bf16.msra.mxu0 0
      %822 = vmatpush.bf16.msra.mxu0 0
      %823 = vmatpush.bf16.msra.mxu0 %v814
      %824 = vmatmul.bf16.gmra.mxu0 %v811
      %v825 = vpop.f32.mrf.mxu0
      %v826 = vadd.f32 0.0, %v825
      %v827 = vpop.f32.mrf.mxu0
      %828 = vdwg.mxu0
      %v829 = vpack.c.bf16 %v826, %v826
      %v830 = vpack.c.bf16 %v584, %v584
      %v832 = vsel %vm615, %v829, 0
      %v835 = vsel %vm654, %v830, 0
      %837 = vmatpush.bf16.msra.mxu0 0
      %838 = vmatpush.bf16.msra.mxu0 0
      %839 = vmatpush.bf16.msra.mxu0 0
      %840 = vmatpush.bf16.msra.mxu0 0
      %841 = vmatpush.bf16.msra.mxu0 0
      %842 = vmatpush.bf16.msra.mxu0 0
      %843 = vmatpush.bf16.msra.mxu0 0
      %844 = vmatpush.bf16.msra.mxu0 %v835
      %845 = vmatmul.bf16.gmra.mxu0 %v832
      %v846 = vpop.f32.mrf.mxu0
      %v847 = vadd.f32 0.0, %v846
      %v848 = vpop.f32.mrf.mxu0
      %849 = vdwg.mxu0
      %v850 = vadd.f32 %v768, %v847
      %851 = vrot.lane.b32.xlu0 %v611, 104
      %v852 = vpop.permute.xlu0 %851
      %853 = vrot.lane.b32.xlu0 %v611, 72
      %v854 = vpop.permute.xlu0 %853
      %v856 = vsel %vm615, %v852, 0
      %v859 = vsel %vm615, %v854, 0
      %861 = vmatpush.bf16.xpose.msra.mxu0 0
      %862 = vmatpush.bf16.xpose.msra.mxu0 0
      %863 = vmatpush.bf16.xpose.msra.mxu0 0
      %864 = vmatpush.bf16.xpose.msra.mxu0 0
      %865 = vmatpush.bf16.xpose.msra.mxu0 0
      %866 = vmatpush.bf16.xpose.msra.mxu0 0
      %867 = vmatpush.bf16.xpose.msra.mxu0 0
      %868 = vmatpush.bf16.xpose.msra.mxu0 %v859
      %869 = vmatmul.bf16.gmra.mxu0 %v856
      %v870 = vpop.f32.mrf.mxu0
      %v871 = vadd.f32 0.0, %v870
      %v872 = vpop.f32.mrf.mxu0
      %873 = vdwg.mxu0
      %v874 = vmul.f32 %v871, 0.35355338
      %v875 = vadd.f32 %v874, %v535
      %v876 = vsel %vm615, %v875, -inf
      %877 = vmax.xlane.f32.xlu0 %v876
      %v878 = vpop.xlane.xlu0 %877
      %v879 = vsub.f32 %v875, %v878
      %v880 = vmul.f32 %v879, 1.442695
      %v881 = vpow.pop %v880
      %v882 = vsel %vm615, %v881, 0.0
      %883 = vadd.xlane.f32.xlu0 %v882
      %v884 = vpop.xlane.xlu0 %883
      %v885 = vrcp.pop %v884
      %v886 = vmul.f32 %v881, %v885
      %v887 = vpack.c.bf16 %v886, %v886
      %888 = vrot.lane.b32.xlu0 %v611, 40
      %v889 = vpop.permute.xlu0 %888
      %v891 = vsel %vm615, %v887, 0
      %v894 = vsel %vm654, %v889, 0
      %896 = vmatpush.bf16.msra.mxu0 0
      %897 = vmatpush.bf16.msra.mxu0 0
      %898 = vmatpush.bf16.msra.mxu0 0
      %899 = vmatpush.bf16.msra.mxu0 0
      %900 = vmatpush.bf16.msra.mxu0 0
      %901 = vmatpush.bf16.msra.mxu0 0
      %902 = vmatpush.bf16.msra.mxu0 0
      %903 = vmatpush.bf16.msra.mxu0 %v894
      %904 = vmatmul.bf16.gmra.mxu0 %v891
      %v905 = vpop.f32.mrf.mxu0
      %v906 = vadd.f32 0.0, %v905
      %v907 = vpop.f32.mrf.mxu0
      %908 = vdwg.mxu0
      %v909 = vpack.c.bf16 %v906, %v906
      %v910 = vpack.c.bf16 %v585, %v585
      %v912 = vsel %vm615, %v909, 0
      %v915 = vsel %vm654, %v910, 0
      %917 = vmatpush.bf16.msra.mxu0 0
      %918 = vmatpush.bf16.msra.mxu0 0
      %919 = vmatpush.bf16.msra.mxu0 0
      %920 = vmatpush.bf16.msra.mxu0 0
      %921 = vmatpush.bf16.msra.mxu0 0
      %922 = vmatpush.bf16.msra.mxu0 0
      %923 = vmatpush.bf16.msra.mxu0 0
      %924 = vmatpush.bf16.msra.mxu0 %v915
      %925 = vmatmul.bf16.gmra.mxu0 %v912
      %v926 = vpop.f32.mrf.mxu0
      %v927 = vadd.f32 0.0, %v926
      %v928 = vpop.f32.mrf.mxu0
      %929 = vdwg.mxu0
      %v930 = vadd.f32 %v850, %v927
      %v932 = vperm.slane %v586, 0
      %v934 = vadd.f32 %v930, %v932
      %v935 = vadd.f32 %v934, %v576
      %v936 = vsel %vm539, %v935, 0.0
      %937 = vadd.xlane.f32.xlu0 %v936
      %v938 = vpop.xlane.xlu0 %937
      %v939 = vmul.f32 %v938, %v549
      %v940 = vsub.f32 %v935, %v939
      %v941 = vmul.f32 %v940, %v940
      %v942 = vsel %vm539, %v941, 0.0
      %943 = vadd.xlane.f32.xlu0 %v942
      %v944 = vpop.xlane.xlu0 %943
      %v945 = vmul.f32 %v944, %v549
      %v946 = vadd.f32 %v945, 1e-12
      %v947 = vrsqrt.pop %v946
      %v948 = vmul.f32 %v947, %v946
      %v949 = vmul.f32 %v948, %v947
      %v950 = vmul.f32 0.5, %v949
      %v951 = vsub.f32 1.5, %v950
      %v952 = vmul.f32 %v947, %v951
      %vm953 = vweird.f32 %v946
      %vm954 = vweird.f32 %v947
      %vm955 = vmor %vm953, %vm954
      %v956 = vsel %vm955, %v947, %v952
      %v957 = vmul.f32 %v940, %v956
      %v959 = vperm.slane %v587, 0
      %v961 = vmul.f32 %v957, %v959
      %v963 = vperm.slane %v588, 0
      %v965 = vadd.f32 %v961, %v963
      %v966 = vld [vmem:[%s10] sm:$0xff]
      %v967 = vld [vmem:[%s10 + $0x8] sm:$0xff]
      %v968 = vld [vmem:[%s10 + $0x10] sm:$0xff]
      %v969 = vld [vmem:[%s10 + $0x18] sm:$0xff]
      %v970 = vld [vmem:[%s11] sm:$0x1]
      %v971 = vld [vmem:[%s12] sm:$0xff]
      %v972 = vld [vmem:[%s12 + $0x8] sm:$0xff]
      %v973 = vld [vmem:[%s12 + $0x10] sm:$0xff]
      %v974 = vld [vmem:[%s12 + $0x18] sm:$0xff]
      %v975 = vld [vmem:[%s12 + $0x20] sm:$0xff]
      %v976 = vld [vmem:[%s12 + $0x28] sm:$0xff]
      %v977 = vld [vmem:[%s12 + $0x30] sm:$0xff]
      %v978 = vld [vmem:[%s12 + $0x38] sm:$0xff]
      %v979 = vld [vmem:[%s13] sm:$0x1]
      %v980 = vld [vmem:[%s14] sm:$0x1]
      %v981 = vld [vmem:[%s15] sm:$0x1]
      %v982 = vpack.c.bf16 %v965, %v965
      %v983 = vpack.c.bf16 %v967, %v966
      %v984 = vpack.c.bf16 %v969, %v968
      %v986 = vperm.slane %v970, 0
      %v989 = vsel %vm539, %v982, 0
      %991 = vmatpush.bf16.msra.mxu0 0
      %992 = vmatpush.bf16.msra.mxu0 0
      %993 = vmatpush.bf16.msra.mxu0 0
      %994 = vmatpush.bf16.msra.mxu0 0
      %995 = vmatpush.bf16.msra.mxu0 0
      %996 = vmatpush.bf16.msra.mxu0 0
      %997 = vmatpush.bf16.msra.mxu0 %v984
      %998 = vmatpush.bf16.msra.mxu0 %v983
      %999 = vmatmul.bf16.gmra.mxu0 %v989
      %v1000 = vpop.f32.mrf.mxu0
      %v1001 = vadd.f32 %v986, %v1000
      %v1002 = vpop.f32.mrf.mxu0
      %1003 = vdwg.mxu0
      %v1004 = vmul.f32 %v1001, 0.5
      %v1005 = vmul.f32 %v1001, 0.044715
      %v1006 = vmul.f32 %v1005, %v1001
      %v1007 = vmul.f32 %v1006, %v1001
      %v1008 = vadd.f32 %v1001, %v1007
      %v1009 = vmul.f32 %v1008, 0.7978846
      %v1010 = vtanh.pop %v1009
      %v1011 = vadd.f32 %v1010, 1.0
      %v1012 = vmul.f32 %v1004, %v1011
      %v1013 = vpack.c.bf16 %v1012, %v1012
      %v1014 = vpack.c.bf16 %v972, %v971
      %v1015 = vpack.c.bf16 %v974, %v973
      %v1016 = vpack.c.bf16 %v976, %v975
      %v1017 = vpack.c.bf16 %v978, %v977
      %v1019 = vperm.slane %v979, 0
      %vm1021 = vcmask 523264
      %v1023 = vsel %vm1021, %v1013, 0
      %1025 = vmatpush.bf16.msra.mxu0 0
      %1026 = vmatpush.bf16.msra.mxu0 0
      %1027 = vmatpush.bf16.msra.mxu0 0
      %1028 = vmatpush.bf16.msra.mxu0 0
      %1029 = vmatpush.bf16.msra.mxu0 %v1017
      %1030 = vmatpush.bf16.msra.mxu0 %v1016
      %1031 = vmatpush.bf16.msra.mxu0 %v1015
      %1032 = vmatpush.bf16.msra.mxu0 %v1014
      %1033 = vmatmul.bf16.gmra.mxu0 %v1023
      %v1034 = vpop.f32.mrf.mxu0
      %v1035 = vadd.f32 %v1019, %v1034
      %v1036 = vpop.f32.mrf.mxu0
      %1037 = vdwg.mxu0
      %v1038 = vadd.f32 %v1035, %v965
      %v1039 = vsel %vm539, %v1038, 0.0
      %1040 = vadd.xlane.f32.xlu0 %v1039
      %v1041 = vpop.xlane.xlu0 %1040
      %v1042 = vmul.f32 %v1041, %v549
      %v1043 = vsub.f32 %v1038, %v1042
      %v1044 = vmul.f32 %v1043, %v1043
      %v1045 = vsel %vm539, %v1044, 0.0
      %1046 = vadd.xlane.f32.xlu0 %v1045
      %v1047 = vpop.xlane.xlu0 %1046
      %v1048 = vmul.f32 %v1047, %v549
      %v1049 = vadd.f32 %v1048, 1e-12
      %v1050 = vrsqrt.pop %v1049
      %v1051 = vmul.f32 %v1050, %v1049
      %v1052 = vmul.f32 %v1051, %v1050
      %v1053 = vmul.f32 0.5, %v1052
      %v1054 = vsub.f32 1.5, %v1053
      %v1055 = vmul.f32 %v1050, %v1054
      %vm1056 = vweird.f32 %v1049
      %vm1057 = vweird.f32 %v1050
      %vm1058 = vmor %vm1056, %vm1057
      %v1059 = vsel %vm1058, %v1050, %v1055
      %v1060 = vmul.f32 %v1043, %v1059
      %v1062 = vperm.slane %v980, 0
      %v1064 = vmul.f32 %v1060, %v1062
      %v1066 = vperm.slane %v981, 0
      %v1068 = vadd.f32 %v1064, %v1066
      %s1069 = scalar_lea.vmem %s4, 32
      %v1070 = vld [vmem:[%s1069] sm:$0xff]
      %v1071 = vld [vmem:[%s1069 + $0x8] sm:$0xff]
      %v1072 = vld [vmem:[%s1069 + $0x10] sm:$0xff]
      %v1073 = vld [vmem:[%s1069 + $0x18] sm:$0xff]
      %s1074 = scalar_lea.vmem %s5, 1
      %v1075 = vld [vmem:[%s1074] sm:$0x1]
      %s1076 = scalar_lea.vmem %s6, 32
      %v1077 = vld [vmem:[%s1076] sm:$0xff]
      %v1078 = vld [vmem:[%s1076 + $0x8] sm:$0xff]
      %v1079 = vld [vmem:[%s1076 + $0x10] sm:$0xff]
      %v1080 = vld [vmem:[%s1076 + $0x18] sm:$0xff]
      %s1081 = scalar_lea.vmem %s7, 1
      %v1082 = vld [vmem:[%s1081] sm:$0x1]
      %s1083 = scalar_lea.vmem %s8, 1
      %v1084 = vld [vmem:[%s1083] sm:$0x1]
      %s1085 = scalar_lea.vmem %s9, 1
      %v1086 = vld [vmem:[%s1085] sm:$0x1]
      %v1087 = vpack.c.bf16 %v1068, %v1068
      %v1088 = vpack.c.bf16 %v1071, %v1070
      %v1089 = vpack.c.bf16 %v1073, %v1072
      %v1091 = vperm.slane %v1075, 0
      %v1094 = vsel %vm539, %v1087, 0
      %1096 = vmatpush.bf16.msra.mxu0 0
      %1097 = vmatpush.bf16.msra.mxu0 0
      %1098 = vmatpush.bf16.msra.mxu0 0
      %1099 = vmatpush.bf16.msra.mxu0 0
      %1100 = vmatpush.bf16.msra.mxu0 0
      %1101 = vmatpush.bf16.msra.mxu0 0
      %1102 = vmatpush.bf16.msra.mxu0 %v1089
      %1103 = vmatpush.bf16.msra.mxu0 %v1088
      %1104 = vmatmul.bf16.gmra.mxu0 %v1094
      %v1105 = vpop.f32.mrf.mxu0
      %v1106 = vadd.f32 %v1091, %v1105
      %v1107 = vpop.f32.mrf.mxu0
      %1108 = vdwg.mxu0
      %v1109 = vpack.c.bf16 %v1106, %v1106
      %1111 = vrot.lane.b32.xlu0 %v1109, 96
      %v1112 = vpop.permute.xlu0 %1111
      %v1114 = vsel %vm615, %v1109, 0
      %v1117 = vsel %vm615, %v1112, 0
      %1119 = vmatpush.bf16.xpose.msra.mxu0 0
      %1120 = vmatpush.bf16.xpose.msra.mxu0 0
      %1121 = vmatpush.bf16.xpose.msra.mxu0 0
      %1122 = vmatpush.bf16.xpose.msra.mxu0 0
      %1123 = vmatpush.bf16.xpose.msra.mxu0 0
      %1124 = vmatpush.bf16.xpose.msra.mxu0 0
      %1125 = vmatpush.bf16.xpose.msra.mxu0 0
      %1126 = vmatpush.bf16.xpose.msra.mxu0 %v1117
      %1127 = vmatmul.bf16.gmra.mxu0 %v1114
      %v1128 = vpop.f32.mrf.mxu0
      %v1129 = vadd.f32 0.0, %v1128
      %v1130 = vpop.f32.mrf.mxu0
      %1131 = vdwg.mxu0
      %v1132 = vmul.f32 %v1129, 0.35355338
      %v1133 = vadd.f32 %v1132, %v535
      %v1134 = vsel %vm615, %v1133, -inf
      %1135 = vmax.xlane.f32.xlu0 %v1134
      %v1136 = vpop.xlane.xlu0 %1135
      %v1137 = vsub.f32 %v1133, %v1136
      %v1138 = vmul.f32 %v1137, 1.442695
      %v1139 = vpow.pop %v1138
      %v1140 = vsel %vm615, %v1139, 0.0
      %1141 = vadd.xlane.f32.xlu0 %v1140
      %v1142 = vpop.xlane.xlu0 %1141
      %v1143 = vrcp.pop %v1142
      %v1144 = vmul.f32 %v1139, %v1143
      %v1145 = vpack.c.bf16 %v1144, %v1144
      %1146 = vrot.lane.b32.xlu0 %v1109, 64
      %v1147 = vpop.permute.xlu0 %1146
      %v1149 = vsel %vm615, %v1145, 0
      %v1152 = vsel %vm654, %v1147, 0
      %1154 = vmatpush.bf16.msra.mxu0 0
      %1155 = vmatpush.bf16.msra.mxu0 0
      %1156 = vmatpush.bf16.msra.mxu0 0
      %1157 = vmatpush.bf16.msra.mxu0 0
      %1158 = vmatpush.bf16.msra.mxu0 0
      %1159 = vmatpush.bf16.msra.mxu0 0
      %1160 = vmatpush.bf16.msra.mxu0 0
      %1161 = vmatpush.bf16.msra.mxu0 %v1152
      %1162 = vmatmul.bf16.gmra.mxu0 %v1149
      %v1163 = vpop.f32.mrf.mxu0
      %v1164 = vadd.f32 0.0, %v1163
      %v1165 = vpop.f32.mrf.mxu0
      %1166 = vdwg.mxu0
      %v1167 = vpack.c.bf16 %v1164, %v1164
      %v1168 = vpack.c.bf16 %v1077, %v1077
      %1169 = vrot.lane.b32.xlu0 %v1109, 120
      %v1170 = vpop.permute.xlu0 %1169
      %1171 = vrot.lane.b32.xlu0 %v1109, 88
      %v1172 = vpop.permute.xlu0 %1171
      %v1174 = vsel %vm615, %v1170, 0
      %v1177 = vsel %vm615, %v1172, 0
      %1179 = vmatpush.bf16.xpose.msra.mxu0 0
      %1180 = vmatpush.bf16.xpose.msra.mxu0 0
      %1181 = vmatpush.bf16.xpose.msra.mxu0 0
      %1182 = vmatpush.bf16.xpose.msra.mxu0 0
      %1183 = vmatpush.bf16.xpose.msra.mxu0 0
      %1184 = vmatpush.bf16.xpose.msra.mxu0 0
      %1185 = vmatpush.bf16.xpose.msra.mxu0 0
      %1186 = vmatpush.bf16.xpose.msra.mxu0 %v1177
      %1187 = vmatmul.bf16.gmra.mxu0 %v1174
      %v1188 = vpop.f32.mrf.mxu0
      %v1189 = vadd.f32 0.0, %v1188
      %v1190 = vpop.f32.mrf.mxu0
      %1191 = vdwg.mxu0
      %v1192 = vmul.f32 %v1189, 0.35355338
      %v1193 = vadd.f32 %v1192, %v535
      %v1194 = vsel %vm615, %v1193, -inf
      %1195 = vmax.xlane.f32.xlu0 %v1194
      %v1196 = vpop.xlane.xlu0 %1195
      %v1197 = vsub.f32 %v1193, %v1196
      %v1198 = vmul.f32 %v1197, 1.442695
      %v1199 = vpow.pop %v1198
      %v1200 = vsel %vm615, %v1199, 0.0
      %1201 = vadd.xlane.f32.xlu0 %v1200
      %v1202 = vpop.xlane.xlu0 %1201
      %v1203 = vrcp.pop %v1202
      %v1204 = vmul.f32 %v1199, %v1203
      %v1205 = vpack.c.bf16 %v1204, %v1204
      %1206 = vrot.lane.b32.xlu0 %v1109, 56
      %v1207 = vpop.permute.xlu0 %1206
      %v1209 = vsel %vm615, %v1205, 0
      %v1212 = vsel %vm654, %v1207, 0
      %1214 = vmatpush.bf16.msra.mxu0 0
      %1215 = vmatpush.bf16.msra.mxu0 0
      %1216 = vmatpush.bf16.msra.mxu0 0
      %1217 = vmatpush.bf16.msra.mxu0 0
      %1218 = vmatpush.bf16.msra.mxu0 0
      %1219 = vmatpush.bf16.msra.mxu0 0
      %1220 = vmatpush.bf16.msra.mxu0 0
      %1221 = vmatpush.bf16.msra.mxu0 %v1212
      %1222 = vmatmul.bf16.gmra.mxu0 %v1209
      %v1223 = vpop.f32.mrf.mxu0
      %v1224 = vadd.f32 0.0, %v1223
      %v1225 = vpop.f32.mrf.mxu0
      %1226 = vdwg.mxu0
      %v1227 = vpack.c.bf16 %v1224, %v1224
      %v1228 = vpack.c.bf16 %v1078, %v1078
      %v1230 = vsel %vm615, %v1227, 0
      %v1233 = vsel %vm654, %v1228, 0
      %1235 = vmatpush.bf16.msra.mxu0 0
      %1236 = vmatpush.bf16.msra.mxu0 0
      %1237 = vmatpush.bf16.msra.mxu0 0
      %1238 = vmatpush.bf16.msra.mxu0 0
      %1239 = vmatpush.bf16.msra.mxu0 0
      %1240 = vmatpush.bf16.msra.mxu0 0
      %1241 = vmatpush.bf16.msra.mxu0 0
      %1242 = vmatpush.bf16.msra.mxu0 %v1233
      %1243 = vmatmul.bf16.gmra.mxu0 %v1230
      %v1244 = vpop.f32.mrf.mxu0
      %v1245 = vadd.f32 0.0, %v1244
      %v1246 = vpop.f32.mrf.mxu0
      %1247 = vdwg.mxu0
      %v1249 = vsel %vm615, %v1167, 0
      %v1252 = vsel %vm654, %v1168, 0
      %1254 = vmatpush.bf16.msra.mxu0 0
      %1255 = vmatpush.bf16.msra.mxu0 0
      %1256 = vmatpush.bf16.msra.mxu0 0
      %1257 = vmatpush.bf16.msra.mxu0 0
      %1258 = vmatpush.bf16.msra.mxu0 0
      %1259 = vmatpush.bf16.msra.mxu0 0
      %1260 = vmatpush.bf16.msra.mxu0 0
      %1261 = vmatpush.bf16.msra.mxu0 %v1252
      %1262 = vmatmul.bf16.gmra.mxu0 %v1249
      %v1263 = vpop.f32.mrf.mxu0
      %v1264 = vadd.f32 %v1245, %v1263
      %v1265 = vpop.f32.mrf.mxu0
      %1266 = vdwg.mxu0
      %1267 = vrot.lane.b32.xlu0 %v1109, 112
      %v1268 = vpop.permute.xlu0 %1267
      %1269 = vrot.lane.b32.xlu0 %v1109, 80
      %v1270 = vpop.permute.xlu0 %1269
      %v1272 = vsel %vm615, %v1268, 0
      %v1275 = vsel %vm615, %v1270, 0
      %1277 = vmatpush.bf16.xpose.msra.mxu0 0
      %1278 = vmatpush.bf16.xpose.msra.mxu0 0
      %1279 = vmatpush.bf16.xpose.msra.mxu0 0
      %1280 = vmatpush.bf16.xpose.msra.mxu0 0
      %1281 = vmatpush.bf16.xpose.msra.mxu0 0
      %1282 = vmatpush.bf16.xpose.msra.mxu0 0
      %1283 = vmatpush.bf16.xpose.msra.mxu0 0
      %1284 = vmatpush.bf16.xpose.msra.mxu0 %v1275
      %1285 = vmatmul.bf16.gmra.mxu0 %v1272
      %v1286 = vpop.f32.mrf.mxu0
      %v1287 = vadd.f32 0.0, %v1286
      %v1288 = vpop.f32.mrf.mxu0
      %1289 = vdwg.mxu0
      %v1290 = vmul.f32 %v1287, 0.35355338
      %v1291 = vadd.f32 %v1290, %v535
      %v1292 = vsel %vm615, %v1291, -inf
      %1293 = vmax.xlane.f32.xlu0 %v1292
      %v1294 = vpop.xlane.xlu0 %1293
      %v1295 = vsub.f32 %v1291, %v1294
      %v1296 = vmul.f32 %v1295, 1.442695
      %v1297 = vpow.pop %v1296
      %v1298 = vsel %vm615, %v1297, 0.0
      %1299 = vadd.xlane.f32.xlu0 %v1298
      %v1300 = vpop.xlane.xlu0 %1299
      %v1301 = vrcp.pop %v1300
      %v1302 = vmul.f32 %v1297, %v1301
      %v1303 = vpack.c.bf16 %v1302, %v1302
      %1304 = vrot.lane.b32.xlu0 %v1109, 48
      %v1305 = vpop.permute.xlu0 %1304
      %v1307 = vsel %vm615, %v1303, 0
      %v1310 = vsel %vm654, %v1305, 0
      %1312 = vmatpush.bf16.msra.mxu0 0
      %1313 = vmatpush.bf16.msra.mxu0 0
      %1314 = vmatpush.bf16.msra.mxu0 0
      %1315 = vmatpush.bf16.msra.mxu0 0
      %1316 = vmatpush.bf16.msra.mxu0 0
      %1317 = vmatpush.bf16.msra.mxu0 0
      %1318 = vmatpush.bf16.msra.mxu0 0
      %1319 = vmatpush.bf16.msra.mxu0 %v1310
      %1320 = vmatmul.bf16.gmra.mxu0 %v1307
      %v1321 = vpop.f32.mrf.mxu0
      %v1322 = vadd.f32 0.0, %v1321
      %v1323 = vpop.f32.mrf.mxu0
      %1324 = vdwg.mxu0
      %v1325 = vpack.c.bf16 %v1322, %v1322
      %v1326 = vpack.c.bf16 %v1079, %v1079
      %v1328 = vsel %vm615, %v1325, 0
      %v1331 = vsel %vm654, %v1326, 0
      %1333 = vmatpush.bf16.msra.mxu0 0
      %1334 = vmatpush.bf16.msra.mxu0 0
      %1335 = vmatpush.bf16.msra.mxu0 0
      %1336 = vmatpush.bf16.msra.mxu0 0
      %1337 = vmatpush.bf16.msra.mxu0 0
      %1338 = vmatpush.bf16.msra.mxu0 0
      %1339 = vmatpush.bf16.msra.mxu0 0
      %1340 = vmatpush.bf16.msra.mxu0 %v1331
      %1341 = vmatmul.bf16.gmra.mxu0 %v1328
      %v1342 = vpop.f32.mrf.mxu0
      %v1343 = vadd.f32 0.0, %v1342
      %v1344 = vpop.f32.mrf.mxu0
      %1345 = vdwg.mxu0
      %v1346 = vadd.f32 %v1264, %v1343
      %1347 = vrot.lane.b32.xlu0 %v1109, 104
      %v1348 = vpop.permute.xlu0 %1347
      %1349 = vrot.lane.b32.xlu0 %v1109, 72
      %v1350 = vpop.permute.xlu0 %1349
      %v1352 = vsel %vm615, %v1348, 0
      %v1355 = vsel %vm615, %v1350, 0
      %1357 = vmatpush.bf16.xpose.msra.mxu0 0
      %1358 = vmatpush.bf16.xpose.msra.mxu0 0
      %1359 = vmatpush.bf16.xpose.msra.mxu0 0
      %1360 = vmatpush.bf16.xpose.msra.mxu0 0
      %1361 = vmatpush.bf16.xpose.msra.mxu0 0
      %1362 = vmatpush.bf16.xpose.msra.mxu0 0
      %1363 = vmatpush.bf16.xpose.msra.mxu0 0
      %1364 = vmatpush.bf16.xpose.msra.mxu0 %v1355
      %1365 = vmatmul.bf16.gmra.mxu0 %v1352
      %v1366 = vpop.f32.mrf.mxu0
      %v1367 = vadd.f32 0.0, %v1366
      %v1368 = vpop.f32.mrf.mxu0
      %1369 = vdwg.mxu0
      %v1370 = vmul.f32 %v1367, 0.35355338
      %v1371 = vadd.f32 %v1370, %v535
      %v1372 = vsel %vm615, %v1371, -inf
      %1373 = vmax.xlane.f32.xlu0 %v1372
      %v1374 = vpop.xlane.xlu0 %1373
      %v1375 = vsub.f32 %v1371, %v1374
      %v1376 = vmul.f32 %v1375, 1.442695
      %v1377 = vpow.pop %v1376
      %v1378 = vsel %vm615, %v1377, 0.0
      %1379 = vadd.xlane.f32.xlu0 %v1378
      %v1380 = vpop.xlane.xlu0 %1379
      %v1381 = vrcp.pop %v1380
      %v1382 = vmul.f32 %v1377, %v1381
      %v1383 = vpack.c.bf16 %v1382, %v1382
      %1384 = vrot.lane.b32.xlu0 %v1109, 40
      %v1385 = vpop.permute.xlu0 %1384
      %v1387 = vsel %vm615, %v1383, 0
      %v1390 = vsel %vm654, %v1385, 0
      %1392 = vmatpush.bf16.msra.mxu0 0
      %1393 = vmatpush.bf16.msra.mxu0 0
      %1394 = vmatpush.bf16.msra.mxu0 0
      %1395 = vmatpush.bf16.msra.mxu0 0
      %1396 = vmatpush.bf16.msra.mxu0 0
      %1397 = vmatpush.bf16.msra.mxu0 0
      %1398 = vmatpush.bf16.msra.mxu0 0
      %1399 = vmatpush.bf16.msra.mxu0 %v1390
      %1400 = vmatmul.bf16.gmra.mxu0 %v1387
      %v1401 = vpop.f32.mrf.mxu0
      %v1402 = vadd.f32 0.0, %v1401
      %v1403 = vpop.f32.mrf.mxu0
      %1404 = vdwg.mxu0
      %v1405 = vpack.c.bf16 %v1402, %v1402
      %v1406 = vpack.c.bf16 %v1080, %v1080
      %v1408 = vsel %vm615, %v1405, 0
      %v1411 = vsel %vm654, %v1406, 0
      %1413 = vmatpush.bf16.msra.mxu0 0
      %1414 = vmatpush.bf16.msra.mxu0 0
      %1415 = vmatpush.bf16.msra.mxu0 0
      %1416 = vmatpush.bf16.msra.mxu0 0
      %1417 = vmatpush.bf16.msra.mxu0 0
      %1418 = vmatpush.bf16.msra.mxu0 0
      %1419 = vmatpush.bf16.msra.mxu0 0
      %1420 = vmatpush.bf16.msra.mxu0 %v1411
      %1421 = vmatmul.bf16.gmra.mxu0 %v1408
      %v1422 = vpop.f32.mrf.mxu0
      %v1423 = vadd.f32 0.0, %v1422
      %v1424 = vpop.f32.mrf.mxu0
      %1425 = vdwg.mxu0
      %v1426 = vadd.f32 %v1346, %v1423
      %v1428 = vperm.slane %v1082, 0
      %v1430 = vadd.f32 %v1426, %v1428
      %v1431 = vadd.f32 %v1430, %v1068
      %v1432 = vsel %vm539, %v1431, 0.0
      %1433 = vadd.xlane.f32.xlu0 %v1432
      %v1434 = vpop.xlane.xlu0 %1433
      %v1435 = vmul.f32 %v1434, %v549
      %v1436 = vsub.f32 %v1431, %v1435
      %v1437 = vmul.f32 %v1436, %v1436
      %v1438 = vsel %vm539, %v1437, 0.0
      %1439 = vadd.xlane.f32.xlu0 %v1438
      %v1440 = vpop.xlane.xlu0 %1439
      %v1441 = vmul.f32 %v1440, %v549
      %v1442 = vadd.f32 %v1441, 1e-12
      %v1443 = vrsqrt.pop %v1442
      %v1444 = vmul.f32 %v1443, %v1442
      %v1445 = vmul.f32 %v1444, %v1443
      %v1446 = vmul.f32 0.5, %v1445
      %v1447 = vsub.f32 1.5, %v1446
      %v1448 = vmul.f32 %v1443, %v1447
      %vm1449 = vweird.f32 %v1442
      %vm1450 = vweird.f32 %v1443
      %vm1451 = vmor %vm1449, %vm1450
      %v1452 = vsel %vm1451, %v1443, %v1448
      %v1453 = vmul.f32 %v1436, %v1452
      %v1455 = vperm.slane %v1084, 0
      %v1457 = vmul.f32 %v1453, %v1455
      %v1459 = vperm.slane %v1086, 0
      %v1461 = vadd.f32 %v1457, %v1459
      %s1462 = scalar_lea.vmem %s10, 32
      %v1463 = vld [vmem:[%s1462] sm:$0xff]
      %v1464 = vld [vmem:[%s1462 + $0x8] sm:$0xff]
      %v1465 = vld [vmem:[%s1462 + $0x10] sm:$0xff]
      %v1466 = vld [vmem:[%s1462 + $0x18] sm:$0xff]
      %s1467 = scalar_lea.vmem %s11, 1
      %v1468 = vld [vmem:[%s1467] sm:$0x1]
      %s1469 = scalar_lea.vmem %s12, 64
      %v1470 = vld [vmem:[%s1469] sm:$0xff]
      %v1471 = vld [vmem:[%s1469 + $0x8] sm:$0xff]
      %v1472 = vld [vmem:[%s1469 + $0x10] sm:$0xff]
      %v1473 = vld [vmem:[%s1469 + $0x18] sm:$0xff]
      %v1474 = vld [vmem:[%s1469 + $0x20] sm:$0xff]
      %v1475 = vld [vmem:[%s1469 + $0x28] sm:$0xff]
      %v1476 = vld [vmem:[%s1469 + $0x30] sm:$0xff]
      %v1477 = vld [vmem:[%s1469 + $0x38] sm:$0xff]
      %s1478 = scalar_lea.vmem %s13, 1
      %v1479 = vld [vmem:[%s1478] sm:$0x1]
      %s1480 = scalar_lea.vmem %s14, 1
      %v1481 = vld [vmem:[%s1480] sm:$0x1]
      %s1482 = scalar_lea.vmem %s15, 1
      %v1483 = vld [vmem:[%s1482] sm:$0x1]
      %v1484 = vpack.c.bf16 %v1461, %v1461
      %v1485 = vpack.c.bf16 %v1464, %v1463
      %v1486 = vpack.c.bf16 %v1466, %v1465
      %v1488 = vperm.slane %v1468, 0
      %v1491 = vsel %vm539, %v1484, 0
      %1493 = vmatpush.bf16.msra.mxu0 0
      %1494 = vmatpush.bf16.msra.mxu0 0
      %1495 = vmatpush.bf16.msra.mxu0 0
      %1496 = vmatpush.bf16.msra.mxu0 0
      %1497 = vmatpush.bf16.msra.mxu0 0
      %1498 = vmatpush.bf16.msra.mxu0 0
      %1499 = vmatpush.bf16.msra.mxu0 %v1486
      %1500 = vmatpush.bf16.msra.mxu0 %v1485
      %1501 = vmatmul.bf16.gmra.mxu0 %v1491
      %v1502 = vpop.f32.mrf.mxu0
      %v1503 = vadd.f32 %v1488, %v1502
      %v1504 = vpop.f32.mrf.mxu0
      %1505 = vdwg.mxu0
      %v1506 = vmul.f32 %v1503, 0.5
      %v1507 = vmul.f32 %v1503, 0.044715
      %v1508 = vmul.f32 %v1507, %v1503
      %v1509 = vmul.f32 %v1508, %v1503
      %v1510 = vadd.f32 %v1503, %v1509
      %v1511 = vmul.f32 %v1510, 0.7978846
      %v1512 = vtanh.pop %v1511
      %v1513 = vadd.f32 %v1512, 1.0
      %v1514 = vmul.f32 %v1506, %v1513
      %v1515 = vpack.c.bf16 %v1514, %v1514
      %v1516 = vpack.c.bf16 %v1471, %v1470
      %v1517 = vpack.c.bf16 %v1473, %v1472
      %v1518 = vpack.c.bf16 %v1475, %v1474
      %v1519 = vpack.c.bf16 %v1477, %v1476
      %v1521 = vperm.slane %v1479, 0
      %v1524 = vsel %vm1021, %v1515, 0
      %1526 = vmatpush.bf16.msra.mxu0 0
      %1527 = vmatpush.bf16.msra.mxu0 0
      %1528 = vmatpush.bf16.msra.mxu0 0
      %1529 = vmatpush.bf16.msra.mxu0 0
      %1530 = vmatpush.bf16.msra.mxu0 %v1519
      %1531 = vmatpush.bf16.msra.mxu0 %v1518
      %1532 = vmatpush.bf16.msra.mxu0 %v1517
      %1533 = vmatpush.bf16.msra.mxu0 %v1516
      %1534 = vmatmul.bf16.gmra.mxu0 %v1524
      %v1535 = vpop.f32.mrf.mxu0
      %v1536 = vadd.f32 %v1521, %v1535
      %v1537 = vpop.f32.mrf.mxu0
      %1538 = vdwg.mxu0
      %v1539 = vadd.f32 %v1536, %v1461
      %v1540 = vsel %vm539, %v1539, 0.0
      %1541 = vadd.xlane.f32.xlu0 %v1540
      %v1542 = vpop.xlane.xlu0 %1541
      %v1543 = vmul.f32 %v1542, %v549
      %v1544 = vsub.f32 %v1539, %v1543
      %v1545 = vmul.f32 %v1544, %v1544
      %v1546 = vsel %vm539, %v1545, 0.0
      %1547 = vadd.xlane.f32.xlu0 %v1546
      %v1548 = vpop.xlane.xlu0 %1547
      %v1549 = vmul.f32 %v1548, %v549
      %v1550 = vadd.f32 %v1549, 1e-12
      %v1551 = vrsqrt.pop %v1550
      %v1552 = vmul.f32 %v1551, %v1550
      %v1553 = vmul.f32 %v1552, %v1551
      %v1554 = vmul.f32 0.5, %v1553
      %v1555 = vsub.f32 1.5, %v1554
      %v1556 = vmul.f32 %v1551, %v1555
      %vm1557 = vweird.f32 %v1550
      %vm1558 = vweird.f32 %v1551
      %vm1559 = vmor %vm1557, %vm1558
      %v1560 = vsel %vm1559, %v1551, %v1556
      %v1561 = vmul.f32 %v1544, %v1560
      %v1563 = vperm.slane %v1481, 0
      %v1565 = vmul.f32 %v1561, %v1563
      %v1567 = vperm.slane %v1483, 0
      %v1569 = vadd.f32 %v1565, %v1567
      %1570 = vst.msk [vmem:[%s533] sm:$0xff] %vm539, %v1569
      %p1571 = scmp.lt.s32.totalorder %s27, 1
      %s1572 = scalar_select %p1571, %s27, 1
      %s1573 = smul.addr %s1572, 8
      %s1574 = scalar_lea.vmem %s16, %s1573
      // Predicated region
      $region85: #{code_translator_forward.2} parent=83 // pred_check
        %p1575 = pneg %p391
      $region86: #{code_translator_forward.2} parent=83 // pred_check_branch
        %1577 = sbr.rel (%p1575) target = $region88
      $region87: #{code_translator_forward.2} parent=83 // pred_region
        _
      $region88: #{code_translator_forward.2} parent=83 // pred_fallthru
        _
    $region84: #{code_translator_forward.2} parent=5 // pred_fallthru
      _
    %p1578 = scmp.le.s32.totalorder 2, %s22
    // Predicated region
    $region89: #{code_translator_forward.2} parent=5 // pred_check
      %p1579 = pneg %p1578
    $region90: #{code_translator_forward.2} parent=5 // pred_check_branch
      %1581 = sbr.rel (%p1579) target = $region92
    $region91: #{code_translator_forward.2} parent=5 // pred_region
      %s1582 = ssub.s32 %s22, 2
      // Predicated region
      $region93: #{code_translator_forward.2} parent=91 // pred_check
        %p1583 = pneg %p397
      $region94: #{code_translator_forward.2} parent=91 // pred_check_branch
        %1585 = sbr.rel (%p1583) target = $region96
      $region95: #{code_translator_forward.2} parent=91 // pred_region
        %p1586 = scmp.lt.s32.totalorder %s28, 1
        %s1587 = scalar_select %p1586, %s28, 1
        %s1588 = smul.addr %s1587, 8
        %s1589 = scalar_lea.vmem %s16, %s1588
      $region96: #{code_translator_forward.2} parent=91 // pred_fallthru
        _
    $region92: #{code_translator_forward.2} parent=5 // pred_fallthru
      _
  $region6: #{code_translator_forward.2} parent=0 // loop_footer
    %s26 = sadd.s32 1, %s22
  $region7: #{code_translator_forward.2} parent=0 // loop_footer_branch
    %21 = sbr.rel target = $region3
  $region8: #{code_translator_forward.2} parent=0 // loop_exit
    _

// kernel: code_translator_forward.3
$region0: #{code_translator_forward.3}
  #allocation0 [shape = 'u32[]', space=smem, size = 0x4, offset = 0x4, fixed_abs, tag = 'smem constant byte address 0x4 - core index']
  #allocation1 [shape = 'u32[72,128]{1,0:T(1,128)}', space=vmem, size = 0x9000, scoped, tag = 'internal scratch']
  %s0 = inlined_call_operand.vmem [shape: f32[16,32], index: 0, kind: input, shape index: {}]
  %s1 = inlined_call_operand.vmem [shape: f32[2,8,8], index: 1, kind: input, shape index: {}]
  %s2 = inlined_call_operand.vmem [shape: f32[16,32], index: 2, kind: input, shape index: {}]
  %s3 = inlined_call_operand.hbm [shape: f32[1,32], index: 3, kind: input, shape index: {}]
  %s4 = inlined_call_operand.hbm [shape: f32[1,32], index: 4, kind: input, shape index: {}]
  %s5 = inlined_call_operand.vmem [shape: f32[2,32,96], index: 5, kind: input, shape index: {}]
  %s6 = inlined_call_operand.vmem [shape: f32[2,1,96], index: 6, kind: input, shape index: {}]
  %s7 = inlined_call_operand.vmem [shape: f32[2,32,32], index: 7, kind: input, shape index: {}]
  %s8 = inlined_call_operand.vmem [shape: f32[2,1,32], index: 8, kind: input, shape index: {}]
  %s9 = inlined_call_operand.vmem [shape: f32[2,1,32], index: 9, kind: input, shape index: {}]
  %s10 = inlined_call_operand.vmem [shape: f32[2,1,32], index: 10, kind: input, shape index: {}]
  %s11 = inlined_call_operand.vmem [shape: f32[2,32,32], index: 11, kind: input, shape index: {}]
  %s12 = inlined_call_operand.vmem [shape: f32[2,1,32], index: 12, kind: input, shape index: {}]
  %s13 = inlined_call_operand.vmem [shape: f32[2,32,64], index: 13, kind: input, shape index: {}]
  %s14 = inlined_call_operand.vmem [shape: f32[2,1,64], index: 14, kind: input, shape index: {}]
  %s15 = inlined_call_operand.vmem [shape: f32[2,32,32], index: 15, kind: input, shape index: {}]
  %s16 = inlined_call_operand.vmem [shape: f32[2,1,32], index: 16, kind: input, shape index: {}]
  %s17 = inlined_call_operand.vmem [shape: f32[2,1,32], index: 17, kind: input, shape index: {}]
  %s18 = inlined_call_operand.vmem [shape: f32[2,1,32], index: 18, kind: input, shape index: {}]
  %s19 = inlined_call_operand.vmem [shape: f32[2,32,64], index: 19, kind: input, shape index: {}]
  %s20 = inlined_call_operand.vmem [shape: f32[2,1,64], index: 20, kind: input, shape index: {}]
  %s21 = inlined_call_operand.vmem [shape: f32[2,64,32], index: 21, kind: input, shape index: {}]
  %s22 = inlined_call_operand.vmem [shape: f32[2,1,32], index: 22, kind: input, shape index: {}]
  %s23 = inlined_call_operand.vmem [shape: f32[2,1,32], index: 23, kind: input, shape index: {}]
  %s24 = inlined_call_operand.hbm [shape: f32[2,1,32], index: 24, kind: input, shape index: {}]
  %s25 = inlined_call_operand.vmem [shape: f32[32,64], index: 25, kind: input, shape index: {}]
  %s26 = inlined_call_operand.hbm [shape: f32[1,64], index: 26, kind: input, shape index: {}]
  %s27 = inlined_call_operand.hbm [shape: f32[16,64], index: 27, kind: output, shape index: {}]
  %s28 = sld [smem:[#allocation0]]
  $region157: #{code_translator_forward.3} parent=0
    _
  %s30 = ssub.s32 1, %s28
  %s31 = scalar_select 0, %s30, %s28
  $region1: #{code_translator_forward.3} parent=0
    #allocation2 [shape = 'u8[512]{0}', space=vmem, size = 0x400, scoped, tag = 'input window, operand 3, single buffered']
    #allocation3 [shape = 's32[2]{0}', space=sflag, size = 0x8, scoped, tag = 'scoped memory for code_translator_forward.3']
    #allocation4 [shape = 's32[2]{0}', space=sflag, size = 0x8, scoped, tag = 'scoped memory for code_translator_forward.3']
    #allocation5 [shape = 'u8[512]{0}', space=vmem, size = 0x400, scoped, tag = 'input window, operand 4, single buffered']
    #allocation6 [shape = 's32[1]{0}', space=sflag, size = 0x4, scoped, tag = 'scoped memory for code_translator_forward.3']
    #allocation7 [shape = 'u8[1024]{0}', space=vmem, size = 0x400, scoped, tag = 'input window, operand 24, single buffered']
    #allocation8 [shape = 'u8[512]{0}', space=vmem, size = 0x400, scoped, tag = 'input window, operand 26, single buffered']
    #allocation9 [shape = 's32[1]{0}', space=sflag, size = 0x4, scoped, tag = 'scoped memory for code_translator_forward.3']
    #allocation10 [shape = 'u8[8192]{0}', space=vmem, size = 0x2000, scoped, tag = 'output window, operand 0']
    %32 = vsyncpa [#allocation3], 0
    %33 = vsyncpa [#allocation6], 0
    %34 = vsyncpa [#allocation9], 0
    %35 = vsyncpa [#allocation4], 0
    %s36 = scalar_lea.sflag [#allocation4], 1
    %37 = vsyncpa %s36, 0
    loop: start=0, step=1, limit=4
    $region2: #{code_translator_forward.3} parent=1 // loop_pre_header
      _
    $region3: #{code_translator_forward.3} parent=1 // loop_header
      %s39 = sphi 0, %s43
      %p40 = scmp.ge.s32.totalorder %s39, 4
      %s49 = sphi 0, %s51
      %s52 = sphi 0, %s49
      %s53 = sphi 0, %s52
      %s69 = sphi 0, %s53
      %s75 = sphi 0, %s77
      %s78 = sphi 0, %s75
      %s79 = sphi 0, %s78
      %s95 = sphi 0, %s79
      %s101 = sphi 0, %s103
      %s104 = sphi 0, %s101
      %s105 = sphi 0, %s104
      %s121 = sphi 0, %s105
      %s125 = sphi 0, %s125
      %s127 = sphi 0, %s125
      %s128 = sphi 0, %s127
      %s142 = sphi 0, %s128
      %s146 = sphi 0, %s146
      %s148 = sphi 0, %s146
      %s149 = sphi 0, %s148
      %s163 = sphi 0, %s149
      %s167 = sphi 0, %s167
      %s169 = sphi 0, %s167
      %s170 = sphi 0, %s169
      %s184 = sphi 0, %s170
      %s188 = sphi 0, %s188
      %s190 = sphi 0, %s188
      %s191 = sphi 0, %s190
      %s205 = sphi 0, %s191
      %s209 = sphi 0, %s209
      %s211 = sphi 0, %s209
      %s212 = sphi 0, %s211
      %s226 = sphi 0, %s212
      %s230 = sphi 0, %s230
      %s232 = sphi 0, %s230
      %s233 = sphi 0, %s232
      %s247 = sphi 0, %s233
      %s251 = sphi 0, %s251
      %s253 = sphi 0, %s251
      %s254 = sphi 0, %s253
      %s268 = sphi 0, %s254
      %s272 = sphi 0, %s272
      %s274 = sphi 0, %s272
      %s275 = sphi 0, %s274
      %s289 = sphi 0, %s275
      %s293 = sphi 0, %s293
      %s295 = sphi 0, %s293
      %s296 = sphi 0, %s295
      %s310 = sphi 0, %s296
      %s314 = sphi 0, %s314
      %s316 = sphi 0, %s314
      %s317 = sphi 0, %s316
      %s331 = sphi 0, %s317
      %s335 = sphi 0, %s335
      %s337 = sphi 0, %s335
      %s338 = sphi 0, %s337
      %s352 = sphi 0, %s338
      %s356 = sphi 0, %s356
      %s358 = sphi 0, %s356
      %s359 = sphi 0, %s358
      %s373 = sphi 0, %s359
      %s377 = sphi 0, %s377
      %s379 = sphi 0, %s377
      %s380 = sphi 0, %s379
      %s394 = sphi 0, %s380
      %s398 = sphi 0, %s398
      %s400 = sphi 0, %s398
      %s401 = sphi 0, %s400
      %s415 = sphi 0, %s401
      %s419 = sphi 0, %s419
      %s421 = sphi 0, %s419
      %s422 = sphi 0, %s421
      %s436 = sphi 0, %s422
      %s440 = sphi 0, %s440
      %s442 = sphi 0, %s440
      %s443 = sphi 0, %s442
      %s457 = sphi 0, %s443
      %s461 = sphi 0, %s461
      %s463 = sphi 0, %s461
      %s464 = sphi 0, %s463
      %s478 = sphi 0, %s464
      %s482 = sphi 0, %s482
      %s484 = sphi 0, %s482
      %s485 = sphi 0, %s484
      %s499 = sphi 0, %s485
      %s503 = sphi 0, %s503
      %s505 = sphi 0, %s503
      %s506 = sphi 0, %s505
      %s520 = sphi 0, %s506
      %s524 = sphi 0, %s524
      %s526 = sphi 0, %s524
      %s527 = sphi 0, %s526
      %s541 = sphi 0, %s527
      %s545 = sphi 0, %s545
      %s547 = sphi 0, %s545
      %s548 = sphi 0, %s547
      %s562 = sphi 0, %s548
      %s566 = sphi 0, %s566
      %s568 = sphi 0, %s566
      %s569 = sphi 0, %s568
      %s583 = sphi 0, %s569
      %s587 = sphi 0, %s587
      %s589 = sphi 0, %s587
      %s590 = sphi 0, %s589
      %s604 = sphi 0, %s590
      %s608 = sphi 0, %s608
      %s610 = sphi 0, %s608
      %s611 = sphi 0, %s610
      %s625 = sphi 0, %s611
      %s631 = sphi 0, %s633
      %s634 = sphi 0, %s631
      %s635 = sphi 0, %s634
      %s651 = sphi 0, %s635
    $region4: #{code_translator_forward.3} parent=1 // loop_header_branch
      %42 = sbr.rel (%p40) target = $region8
    $region5: #{code_translator_forward.3} parent=1 // loop_body
      %s44 = ssub.s32 %s39, 1
      %s45 = ssub.s32 %s39, 2
      %s46 = sadd.s32 %s39, 1
      %s47 = ssub.s32 %s39, %s46
      %p48 = scmp.eq.s32.totalorder %s47, 0
      %s50 = sadd.s32 %s49, 1
      %s51 = scalar_select %p48, %s49, %s50
      %p54 = pneg %p48
      %p55 = scmp.eq.s32.totalorder %s39, 1
      %p56 = por %p54, %p55
      %p57 = scmp.ne.s32.totalorder %s49, %s52
      %p58 = scmp.eq.s32.totalorder %s39, 0
      %p59 = por %p57, %p58
      %p60 = scmp.ne.s32.totalorder %s49, %s52
      %p61 = scmp.eq.s32.totalorder %s44, 1
      %p62 = por %p60, %p61
      %p63 = scmp.ne.s32.totalorder %s52, %s53
      %p64 = scmp.eq.s32.totalorder %s44, 0
      %p65 = por %p63, %p64
      %p66 = scmp.ne.s32.totalorder %s52, %s53
      %p67 = scmp.eq.s32.totalorder %s45, 1
      %p68 = por %p66, %p67
      %p70 = scmp.ne.s32.totalorder %s53, %s69
      %p71 = scmp.eq.s32.totalorder %s45, 0
      %p72 = por %p70, %p71
      %s73 = ssub.s32 %s39, %s46
      %p74 = scmp.eq.s32.totalorder %s73, 0
      %s76 = sadd.s32 %s75, 1
      %s77 = scalar_select %p74, %s75, %s76
      %p80 = pneg %p74
      %p81 = scmp.eq.s32.totalorder %s39, 1
      %p82 = por %p80, %p81
      %p83 = scmp.ne.s32.totalorder %s75, %s78
      %p84 = scmp.eq.s32.totalorder %s39, 0
      %p85 = por %p83, %p84
      %p86 = scmp.ne.s32.totalorder %s75, %s78
      %p87 = scmp.eq.s32.totalorder %s44, 1
      %p88 = por %p86, %p87
      %p89 = scmp.ne.s32.totalorder %s78, %s79
      %p90 = scmp.eq.s32.totalorder %s44, 0
      %p91 = por %p89, %p90
      %p92 = scmp.ne.s32.totalorder %s78, %s79
      %p93 = scmp.eq.s32.totalorder %s45, 1
      %p94 = por %p92, %p93
      %p96 = scmp.ne.s32.totalorder %s79, %s95
      %p97 = scmp.eq.s32.totalorder %s45, 0
      %p98 = por %p96, %p97
      %s99 = ssub.s32 %s39, %s46
      %p100 = scmp.eq.s32.totalorder %s99, 0
      %s102 = sadd.s32 %s101, 1
      %s103 = scalar_select %p100, %s101, %s102
      %p106 = pneg %p100
      %p107 = scmp.eq.s32.totalorder %s39, 1
      %p108 = por %p106, %p107
      %p109 = scmp.ne.s32.totalorder %s101, %s104
      %p110 = scmp.eq.s32.totalorder %s39, 0
      %p111 = por %p109, %p110
      %p112 = scmp.ne.s32.totalorder %s101, %s104
      %p113 = scmp.eq.s32.totalorder %s44, 1
      %p114 = por %p112, %p113
      %p115 = scmp.ne.s32.totalorder %s104, %s105
      %p116 = scmp.eq.s32.totalorder %s44, 0
      %p117 = por %p115, %p116
      %p118 = scmp.ne.s32.totalorder %s104, %s105
      %p119 = scmp.eq.s32.totalorder %s45, 1
      %p120 = por %p118, %p119
      %p122 = scmp.ne.s32.totalorder %s105, %s121
      %p123 = scmp.eq.s32.totalorder %s45, 0
      %p124 = por %p122, %p123
      %s126 = sadd.s32 %s125, 1
      %p129 = scmp.eq.s32.totalorder %s39, 1
      %p130 = scmp.ne.s32.totalorder %s125, %s127
      %p131 = scmp.eq.s32.totalorder %s39, 0
      %p132 = por %p130, %p131
      %p133 = scmp.ne.s32.totalorder %s125, %s127
      %p134 = scmp.eq.s32.totalorder %s44, 1
      %p135 = por %p133, %p134
      %p136 = scmp.ne.s32.totalorder %s127, %s128
      %p137 = scmp.eq.s32.totalorder %s44, 0
      %p138 = por %p136, %p137
      %p139 = scmp.ne.s32.totalorder %s127, %s128
      %p140 = scmp.eq.s32.totalorder %s45, 1
      %p141 = por %p139, %p140
      %p143 = scmp.ne.s32.totalorder %s128, %s142
      %p144 = scmp.eq.s32.totalorder %s45, 0
      %p145 = por %p143, %p144
      %s147 = sadd.s32 %s146, 1
      %p150 = scmp.eq.s32.totalorder %s39, 1
      %p151 = scmp.ne.s32.totalorder %s146, %s148
      %p152 = scmp.eq.s32.totalorder %s39, 0
      %p153 = por %p151, %p152
      %p154 = scmp.ne.s32.totalorder %s146, %s148
      %p155 = scmp.eq.s32.totalorder %s44, 1
      %p156 = por %p154, %p155
      %p157 = scmp.ne.s32.totalorder %s148, %s149
      %p158 = scmp.eq.s32.totalorder %s44, 0
      %p159 = por %p157, %p158
      %p160 = scmp.ne.s32.totalorder %s148, %s149
      %p161 = scmp.eq.s32.totalorder %s45, 1
      %p162 = por %p160, %p161
      %p164 = scmp.ne.s32.totalorder %s149, %s163
      %p165 = scmp.eq.s32.totalorder %s45, 0
      %p166 = por %p164, %p165
      %s168 = sadd.s32 %s167, 1
      %p171 = scmp.eq.s32.totalorder %s39, 1
      %p172 = scmp.ne.s32.totalorder %s167, %s169
      %p173 = scmp.eq.s32.totalorder %s39, 0
      %p174 = por %p172, %p173
      %p175 = scmp.ne.s32.totalorder %s167, %s169
      %p176 = scmp.eq.s32.totalorder %s44, 1
      %p177 = por %p175, %p176
      %p178 = scmp.ne.s32.totalorder %s169, %s170
      %p179 = scmp.eq.s32.totalorder %s44, 0
      %p180 = por %p178, %p179
      %p181 = scmp.ne.s32.totalorder %s169, %s170
      %p182 = scmp.eq.s32.totalorder %s45, 1
      %p183 = por %p181, %p182
      %p185 = scmp.ne.s32.totalorder %s170, %s184
      %p186 = scmp.eq.s32.totalorder %s45, 0
      %p187 = por %p185, %p186
      %s189 = sadd.s32 %s188, 1
      %p192 = scmp.eq.s32.totalorder %s39, 1
      %p193 = scmp.ne.s32.totalorder %s188, %s190
      %p194 = scmp.eq.s32.totalorder %s39, 0
      %p195 = por %p193, %p194
      %p196 = scmp.ne.s32.totalorder %s188, %s190
      %p197 = scmp.eq.s32.totalorder %s44, 1
      %p198 = por %p196, %p197
      %p199 = scmp.ne.s32.totalorder %s190, %s191
      %p200 = scmp.eq.s32.totalorder %s44, 0
      %p201 = por %p199, %p200
      %p202 = scmp.ne.s32.totalorder %s190, %s191
      %p203 = scmp.eq.s32.totalorder %s45, 1
      %p204 = por %p202, %p203
      %p206 = scmp.ne.s32.totalorder %s191, %s205
      %p207 = scmp.eq.s32.totalorder %s45, 0
      %p208 = por %p206, %p207
      %s210 = sadd.s32 %s209, 1
      %p213 = scmp.eq.s32.totalorder %s39, 1
      %p214 = scmp.ne.s32.totalorder %s209, %s211
      %p215 = scmp.eq.s32.totalorder %s39, 0
      %p216 = por %p214, %p215
      %p217 = scmp.ne.s32.totalorder %s209, %s211
      %p218 = scmp.eq.s32.totalorder %s44, 1
      %p219 = por %p217, %p218
      %p220 = scmp.ne.s32.totalorder %s211, %s212
      %p221 = scmp.eq.s32.totalorder %s44, 0
      %p222 = por %p220, %p221
      %p223 = scmp.ne.s32.totalorder %s211, %s212
      %p224 = scmp.eq.s32.totalorder %s45, 1
      %p225 = por %p223, %p224
      %p227 = scmp.ne.s32.totalorder %s212, %s226
      %p228 = scmp.eq.s32.totalorder %s45, 0
      %p229 = por %p227, %p228
      %s231 = sadd.s32 %s230, 1
      %p234 = scmp.eq.s32.totalorder %s39, 1
      %p235 = scmp.ne.s32.totalorder %s230, %s232
      %p236 = scmp.eq.s32.totalorder %s39, 0
      %p237 = por %p235, %p236
      %p238 = scmp.ne.s32.totalorder %s230, %s232
      %p239 = scmp.eq.s32.totalorder %s44, 1
      %p240 = por %p238, %p239
      %p241 = scmp.ne.s32.totalorder %s232, %s233
      %p242 = scmp.eq.s32.totalorder %s44, 0
      %p243 = por %p241, %p242
      %p244 = scmp.ne.s32.totalorder %s232, %s233
      %p245 = scmp.eq.s32.totalorder %s45, 1
      %p246 = por %p244, %p245
      %p248 = scmp.ne.s32.totalorder %s233, %s247
      %p249 = scmp.eq.s32.totalorder %s45, 0
      %p250 = por %p248, %p249
      %s252 = sadd.s32 %s251, 1
      %p255 = scmp.eq.s32.totalorder %s39, 1
      %p256 = scmp.ne.s32.totalorder %s251, %s253
      %p257 = scmp.eq.s32.totalorder %s39, 0
      %p258 = por %p256, %p257
      %p259 = scmp.ne.s32.totalorder %s251, %s253
      %p260 = scmp.eq.s32.totalorder %s44, 1
      %p261 = por %p259, %p260
      %p262 = scmp.ne.s32.totalorder %s253, %s254
      %p263 = scmp.eq.s32.totalorder %s44, 0
      %p264 = por %p262, %p263
      %p265 = scmp.ne.s32.totalorder %s253, %s254
      %p266 = scmp.eq.s32.totalorder %s45, 1
      %p267 = por %p265, %p266
      %p269 = scmp.ne.s32.totalorder %s254, %s268
      %p270 = scmp.eq.s32.totalorder %s45, 0
      %p271 = por %p269, %p270
      %s273 = sadd.s32 %s272, 1
      %p276 = scmp.eq.s32.totalorder %s39, 1
      %p277 = scmp.ne.s32.totalorder %s272, %s274
      %p278 = scmp.eq.s32.totalorder %s39, 0
      %p279 = por %p277, %p278
      %p280 = scmp.ne.s32.totalorder %s272, %s274
      %p281 = scmp.eq.s32.totalorder %s44, 1
      %p282 = por %p280, %p281
      %p283 = scmp.ne.s32.totalorder %s274, %s275
      %p284 = scmp.eq.s32.totalorder %s44, 0
      %p285 = por %p283, %p284
      %p286 = scmp.ne.s32.totalorder %s274, %s275
      %p287 = scmp.eq.s32.totalorder %s45, 1
      %p288 = por %p286, %p287
      %p290 = scmp.ne.s32.totalorder %s275, %s289
      %p291 = scmp.eq.s32.totalorder %s45, 0
      %p292 = por %p290, %p291
      %s294 = sadd.s32 %s293, 1
      %p297 = scmp.eq.s32.totalorder %s39, 1
      %p298 = scmp.ne.s32.totalorder %s293, %s295
      %p299 = scmp.eq.s32.totalorder %s39, 0
      %p300 = por %p298, %p299
      %p301 = scmp.ne.s32.totalorder %s293, %s295
      %p302 = scmp.eq.s32.totalorder %s44, 1
      %p303 = por %p301, %p302
      %p304 = scmp.ne.s32.totalorder %s295, %s296
      %p305 = scmp.eq.s32.totalorder %s44, 0
      %p306 = por %p304, %p305
      %p307 = scmp.ne.s32.totalorder %s295, %s296
      %p308 = scmp.eq.s32.totalorder %s45, 1
      %p309 = por %p307, %p308
      %p311 = scmp.ne.s32.totalorder %s296, %s310
      %p312 = scmp.eq.s32.totalorder %s45, 0
      %p313 = por %p311, %p312
      %s315 = sadd.s32 %s314, 1
      %p318 = scmp.eq.s32.totalorder %s39, 1
      %p319 = scmp.ne.s32.totalorder %s314, %s316
      %p320 = scmp.eq.s32.totalorder %s39, 0
      %p321 = por %p319, %p320
      %p322 = scmp.ne.s32.totalorder %s314, %s316
      %p323 = scmp.eq.s32.totalorder %s44, 1
      %p324 = por %p322, %p323
      %p325 = scmp.ne.s32.totalorder %s316, %s317
      %p326 = scmp.eq.s32.totalorder %s44, 0
      %p327 = por %p325, %p326
      %p328 = scmp.ne.s32.totalorder %s316, %s317
      %p329 = scmp.eq.s32.totalorder %s45, 1
      %p330 = por %p328, %p329
      %p332 = scmp.ne.s32.totalorder %s317, %s331
      %p333 = scmp.eq.s32.totalorder %s45, 0
      %p334 = por %p332, %p333
      %s336 = sadd.s32 %s335, 1
      %p339 = scmp.eq.s32.totalorder %s39, 1
      %p340 = scmp.ne.s32.totalorder %s335, %s337
      %p341 = scmp.eq.s32.totalorder %s39, 0
      %p342 = por %p340, %p341
      %p343 = scmp.ne.s32.totalorder %s335, %s337
      %p344 = scmp.eq.s32.totalorder %s44, 1
      %p345 = por %p343, %p344
      %p346 = scmp.ne.s32.totalorder %s337, %s338
      %p347 = scmp.eq.s32.totalorder %s44, 0
      %p348 = por %p346, %p347
      %p349 = scmp.ne.s32.totalorder %s337, %s338
      %p350 = scmp.eq.s32.totalorder %s45, 1
      %p351 = por %p349, %p350
      %p353 = scmp.ne.s32.totalorder %s338, %s352
      %p354 = scmp.eq.s32.totalorder %s45, 0
      %p355 = por %p353, %p354
      %s357 = sadd.s32 %s356, 1
      %p360 = scmp.eq.s32.totalorder %s39, 1
      %p361 = scmp.ne.s32.totalorder %s356, %s358
      %p362 = scmp.eq.s32.totalorder %s39, 0
      %p363 = por %p361, %p362
      %p364 = scmp.ne.s32.totalorder %s356, %s358
      %p365 = scmp.eq.s32.totalorder %s44, 1
      %p366 = por %p364, %p365
      %p367 = scmp.ne.s32.totalorder %s358, %s359
      %p368 = scmp.eq.s32.totalorder %s44, 0
      %p369 = por %p367, %p368
      %p370 = scmp.ne.s32.totalorder %s358, %s359
      %p371 = scmp.eq.s32.totalorder %s45, 1
      %p372 = por %p370, %p371
      %p374 = scmp.ne.s32.totalorder %s359, %s373
      %p375 = scmp.eq.s32.totalorder %s45, 0
      %p376 = por %p374, %p375
      %s378 = sadd.s32 %s377, 1
      %p381 = scmp.eq.s32.totalorder %s39, 1
      %p382 = scmp.ne.s32.totalorder %s377, %s379
      %p383 = scmp.eq.s32.totalorder %s39, 0
      %p384 = por %p382, %p383
      %p385 = scmp.ne.s32.totalorder %s377, %s379
      %p386 = scmp.eq.s32.totalorder %s44, 1
      %p387 = por %p385, %p386
      %p388 = scmp.ne.s32.totalorder %s379, %s380
      %p389 = scmp.eq.s32.totalorder %s44, 0
      %p390 = por %p388, %p389
      %p391 = scmp.ne.s32.totalorder %s379, %s380
      %p392 = scmp.eq.s32.totalorder %s45, 1
      %p393 = por %p391, %p392
      %p395 = scmp.ne.s32.totalorder %s380, %s394
      %p396 = scmp.eq.s32.totalorder %s45, 0
      %p397 = por %p395, %p396
      %s399 = sadd.s32 %s398, 1
      %p402 = scmp.eq.s32.totalorder %s39, 1
      %p403 = scmp.ne.s32.totalorder %s398, %s400
      %p404 = scmp.eq.s32.totalorder %s39, 0
      %p405 = por %p403, %p404
      %p406 = scmp.ne.s32.totalorder %s398, %s400
      %p407 = scmp.eq.s32.totalorder %s44, 1
      %p408 = por %p406, %p407
      %p409 = scmp.ne.s32.totalorder %s400, %s401
      %p410 = scmp.eq.s32.totalorder %s44, 0
      %p411 = por %p409, %p410
      %p412 = scmp.ne.s32.totalorder %s400, %s401
      %p413 = scmp.eq.s32.totalorder %s45, 1
      %p414 = por %p412, %p413
      %p416 = scmp.ne.s32.totalorder %s401, %s415
      %p417 = scmp.eq.s32.totalorder %s45, 0
      %p418 = por %p416, %p417
      %s420 = sadd.s32 %s419, 1
      %p423 = scmp.eq.s32.totalorder %s39, 1
      %p424 = scmp.ne.s32.totalorder %s419, %s421
      %p425 = scmp.eq.s32.totalorder %s39, 0
      %p426 = por %p424, %p425
      %p427 = scmp.ne.s32.totalorder %s419, %s421
      %p428 = scmp.eq.s32.totalorder %s44, 1
      %p429 = por %p427, %p428
      %p430 = scmp.ne.s32.totalorder %s421, %s422
      %p431 = scmp.eq.s32.totalorder %s44, 0
      %p432 = por %p430, %p431
      %p433 = scmp.ne.s32.totalorder %s421, %s422
      %p434 = scmp.eq.s32.totalorder %s45, 1
      %p435 = por %p433, %p434
      %p437 = scmp.ne.s32.totalorder %s422, %s436
      %p438 = scmp.eq.s32.totalorder %s45, 0
      %p439 = por %p437, %p438
      %s441 = sadd.s32 %s440, 1
      %p444 = scmp.eq.s32.totalorder %s39, 1
      %p445 = scmp.ne.s32.totalorder %s440, %s442
      %p446 = scmp.eq.s32.totalorder %s39, 0
      %p447 = por %p445, %p446
      %p448 = scmp.ne.s32.totalorder %s440, %s442
      %p449 = scmp.eq.s32.totalorder %s44, 1
      %p450 = por %p448, %p449
      %p451 = scmp.ne.s32.totalorder %s442, %s443
      %p452 = scmp.eq.s32.totalorder %s44, 0
      %p453 = por %p451, %p452
      %p454 = scmp.ne.s32.totalorder %s442, %s443
      %p455 = scmp.eq.s32.totalorder %s45, 1
      %p456 = por %p454, %p455
      %p458 = scmp.ne.s32.totalorder %s443, %s457
      %p459 = scmp.eq.s32.totalorder %s45, 0
      %p460 = por %p458, %p459
      %s462 = sadd.s32 %s461, 1
      %p465 = scmp.eq.s32.totalorder %s39, 1
      %p466 = scmp.ne.s32.totalorder %s461, %s463
      %p467 = scmp.eq.s32.totalorder %s39, 0
      %p468 = por %p466, %p467
      %p469 = scmp.ne.s32.totalorder %s461, %s463
      %p470 = scmp.eq.s32.totalorder %s44, 1
      %p471 = por %p469, %p470
      %p472 = scmp.ne.s32.totalorder %s463, %s464
      %p473 = scmp.eq.s32.totalorder %s44, 0
      %p474 = por %p472, %p473
      %p475 = scmp.ne.s32.totalorder %s463, %s464
      %p476 = scmp.eq.s32.totalorder %s45, 1
      %p477 = por %p475, %p476
      %p479 = scmp.ne.s32.totalorder %s464, %s478
      %p480 = scmp.eq.s32.totalorder %s45, 0
      %p481 = por %p479, %p480
      %s483 = sadd.s32 %s482, 1
      %p486 = scmp.eq.s32.totalorder %s39, 1
      %p487 = scmp.ne.s32.totalorder %s482, %s484
      %p488 = scmp.eq.s32.totalorder %s39, 0
      %p489 = por %p487, %p488
      %p490 = scmp.ne.s32.totalorder %s482, %s484
      %p491 = scmp.eq.s32.totalorder %s44, 1
      %p492 = por %p490, %p491
      %p493 = scmp.ne.s32.totalorder %s484, %s485
      %p494 = scmp.eq.s32.totalorder %s44, 0
      %p495 = por %p493, %p494
      %p496 = scmp.ne.s32.totalorder %s484, %s485
      %p497 = scmp.eq.s32.totalorder %s45, 1
      %p498 = por %p496, %p497
      %p500 = scmp.ne.s32.totalorder %s485, %s499
      %p501 = scmp.eq.s32.totalorder %s45, 0
      %p502 = por %p500, %p501
      %s504 = sadd.s32 %s503, 1
      %p507 = scmp.eq.s32.totalorder %s39, 1
      %p508 = scmp.ne.s32.totalorder %s503, %s505
      %p509 = scmp.eq.s32.totalorder %s39, 0
      %p510 = por %p508, %p509
      %p511 = scmp.ne.s32.totalorder %s503, %s505
      %p512 = scmp.eq.s32.totalorder %s44, 1
      %p513 = por %p511, %p512
      %p514 = scmp.ne.s32.totalorder %s505, %s506
      %p515 = scmp.eq.s32.totalorder %s44, 0
      %p516 = por %p514, %p515
      %p517 = scmp.ne.s32.totalorder %s505, %s506
      %p518 = scmp.eq.s32.totalorder %s45, 1
      %p519 = por %p517, %p518
      %p521 = scmp.ne.s32.totalorder %s506, %s520
      %p522 = scmp.eq.s32.totalorder %s45, 0
      %p523 = por %p521, %p522
      %s525 = sadd.s32 %s524, 1
      %p528 = scmp.eq.s32.totalorder %s39, 1
      %p529 = scmp.ne.s32.totalorder %s524, %s526
      %p530 = scmp.eq.s32.totalorder %s39, 0
      %p531 = por %p529, %p530
      %p532 = scmp.ne.s32.totalorder %s524, %s526
      %p533 = scmp.eq.s32.totalorder %s44, 1
      %p534 = por %p532, %p533
      %p535 = scmp.ne.s32.totalorder %s526, %s527
      %p536 = scmp.eq.s32.totalorder %s44, 0
      %p537 = por %p535, %p536
      %p538 = scmp.ne.s32.totalorder %s526, %s527
      %p539 = scmp.eq.s32.totalorder %s45, 1
      %p540 = por %p538, %p539
      %p542 = scmp.ne.s32.totalorder %s527, %s541
      %p543 = scmp.eq.s32.totalorder %s45, 0
      %p544 = por %p542, %p543
      %s546 = sadd.s32 %s545, 1
      %p549 = scmp.eq.s32.totalorder %s39, 1
      %p550 = scmp.ne.s32.totalorder %s545, %s547
      %p551 = scmp.eq.s32.totalorder %s39, 0
      %p552 = por %p550, %p551
      %p553 = scmp.ne.s32.totalorder %s545, %s547
      %p554 = scmp.eq.s32.totalorder %s44, 1
      %p555 = por %p553, %p554
      %p556 = scmp.ne.s32.totalorder %s547, %s548
      %p557 = scmp.eq.s32.totalorder %s44, 0
      %p558 = por %p556, %p557
      %p559 = scmp.ne.s32.totalorder %s547, %s548
      %p560 = scmp.eq.s32.totalorder %s45, 1
      %p561 = por %p559, %p560
      %p563 = scmp.ne.s32.totalorder %s548, %s562
      %p564 = scmp.eq.s32.totalorder %s45, 0
      %p565 = por %p563, %p564
      %s567 = sadd.s32 %s566, 1
      %p570 = scmp.eq.s32.totalorder %s39, 1
      %p571 = scmp.ne.s32.totalorder %s566, %s568
      %p572 = scmp.eq.s32.totalorder %s39, 0
      %p573 = por %p571, %p572
      %p574 = scmp.ne.s32.totalorder %s566, %s568
      %p575 = scmp.eq.s32.totalorder %s44, 1
      %p576 = por %p574, %p575
      %p577 = scmp.ne.s32.totalorder %s568, %s569
      %p578 = scmp.eq.s32.totalorder %s44, 0
      %p579 = por %p577, %p578
      %p580 = scmp.ne.s32.totalorder %s568, %s569
      %p581 = scmp.eq.s32.totalorder %s45, 1
      %p582 = por %p580, %p581
      %p584 = scmp.ne.s32.totalorder %s569, %s583
      %p585 = scmp.eq.s32.totalorder %s45, 0
      %p586 = por %p584, %p585
      %s588 = sadd.s32 %s587, 1
      %p591 = scmp.eq.s32.totalorder %s39, 1
      %p592 = scmp.ne.s32.totalorder %s587, %s589
      %p593 = scmp.eq.s32.totalorder %s39, 0
      %p594 = por %p592, %p593
      %p595 = scmp.ne.s32.totalorder %s587, %s589
      %p596 = scmp.eq.s32.totalorder %s44, 1
      %p597 = por %p595, %p596
      %p598 = scmp.ne.s32.totalorder %s589, %s590
      %p599 = scmp.eq.s32.totalorder %s44, 0
      %p600 = por %p598, %p599
      %p601 = scmp.ne.s32.totalorder %s589, %s590
      %p602 = scmp.eq.s32.totalorder %s45, 1
      %p603 = por %p601, %p602
      %p605 = scmp.ne.s32.totalorder %s590, %s604
      %p606 = scmp.eq.s32.totalorder %s45, 0
      %p607 = por %p605, %p606
      %s609 = sadd.s32 %s608, 1
      %p612 = scmp.eq.s32.totalorder %s39, 1
      %p613 = scmp.ne.s32.totalorder %s608, %s610
      %p614 = scmp.eq.s32.totalorder %s39, 0
      %p615 = por %p613, %p614
      %p616 = scmp.ne.s32.totalorder %s608, %s610
      %p617 = scmp.eq.s32.totalorder %s44, 1
      %p618 = por %p616, %p617
      %p619 = scmp.ne.s32.totalorder %s610, %s611
      %p620 = scmp.eq.s32.totalorder %s44, 0
      %p621 = por %p619, %p620
      %p622 = scmp.ne.s32.totalorder %s610, %s611
      %p623 = scmp.eq.s32.totalorder %s45, 1
      %p624 = por %p622, %p623
      %p626 = scmp.ne.s32.totalorder %s611, %s625
      %p627 = scmp.eq.s32.totalorder %s45, 0
      %p628 = por %p626, %p627
      %s629 = ssub.s32 %s39, %s46
      %p630 = scmp.eq.s32.totalorder %s629, 0
      %s632 = sadd.s32 %s631, 1
      %s633 = scalar_select %p630, %s631, %s632
      %p636 = pneg %p630
      %p637 = scmp.eq.s32.totalorder %s39, 1
      %p638 = por %p636, %p637
      %p639 = scmp.ne.s32.totalorder %s631, %s634
      %p640 = scmp.eq.s32.totalorder %s39, 0
      %p641 = por %p639, %p640
      %p642 = scmp.ne.s32.totalorder %s631, %s634
      %p643 = scmp.eq.s32.totalorder %s44, 1
      %p644 = por %p642, %p643
      %p645 = scmp.ne.s32.totalorder %s634, %s635
      %p646 = scmp.eq.s32.totalorder %s44, 0
      %p647 = por %p645, %p646
      %p648 = scmp.ne.s32.totalorder %s634, %s635
      %p649 = scmp.eq.s32.totalorder %s45, 1
      %p650 = por %p648, %p649
      %p652 = scmp.ne.s32.totalorder %s635, %s651
      %p653 = scmp.eq.s32.totalorder %s45, 0
      %p654 = por %p652, %p653
      %p655 = scmp.le.s32.totalorder 1, %s39
      %p656 = scmp.lt.s32.totalorder %s39, 3
      %p657 = pnand %p655, %p656
      %p658 = pneg %p657
      // Predicated region
      $region9: #{code_translator_forward.3} parent=5 // pred_check
        _
      $region10: #{code_translator_forward.3} parent=5 // pred_check_branch
        %660 = sbr.rel (%p657) target = $region12
      $region11: #{code_translator_forward.3} parent=5 // pred_region
        %s661 = ssub.s32 %s39, 1
        // Predicated region
        $region13: #{code_translator_forward.3} parent=11 // pred_check
          %p662 = pneg %p138
        $region14: #{code_translator_forward.3} parent=11 // pred_check_branch
          %664 = sbr.rel (%p662) target = $region16
        $region15: #{code_translator_forward.3} parent=11 // pred_region
          %666 = vsyncadd [#allocation3], 0
          %s668 = sshll.u32 %s3, 4
          %s669 = int_to_ptr.hbm [resolvable:$true] %s668
          %s670 = sshll.u32 [#allocation2], 4
          %s671 = int_to_ptr.vmem [resolvable:$true] %s670
          %673 = dma.hbm_to_vmem [thread:$0]  %s669, 16, %s671, [#allocation3]
        $region16: #{code_translator_forward.3} parent=11 // pred_fallthru
          _
        // Predicated region
        $region17: #{code_translator_forward.3} parent=11 // pred_check
          %p674 = pneg %p159
        $region18: #{code_translator_forward.3} parent=11 // pred_check_branch
          %676 = sbr.rel (%p674) target = $region20
        $region19: #{code_translator_forward.3} parent=11 // pred_region
          %678 = vsyncadd [#allocation6], 0
          %s680 = sshll.u32 %s4, 4
          %s681 = int_to_ptr.hbm [resolvable:$true] %s680
          %s682 = sshll.u32 [#allocation5], 4
          %s683 = int_to_ptr.vmem [resolvable:$true] %s682
          %685 = dma.hbm_to_vmem [thread:$0]  %s681, 16, %s683, [#allocation6]
        $region20: #{code_translator_forward.3} parent=11 // pred_fallthru
          _
        // Predicated region
        $region21: #{code_translator_forward.3} parent=11 // pred_check
          %p686 = pneg %p180
        $region22: #{code_translator_forward.3} parent=11 // pred_check_branch
          %688 = sbr.rel (%p686) target = $region24
        $region23: #{code_translator_forward.3} parent=11 // pred_region
          _
        $region24: #{code_translator_forward.3} parent=11 // pred_fallthru
          _
        // Predicated region
        $region25: #{code_translator_forward.3} parent=11 // pred_check
          %p689 = pneg %p201
        $region26: #{code_translator_forward.3} parent=11 // pred_check_branch
          %691 = sbr.rel (%p689) target = $region28
        $region27: #{code_translator_forward.3} parent=11 // pred_region
          _
        $region28: #{code_translator_forward.3} parent=11 // pred_fallthru
          _
        // Predicated region
        $region29: #{code_translator_forward.3} parent=11 // pred_check
          %p692 = pneg %p222
        $region30: #{code_translator_forward.3} parent=11 // pred_check_branch
          %694 = sbr.rel (%p692) target = $region32
        $region31: #{code_translator_forward.3} parent=11 // pred_region
          _
        $region32: #{code_translator_forward.3} parent=11 // pred_fallthru
          _
        // Predicated region
        $region33: #{code_translator_forward.3} parent=11 // pred_check
          %p695 = pneg %p243
        $region34: #{code_translator_forward.3} parent=11 // pred_check_branch
          %697 = sbr.rel (%p695) target = $region36
        $region35: #{code_translator_forward.3} parent=11 // pred_region
          _
        $region36: #{code_translator_forward.3} parent=11 // pred_fallthru
          _
        // Predicated region
        $region37: #{code_translator_forward.3} parent=11 // pred_check
          %p698 = pneg %p264
        $region38: #{code_translator_forward.3} parent=11 // pred_check_branch
          %700 = sbr.rel (%p698) target = $region40
        $region39: #{code_translator_forward.3} parent=11 // pred_region
          _
        $region40: #{code_translator_forward.3} parent=11 // pred_fallthru
          _
        // Predicated region
        $region41: #{code_translator_forward.3} parent=11 // pred_check
          %p701 = pneg %p285
        $region42: #{code_translator_forward.3} parent=11 // pred_check_branch
          %703 = sbr.rel (%p701) target = $region44
        $region43: #{code_translator_forward.3} parent=11 // pred_region
          _
        $region44: #{code_translator_forward.3} parent=11 // pred_fallthru
          _
        // Predicated region
        $region45: #{code_translator_forward.3} parent=11 // pred_check
          %p704 = pneg %p306
        $region46: #{code_translator_forward.3} parent=11 // pred_check_branch
          %706 = sbr.rel (%p704) target = $region48
        $region47: #{code_translator_forward.3} parent=11 // pred_region
          _
        $region48: #{code_translator_forward.3} parent=11 // pred_fallthru
          _
        // Predicated region
        $region49: #{code_translator_forward.3} parent=11 // pred_check
          %p707 = pneg %p327
        $region50: #{code_translator_forward.3} parent=11 // pred_check_branch
          %709 = sbr.rel (%p707) target = $region52
        $region51: #{code_translator_forward.3} parent=11 // pred_region
          _
        $region52: #{code_translator_forward.3} parent=11 // pred_fallthru
          _
        // Predicated region
        $region53: #{code_translator_forward.3} parent=11 // pred_check
          %p710 = pneg %p348
        $region54: #{code_translator_forward.3} parent=11 // pred_check_branch
          %712 = sbr.rel (%p710) target = $region56
        $region55: #{code_translator_forward.3} parent=11 // pred_region
          _
        $region56: #{code_translator_forward.3} parent=11 // pred_fallthru
          _
        // Predicated region
        $region57: #{code_translator_forward.3} parent=11 // pred_check
          %p713 = pneg %p369
        $region58: #{code_translator_forward.3} parent=11 // pred_check_branch
          %715 = sbr.rel (%p713) target = $region60
        $region59: #{code_translator_forward.3} parent=11 // pred_region
          _
        $region60: #{code_translator_forward.3} parent=11 // pred_fallthru
          _
        // Predicated region
        $region61: #{code_translator_forward.3} parent=11 // pred_check
          %p716 = pneg %p390
        $region62: #{code_translator_forward.3} parent=11 // pred_check_branch
          %718 = sbr.rel (%p716) target = $region64
        $region63: #{code_translator_forward.3} parent=11 // pred_region
          _
        $region64: #{code_translator_forward.3} parent=11 // pred_fallthru
          _
        // Predicated region
        $region65: #{code_translator_forward.3} parent=11 // pred_check
          %p719 = pneg %p411
        $region66: #{code_translator_forward.3} parent=11 // pred_check_branch
          %721 = sbr.rel (%p719) target = $region68
        $region67: #{code_translator_forward.3} parent=11 // pred_region
          _
        $region68: #{code_translator_forward.3} parent=11 // pred_fallthru
          _
        // Predicated region
        $region69: #{code_translator_forward.3} parent=11 // pred_check
          %p722 = pneg %p432
        $region70: #{code_translator_forward.3} parent=11 // pred_check_branch
          %724 = sbr.rel (%p722) target = $region72
        $region71: #{code_translator_forward.3} parent=11 // pred_region
          _
        $region72: #{code_translator_forward.3} parent=11 // pred_fallthru
          _
        // Predicated region
        $region73: #{code_translator_forward.3} parent=11 // pred_check
          %p725 = pneg %p453
        $region74: #{code_translator_forward.3} parent=11 // pred_check_branch
          %727 = sbr.rel (%p725) target = $region76
        $region75: #{code_translator_forward.3} parent=11 // pred_region
          _
        $region76: #{code_translator_forward.3} parent=11 // pred_fallthru
          _
        // Predicated region
        $region77: #{code_translator_forward.3} parent=11 // pred_check
          %p728 = pneg %p474
        $region78: #{code_translator_forward.3} parent=11 // pred_check_branch
          %730 = sbr.rel (%p728) target = $region80
        $region79: #{code_translator_forward.3} parent=11 // pred_region
          _
        $region80: #{code_translator_forward.3} parent=11 // pred_fallthru
          _
        // Predicated region
        $region81: #{code_translator_forward.3} parent=11 // pred_check
          %p731 = pneg %p495
        $region82: #{code_translator_forward.3} parent=11 // pred_check_branch
          %733 = sbr.rel (%p731) target = $region84
        $region83: #{code_translator_forward.3} parent=11 // pred_region
          _
        $region84: #{code_translator_forward.3} parent=11 // pred_fallthru
          _
        // Predicated region
        $region85: #{code_translator_forward.3} parent=11 // pred_check
          %p734 = pneg %p516
        $region86: #{code_translator_forward.3} parent=11 // pred_check_branch
          %736 = sbr.rel (%p734) target = $region88
        $region87: #{code_translator_forward.3} parent=11 // pred_region
          _
        $region88: #{code_translator_forward.3} parent=11 // pred_fallthru
          _
        // Predicated region
        $region89: #{code_translator_forward.3} parent=11 // pred_check
          %p737 = pneg %p537
        $region90: #{code_translator_forward.3} parent=11 // pred_check_branch
          %739 = sbr.rel (%p737) target = $region92
        $region91: #{code_translator_forward.3} parent=11 // pred_region
          _
        $region92: #{code_translator_forward.3} parent=11 // pred_fallthru
          _
        // Predicated region
        $region93: #{code_translator_forward.3} parent=11 // pred_check
          %p740 = pneg %p558
        $region94: #{code_translator_forward.3} parent=11 // pred_check_branch
          %742 = sbr.rel (%p740) target = $region96
        $region95: #{code_translator_forward.3} parent=11 // pred_region
          _
        $region96: #{code_translator_forward.3} parent=11 // pred_fallthru
          _
        // Predicated region
        $region97: #{code_translator_forward.3} parent=11 // pred_check
          %p743 = pneg %p579
        $region98: #{code_translator_forward.3} parent=11 // pred_check_branch
          %745 = sbr.rel (%p743) target = $region100
        $region99: #{code_translator_forward.3} parent=11 // pred_region
          %747 = vsyncadd [#allocation6], 0
          %s748 = sshll.u32 %s24, 4
          %s749 = int_to_ptr.hbm [resolvable:$true] %s748
          %s750 = sshll.u32 [#allocation7], 4
          %s751 = int_to_ptr.vmem [resolvable:$true] %s750
          %756 = dma.hbm_to_vmem [thread:$0]  %s749, 32, %s751, [#allocation6], 16, 16, 1
        $region100: #{code_translator_forward.3} parent=11 // pred_fallthru
          _
        // Predicated region
        $region101: #{code_translator_forward.3} parent=11 // pred_check
          %p757 = pneg %p600
        $region102: #{code_translator_forward.3} parent=11 // pred_check_branch
          %759 = sbr.rel (%p757) target = $region104
        $region103: #{code_translator_forward.3} parent=11 // pred_region
          _
        $region104: #{code_translator_forward.3} parent=11 // pred_fallthru
          _
        // Predicated region
        $region105: #{code_translator_forward.3} parent=11 // pred_check
          %p760 = pneg %p621
        $region106: #{code_translator_forward.3} parent=11 // pred_check_branch
          %762 = sbr.rel (%p760) target = $region108
        $region107: #{code_translator_forward.3} parent=11 // pred_region
          %764 = vsyncadd [#allocation9], 0
          %s766 = sshll.u32 %s26, 4
          %s767 = int_to_ptr.hbm [resolvable:$true] %s766
          %s768 = sshll.u32 [#allocation8], 4
          %s769 = int_to_ptr.vmem [resolvable:$true] %s768
          %771 = dma.hbm_to_vmem [thread:$0]  %s767, 16, %s769, [#allocation9]
        $region108: #{code_translator_forward.3} parent=11 // pred_fallthru
          _
      $region12: #{code_translator_forward.3} parent=5 // pred_fallthru
        _
      %p772 = scmp.lt.s32.totalorder %s39, 2
      // Predicated region
      $region109: #{code_translator_forward.3} parent=5 // pred_check
        %p773 = pneg %p772
      $region110: #{code_translator_forward.3} parent=5 // pred_check_branch
        %775 = sbr.rel (%p773) target = $region112
      $region111: #{code_translator_forward.3} parent=5 // pred_region
        // Predicated region
        $region113: #{code_translator_forward.3} parent=111 // pred_check
          %p776 = pneg %p59
        $region114: #{code_translator_forward.3} parent=111 // pred_check_branch
          %778 = sbr.rel (%p776) target = $region116
        $region115: #{code_translator_forward.3} parent=111 // pred_region
          %p779 = scmp.lt.s32.totalorder %s39, 1
          %s780 = scalar_select %p779, %s39, 1
          %s781 = smul.addr %s780, 8
          %s782 = scalar_lea.vmem %s0, %s781
        $region116: #{code_translator_forward.3} parent=111 // pred_fallthru
          _
        // Predicated region
        $region117: #{code_translator_forward.3} parent=111 // pred_check
          %p783 = pneg %p85
        $region118: #{code_translator_forward.3} parent=111 // pred_check_branch
          %785 = sbr.rel (%p783) target = $region120
        $region119: #{code_translator_forward.3} parent=111 // pred_region
          %p786 = scmp.lt.s32.totalorder %s39, 1
          %s787 = scalar_select %p786, %s39, 1
          %s788 = smul.addr %s787, 8
          %s789 = scalar_lea.vmem %s1, %s788
        $region120: #{code_translator_forward.3} parent=111 // pred_fallthru
          _
        // Predicated region
        $region121: #{code_translator_forward.3} parent=111 // pred_check
          %p790 = pneg %p111
        $region122: #{code_translator_forward.3} parent=111 // pred_check_branch
          %792 = sbr.rel (%p790) target = $region124
        $region123: #{code_translator_forward.3} parent=111 // pred_region
          %p793 = scmp.lt.s32.totalorder %s39, 1
          %s794 = scalar_select %p793, %s39, 1
          %s795 = smul.addr %s794, 8
          %s796 = scalar_lea.vmem %s2, %s795
        $region124: #{code_translator_forward.3} parent=111 // pred_fallthru
          _
      $region112: #{code_translator_forward.3} parent=5 // pred_fallthru
        _
      %p797 = scmp.le.s32.totalorder 1, %s39
      %p798 = scmp.lt.s32.totalorder %s39, 3
      %p799 = pnand %p797, %p798
      %p800 = pneg %p799
      // Predicated region
      $region125: #{code_translator_forward.3} parent=5 // pred_check
        _
      $region126: #{code_translator_forward.3} parent=5 // pred_check_branch
        %802 = sbr.rel (%p799) target = $region128
      $region127: #{code_translator_forward.3} parent=5 // pred_region
        %s803 = ssub.s32 %s39, 1
        // Predicated region
        $region129: #{code_translator_forward.3} parent=127 // pred_check
          %p804 = pneg %p138
        $region130: #{code_translator_forward.3} parent=127 // pred_check_branch
          %806 = sbr.rel (%p804) target = $region132
        $region131: #{code_translator_forward.3} parent=127 // pred_region
          %808 = dma.done [#allocation3], 16
        $region132: #{code_translator_forward.3} parent=127 // pred_fallthru
          _
        // Predicated region
        $region133: #{code_translator_forward.3} parent=127 // pred_check
          %p809 = pneg %p159
        $region134: #{code_translator_forward.3} parent=127 // pred_check_branch
          %811 = sbr.rel (%p809) target = $region136
        $region135: #{code_translator_forward.3} parent=127 // pred_region
          %813 = dma.done [#allocation6], 16
        $region136: #{code_translator_forward.3} parent=127 // pred_fallthru
          _
        // Predicated region
        $region137: #{code_translator_forward.3} parent=127 // pred_check
          %p814 = pneg %p579
        $region138: #{code_translator_forward.3} parent=127 // pred_check_branch
          %816 = sbr.rel (%p814) target = $region140
        $region139: #{code_translator_forward.3} parent=127 // pred_region
          %818 = dma.done [#allocation6], 32
        $region140: #{code_translator_forward.3} parent=127 // pred_fallthru
          _
        // Predicated region
        $region141: #{code_translator_forward.3} parent=127 // pred_check
          %p819 = pneg %p621
        $region142: #{code_translator_forward.3} parent=127 // pred_check_branch
          %821 = sbr.rel (%p819) target = $region144
        $region143: #{code_translator_forward.3} parent=127 // pred_region
          %823 = dma.done [#allocation9], 16
        $region144: #{code_translator_forward.3} parent=127 // pred_fallthru
          _
        %p824 = scmp.lt.s32.totalorder %s44, 1
        %s825 = scalar_select %p824, %s44, 1
        %s826 = smul.addr %s825, 8
        %s827 = scalar_lea.vmem %s0, %s826
        %p828 = pneg %p65
        %p829 = pneg %p62
        %p830 = scmp.lt.s32.totalorder %s44, 1
        %s831 = scalar_select %p830, %s44, 1
        %s832 = smul.addr %s831, 8
        %s833 = scalar_lea.vmem %s1, %s832
        %p834 = pneg %p91
        %p835 = pneg %p88
        %p836 = scmp.lt.s32.totalorder %s44, 1
        %s837 = scalar_select %p836, %s44, 1
        %s838 = smul.addr %s837, 8
        %s839 = scalar_lea.vmem %s2, %s838
        %p840 = pneg %p117
        %p841 = pneg %p114
        %p842 = pneg %p138
        %p843 = pneg %p135
        %p844 = pneg %p159
        %p845 = pneg %p156
        %p846 = pneg %p180
        %p847 = pneg %p177
        %p848 = pneg %p201
        %p849 = pneg %p198
        %p850 = pneg %p222
        %p851 = pneg %p219
        %p852 = pneg %p243
        %p853 = pneg %p240
        %p854 = pneg %p264
        %p855 = pneg %p261
        %p856 = pneg %p285
        %p857 = pneg %p282
        %p858 = pneg %p306
        %p859 = pneg %p303
        %p860 = pneg %p327
        %p861 = pneg %p324
        %p862 = pneg %p348
        %p863 = pneg %p345
        %p864 = pneg %p369
        %p865 = pneg %p366
        %p866 = pneg %p390
        %p867 = pneg %p387
        %p868 = pneg %p411
        %p869 = pneg %p408
        %p870 = pneg %p432
        %p871 = pneg %p429
        %p872 = pneg %p453
        %p873 = pneg %p450
        %p874 = pneg %p474
        %p875 = pneg %p471
        %p876 = pneg %p495
        %p877 = pneg %p492
        %p878 = pneg %p516
        %p879 = pneg %p513
        %p880 = pneg %p537
        %p881 = pneg %p534
        %p882 = pneg %p558
        %p883 = pneg %p555
        %p884 = pneg %p579
        %p885 = pneg %p576
        %p886 = pneg %p600
        %p887 = pneg %p597
        %p888 = pneg %p621
        %p889 = pneg %p618
        %p890 = pneg %p647
        %p891 = pneg %p644
        %s892 = sand.u32 %s634, 1
        %s893 = scalar_lea.sflag [#allocation4], %s892
        %s894 = sand.u32 %s634, 1
        %s895 = smul.addr %s894, 8
        %s896 = scalar_lea.vmem [#allocation10], %s895
        %p897 = scmp.lt.s32.totalorder %s44, 1
        %s898 = scalar_select %p897, %s44, 1
        %s899 = smul.addr %s898, 8
        %s900 = scalar_lea.vmem %s0, %s899
        %p901 = scmp.lt.s32.totalorder %s44, 1
        %s902 = scalar_select %p901, %s44, 1
        %s903 = smul.addr %s902, 8
        %s904 = scalar_lea.vmem %s1, %s903
        %p905 = scmp.lt.s32.totalorder %s44, 1
        %s906 = scalar_select %p905, %s44, 1
        %s907 = smul.addr %s906, 8
        %s908 = scalar_lea.vmem %s2, %s907
        %v910 = vld [vmem:[%s904] sm:$0xff]
        %v911 = vld [vmem:[%s908] sm:$0xff]
        %v912 = vld [vmem:[%s900] sm:$0xff]
        %v913 = vld [vmem:[#allocation2] sm:$0x1]
        %v914 = vld [vmem:[#allocation5] sm:$0x1]
        %vm915 = vcmask 261120
        %v916 = vsel %vm915, %v912, 0.0
        %917 = vadd.xlane.f32.xlu0 %v916
        %v918 = vpop.xlane.xlu0 %917
        %v919 = vrcp.pop 32.0
        %v920 = vmul.f32 32.0, %v919
        %v921 = vsub.f32 1.0, %v920
        %v922 = vmul.f32 %v919, %v921
        %v923 = vadd.f32 %v919, %v922
        %vm924 = vweird.f32 %v919
        %v925 = vsel %vm924, %v919, %v923
        %v926 = vmul.f32 %v918, %v925
        %v927 = vsub.f32 %v912, %v926
        %v928 = vmul.f32 %v927, %v927
        %v929 = vsel %vm915, %v928, 0.0
        %930 = vadd.xlane.f32.xlu0 %v929
        %v931 = vpop.xlane.xlu0 %930
        %v932 = vmul.f32 %v931, %v925
        %v933 = vadd.f32 %v932, 1e-12
        %v934 = vrsqrt.pop %v933
        %v935 = vmul.f32 %v934, %v933
        %v936 = vmul.f32 %v935, %v934
        %v937 = vmul.f32 0.5, %v936
        %v938 = vsub.f32 1.5, %v937
        %v939 = vmul.f32 %v934, %v938
        %vm940 = vweird.f32 %v933
        %vm941 = vweird.f32 %v934
        %vm942 = vmor %vm940, %vm941
        %v943 = vsel %vm942, %v934, %v939
        %v944 = vmul.f32 %v927, %v943
        %v946 = vperm.slane %v913, 0
        %v948 = vmul.f32 %v944, %v946
        %v950 = vperm.slane %v914, 0
        %v952 = vadd.f32 %v948, %v950
        %v953 = vld [vmem:[%s5] sm:$0xff]
        %v954 = vld [vmem:[%s5 + $0x8] sm:$0xff]
        %v955 = vld [vmem:[%s5 + $0x10] sm:$0xff]
        %v956 = vld [vmem:[%s5 + $0x18] sm:$0xff]
        %v957 = vld [vmem:[%s6] sm:$0x1]
        %v958 = vld [vmem:[%s7] sm:$0xff]
        %v959 = vld [vmem:[%s7 + $0x8] sm:$0xff]
        %v960 = vld [vmem:[%s7 + $0x10] sm:$0xff]
        %v961 = vld [vmem:[%s7 + $0x18] sm:$0xff]
        %v962 = vld [vmem:[%s8] sm:$0x1]
        %v963 = vld [vmem:[%s9] sm:$0x1]
        %v964 = vld [vmem:[%s10] sm:$0x1]
        %v965 = vpack.c.bf16 %v952, %v952
        %v966 = vpack.c.bf16 %v954, %v953
        %v967 = vpack.c.bf16 %v956, %v955
        %v969 = vperm.slane %v957, 0
        %v972 = vsel %vm915, %v965, 0
        %974 = vmatpush.bf16.msra.mxu0 0
        %975 = vmatpush.bf16.msra.mxu0 0
        %976 = vmatpush.bf16.msra.mxu0 0
        %977 = vmatpush.bf16.msra.mxu0 0
        %978 = vmatpush.bf16.msra.mxu0 0
        %979 = vmatpush.bf16.msra.mxu0 0
        %980 = vmatpush.bf16.msra.mxu0 %v967
        %981 = vmatpush.bf16.msra.mxu0 %v966
        %982 = vmatmul.bf16.gmra.mxu0 %v972
        %v983 = vpop.f32.mrf.mxu0
        %v984 = vadd.f32 %v969, %v983
        %v985 = vpop.f32.mrf.mxu0
        %986 = vdwg.mxu0
        %v987 = vpack.c.bf16 %v984, %v984
        %989 = vrot.lane.b32.xlu0 %v987, 96
        %v990 = vpop.permute.xlu0 %989
        %vm991 = vcmask 64512
        %v993 = vsel %vm991, %v987, 0
        %v996 = vsel %vm991, %v990, 0
        %998 = vmatpush.bf16.xpose.msra.mxu0 0
        %999 = vmatpush.bf16.xpose.msra.mxu0 0
        %1000 = vmatpush.bf16.xpose.msra.mxu0 0
        %1001 = vmatpush.bf16.xpose.msra.mxu0 0
        %1002 = vmatpush.bf16.xpose.msra.mxu0 0
        %1003 = vmatpush.bf16.xpose.msra.mxu0 0
        %1004 = vmatpush.bf16.xpose.msra.mxu0 0
        %1005 = vmatpush.bf16.xpose.msra.mxu0 %v996
        %1006 = vmatmul.bf16.gmra.mxu0 %v993
        %v1007 = vpop.f32.mrf.mxu0
        %v1008 = vadd.f32 0.0, %v1007
        %v1009 = vpop.f32.mrf.mxu0
        %1010 = vdwg.mxu0
        %v1011 = vmul.f32 %v1008, 0.35355338
        %v1012 = vadd.f32 %v1011, %v910
        %v1013 = vsel %vm991, %v1012, -inf
        %1014 = vmax.xlane.f32.xlu0 %v1013
        %v1015 = vpop.xlane.xlu0 %1014
        %v1016 = vsub.f32 %v1012, %v1015
        %v1017 = vmul.f32 %v1016, 1.442695
        %v1018 = vpow.pop %v1017
        %v1019 = vsel %vm991, %v1018, 0.0
        %1020 = vadd.xlane.f32.xlu0 %v1019
        %v1021 = vpop.xlane.xlu0 %1020
        %v1022 = vrcp.pop %v1021
        %v1023 = vmul.f32 %v1018, %v1022
        %v1024 = vpack.c.bf16 %v1023, %v1023
        %1025 = vrot.lane.b32.xlu0 %v987, 64
        %v1026 = vpop.permute.xlu0 %1025
        %v1028 = vsel %vm991, %v1024, 0
        %vm1030 = vcmask 1043456
        %v1032 = vsel %vm1030, %v1026, 0
        %1034 = vmatpush.bf16.msra.mxu0 0
        %1035 = vmatpush.bf16.msra.mxu0 0
        %1036 = vmatpush.bf16.msra.mxu0 0
        %1037 = vmatpush.bf16.msra.mxu0 0
        %1038 = vmatpush.bf16.msra.mxu0 0
        %1039 = vmatpush.bf16.msra.mxu0 0
        %1040 = vmatpush.bf16.msra.mxu0 0
        %1041 = vmatpush.bf16.msra.mxu0 %v1032
        %1042 = vmatmul.bf16.gmra.mxu0 %v1028
        %v1043 = vpop.f32.mrf.mxu0
        %v1044 = vadd.f32 0.0, %v1043
        %v1045 = vpop.f32.mrf.mxu0
        %1046 = vdwg.mxu0
        %v1047 = vpack.c.bf16 %v1044, %v1044
        %v1048 = vpack.c.bf16 %v958, %v958
        %1049 = vrot.lane.b32.xlu0 %v987, 120
        %v1050 = vpop.permute.xlu0 %1049
        %1051 = vrot.lane.b32.xlu0 %v987, 88
        %v1052 = vpop.permute.xlu0 %1051
        %v1054 = vsel %vm991, %v1050, 0
        %v1057 = vsel %vm991, %v1052, 0
        %1059 = vmatpush.bf16.xpose.msra.mxu0 0
        %1060 = vmatpush.bf16.xpose.msra.mxu0 0
        %1061 = vmatpush.bf16.xpose.msra.mxu0 0
        %1062 = vmatpush.bf16.xpose.msra.mxu0 0
        %1063 = vmatpush.bf16.xpose.msra.mxu0 0
        %1064 = vmatpush.bf16.xpose.msra.mxu0 0
        %1065 = vmatpush.bf16.xpose.msra.mxu0 0
        %1066 = vmatpush.bf16.xpose.msra.mxu0 %v1057
        %1067 = vmatmul.bf16.gmra.mxu0 %v1054
        %v1068 = vpop.f32.mrf.mxu0
        %v1069 = vadd.f32 0.0, %v1068
        %v1070 = vpop.f32.mrf.mxu0
        %1071 = vdwg.mxu0
        %v1072 = vmul.f32 %v1069, 0.35355338
        %v1073 = vadd.f32 %v1072, %v910
        %v1074 = vsel %vm991, %v1073, -inf
        %1075 = vmax.xlane.f32.xlu0 %v1074
        %v1076 = vpop.xlane.xlu0 %1075
        %v1077 = vsub.f32 %v1073, %v1076
        %v1078 = vmul.f32 %v1077, 1.442695
        %v1079 = vpow.pop %v1078
        %v1080 = vsel %vm991, %v1079, 0.0
        %1081 = vadd.xlane.f32.xlu0 %v1080
        %v1082 = vpop.xlane.xlu0 %1081
        %v1083 = vrcp.pop %v1082
        %v1084 = vmul.f32 %v1079, %v1083
        %v1085 = vpack.c.bf16 %v1084, %v1084
        %1086 = vrot.lane.b32.xlu0 %v987, 56
        %v1087 = vpop.permute.xlu0 %1086
        %v1089 = vsel %vm991, %v1085, 0
        %v1092 = vsel %vm1030, %v1087, 0
        %1094 = vmatpush.bf16.msra.mxu0 0
        %1095 = vmatpush.bf16.msra.mxu0 0
        %1096 = vmatpush.bf16.msra.mxu0 0
        %1097 = vmatpush.bf16.msra.mxu0 0
        %1098 = vmatpush.bf16.msra.mxu0 0
        %1099 = vmatpush.bf16.msra.mxu0 0
        %1100 = vmatpush.bf16.msra.mxu0 0
        %1101 = vmatpush.bf16.msra.mxu0 %v1092
        %1102 = vmatmul.bf16.gmra.mxu0 %v1089
        %v1103 = vpop.f32.mrf.mxu0
        %v1104 = vadd.f32 0.0, %v1103
        %v1105 = vpop.f32.mrf.mxu0
        %1106 = vdwg.mxu0
        %v1107 = vpack.c.bf16 %v1104, %v1104
        %v1108 = vpack.c.bf16 %v959, %v959
        %v1110 = vsel %vm991, %v1107, 0
        %v1113 = vsel %vm1030, %v1108, 0
        %1115 = vmatpush.bf16.msra.mxu0 0
        %1116 = vmatpush.bf16.msra.mxu0 0
        %1117 = vmatpush.bf16.msra.mxu0 0
        %1118 = vmatpush.bf16.msra.mxu0 0
        %1119 = vmatpush.bf16.msra.mxu0 0
        %1120 = vmatpush.bf16.msra.mxu0 0
        %1121 = vmatpush.bf16.msra.mxu0 0
        %1122 = vmatpush.bf16.msra.mxu0 %v1113
        %1123 = vmatmul.bf16.gmra.mxu0 %v1110
        %v1124 = vpop.f32.mrf.mxu0
        %v1125 = vadd.f32 0.0, %v1124
        %v1126 = vpop.f32.mrf.mxu0
        %1127 = vdwg.mxu0
        %v1129 = vsel %vm991, %v1047, 0
        %v1132 = vsel %vm1030, %v1048, 0
        %1134 = vmatpush.bf16.msra.mxu0 0
        %1135 = vmatpush.bf16.msra.mxu0 0
        %1136 = vmatpush.bf16.msra.mxu0 0
        %1137 = vmatpush.bf16.msra.mxu0 0
        %1138 = vmatpush.bf16.msra.mxu0 0
        %1139 = vmatpush.bf16.msra.mxu0 0
        %1140 = vmatpush.bf16.msra.mxu0 0
        %1141 = vmatpush.bf16.msra.mxu0 %v1132
        %1142 = vmatmul.bf16.gmra.mxu0 %v1129
        %v1143 = vpop.f32.mrf.mxu0
        %v1144 = vadd.f32 %v1125, %v1143
        %v1145 = vpop.f32.mrf.mxu0
        %1146 = vdwg.mxu0
        %1147 = vrot.lane.b32.xlu0 %v987, 112
        %v1148 = vpop.permute.xlu0 %1147
        %1149 = vrot.lane.b32.xlu0 %v987, 80
        %v1150 = vpop.permute.xlu0 %1149
        %v1152 = vsel %vm991, %v1148, 0
        %v1155 = vsel %vm991, %v1150, 0
        %1157 = vmatpush.bf16.xpose.msra.mxu0 0
        %1158 = vmatpush.bf16.xpose.msra.mxu0 0
        %1159 = vmatpush.bf16.xpose.msra.mxu0 0
        %1160 = vmatpush.bf16.xpose.msra.mxu0 0
        %1161 = vmatpush.bf16.xpose.msra.mxu0 0
        %1162 = vmatpush.bf16.xpose.msra.mxu0 0
        %1163 = vmatpush.bf16.xpose.msra.mxu0 0
        %1164 = vmatpush.bf16.xpose.msra.mxu0 %v1155
        %1165 = vmatmul.bf16.gmra.mxu0 %v1152
        %v1166 = vpop.f32.mrf.mxu0
        %v1167 = vadd.f32 0.0, %v1166
        %v1168 = vpop.f32.mrf.mxu0
        %1169 = vdwg.mxu0
        %v1170 = vmul.f32 %v1167, 0.35355338
        %v1171 = vadd.f32 %v1170, %v910
        %v1172 = vsel %vm991, %v1171, -inf
        %1173 = vmax.xlane.f32.xlu0 %v1172
        %v1174 = vpop.xlane.xlu0 %1173
        %v1175 = vsub.f32 %v1171, %v1174
        %v1176 = vmul.f32 %v1175, 1.442695
        %v1177 = vpow.pop %v1176
        %v1178 = vsel %vm991, %v1177, 0.0
        %1179 = vadd.xlane.f32.xlu0 %v1178
        %v1180 = vpop.xlane.xlu0 %1179
        %v1181 = vrcp.pop %v1180
        %v1182 = vmul.f32 %v1177, %v1181
        %v1183 = vpack.c.bf16 %v1182, %v1182
        %1184 = vrot.lane.b32.xlu0 %v987, 48
        %v1185 = vpop.permute.xlu0 %1184
        %v1187 = vsel %vm991, %v1183, 0
        %v1190 = vsel %vm1030, %v1185, 0
        %1192 = vmatpush.bf16.msra.mxu0 0
        %1193 = vmatpush.bf16.msra.mxu0 0
        %1194 = vmatpush.bf16.msra.mxu0 0
        %1195 = vmatpush.bf16.msra.mxu0 0
        %1196 = vmatpush.bf16.msra.mxu0 0
        %1197 = vmatpush.bf16.msra.mxu0 0
        %1198 = vmatpush.bf16.msra.mxu0 0
        %1199 = vmatpush.bf16.msra.mxu0 %v1190
        %1200 = vmatmul.bf16.gmra.mxu0 %v1187
        %v1201 = vpop.f32.mrf.mxu0
        %v1202 = vadd.f32 0.0, %v1201
        %v1203 = vpop.f32.mrf.mxu0
        %1204 = vdwg.mxu0
        %v1205 = vpack.c.bf16 %v1202, %v1202
        %v1206 = vpack.c.bf16 %v960, %v960
        %v1208 = vsel %vm991, %v1205, 0
        %v1211 = vsel %vm1030, %v1206, 0
        %1213 = vmatpush.bf16.msra.mxu0 0
        %1214 = vmatpush.bf16.msra.mxu0 0
        %1215 = vmatpush.bf16.msra.mxu0 0
        %1216 = vmatpush.bf16.msra.mxu0 0
        %1217 = vmatpush.bf16.msra.mxu0 0
        %1218 = vmatpush.bf16.msra.mxu0 0
        %1219 = vmatpush.bf16.msra.mxu0 0
        %1220 = vmatpush.bf16.msra.mxu0 %v1211
        %1221 = vmatmul.bf16.gmra.mxu0 %v1208
        %v1222 = vpop.f32.mrf.mxu0
        %v1223 = vadd.f32 0.0, %v1222
        %v1224 = vpop.f32.mrf.mxu0
        %1225 = vdwg.mxu0
        %v1226 = vadd.f32 %v1144, %v1223
        %1227 = vrot.lane.b32.xlu0 %v987, 104
        %v1228 = vpop.permute.xlu0 %1227
        %1229 = vrot.lane.b32.xlu0 %v987, 72
        %v1230 = vpop.permute.xlu0 %1229
        %v1232 = vsel %vm991, %v1228, 0
        %v1235 = vsel %vm991, %v1230, 0
        %1237 = vmatpush.bf16.xpose.msra.mxu0 0
        %1238 = vmatpush.bf16.xpose.msra.mxu0 0
        %1239 = vmatpush.bf16.xpose.msra.mxu0 0
        %1240 = vmatpush.bf16.xpose.msra.mxu0 0
        %1241 = vmatpush.bf16.xpose.msra.mxu0 0
        %1242 = vmatpush.bf16.xpose.msra.mxu0 0
        %1243 = vmatpush.bf16.xpose.msra.mxu0 0
        %1244 = vmatpush.bf16.xpose.msra.mxu0 %v1235
        %1245 = vmatmul.bf16.gmra.mxu0 %v1232
        %v1246 = vpop.f32.mrf.mxu0
        %v1247 = vadd.f32 0.0, %v1246
        %v1248 = vpop.f32.mrf.mxu0
        %1249 = vdwg.mxu0
        %v1250 = vmul.f32 %v1247, 0.35355338
        %v1251 = vadd.f32 %v1250, %v910
        %v1252 = vsel %vm991, %v1251, -inf
        %1253 = vmax.xlane.f32.xlu0 %v1252
        %v1254 = vpop.xlane.xlu0 %1253
        %v1255 = vsub.f32 %v1251, %v1254
        %v1256 = vmul.f32 %v1255, 1.442695
        %v1257 = vpow.pop %v1256
        %v1258 = vsel %vm991, %v1257, 0.0
        %1259 = vadd.xlane.f32.xlu0 %v1258
        %v1260 = vpop.xlane.xlu0 %1259
        %v1261 = vrcp.pop %v1260
        %v1262 = vmul.f32 %v1257, %v1261
        %v1263 = vpack.c.bf16 %v1262, %v1262
        %1264 = vrot.lane.b32.xlu0 %v987, 40
        %v1265 = vpop.permute.xlu0 %1264
        %v1267 = vsel %vm991, %v1263, 0
        %v1270 = vsel %vm1030, %v1265, 0
        %1272 = vmatpush.bf16.msra.mxu0 0
        %1273 = vmatpush.bf16.msra.mxu0 0
        %1274 = vmatpush.bf16.msra.mxu0 0
        %1275 = vmatpush.bf16.msra.mxu0 0
        %1276 = vmatpush.bf16.msra.mxu0 0
        %1277 = vmatpush.bf16.msra.mxu0 0
        %1278 = vmatpush.bf16.msra.mxu0 0
        %1279 = vmatpush.bf16.msra.mxu0 %v1270
        %1280 = vmatmul.bf16.gmra.mxu0 %v1267
        %v1281 = vpop.f32.mrf.mxu0
        %v1282 = vadd.f32 0.0, %v1281
        %v1283 = vpop.f32.mrf.mxu0
        %1284 = vdwg.mxu0
        %v1285 = vpack.c.bf16 %v1282, %v1282
        %v1286 = vpack.c.bf16 %v961, %v961
        %v1288 = vsel %vm991, %v1285, 0
        %v1291 = vsel %vm1030, %v1286, 0
        %1293 = vmatpush.bf16.msra.mxu0 0
        %1294 = vmatpush.bf16.msra.mxu0 0
        %1295 = vmatpush.bf16.msra.mxu0 0
        %1296 = vmatpush.bf16.msra.mxu0 0
        %1297 = vmatpush.bf16.msra.mxu0 0
        %1298 = vmatpush.bf16.msra.mxu0 0
        %1299 = vmatpush.bf16.msra.mxu0 0
        %1300 = vmatpush.bf16.msra.mxu0 %v1291
        %1301 = vmatmul.bf16.gmra.mxu0 %v1288
        %v1302 = vpop.f32.mrf.mxu0
        %v1303 = vadd.f32 0.0, %v1302
        %v1304 = vpop.f32.mrf.mxu0
        %1305 = vdwg.mxu0
        %v1306 = vadd.f32 %v1226, %v1303
        %v1308 = vperm.slane %v962, 0
        %v1310 = vadd.f32 %v1306, %v1308
        %v1311 = vadd.f32 %v1310, %v952
        %v1312 = vsel %vm915, %v1311, 0.0
        %1313 = vadd.xlane.f32.xlu0 %v1312
        %v1314 = vpop.xlane.xlu0 %1313
        %v1315 = vmul.f32 %v1314, %v925
        %v1316 = vsub.f32 %v1311, %v1315
        %v1317 = vmul.f32 %v1316, %v1316
        %v1318 = vsel %vm915, %v1317, 0.0
        %1319 = vadd.xlane.f32.xlu0 %v1318
        %v1320 = vpop.xlane.xlu0 %1319
        %v1321 = vmul.f32 %v1320, %v925
        %v1322 = vadd.f32 %v1321, 1e-12
        %v1323 = vrsqrt.pop %v1322
        %v1324 = vmul.f32 %v1323, %v1322
        %v1325 = vmul.f32 %v1324, %v1323
        %v1326 = vmul.f32 0.5, %v1325
        %v1327 = vsub.f32 1.5, %v1326
        %v1328 = vmul.f32 %v1323, %v1327
        %vm1329 = vweird.f32 %v1322
        %vm1330 = vweird.f32 %v1323
        %vm1331 = vmor %vm1329, %vm1330
        %v1332 = vsel %vm1331, %v1323, %v1328
        %v1333 = vmul.f32 %v1316, %v1332
        %v1335 = vperm.slane %v963, 0
        %v1337 = vmul.f32 %v1333, %v1335
        %v1339 = vperm.slane %v964, 0
        %v1341 = vadd.f32 %v1337, %v1339
        %v1342 = vld [vmem:[%s11] sm:$0xff]
        %v1343 = vld [vmem:[%s11 + $0x8] sm:$0xff]
        %v1344 = vld [vmem:[%s11 + $0x10] sm:$0xff]
        %v1345 = vld [vmem:[%s11 + $0x18] sm:$0xff]
        %v1346 = vpack.c.bf16 %v1341, %v1341
        %v1347 = vpack.c.bf16 %v1343, %v1342
        %v1348 = vpack.c.bf16 %v1345, %v1344
        %v1349 = vld [vmem:[%s12] sm:$0x1]
        %v1351 = vperm.slane %v1349, 0
        %v1354 = vsel %vm915, %v1346, 0
        %1356 = vmatpush.bf16.msra.mxu0 0
        %1357 = vmatpush.bf16.msra.mxu0 0
        %1358 = vmatpush.bf16.msra.mxu0 0
        %1359 = vmatpush.bf16.msra.mxu0 0
        %1360 = vmatpush.bf16.msra.mxu0 0
        %1361 = vmatpush.bf16.msra.mxu0 0
        %1362 = vmatpush.bf16.msra.mxu0 %v1348
        %1363 = vmatpush.bf16.msra.mxu0 %v1347
        %1364 = vmatmul.bf16.gmra.mxu0 %v1354
        %v1365 = vpop.f32.mrf.mxu0
        %v1366 = vadd.f32 %v1351, %v1365
        %v1367 = vpop.f32.mrf.mxu0
        %1368 = vdwg.mxu0
        %v1369 = vld [vmem:[%s13] sm:$0xff]
        %v1370 = vld [vmem:[%s13 + $0x8] sm:$0xff]
        %v1371 = vld [vmem:[%s13 + $0x10] sm:$0xff]
        %v1372 = vld [vmem:[%s13 + $0x18] sm:$0xff]
        %v1373 = vpack.c.bf16 %v911, %v911
        %v1374 = vpack.c.bf16 %v1370, %v1369
        %v1375 = vpack.c.bf16 %v1372, %v1371
        %v1376 = vld [vmem:[%s14] sm:$0x1]
        %v1378 = vperm.slane %v1376, 0
        %v1381 = vsel %vm915, %v1373, 0
        %1383 = vmatpush.bf16.msra.mxu0 0
        %1384 = vmatpush.bf16.msra.mxu0 0
        %1385 = vmatpush.bf16.msra.mxu0 0
        %1386 = vmatpush.bf16.msra.mxu0 0
        %1387 = vmatpush.bf16.msra.mxu0 0
        %1388 = vmatpush.bf16.msra.mxu0 0
        %1389 = vmatpush.bf16.msra.mxu0 %v1375
        %1390 = vmatpush.bf16.msra.mxu0 %v1374
        %1391 = vmatmul.bf16.gmra.mxu0 %v1381
        %v1392 = vpop.f32.mrf.mxu0
        %v1393 = vadd.f32 %v1378, %v1392
        %v1394 = vpop.f32.mrf.mxu0
        %1395 = vdwg.mxu0
        %v1396 = vld [vmem:[%s15] sm:$0xff]
        %v1397 = vld [vmem:[%s15 + $0x8] sm:$0xff]
        %v1398 = vld [vmem:[%s15 + $0x10] sm:$0xff]
        %v1399 = vld [vmem:[%s15 + $0x18] sm:$0xff]
        %v1400 = vld [vmem:[%s16] sm:$0x1]
        %v1401 = vpack.c.bf16 %v1366, %v1366
        %v1402 = vpack.c.bf16 %v1393, %v1393
        %v1404 = vsel %vm991, %v1401, 0
        %v1407 = vsel %vm991, %v1402, 0
        %1409 = vmatpush.bf16.xpose.msra.mxu0 0
        %1410 = vmatpush.bf16.xpose.msra.mxu0 0
        %1411 = vmatpush.bf16.xpose.msra.mxu0 0
        %1412 = vmatpush.bf16.xpose.msra.mxu0 0
        %1413 = vmatpush.bf16.xpose.msra.mxu0 0
        %1414 = vmatpush.bf16.xpose.msra.mxu0 0
        %1415 = vmatpush.bf16.xpose.msra.mxu0 0
        %1416 = vmatpush.bf16.xpose.msra.mxu0 %v1407
        %1417 = vmatmul.bf16.gmra.mxu0 %v1404
        %v1418 = vpop.f32.mrf.mxu0
        %v1419 = vadd.f32 0.0, %v1418
        %v1420 = vpop.f32.mrf.mxu0
        %1421 = vdwg.mxu0
        %v1422 = vmul.f32 %v1419, 0.35355338
        %v1423 = vsel %vm991, %v1422, -inf
        %1424 = vmax.xlane.f32.xlu0 %v1423
        %v1425 = vpop.xlane.xlu0 %1424
        %v1426 = vsub.f32 %v1422, %v1425
        %v1427 = vmul.f32 %v1426, 1.442695
        %v1428 = vpow.pop %v1427
        %v1429 = vsel %vm991, %v1428, 0.0
        %1430 = vadd.xlane.f32.xlu0 %v1429
        %v1431 = vpop.xlane.xlu0 %1430
        %v1432 = vrcp.pop %v1431
        %v1433 = vmul.f32 %v1428, %v1432
        %v1434 = vpack.c.bf16 %v1433, %v1433
        %1436 = vrot.lane.b32.xlu0 %v1402, 96
        %v1437 = vpop.permute.xlu0 %1436
        %v1439 = vsel %vm991, %v1434, 0
        %v1442 = vsel %vm1030, %v1437, 0
        %1444 = vmatpush.bf16.msra.mxu0 0
        %1445 = vmatpush.bf16.msra.mxu0 0
        %1446 = vmatpush.bf16.msra.mxu0 0
        %1447 = vmatpush.bf16.msra.mxu0 0
        %1448 = vmatpush.bf16.msra.mxu0 0
        %1449 = vmatpush.bf16.msra.mxu0 0
        %1450 = vmatpush.bf16.msra.mxu0 0
        %1451 = vmatpush.bf16.msra.mxu0 %v1442
        %1452 = vmatmul.bf16.gmra.mxu0 %v1439
        %v1453 = vpop.f32.mrf.mxu0
        %v1454 = vadd.f32 0.0, %v1453
        %v1455 = vpop.f32.mrf.mxu0
        %1456 = vdwg.mxu0
        %v1457 = vpack.c.bf16 %v1454, %v1454
        %v1458 = vpack.c.bf16 %v1396, %v1396
        %1460 = vrot.lane.b32.xlu0 %v1401, 120
        %v1461 = vpop.permute.xlu0 %1460
        %1462 = vrot.lane.b32.xlu0 %v1402, 120
        %v1463 = vpop.permute.xlu0 %1462
        %v1465 = vsel %vm991, %v1461, 0
        %v1468 = vsel %vm991, %v1463, 0
        %1470 = vmatpush.bf16.xpose.msra.mxu0 0
        %1471 = vmatpush.bf16.xpose.msra.mxu0 0
        %1472 = vmatpush.bf16.xpose.msra.mxu0 0
        %1473 = vmatpush.bf16.xpose.msra.mxu0 0
        %1474 = vmatpush.bf16.xpose.msra.mxu0 0
        %1475 = vmatpush.bf16.xpose.msra.mxu0 0
        %1476 = vmatpush.bf16.xpose.msra.mxu0 0
        %1477 = vmatpush.bf16.xpose.msra.mxu0 %v1468
        %1478 = vmatmul.bf16.gmra.mxu0 %v1465
        %v1479 = vpop.f32.mrf.mxu0
        %v1480 = vadd.f32 0.0, %v1479
        %v1481 = vpop.f32.mrf.mxu0
        %1482 = vdwg.mxu0
        %v1483 = vmul.f32 %v1480, 0.35355338
        %v1484 = vsel %vm991, %v1483, -inf
        %1485 = vmax.xlane.f32.xlu0 %v1484
        %v1486 = vpop.xlane.xlu0 %1485
        %v1487 = vsub.f32 %v1483, %v1486
        %v1488 = vmul.f32 %v1487, 1.442695
        %v1489 = vpow.pop %v1488
        %v1490 = vsel %vm991, %v1489, 0.0
        %1491 = vadd.xlane.f32.xlu0 %v1490
        %v1492 = vpop.xlane.xlu0 %1491
        %v1493 = vrcp.pop %v1492
        %v1494 = vmul.f32 %v1489, %v1493
        %v1495 = vpack.c.bf16 %v1494, %v1494
        %1496 = vrot.lane.b32.xlu0 %v1402, 88
        %v1497 = vpop.permute.xlu0 %1496
        %v1499 = vsel %vm991, %v1495, 0
        %v1502 = vsel %vm1030, %v1497, 0
        %1504 = vmatpush.bf16.msra.mxu0 0
        %1505 = vmatpush.bf16.msra.mxu0 0
        %1506 = vmatpush.bf16.msra.mxu0 0
        %1507 = vmatpush.bf16.msra.mxu0 0
        %1508 = vmatpush.bf16.msra.mxu0 0
        %1509 = vmatpush.bf16.msra.mxu0 0
        %1510 = vmatpush.bf16.msra.mxu0 0
        %1511 = vmatpush.bf16.msra.mxu0 %v1502
        %1512 = vmatmul.bf16.gmra.mxu0 %v1499
        %v1513 = vpop.f32.mrf.mxu0
        %v1514 = vadd.f32 0.0, %v1513
        %v1515 = vpop.f32.mrf.mxu0
        %1516 = vdwg.mxu0
        %v1517 = vpack.c.bf16 %v1514, %v1514
        %v1518 = vpack.c.bf16 %v1397, %v1397
        %v1520 = vsel %vm991, %v1517, 0
        %v1523 = vsel %vm1030, %v1518, 0
        %1525 = vmatpush.bf16.msra.mxu0 0
        %1526 = vmatpush.bf16.msra.mxu0 0
        %1527 = vmatpush.bf16.msra.mxu0 0
        %1528 = vmatpush.bf16.msra.mxu0 0
        %1529 = vmatpush.bf16.msra.mxu0 0
        %1530 = vmatpush.bf16.msra.mxu0 0
        %1531 = vmatpush.bf16.msra.mxu0 0
        %1532 = vmatpush.bf16.msra.mxu0 %v1523
        %1533 = vmatmul.bf16.gmra.mxu0 %v1520
        %v1534 = vpop.f32.mrf.mxu0
        %v1535 = vadd.f32 0.0, %v1534
        %v1536 = vpop.f32.mrf.mxu0
        %1537 = vdwg.mxu0
        %v1539 = vsel %vm991, %v1457, 0
        %v1542 = vsel %vm1030, %v1458, 0
        %1544 = vmatpush.bf16.msra.mxu0 0
        %1545 = vmatpush.bf16.msra.mxu0 0
        %1546 = vmatpush.bf16.msra.mxu0 0
        %1547 = vmatpush.bf16.msra.mxu0 0
        %1548 = vmatpush.bf16.msra.mxu0 0
        %1549 = vmatpush.bf16.msra.mxu0 0
        %1550 = vmatpush.bf16.msra.mxu0 0
        %1551 = vmatpush.bf16.msra.mxu0 %v1542
        %1552 = vmatmul.bf16.gmra.mxu0 %v1539
        %v1553 = vpop.f32.mrf.mxu0
        %v1554 = vadd.f32 %v1535, %v1553
        %v1555 = vpop.f32.mrf.mxu0
        %1556 = vdwg.mxu0
        %1557 = vrot.lane.b32.xlu0 %v1401, 112
        %v1558 = vpop.permute.xlu0 %1557
        %1559 = vrot.lane.b32.xlu0 %v1402, 112
        %v1560 = vpop.permute.xlu0 %1559
        %v1562 = vsel %vm991, %v1558, 0
        %v1565 = vsel %vm991, %v1560, 0
        %1567 = vmatpush.bf16.xpose.msra.mxu0 0
        %1568 = vmatpush.bf16.xpose.msra.mxu0 0
        %1569 = vmatpush.bf16.xpose.msra.mxu0 0
        %1570 = vmatpush.bf16.xpose.msra.mxu0 0
        %1571 = vmatpush.bf16.xpose.msra.mxu0 0
        %1572 = vmatpush.bf16.xpose.msra.mxu0 0
        %1573 = vmatpush.bf16.xpose.msra.mxu0 0
        %1574 = vmatpush.bf16.xpose.msra.mxu0 %v1565
        %1575 = vmatmul.bf16.gmra.mxu0 %v1562
        %v1576 = vpop.f32.mrf.mxu0
        %v1577 = vadd.f32 0.0, %v1576
        %v1578 = vpop.f32.mrf.mxu0
        %1579 = vdwg.mxu0
        %v1580 = vmul.f32 %v1577, 0.35355338
        %v1581 = vsel %vm991, %v1580, -inf
        %1582 = vmax.xlane.f32.xlu0 %v1581
        %v1583 = vpop.xlane.xlu0 %1582
        %v1584 = vsub.f32 %v1580, %v1583
        %v1585 = vmul.f32 %v1584, 1.442695
        %v1586 = vpow.pop %v1585
        %v1587 = vsel %vm991, %v1586, 0.0
        %1588 = vadd.xlane.f32.xlu0 %v1587
        %v1589 = vpop.xlane.xlu0 %1588
        %v1590 = vrcp.pop %v1589
        %v1591 = vmul.f32 %v1586, %v1590
        %v1592 = vpack.c.bf16 %v1591, %v1591
        %1593 = vrot.lane.b32.xlu0 %v1402, 80
        %v1594 = vpop.permute.xlu0 %1593
        %v1596 = vsel %vm991, %v1592, 0
        %v1599 = vsel %vm1030, %v1594, 0
        %1601 = vmatpush.bf16.msra.mxu0 0
        %1602 = vmatpush.bf16.msra.mxu0 0
        %1603 = vmatpush.bf16.msra.mxu0 0
        %1604 = vmatpush.bf16.msra.mxu0 0
        %1605 = vmatpush.bf16.msra.mxu0 0
        %1606 = vmatpush.bf16.msra.mxu0 0
        %1607 = vmatpush.bf16.msra.mxu0 0
        %1608 = vmatpush.bf16.msra.mxu0 %v1599
        %1609 = vmatmul.bf16.gmra.mxu0 %v1596
        %v1610 = vpop.f32.mrf.mxu0
        %v1611 = vadd.f32 0.0, %v1610
        %v1612 = vpop.f32.mrf.mxu0
        %1613 = vdwg.mxu0
        %v1614 = vpack.c.bf16 %v1611, %v1611
        %v1615 = vpack.c.bf16 %v1398, %v1398
        %v1617 = vsel %vm991, %v1614, 0
        %v1620 = vsel %vm1030, %v1615, 0
        %1622 = vmatpush.bf16.msra.mxu0 0
        %1623 = vmatpush.bf16.msra.mxu0 0
        %1624 = vmatpush.bf16.msra.mxu0 0
        %1625 = vmatpush.bf16.msra.mxu0 0
        %1626 = vmatpush.bf16.msra.mxu0 0
        %1627 = vmatpush.bf16.msra.mxu0 0
        %1628 = vmatpush.bf16.msra.mxu0 0
        %1629 = vmatpush.bf16.msra.mxu0 %v1620
        %1630 = vmatmul.bf16.gmra.mxu0 %v1617
        %v1631 = vpop.f32.mrf.mxu0
        %v1632 = vadd.f32 0.0, %v1631
        %v1633 = vpop.f32.mrf.mxu0
        %1634 = vdwg.mxu0
        %v1635 = vadd.f32 %v1554, %v1632
        %1636 = vrot.lane.b32.xlu0 %v1401, 104
        %v1637 = vpop.permute.xlu0 %1636
        %1638 = vrot.lane.b32.xlu0 %v1402, 104
        %v1639 = vpop.permute.xlu0 %1638
        %v1641 = vsel %vm991, %v1637, 0
        %v1644 = vsel %vm991, %v1639, 0
        %1646 = vmatpush.bf16.xpose.msra.mxu0 0
        %1647 = vmatpush.bf16.xpose.msra.mxu0 0
        %1648 = vmatpush.bf16.xpose.msra.mxu0 0
        %1649 = vmatpush.bf16.xpose.msra.mxu0 0
        %1650 = vmatpush.bf16.xpose.msra.mxu0 0
        %1651 = vmatpush.bf16.xpose.msra.mxu0 0
        %1652 = vmatpush.bf16.xpose.msra.mxu0 0
        %1653 = vmatpush.bf16.xpose.msra.mxu0 %v1644
        %1654 = vmatmul.bf16.gmra.mxu0 %v1641
        %v1655 = vpop.f32.mrf.mxu0
        %v1656 = vadd.f32 0.0, %v1655
        %v1657 = vpop.f32.mrf.mxu0
        %1658 = vdwg.mxu0
        %v1659 = vmul.f32 %v1656, 0.35355338
        %v1660 = vsel %vm991, %v1659, -inf
        %1661 = vmax.xlane.f32.xlu0 %v1660
        %v1662 = vpop.xlane.xlu0 %1661
        %v1663 = vsub.f32 %v1659, %v1662
        %v1664 = vmul.f32 %v1663, 1.442695
        %v1665 = vpow.pop %v1664
        %v1666 = vsel %vm991, %v1665, 0.0
        %1667 = vadd.xlane.f32.xlu0 %v1666
        %v1668 = vpop.xlane.xlu0 %1667
        %v1669 = vrcp.pop %v1668
        %v1670 = vmul.f32 %v1665, %v1669
        %v1671 = vpack.c.bf16 %v1670, %v1670
        %1672 = vrot.lane.b32.xlu0 %v1402, 72
        %v1673 = vpop.permute.xlu0 %1672
        %v1675 = vsel %vm991, %v1671, 0
        %v1678 = vsel %vm1030, %v1673, 0
        %1680 = vmatpush.bf16.msra.mxu0 0
        %1681 = vmatpush.bf16.msra.mxu0 0
        %1682 = vmatpush.bf16.msra.mxu0 0
        %1683 = vmatpush.bf16.msra.mxu0 0
        %1684 = vmatpush.bf16.msra.mxu0 0
        %1685 = vmatpush.bf16.msra.mxu0 0
        %1686 = vmatpush.bf16.msra.mxu0 0
        %1687 = vmatpush.bf16.msra.mxu0 %v1678
        %1688 = vmatmul.bf16.gmra.mxu0 %v1675
        %v1689 = vpop.f32.mrf.mxu0
        %v1690 = vadd.f32 0.0, %v1689
        %v1691 = vpop.f32.mrf.mxu0
        %1692 = vdwg.mxu0
        %v1693 = vpack.c.bf16 %v1690, %v1690
        %v1694 = vpack.c.bf16 %v1399, %v1399
        %v1696 = vsel %vm991, %v1693, 0
        %v1699 = vsel %vm1030, %v1694, 0
        %1701 = vmatpush.bf16.msra.mxu0 0
        %1702 = vmatpush.bf16.msra.mxu0 0
        %1703 = vmatpush.bf16.msra.mxu0 0
        %1704 = vmatpush.bf16.msra.mxu0 0
        %1705 = vmatpush.bf16.msra.mxu0 0
        %1706 = vmatpush.bf16.msra.mxu0 0
        %1707 = vmatpush.bf16.msra.mxu0 0
        %1708 = vmatpush.bf16.msra.mxu0 %v1699
        %1709 = vmatmul.bf16.gmra.mxu0 %v1696
        %v1710 = vpop.f32.mrf.mxu0
        %v1711 = vadd.f32 0.0, %v1710
        %v1712 = vpop.f32.mrf.mxu0
        %1713 = vdwg.mxu0
        %v1714 = vadd.f32 %v1635, %v1711
        %v1716 = vperm.slane %v1400, 0
        %v1718 = vadd.f32 %v1714, %v1716
        %v1719 = vadd.f32 %v1718, %v1341
        %v1720 = vld [vmem:[%s17] sm:$0x1]
        %v1721 = vld [vmem:[%s18] sm:$0x1]
        %v1722 = vsel %vm915, %v1719, 0.0
        %1723 = vadd.xlane.f32.xlu0 %v1722
        %v1724 = vpop.xlane.xlu0 %1723
        %v1725 = vmul.f32 %v1724, %v925
        %v1726 = vsub.f32 %v1719, %v1725
        %v1727 = vmul.f32 %v1726, %v1726
        %v1728 = vsel %vm915, %v1727, 0.0
        %1729 = vadd.xlane.f32.xlu0 %v1728
        %v1730 = vpop.xlane.xlu0 %1729
        %v1731 = vmul.f32 %v1730, %v925
        %v1732 = vadd.f32 %v1731, 1e-12
        %v1733 = vrsqrt.pop %v1732
        %v1734 = vmul.f32 %v1733, %v1732
        %v1735 = vmul.f32 %v1734, %v1733
        %v1736 = vmul.f32 0.5, %v1735
        %v1737 = vsub.f32 1.5, %v1736
        %v1738 = vmul.f32 %v1733, %v1737
        %vm1739 = vweird.f32 %v1732
        %vm1740 = vweird.f32 %v1733
        %vm1741 = vmor %vm1739, %vm1740
        %v1742 = vsel %vm1741, %v1733, %v1738
        %v1743 = vmul.f32 %v1726, %v1742
        %v1745 = vperm.slane %v1720, 0
        %v1747 = vmul.f32 %v1743, %v1745
        %v1749 = vperm.slane %v1721, 0
        %v1751 = vadd.f32 %v1747, %v1749
        %v1752 = vld [vmem:[%s19] sm:$0xff]
        %v1753 = vld [vmem:[%s19 + $0x8] sm:$0xff]
        %v1754 = vld [vmem:[%s19 + $0x10] sm:$0xff]
        %v1755 = vld [vmem:[%s19 + $0x18] sm:$0xff]
        %v1756 = vld [vmem:[%s20] sm:$0x1]
        %v1757 = vld [vmem:[%s21] sm:$0xff]
        %v1758 = vld [vmem:[%s21 + $0x8] sm:$0xff]
        %v1759 = vld [vmem:[%s21 + $0x10] sm:$0xff]
        %v1760 = vld [vmem:[%s21 + $0x18] sm:$0xff]
        %v1761 = vld [vmem:[%s21 + $0x20] sm:$0xff]
        %v1762 = vld [vmem:[%s21 + $0x28] sm:$0xff]
        %v1763 = vld [vmem:[%s21 + $0x30] sm:$0xff]
        %v1764 = vld [vmem:[%s21 + $0x38] sm:$0xff]
        %v1765 = vld [vmem:[%s22] sm:$0x1]
        %v1766 = vld [vmem:[%s23] sm:$0x1]
        %v1767 = vld [vmem:[#allocation7] sm:$0x1]
        %v1768 = vpack.c.bf16 %v1751, %v1751
        %v1769 = vpack.c.bf16 %v1753, %v1752
        %v1770 = vpack.c.bf16 %v1755, %v1754
        %v1772 = vperm.slane %v1756, 0
        %v1775 = vsel %vm915, %v1768, 0
        %1777 = vmatpush.bf16.msra.mxu0 0
        %1778 = vmatpush.bf16.msra.mxu0 0
        %1779 = vmatpush.bf16.msra.mxu0 0
        %1780 = vmatpush.bf16.msra.mxu0 0
        %1781 = vmatpush.bf16.msra.mxu0 0
        %1782 = vmatpush.bf16.msra.mxu0 0
        %1783 = vmatpush.bf16.msra.mxu0 %v1770
        %1784 = vmatpush.bf16.msra.mxu0 %v1769
        %1785 = vmatmul.bf16.gmra.mxu0 %v1775
        %v1786 = vpop.f32.mrf.mxu0
        %v1787 = vadd.f32 %v1772, %v1786
        %v1788 = vpop.f32.mrf.mxu0
        %1789 = vdwg.mxu0
        %v1790 = vmul.f32 %v1787, 0.5
        %v1791 = vmul.f32 %v1787, 0.044715
        %v1792 = vmul.f32 %v1791, %v1787
        %v1793 = vmul.f32 %v1792, %v1787
        %v1794 = vadd.f32 %v1787, %v1793
        %v1795 = vmul.f32 %v1794, 0.7978846
        %v1796 = vtanh.pop %v1795
        %v1797 = vadd.f32 %v1796, 1.0
        %v1798 = vmul.f32 %v1790, %v1797
        %v1799 = vpack.c.bf16 %v1798, %v1798
        %v1800 = vpack.c.bf16 %v1758, %v1757
        %v1801 = vpack.c.bf16 %v1760, %v1759
        %v1802 = vpack.c.bf16 %v1762, %v1761
        %v1803 = vpack.c.bf16 %v1764, %v1763
        %v1805 = vperm.slane %v1765, 0
        %vm1807 = vcmask 523264
        %v1809 = vsel %vm1807, %v1799, 0
        %1811 = vmatpush.bf16.msra.mxu0 0
        %1812 = vmatpush.bf16.msra.mxu0 0
        %1813 = vmatpush.bf16.msra.mxu0 0
        %1814 = vmatpush.bf16.msra.mxu0 0
        %1815 = vmatpush.bf16.msra.mxu0 %v1803
        %1816 = vmatpush.bf16.msra.mxu0 %v1802
        %1817 = vmatpush.bf16.msra.mxu0 %v1801
        %1818 = vmatpush.bf16.msra.mxu0 %v1800
        %1819 = vmatmul.bf16.gmra.mxu0 %v1809
        %v1820 = vpop.f32.mrf.mxu0
        %v1821 = vadd.f32 %v1805, %v1820
        %v1822 = vpop.f32.mrf.mxu0
        %1823 = vdwg.mxu0
        %v1824 = vadd.f32 %v1821, %v1751
        %v1825 = vsel %vm915, %v1824, 0.0
        %1826 = vadd.xlane.f32.xlu0 %v1825
        %v1827 = vpop.xlane.xlu0 %1826
        %v1828 = vmul.f32 %v1827, %v925
        %v1829 = vsub.f32 %v1824, %v1828
        %v1830 = vmul.f32 %v1829, %v1829
        %v1831 = vsel %vm915, %v1830, 0.0
        %1832 = vadd.xlane.f32.xlu0 %v1831
        %v1833 = vpop.xlane.xlu0 %1832
        %v1834 = vmul.f32 %v1833, %v925
        %v1835 = vadd.f32 %v1834, 1e-12
        %v1836 = vrsqrt.pop %v1835
        %v1837 = vmul.f32 %v1836, %v1835
        %v1838 = vmul.f32 %v1837, %v1836
        %v1839 = vmul.f32 0.5, %v1838
        %v1840 = vsub.f32 1.5, %v1839
        %v1841 = vmul.f32 %v1836, %v1840
        %vm1842 = vweird.f32 %v1835
        %vm1843 = vweird.f32 %v1836
        %vm1844 = vmor %vm1842, %vm1843
        %v1845 = vsel %vm1844, %v1836, %v1841
        %v1846 = vmul.f32 %v1829, %v1845
        %v1848 = vperm.slane %v1766, 0
        %v1850 = vmul.f32 %v1846, %v1848
        %v1852 = vperm.slane %v1767, 0
        %v1854 = vadd.f32 %v1850, %v1852
        %s1855 = scalar_lea.vmem %s5, 32
        %v1856 = vld [vmem:[%s1855] sm:$0xff]
        %v1857 = vld [vmem:[%s1855 + $0x8] sm:$0xff]
        %v1858 = vld [vmem:[%s1855 + $0x10] sm:$0xff]
        %v1859 = vld [vmem:[%s1855 + $0x18] sm:$0xff]
        %s1860 = scalar_lea.vmem %s6, 1
        %v1861 = vld [vmem:[%s1860] sm:$0x1]
        %s1862 = scalar_lea.vmem %s7, 32
        %v1863 = vld [vmem:[%s1862] sm:$0xff]
        %v1864 = vld [vmem:[%s1862 + $0x8] sm:$0xff]
        %v1865 = vld [vmem:[%s1862 + $0x10] sm:$0xff]
        %v1866 = vld [vmem:[%s1862 + $0x18] sm:$0xff]
        %s1867 = scalar_lea.vmem %s8, 1
        %v1868 = vld [vmem:[%s1867] sm:$0x1]
        %s1869 = scalar_lea.vmem %s9, 1
        %v1870 = vld [vmem:[%s1869] sm:$0x1]
        %s1871 = scalar_lea.vmem %s10, 1
        %v1872 = vld [vmem:[%s1871] sm:$0x1]
        %v1873 = vpack.c.bf16 %v1854, %v1854
        %v1874 = vpack.c.bf16 %v1857, %v1856
        %v1875 = vpack.c.bf16 %v1859, %v1858
        %v1877 = vperm.slane %v1861, 0
        %v1880 = vsel %vm915, %v1873, 0
        %1882 = vmatpush.bf16.msra.mxu0 0
        %1883 = vmatpush.bf16.msra.mxu0 0
        %1884 = vmatpush.bf16.msra.mxu0 0
        %1885 = vmatpush.bf16.msra.mxu0 0
        %1886 = vmatpush.bf16.msra.mxu0 0
        %1887 = vmatpush.bf16.msra.mxu0 0
        %1888 = vmatpush.bf16.msra.mxu0 %v1875
        %1889 = vmatpush.bf16.msra.mxu0 %v1874
        %1890 = vmatmul.bf16.gmra.mxu0 %v1880
        %v1891 = vpop.f32.mrf.mxu0
        %v1892 = vadd.f32 %v1877, %v1891
        %v1893 = vpop.f32.mrf.mxu0
        %1894 = vdwg.mxu0
        %v1895 = vpack.c.bf16 %v1892, %v1892
        %1897 = vrot.lane.b32.xlu0 %v1895, 96
        %v1898 = vpop.permute.xlu0 %1897
        %v1900 = vsel %vm991, %v1895, 0
        %v1903 = vsel %vm991, %v1898, 0
        %1905 = vmatpush.bf16.xpose.msra.mxu0 0
        %1906 = vmatpush.bf16.xpose.msra.mxu0 0
        %1907 = vmatpush.bf16.xpose.msra.mxu0 0
        %1908 = vmatpush.bf16.xpose.msra.mxu0 0
        %1909 = vmatpush.bf16.xpose.msra.mxu0 0
        %1910 = vmatpush.bf16.xpose.msra.mxu0 0
        %1911 = vmatpush.bf16.xpose.msra.mxu0 0
        %1912 = vmatpush.bf16.xpose.msra.mxu0 %v1903
        %1913 = vmatmul.bf16.gmra.mxu0 %v1900
        %v1914 = vpop.f32.mrf.mxu0
        %v1915 = vadd.f32 0.0, %v1914
        %v1916 = vpop.f32.mrf.mxu0
        %1917 = vdwg.mxu0
        %v1918 = vmul.f32 %v1915, 0.35355338
        %v1919 = vadd.f32 %v1918, %v910
        %v1920 = vsel %vm991, %v1919, -inf
        %1921 = vmax.xlane.f32.xlu0 %v1920
        %v1922 = vpop.xlane.xlu0 %1921
        %v1923 = vsub.f32 %v1919, %v1922
        %v1924 = vmul.f32 %v1923, 1.442695
        %v1925 = vpow.pop %v1924
        %v1926 = vsel %vm991, %v1925, 0.0
        %1927 = vadd.xlane.f32.xlu0 %v1926
        %v1928 = vpop.xlane.xlu0 %1927
        %v1929 = vrcp.pop %v1928
        %v1930 = vmul.f32 %v1925, %v1929
        %v1931 = vpack.c.bf16 %v1930, %v1930
        %1932 = vrot.lane.b32.xlu0 %v1895, 64
        %v1933 = vpop.permute.xlu0 %1932
        %v1935 = vsel %vm991, %v1931, 0
        %v1938 = vsel %vm1030, %v1933, 0
        %1940 = vmatpush.bf16.msra.mxu0 0
        %1941 = vmatpush.bf16.msra.mxu0 0
        %1942 = vmatpush.bf16.msra.mxu0 0
        %1943 = vmatpush.bf16.msra.mxu0 0
        %1944 = vmatpush.bf16.msra.mxu0 0
        %1945 = vmatpush.bf16.msra.mxu0 0
        %1946 = vmatpush.bf16.msra.mxu0 0
        %1947 = vmatpush.bf16.msra.mxu0 %v1938
        %1948 = vmatmul.bf16.gmra.mxu0 %v1935
        %v1949 = vpop.f32.mrf.mxu0
        %v1950 = vadd.f32 0.0, %v1949
        %v1951 = vpop.f32.mrf.mxu0
        %1952 = vdwg.mxu0
        %v1953 = vpack.c.bf16 %v1950, %v1950
        %v1954 = vpack.c.bf16 %v1863, %v1863
        %1955 = vrot.lane.b32.xlu0 %v1895, 120
        %v1956 = vpop.permute.xlu0 %1955
        %1957 = vrot.lane.b32.xlu0 %v1895, 88
        %v1958 = vpop.permute.xlu0 %1957
        %v1960 = vsel %vm991, %v1956, 0
        %v1963 = vsel %vm991, %v1958, 0
        %1965 = vmatpush.bf16.xpose.msra.mxu0 0
        %1966 = vmatpush.bf16.xpose.msra.mxu0 0
        %1967 = vmatpush.bf16.xpose.msra.mxu0 0
        %1968 = vmatpush.bf16.xpose.msra.mxu0 0
        %1969 = vmatpush.bf16.xpose.msra.mxu0 0
        %1970 = vmatpush.bf16.xpose.msra.mxu0 0
        %1971 = vmatpush.bf16.xpose.msra.mxu0 0
        %1972 = vmatpush.bf16.xpose.msra.mxu0 %v1963
        %1973 = vmatmul.bf16.gmra.mxu0 %v1960
        %v1974 = vpop.f32.mrf.mxu0
        %v1975 = vadd.f32 0.0, %v1974
        %v1976 = vpop.f32.mrf.mxu0
        %1977 = vdwg.mxu0
        %v1978 = vmul.f32 %v1975, 0.35355338
        %v1979 = vadd.f32 %v1978, %v910
        %v1980 = vsel %vm991, %v1979, -inf
        %1981 = vmax.xlane.f32.xlu0 %v1980
        %v1982 = vpop.xlane.xlu0 %1981
        %v1983 = vsub.f32 %v1979, %v1982
        %v1984 = vmul.f32 %v1983, 1.442695
        %v1985 = vpow.pop %v1984
        %v1986 = vsel %vm991, %v1985, 0.0
        %1987 = vadd.xlane.f32.xlu0 %v1986
        %v1988 = vpop.xlane.xlu0 %1987
        %v1989 = vrcp.pop %v1988
        %v1990 = vmul.f32 %v1985, %v1989
        %v1991 = vpack.c.bf16 %v1990, %v1990
        %1992 = vrot.lane.b32.xlu0 %v1895, 56
        %v1993 = vpop.permute.xlu0 %1992
        %v1995 = vsel %vm991, %v1991, 0
        %v1998 = vsel %vm1030, %v1993, 0
        %2000 = vmatpush.bf16.msra.mxu0 0
        %2001 = vmatpush.bf16.msra.mxu0 0
        %2002 = vmatpush.bf16.msra.mxu0 0
        %2003 = vmatpush.bf16.msra.mxu0 0
        %2004 = vmatpush.bf16.msra.mxu0 0
        %2005 = vmatpush.bf16.msra.mxu0 0
        %2006 = vmatpush.bf16.msra.mxu0 0
        %2007 = vmatpush.bf16.msra.mxu0 %v1998
        %2008 = vmatmul.bf16.gmra.mxu0 %v1995
        %v2009 = vpop.f32.mrf.mxu0
        %v2010 = vadd.f32 0.0, %v2009
        %v2011 = vpop.f32.mrf.mxu0
        %2012 = vdwg.mxu0
        %v2013 = vpack.c.bf16 %v2010, %v2010
        %v2014 = vpack.c.bf16 %v1864, %v1864
        %v2016 = vsel %vm991, %v2013, 0
        %v2019 = vsel %vm1030, %v2014, 0
        %2021 = vmatpush.bf16.msra.mxu0 0
        %2022 = vmatpush.bf16.msra.mxu0 0
        %2023 = vmatpush.bf16.msra.mxu0 0
        %2024 = vmatpush.bf16.msra.mxu0 0
        %2025 = vmatpush.bf16.msra.mxu0 0
        %2026 = vmatpush.bf16.msra.mxu0 0
        %2027 = vmatpush.bf16.msra.mxu0 0
        %2028 = vmatpush.bf16.msra.mxu0 %v2019
        %2029 = vmatmul.bf16.gmra.mxu0 %v2016
        %v2030 = vpop.f32.mrf.mxu0
        %v2031 = vadd.f32 0.0, %v2030
        %v2032 = vpop.f32.mrf.mxu0
        %2033 = vdwg.mxu0
        %v2035 = vsel %vm991, %v1953, 0
        %v2038 = vsel %vm1030, %v1954, 0
        %2040 = vmatpush.bf16.msra.mxu0 0
        %2041 = vmatpush.bf16.msra.mxu0 0
        %2042 = vmatpush.bf16.msra.mxu0 0
        %2043 = vmatpush.bf16.msra.mxu0 0
        %2044 = vmatpush.bf16.msra.mxu0 0
        %2045 = vmatpush.bf16.msra.mxu0 0
        %2046 = vmatpush.bf16.msra.mxu0 0
        %2047 = vmatpush.bf16.msra.mxu0 %v2038
        %2048 = vmatmul.bf16.gmra.mxu0 %v2035
        %v2049 = vpop.f32.mrf.mxu0
        %v2050 = vadd.f32 %v2031, %v2049
        %v2051 = vpop.f32.mrf.mxu0
        %2052 = vdwg.mxu0
        %2053 = vrot.lane.b32.xlu0 %v1895, 112
        %v2054 = vpop.permute.xlu0 %2053
        %2055 = vrot.lane.b32.xlu0 %v1895, 80
        %v2056 = vpop.permute.xlu0 %2055
        %v2058 = vsel %vm991, %v2054, 0
        %v2061 = vsel %vm991, %v2056, 0
        %2063 = vmatpush.bf16.xpose.msra.mxu0 0
        %2064 = vmatpush.bf16.xpose.msra.mxu0 0
        %2065 = vmatpush.bf16.xpose.msra.mxu0 0
        %2066 = vmatpush.bf16.xpose.msra.mxu0 0
        %2067 = vmatpush.bf16.xpose.msra.mxu0 0
        %2068 = vmatpush.bf16.xpose.msra.mxu0 0
        %2069 = vmatpush.bf16.xpose.msra.mxu0 0
        %2070 = vmatpush.bf16.xpose.msra.mxu0 %v2061
        %2071 = vmatmul.bf16.gmra.mxu0 %v2058
        %v2072 = vpop.f32.mrf.mxu0
        %v2073 = vadd.f32 0.0, %v2072
        %v2074 = vpop.f32.mrf.mxu0
        %2075 = vdwg.mxu0
        %v2076 = vmul.f32 %v2073, 0.35355338
        %v2077 = vadd.f32 %v2076, %v910
        %v2078 = vsel %vm991, %v2077, -inf
        %2079 = vmax.xlane.f32.xlu0 %v2078
        %v2080 = vpop.xlane.xlu0 %2079
        %v2081 = vsub.f32 %v2077, %v2080
        %v2082 = vmul.f32 %v2081, 1.442695
        %v2083 = vpow.pop %v2082
        %v2084 = vsel %vm991, %v2083, 0.0
        %2085 = vadd.xlane.f32.xlu0 %v2084
        %v2086 = vpop.xlane.xlu0 %2085
        %v2087 = vrcp.pop %v2086
        %v2088 = vmul.f32 %v2083, %v2087
        %v2089 = vpack.c.bf16 %v2088, %v2088
        %2090 = vrot.lane.b32.xlu0 %v1895, 48
        %v2091 = vpop.permute.xlu0 %2090
        %v2093 = vsel %vm991, %v2089, 0
        %v2096 = vsel %vm1030, %v2091, 0
        %2098 = vmatpush.bf16.msra.mxu0 0
        %2099 = vmatpush.bf16.msra.mxu0 0
        %2100 = vmatpush.bf16.msra.mxu0 0
        %2101 = vmatpush.bf16.msra.mxu0 0
        %2102 = vmatpush.bf16.msra.mxu0 0
        %2103 = vmatpush.bf16.msra.mxu0 0
        %2104 = vmatpush.bf16.msra.mxu0 0
        %2105 = vmatpush.bf16.msra.mxu0 %v2096
        %2106 = vmatmul.bf16.gmra.mxu0 %v2093
        %v2107 = vpop.f32.mrf.mxu0
        %v2108 = vadd.f32 0.0, %v2107
        %v2109 = vpop.f32.mrf.mxu0
        %2110 = vdwg.mxu0
        %v2111 = vpack.c.bf16 %v2108, %v2108
        %v2112 = vpack.c.bf16 %v1865, %v1865
        %v2114 = vsel %vm991, %v2111, 0
        %v2117 = vsel %vm1030, %v2112, 0
        %2119 = vmatpush.bf16.msra.mxu0 0
        %2120 = vmatpush.bf16.msra.mxu0 0
        %2121 = vmatpush.bf16.msra.mxu0 0
        %2122 = vmatpush.bf16.msra.mxu0 0
        %2123 = vmatpush.bf16.msra.mxu0 0
        %2124 = vmatpush.bf16.msra.mxu0 0
        %2125 = vmatpush.bf16.msra.mxu0 0
        %2126 = vmatpush.bf16.msra.mxu0 %v2117
        %2127 = vmatmul.bf16.gmra.mxu0 %v2114
        %v2128 = vpop.f32.mrf.mxu0
        %v2129 = vadd.f32 0.0, %v2128
        %v2130 = vpop.f32.mrf.mxu0
        %2131 = vdwg.mxu0
        %v2132 = vadd.f32 %v2050, %v2129
        %2133 = vrot.lane.b32.xlu0 %v1895, 104
        %v2134 = vpop.permute.xlu0 %2133
        %2135 = vrot.lane.b32.xlu0 %v1895, 72
        %v2136 = vpop.permute.xlu0 %2135
        %v2138 = vsel %vm991, %v2134, 0
        %v2141 = vsel %vm991, %v2136, 0
        %2143 = vmatpush.bf16.xpose.msra.mxu0 0
        %2144 = vmatpush.bf16.xpose.msra.mxu0 0
        %2145 = vmatpush.bf16.xpose.msra.mxu0 0
        %2146 = vmatpush.bf16.xpose.msra.mxu0 0
        %2147 = vmatpush.bf16.xpose.msra.mxu0 0
        %2148 = vmatpush.bf16.xpose.msra.mxu0 0
        %2149 = vmatpush.bf16.xpose.msra.mxu0 0
        %2150 = vmatpush.bf16.xpose.msra.mxu0 %v2141
        %2151 = vmatmul.bf16.gmra.mxu0 %v2138
        %v2152 = vpop.f32.mrf.mxu0
        %v2153 = vadd.f32 0.0, %v2152
        %v2154 = vpop.f32.mrf.mxu0
        %2155 = vdwg.mxu0
        %v2156 = vmul.f32 %v2153, 0.35355338
        %v2157 = vadd.f32 %v2156, %v910
        %v2158 = vsel %vm991, %v2157, -inf
        %2159 = vmax.xlane.f32.xlu0 %v2158
        %v2160 = vpop.xlane.xlu0 %2159
        %v2161 = vsub.f32 %v2157, %v2160
        %v2162 = vmul.f32 %v2161, 1.442695
        %v2163 = vpow.pop %v2162
        %v2164 = vsel %vm991, %v2163, 0.0
        %2165 = vadd.xlane.f32.xlu0 %v2164
        %v2166 = vpop.xlane.xlu0 %2165
        %v2167 = vrcp.pop %v2166
        %v2168 = vmul.f32 %v2163, %v2167
        %v2169 = vpack.c.bf16 %v2168, %v2168
        %2170 = vrot.lane.b32.xlu0 %v1895, 40
        %v2171 = vpop.permute.xlu0 %2170
        %v2173 = vsel %vm991, %v2169, 0
        %v2176 = vsel %vm1030, %v2171, 0
        %2178 = vmatpush.bf16.msra.mxu0 0
        %2179 = vmatpush.bf16.msra.mxu0 0
        %2180 = vmatpush.bf16.msra.mxu0 0
        %2181 = vmatpush.bf16.msra.mxu0 0
        %2182 = vmatpush.bf16.msra.mxu0 0
        %2183 = vmatpush.bf16.msra.mxu0 0
        %2184 = vmatpush.bf16.msra.mxu0 0
        %2185 = vmatpush.bf16.msra.mxu0 %v2176
        %2186 = vmatmul.bf16.gmra.mxu0 %v2173
        %v2187 = vpop.f32.mrf.mxu0
        %v2188 = vadd.f32 0.0, %v2187
        %v2189 = vpop.f32.mrf.mxu0
        %2190 = vdwg.mxu0
        %v2191 = vpack.c.bf16 %v2188, %v2188
        %v2192 = vpack.c.bf16 %v1866, %v1866
        %v2194 = vsel %vm991, %v2191, 0
        %v2197 = vsel %vm1030, %v2192, 0
        %2199 = vmatpush.bf16.msra.mxu0 0
        %2200 = vmatpush.bf16.msra.mxu0 0
        %2201 = vmatpush.bf16.msra.mxu0 0
        %2202 = vmatpush.bf16.msra.mxu0 0
        %2203 = vmatpush.bf16.msra.mxu0 0
        %2204 = vmatpush.bf16.msra.mxu0 0
        %2205 = vmatpush.bf16.msra.mxu0 0
        %2206 = vmatpush.bf16.msra.mxu0 %v2197
        %2207 = vmatmul.bf16.gmra.mxu0 %v2194
        %v2208 = vpop.f32.mrf.mxu0
        %v2209 = vadd.f32 0.0, %v2208
        %v2210 = vpop.f32.mrf.mxu0
        %2211 = vdwg.mxu0
        %v2212 = vadd.f32 %v2132, %v2209
        %v2214 = vperm.slane %v1868, 0
        %v2216 = vadd.f32 %v2212, %v2214
        %v2217 = vadd.f32 %v2216, %v1854
        %v2218 = vsel %vm915, %v2217, 0.0
        %2219 = vadd.xlane.f32.xlu0 %v2218
        %v2220 = vpop.xlane.xlu0 %2219
        %v2221 = vmul.f32 %v2220, %v925
        %v2222 = vsub.f32 %v2217, %v2221
        %v2223 = vmul.f32 %v2222, %v2222
        %v2224 = vsel %vm915, %v2223, 0.0
        %2225 = vadd.xlane.f32.xlu0 %v2224
        %v2226 = vpop.xlane.xlu0 %2225
        %v2227 = vmul.f32 %v2226, %v925
        %v2228 = vadd.f32 %v2227, 1e-12
        %v2229 = vrsqrt.pop %v2228
        %v2230 = vmul.f32 %v2229, %v2228
        %v2231 = vmul.f32 %v2230, %v2229
        %v2232 = vmul.f32 0.5, %v2231
        %v2233 = vsub.f32 1.5, %v2232
        %v2234 = vmul.f32 %v2229, %v2233
        %vm2235 = vweird.f32 %v2228
        %vm2236 = vweird.f32 %v2229
        %vm2237 = vmor %vm2235, %vm2236
        %v2238 = vsel %vm2237, %v2229, %v2234
        %v2239 = vmul.f32 %v2222, %v2238
        %v2241 = vperm.slane %v1870, 0
        %v2243 = vmul.f32 %v2239, %v2241
        %v2245 = vperm.slane %v1872, 0
        %v2247 = vadd.f32 %v2243, %v2245
        %s2248 = scalar_lea.vmem %s11, 32
        %v2249 = vld [vmem:[%s2248] sm:$0xff]
        %v2250 = vld [vmem:[%s2248 + $0x8] sm:$0xff]
        %v2251 = vld [vmem:[%s2248 + $0x10] sm:$0xff]
        %v2252 = vld [vmem:[%s2248 + $0x18] sm:$0xff]
        %v2253 = vpack.c.bf16 %v2247, %v2247
        %v2254 = vpack.c.bf16 %v2250, %v2249
        %v2255 = vpack.c.bf16 %v2252, %v2251
        %s2256 = scalar_lea.vmem %s12, 1
        %v2257 = vld [vmem:[%s2256] sm:$0x1]
        %v2259 = vperm.slane %v2257, 0
        %v2262 = vsel %vm915, %v2253, 0
        %2264 = vmatpush.bf16.msra.mxu0 0
        %2265 = vmatpush.bf16.msra.mxu0 0
        %2266 = vmatpush.bf16.msra.mxu0 0
        %2267 = vmatpush.bf16.msra.mxu0 0
        %2268 = vmatpush.bf16.msra.mxu0 0
        %2269 = vmatpush.bf16.msra.mxu0 0
        %2270 = vmatpush.bf16.msra.mxu0 %v2255
        %2271 = vmatpush.bf16.msra.mxu0 %v2254
        %2272 = vmatmul.bf16.gmra.mxu0 %v2262
        %v2273 = vpop.f32.mrf.mxu0
        %v2274 = vadd.f32 %v2259, %v2273
        %v2275 = vpop.f32.mrf.mxu0
        %2276 = vdwg.mxu0
        %s2277 = scalar_lea.vmem %s13, 32
        %v2278 = vld [vmem:[%s2277] sm:$0xff]
        %v2279 = vld [vmem:[%s2277 + $0x8] sm:$0xff]
        %v2280 = vld [vmem:[%s2277 + $0x10] sm:$0xff]
        %v2281 = vld [vmem:[%s2277 + $0x18] sm:$0xff]
        %v2282 = vpack.c.bf16 %v2279, %v2278
        %v2283 = vpack.c.bf16 %v2281, %v2280
        %s2284 = scalar_lea.vmem %s14, 1
        %v2285 = vld [vmem:[%s2284] sm:$0x1]
        %v2287 = vperm.slane %v2285, 0
        %2289 = vmatpush.bf16.msra.mxu0 0
        %2290 = vmatpush.bf16.msra.mxu0 0
        %2291 = vmatpush.bf16.msra.mxu0 0
        %2292 = vmatpush.bf16.msra.mxu0 0
        %2293 = vmatpush.bf16.msra.mxu0 0
        %2294 = vmatpush.bf16.msra.mxu0 0
        %2295 = vmatpush.bf16.msra.mxu0 %v2283
        %2296 = vmatpush.bf16.msra.mxu0 %v2282
        %2297 = vmatmul.bf16.gmra.mxu0 %v1381
        %v2298 = vpop.f32.mrf.mxu0
        %v2299 = vadd.f32 %v2287, %v2298
        %v2300 = vpop.f32.mrf.mxu0
        %2301 = vdwg.mxu0
        %s2302 = scalar_lea.vmem %s15, 32
        %v2303 = vld [vmem:[%s2302] sm:$0xff]
        %v2304 = vld [vmem:[%s2302 + $0x8] sm:$0xff]
        %v2305 = vld [vmem:[%s2302 + $0x10] sm:$0xff]
        %v2306 = vld [vmem:[%s2302 + $0x18] sm:$0xff]
        %s2307 = scalar_lea.vmem %s16, 1
        %v2308 = vld [vmem:[%s2307] sm:$0x1]
        %v2309 = vpack.c.bf16 %v2274, %v2274
        %v2310 = vpack.c.bf16 %v2299, %v2299
        %v2312 = vsel %vm991, %v2309, 0
        %v2315 = vsel %vm991, %v2310, 0
        %2317 = vmatpush.bf16.xpose.msra.mxu0 0
        %2318 = vmatpush.bf16.xpose.msra.mxu0 0
        %2319 = vmatpush.bf16.xpose.msra.mxu0 0
        %2320 = vmatpush.bf16.xpose.msra.mxu0 0
        %2321 = vmatpush.bf16.xpose.msra.mxu0 0
        %2322 = vmatpush.bf16.xpose.msra.mxu0 0
        %2323 = vmatpush.bf16.xpose.msra.mxu0 0
        %2324 = vmatpush.bf16.xpose.msra.mxu0 %v2315
        %2325 = vmatmul.bf16.gmra.mxu0 %v2312
        %v2326 = vpop.f32.mrf.mxu0
        %v2327 = vadd.f32 0.0, %v2326
        %v2328 = vpop.f32.mrf.mxu0
        %2329 = vdwg.mxu0
        %v2330 = vmul.f32 %v2327, 0.35355338
        %v2331 = vsel %vm991, %v2330, -inf
        %2332 = vmax.xlane.f32.xlu0 %v2331
        %v2333 = vpop.xlane.xlu0 %2332
        %v2334 = vsub.f32 %v2330, %v2333
        %v2335 = vmul.f32 %v2334, 1.442695
        %v2336 = vpow.pop %v2335
        %v2337 = vsel %vm991, %v2336, 0.0
        %2338 = vadd.xlane.f32.xlu0 %v2337
        %v2339 = vpop.xlane.xlu0 %2338
        %v2340 = vrcp.pop %v2339
        %v2341 = vmul.f32 %v2336, %v2340
        %v2342 = vpack.c.bf16 %v2341, %v2341
        %2344 = vrot.lane.b32.xlu0 %v2310, 96
        %v2345 = vpop.permute.xlu0 %2344
        %v2347 = vsel %vm991, %v2342, 0
        %v2350 = vsel %vm1030, %v2345, 0
        %2352 = vmatpush.bf16.msra.mxu0 0
        %2353 = vmatpush.bf16.msra.mxu0 0
        %2354 = vmatpush.bf16.msra.mxu0 0
        %2355 = vmatpush.bf16.msra.mxu0 0
        %2356 = vmatpush.bf16.msra.mxu0 0
        %2357 = vmatpush.bf16.msra.mxu0 0
        %2358 = vmatpush.bf16.msra.mxu0 0
        %2359 = vmatpush.bf16.msra.mxu0 %v2350
        %2360 = vmatmul.bf16.gmra.mxu0 %v2347
        %v2361 = vpop.f32.mrf.mxu0
        %v2362 = vadd.f32 0.0, %v2361
        %v2363 = vpop.f32.mrf.mxu0
        %2364 = vdwg.mxu0
        %v2365 = vpack.c.bf16 %v2362, %v2362
        %v2366 = vpack.c.bf16 %v2303, %v2303
        %2368 = vrot.lane.b32.xlu0 %v2309, 120
        %v2369 = vpop.permute.xlu0 %2368
        %2370 = vrot.lane.b32.xlu0 %v2310, 120
        %v2371 = vpop.permute.xlu0 %2370
        %v2373 = vsel %vm991, %v2369, 0
        %v2376 = vsel %vm991, %v2371, 0
        %2378 = vmatpush.bf16.xpose.msra.mxu0 0
        %2379 = vmatpush.bf16.xpose.msra.mxu0 0
        %2380 = vmatpush.bf16.xpose.msra.mxu0 0
        %2381 = vmatpush.bf16.xpose.msra.mxu0 0
        %2382 = vmatpush.bf16.xpose.msra.mxu0 0
        %2383 = vmatpush.bf16.xpose.msra.mxu0 0
        %2384 = vmatpush.bf16.xpose.msra.mxu0 0
        %2385 = vmatpush.bf16.xpose.msra.mxu0 %v2376
        %2386 = vmatmul.bf16.gmra.mxu0 %v2373
        %v2387 = vpop.f32.mrf.mxu0
        %v2388 = vadd.f32 0.0, %v2387
        %v2389 = vpop.f32.mrf.mxu0
        %2390 = vdwg.mxu0
        %v2391 = vmul.f32 %v2388, 0.35355338
        %v2392 = vsel %vm991, %v2391, -inf
        %2393 = vmax.xlane.f32.xlu0 %v2392
        %v2394 = vpop.xlane.xlu0 %2393
        %v2395 = vsub.f32 %v2391, %v2394
        %v2396 = vmul.f32 %v2395, 1.442695
        %v2397 = vpow.pop %v2396
        %v2398 = vsel %vm991, %v2397, 0.0
        %2399 = vadd.xlane.f32.xlu0 %v2398
        %v2400 = vpop.xlane.xlu0 %2399
        %v2401 = vrcp.pop %v2400
        %v2402 = vmul.f32 %v2397, %v2401
        %v2403 = vpack.c.bf16 %v2402, %v2402
        %2404 = vrot.lane.b32.xlu0 %v2310, 88
        %v2405 = vpop.permute.xlu0 %2404
        %v2407 = vsel %vm991, %v2403, 0
        %v2410 = vsel %vm1030, %v2405, 0
        %2412 = vmatpush.bf16.msra.mxu0 0
        %2413 = vmatpush.bf16.msra.mxu0 0
        %2414 = vmatpush.bf16.msra.mxu0 0
        %2415 = vmatpush.bf16.msra.mxu0 0
        %2416 = vmatpush.bf16.msra.mxu0 0
        %2417 = vmatpush.bf16.msra.mxu0 0
        %2418 = vmatpush.bf16.msra.mxu0 0
        %2419 = vmatpush.bf16.msra.mxu0 %v2410
        %2420 = vmatmul.bf16.gmra.mxu0 %v2407
        %v2421 = vpop.f32.mrf.mxu0
        %v2422 = vadd.f32 0.0, %v2421
        %v2423 = vpop.f32.mrf.mxu0
        %2424 = vdwg.mxu0
        %v2425 = vpack.c.bf16 %v2422, %v2422
        %v2426 = vpack.c.bf16 %v2304, %v2304
        %v2428 = vsel %vm991, %v2425, 0
        %v2431 = vsel %vm1030, %v2426, 0
        %2433 = vmatpush.bf16.msra.mxu0 0
        %2434 = vmatpush.bf16.msra.mxu0 0
        %2435 = vmatpush.bf16.msra.mxu0 0
        %2436 = vmatpush.bf16.msra.mxu0 0
        %2437 = vmatpush.bf16.msra.mxu0 0
        %2438 = vmatpush.bf16.msra.mxu0 0
        %2439 = vmatpush.bf16.msra.mxu0 0
        %2440 = vmatpush.bf16.msra.mxu0 %v2431
        %2441 = vmatmul.bf16.gmra.mxu0 %v2428
        %v2442 = vpop.f32.mrf.mxu0
        %v2443 = vadd.f32 0.0, %v2442
        %v2444 = vpop.f32.mrf.mxu0
        %2445 = vdwg.mxu0
        %v2447 = vsel %vm991, %v2365, 0
        %v2450 = vsel %vm1030, %v2366, 0
        %2452 = vmatpush.bf16.msra.mxu0 0
        %2453 = vmatpush.bf16.msra.mxu0 0
        %2454 = vmatpush.bf16.msra.mxu0 0
        %2455 = vmatpush.bf16.msra.mxu0 0
        %2456 = vmatpush.bf16.msra.mxu0 0
        %2457 = vmatpush.bf16.msra.mxu0 0
        %2458 = vmatpush.bf16.msra.mxu0 0
        %2459 = vmatpush.bf16.msra.mxu0 %v2450
        %2460 = vmatmul.bf16.gmra.mxu0 %v2447
        %v2461 = vpop.f32.mrf.mxu0
        %v2462 = vadd.f32 %v2443, %v2461
        %v2463 = vpop.f32.mrf.mxu0
        %2464 = vdwg.mxu0
        %2465 = vrot.lane.b32.xlu0 %v2309, 112
        %v2466 = vpop.permute.xlu0 %2465
        %2467 = vrot.lane.b32.xlu0 %v2310, 112
        %v2468 = vpop.permute.xlu0 %2467
        %v2470 = vsel %vm991, %v2466, 0
        %v2473 = vsel %vm991, %v2468, 0
        %2475 = vmatpush.bf16.xpose.msra.mxu0 0
        %2476 = vmatpush.bf16.xpose.msra.mxu0 0
        %2477 = vmatpush.bf16.xpose.msra.mxu0 0
        %2478 = vmatpush.bf16.xpose.msra.mxu0 0
        %2479 = vmatpush.bf16.xpose.msra.mxu0 0
        %2480 = vmatpush.bf16.xpose.msra.mxu0 0
        %2481 = vmatpush.bf16.xpose.msra.mxu0 0
        %2482 = vmatpush.bf16.xpose.msra.mxu0 %v2473
        %2483 = vmatmul.bf16.gmra.mxu0 %v2470
        %v2484 = vpop.f32.mrf.mxu0
        %v2485 = vadd.f32 0.0, %v2484
        %v2486 = vpop.f32.mrf.mxu0
        %2487 = vdwg.mxu0
        %v2488 = vmul.f32 %v2485, 0.35355338
        %v2489 = vsel %vm991, %v2488, -inf
        %2490 = vmax.xlane.f32.xlu0 %v2489
        %v2491 = vpop.xlane.xlu0 %2490
        %v2492 = vsub.f32 %v2488, %v2491
        %v2493 = vmul.f32 %v2492, 1.442695
        %v2494 = vpow.pop %v2493
        %v2495 = vsel %vm991, %v2494, 0.0
        %2496 = vadd.xlane.f32.xlu0 %v2495
        %v2497 = vpop.xlane.xlu0 %2496
        %v2498 = vrcp.pop %v2497
        %v2499 = vmul.f32 %v2494, %v2498
        %v2500 = vpack.c.bf16 %v2499, %v2499
        %2501 = vrot.lane.b32.xlu0 %v2310, 80
        %v2502 = vpop.permute.xlu0 %2501
        %v2504 = vsel %vm991, %v2500, 0
        %v2507 = vsel %vm1030, %v2502, 0
        %2509 = vmatpush.bf16.msra.mxu0 0
        %2510 = vmatpush.bf16.msra.mxu0 0
        %2511 = vmatpush.bf16.msra.mxu0 0
        %2512 = vmatpush.bf16.msra.mxu0 0
        %2513 = vmatpush.bf16.msra.mxu0 0
        %2514 = vmatpush.bf16.msra.mxu0 0
        %2515 = vmatpush.bf16.msra.mxu0 0
        %2516 = vmatpush.bf16.msra.mxu0 %v2507
        %2517 = vmatmul.bf16.gmra.mxu0 %v2504
        %v2518 = vpop.f32.mrf.mxu0
        %v2519 = vadd.f32 0.0, %v2518
        %v2520 = vpop.f32.mrf.mxu0
        %2521 = vdwg.mxu0
        %v2522 = vpack.c.bf16 %v2519, %v2519
        %v2523 = vpack.c.bf16 %v2305, %v2305
        %v2525 = vsel %vm991, %v2522, 0
        %v2528 = vsel %vm1030, %v2523, 0
        %2530 = vmatpush.bf16.msra.mxu0 0
        %2531 = vmatpush.bf16.msra.mxu0 0
        %2532 = vmatpush.bf16.msra.mxu0 0
        %2533 = vmatpush.bf16.msra.mxu0 0
        %2534 = vmatpush.bf16.msra.mxu0 0
        %2535 = vmatpush.bf16.msra.mxu0 0
        %2536 = vmatpush.bf16.msra.mxu0 0
        %2537 = vmatpush.bf16.msra.mxu0 %v2528
        %2538 = vmatmul.bf16.gmra.mxu0 %v2525
        %v2539 = vpop.f32.mrf.mxu0
        %v2540 = vadd.f32 0.0, %v2539
        %v2541 = vpop.f32.mrf.mxu0
        %2542 = vdwg.mxu0
        %v2543 = vadd.f32 %v2462, %v2540
        %2544 = vrot.lane.b32.xlu0 %v2309, 104
        %v2545 = vpop.permute.xlu0 %2544
        %2546 = vrot.lane.b32.xlu0 %v2310, 104
        %v2547 = vpop.permute.xlu0 %2546
        %v2549 = vsel %vm991, %v2545, 0
        %v2552 = vsel %vm991, %v2547, 0
        %2554 = vmatpush.bf16.xpose.msra.mxu0 0
        %2555 = vmatpush.bf16.xpose.msra.mxu0 0
        %2556 = vmatpush.bf16.xpose.msra.mxu0 0
        %2557 = vmatpush.bf16.xpose.msra.mxu0 0
        %2558 = vmatpush.bf16.xpose.msra.mxu0 0
        %2559 = vmatpush.bf16.xpose.msra.mxu0 0
        %2560 = vmatpush.bf16.xpose.msra.mxu0 0
        %2561 = vmatpush.bf16.xpose.msra.mxu0 %v2552
        %2562 = vmatmul.bf16.gmra.mxu0 %v2549
        %v2563 = vpop.f32.mrf.mxu0
        %v2564 = vadd.f32 0.0, %v2563
        %v2565 = vpop.f32.mrf.mxu0
        %2566 = vdwg.mxu0
        %v2567 = vmul.f32 %v2564, 0.35355338
        %v2568 = vsel %vm991, %v2567, -inf
        %2569 = vmax.xlane.f32.xlu0 %v2568
        %v2570 = vpop.xlane.xlu0 %2569
        %v2571 = vsub.f32 %v2567, %v2570
        %v2572 = vmul.f32 %v2571, 1.442695
        %v2573 = vpow.pop %v2572
        %v2574 = vsel %vm991, %v2573, 0.0
        %2575 = vadd.xlane.f32.xlu0 %v2574
        %v2576 = vpop.xlane.xlu0 %2575
        %v2577 = vrcp.pop %v2576
        %v2578 = vmul.f32 %v2573, %v2577
        %v2579 = vpack.c.bf16 %v2578, %v2578
        %2580 = vrot.lane.b32.xlu0 %v2310, 72
        %v2581 = vpop.permute.xlu0 %2580
        %v2583 = vsel %vm991, %v2579, 0
        %v2586 = vsel %vm1030, %v2581, 0
        %2588 = vmatpush.bf16.msra.mxu0 0
        %2589 = vmatpush.bf16.msra.mxu0 0
        %2590 = vmatpush.bf16.msra.mxu0 0
        %2591 = vmatpush.bf16.msra.mxu0 0
        %2592 = vmatpush.bf16.msra.mxu0 0
        %2593 = vmatpush.bf16.msra.mxu0 0
        %2594 = vmatpush.bf16.msra.mxu0 0
        %2595 = vmatpush.bf16.msra.mxu0 %v2586
        %2596 = vmatmul.bf16.gmra.mxu0 %v2583
        %v2597 = vpop.f32.mrf.mxu0
        %v2598 = vadd.f32 0.0, %v2597
        %v2599 = vpop.f32.mrf.mxu0
        %2600 = vdwg.mxu0
        %v2601 = vpack.c.bf16 %v2598, %v2598
        %v2602 = vpack.c.bf16 %v2306, %v2306
        %v2604 = vsel %vm991, %v2601, 0
        %v2607 = vsel %vm1030, %v2602, 0
        %2609 = vmatpush.bf16.msra.mxu0 0
        %2610 = vmatpush.bf16.msra.mxu0 0
        %2611 = vmatpush.bf16.msra.mxu0 0
        %2612 = vmatpush.bf16.msra.mxu0 0
        %2613 = vmatpush.bf16.msra.mxu0 0
        %2614 = vmatpush.bf16.msra.mxu0 0
        %2615 = vmatpush.bf16.msra.mxu0 0
        %2616 = vmatpush.bf16.msra.mxu0 %v2607
        %2617 = vmatmul.bf16.gmra.mxu0 %v2604
        %v2618 = vpop.f32.mrf.mxu0
        %v2619 = vadd.f32 0.0, %v2618
        %v2620 = vpop.f32.mrf.mxu0
        %2621 = vdwg.mxu0
        %v2622 = vadd.f32 %v2543, %v2619
        %v2624 = vperm.slane %v2308, 0
        %v2626 = vadd.f32 %v2622, %v2624
        %v2627 = vadd.f32 %v2626, %v2247
        %s2628 = scalar_lea.vmem %s17, 1
        %v2629 = vld [vmem:[%s2628] sm:$0x1]
        %s2630 = scalar_lea.vmem %s18, 1
        %v2631 = vld [vmem:[%s2630] sm:$0x1]
        %v2632 = vsel %vm915, %v2627, 0.0
        %2633 = vadd.xlane.f32.xlu0 %v2632
        %v2634 = vpop.xlane.xlu0 %2633
        %v2635 = vmul.f32 %v2634, %v925
        %v2636 = vsub.f32 %v2627, %v2635
        %v2637 = vmul.f32 %v2636, %v2636
        %v2638 = vsel %vm915, %v2637, 0.0
        %2639 = vadd.xlane.f32.xlu0 %v2638
        %v2640 = vpop.xlane.xlu0 %2639
        %v2641 = vmul.f32 %v2640, %v925
        %v2642 = vadd.f32 %v2641, 1e-12
        %v2643 = vrsqrt.pop %v2642
        %v2644 = vmul.f32 %v2643, %v2642
        %v2645 = vmul.f32 %v2644, %v2643
        %v2646 = vmul.f32 0.5, %v2645
        %v2647 = vsub.f32 1.5, %v2646
        %v2648 = vmul.f32 %v2643, %v2647
        %vm2649 = vweird.f32 %v2642
        %vm2650 = vweird.f32 %v2643
        %vm2651 = vmor %vm2649, %vm2650
        %v2652 = vsel %vm2651, %v2643, %v2648
        %v2653 = vmul.f32 %v2636, %v2652
        %v2655 = vperm.slane %v2629, 0
        %v2657 = vmul.f32 %v2653, %v2655
        %v2659 = vperm.slane %v2631, 0
        %v2661 = vadd.f32 %v2657, %v2659
        %s2662 = scalar_lea.vmem %s19, 32
        %v2663 = vld [vmem:[%s2662] sm:$0xff]
        %v2664 = vld [vmem:[%s2662 + $0x8] sm:$0xff]
        %v2665 = vld [vmem:[%s2662 + $0x10] sm:$0xff]
        %v2666 = vld [vmem:[%s2662 + $0x18] sm:$0xff]
        %s2667 = scalar_lea.vmem %s20, 1
        %v2668 = vld [vmem:[%s2667] sm:$0x1]
        %s2669 = scalar_lea.vmem %s21, 64
        %v2670 = vld [vmem:[%s2669] sm:$0xff]
        %v2671 = vld [vmem:[%s2669 + $0x8] sm:$0xff]
        %v2672 = vld [vmem:[%s2669 + $0x10] sm:$0xff]
        %v2673 = vld [vmem:[%s2669 + $0x18] sm:$0xff]
        %v2674 = vld [vmem:[%s2669 + $0x20] sm:$0xff]
        %v2675 = vld [vmem:[%s2669 + $0x28] sm:$0xff]
        %v2676 = vld [vmem:[%s2669 + $0x30] sm:$0xff]
        %v2677 = vld [vmem:[%s2669 + $0x38] sm:$0xff]
        %s2678 = scalar_lea.vmem %s22, 1
        %v2679 = vld [vmem:[%s2678] sm:$0x1]
        %s2680 = scalar_lea.vmem %s23, 1
        %v2681 = vld [vmem:[%s2680] sm:$0x1]
        %s2682 = scalar_lea.vmem [#allocation7], 1
        %v2683 = vld [vmem:[%s2682] sm:$0x1]
        %v2684 = vpack.c.bf16 %v2661, %v2661
        %v2685 = vpack.c.bf16 %v2664, %v2663
        %v2686 = vpack.c.bf16 %v2666, %v2665
        %v2688 = vperm.slane %v2668, 0
        %v2691 = vsel %vm915, %v2684, 0
        %2693 = vmatpush.bf16.msra.mxu0 0
        %2694 = vmatpush.bf16.msra.mxu0 0
        %2695 = vmatpush.bf16.msra.mxu0 0
        %2696 = vmatpush.bf16.msra.mxu0 0
        %2697 = vmatpush.bf16.msra.mxu0 0
        %2698 = vmatpush.bf16.msra.mxu0 0
        %2699 = vmatpush.bf16.msra.mxu0 %v2686
        %2700 = vmatpush.bf16.msra.mxu0 %v2685
        %2701 = vmatmul.bf16.gmra.mxu0 %v2691
        %v2702 = vpop.f32.mrf.mxu0
        %v2703 = vadd.f32 %v2688, %v2702
        %v2704 = vpop.f32.mrf.mxu0
        %2705 = vdwg.mxu0
        %v2706 = vmul.f32 %v2703, 0.5
        %v2707 = vmul.f32 %v2703, 0.044715
        %v2708 = vmul.f32 %v2707, %v2703
        %v2709 = vmul.f32 %v2708, %v2703
        %v2710 = vadd.f32 %v2703, %v2709
        %v2711 = vmul.f32 %v2710, 0.7978846
        %v2712 = vtanh.pop %v2711
        %v2713 = vadd.f32 %v2712, 1.0
        %v2714 = vmul.f32 %v2706, %v2713
        %v2715 = vpack.c.bf16 %v2714, %v2714
        %v2716 = vpack.c.bf16 %v2671, %v2670
        %v2717 = vpack.c.bf16 %v2673, %v2672
        %v2718 = vpack.c.bf16 %v2675, %v2674
        %v2719 = vpack.c.bf16 %v2677, %v2676
        %v2721 = vperm.slane %v2679, 0
        %v2724 = vsel %vm1807, %v2715, 0
        %2726 = vmatpush.bf16.msra.mxu0 0
        %2727 = vmatpush.bf16.msra.mxu0 0
        %2728 = vmatpush.bf16.msra.mxu0 0
        %2729 = vmatpush.bf16.msra.mxu0 0
        %2730 = vmatpush.bf16.msra.mxu0 %v2719
        %2731 = vmatpush.bf16.msra.mxu0 %v2718
        %2732 = vmatpush.bf16.msra.mxu0 %v2717
        %2733 = vmatpush.bf16.msra.mxu0 %v2716
        %2734 = vmatmul.bf16.gmra.mxu0 %v2724
        %v2735 = vpop.f32.mrf.mxu0
        %v2736 = vadd.f32 %v2721, %v2735
        %v2737 = vpop.f32.mrf.mxu0
        %2738 = vdwg.mxu0
        %v2739 = vadd.f32 %v2736, %v2661
        %v2740 = vsel %vm915, %v2739, 0.0
        %2741 = vadd.xlane.f32.xlu0 %v2740
        %v2742 = vpop.xlane.xlu0 %2741
        %v2743 = vmul.f32 %v2742, %v925
        %v2744 = vsub.f32 %v2739, %v2743
        %v2745 = vmul.f32 %v2744, %v2744
        %v2746 = vsel %vm915, %v2745, 0.0
        %2747 = vadd.xlane.f32.xlu0 %v2746
        %v2748 = vpop.xlane.xlu0 %2747
        %v2749 = vmul.f32 %v2748, %v925
        %v2750 = vadd.f32 %v2749, 1e-12
        %v2751 = vrsqrt.pop %v2750
        %v2752 = vmul.f32 %v2751, %v2750
        %v2753 = vmul.f32 %v2752, %v2751
        %v2754 = vmul.f32 0.5, %v2753
        %v2755 = vsub.f32 1.5, %v2754
        %v2756 = vmul.f32 %v2751, %v2755
        %vm2757 = vweird.f32 %v2750
        %vm2758 = vweird.f32 %v2751
        %vm2759 = vmor %vm2757, %vm2758
        %v2760 = vsel %vm2759, %v2751, %v2756
        %v2761 = vmul.f32 %v2744, %v2760
        %v2763 = vperm.slane %v2681, 0
        %v2765 = vmul.f32 %v2761, %v2763
        %v2767 = vperm.slane %v2683, 0
        %v2769 = vadd.f32 %v2765, %v2767
        %v2770 = vld [vmem:[%s25] sm:$0xff]
        %v2771 = vld [vmem:[%s25 + $0x8] sm:$0xff]
        %v2772 = vld [vmem:[%s25 + $0x10] sm:$0xff]
        %v2773 = vld [vmem:[%s25 + $0x18] sm:$0xff]
        %v2774 = vpack.c.bf16 %v2769, %v2769
        %v2775 = vpack.c.bf16 %v2771, %v2770
        %v2776 = vpack.c.bf16 %v2773, %v2772
        %v2777 = vld [vmem:[#allocation8] sm:$0x1]
        %v2779 = vperm.slane %v2777, 0
        %v2782 = vsel %vm915, %v2774, 0
        %2784 = vmatpush.bf16.msra.mxu0 0
        %2785 = vmatpush.bf16.msra.mxu0 0
        %2786 = vmatpush.bf16.msra.mxu0 0
        %2787 = vmatpush.bf16.msra.mxu0 0
        %2788 = vmatpush.bf16.msra.mxu0 0
        %2789 = vmatpush.bf16.msra.mxu0 0
        %2790 = vmatpush.bf16.msra.mxu0 %v2776
        %2791 = vmatpush.bf16.msra.mxu0 %v2775
        %2792 = vmatmul.bf16.gmra.mxu0 %v2782
        %v2793 = vpop.f32.mrf.mxu0
        %v2794 = vadd.f32 %v2779, %v2793
        %v2795 = vpop.f32.mrf.mxu0
        %2796 = vdwg.mxu0
        %2797 = vst.msk [vmem:[%s896] sm:$0xff] %vm1807, %v2794
        %s2798 = sand.u32 %s634, 1
        %s2799 = scalar_lea.sflag [#allocation4], %s2798
        %s2800 = sand.u32 %s634, 1
        %s2801 = smul.addr %s2800, 8
        %s2802 = scalar_lea.vmem [#allocation10], %s2801
        // Predicated region
        $region145: #{code_translator_forward.3} parent=127 // pred_check
          %p2803 = pneg %p644
        $region146: #{code_translator_forward.3} parent=127 // pred_check_branch
          %2805 = sbr.rel (%p2803) target = $region148
        $region147: #{code_translator_forward.3} parent=127 // pred_region
          %2807 = vsyncadd %s2799, 0
          %s2808 = smul.addr %s44, 8
          %s2809 = scalar_lea.hbm %s27, %s2808
          %s2811 = sshll.u32 %s2802, 4
          %s2812 = int_to_ptr.vmem [resolvable:$true] %s2811
          %s2813 = sshll.u32 %s2809, 4
          %s2814 = int_to_ptr.hbm [resolvable:$true] %s2813
          %2816 = dma.vmem_to_hbm [thread:$0]  %s2812, 128, %s2814, %s2799
        $region148: #{code_translator_forward.3} parent=127 // pred_fallthru
          _
      $region128: #{code_translator_forward.3} parent=5 // pred_fallthru
        _
      %p2817 = scmp.le.s32.totalorder 2, %s39
      // Predicated region
      $region149: #{code_translator_forward.3} parent=5 // pred_check
        %p2818 = pneg %p2817
      $region150: #{code_translator_forward.3} parent=5 // pred_check_branch
        %2820 = sbr.rel (%p2818) target = $region152
      $region151: #{code_translator_forward.3} parent=5 // pred_region
        %s2821 = ssub.s32 %s39, 2
        // Predicated region
        $region153: #{code_translator_forward.3} parent=151 // pred_check
          %p2822 = pneg %p650
        $region154: #{code_translator_forward.3} parent=151 // pred_check_branch
          %2824 = sbr.rel (%p2822) target = $region156
        $region155: #{code_translator_forward.3} parent=151 // pred_region
          %s2825 = sand.u32 %s635, 1
          %s2826 = scalar_lea.sflag [#allocation4], %s2825
          %s2827 = sand.u32 %s635, 1
          %s2828 = smul.addr %s2827, 8
          %s2829 = scalar_lea.vmem [#allocation10], %s2828
          %2831 = dma.done %s2826, 128
        $region156: #{code_translator_forward.3} parent=151 // pred_fallthru
          _
      $region152: #{code_translator_forward.3} parent=5 // pred_fallthru
        _
    $region6: #{code_translator_forward.3} parent=1 // loop_footer
      %s43 = sadd.s32 1, %s39
    $region7: #{code_translator_forward.3} parent=1 // loop_footer_branch
      %38 = sbr.rel target = $region3
    $region8: #{code_translator_forward.3} parent=1 // loop_exit
      _
    %2832 = vsyncpa [#allocation3], 1
    %s2833 = scalar_lea.sflag [#allocation3], 1
    %2834 = vsyncpa %s2833, 1
    %2835 = vsyncpa [#allocation6], 1
    %2836 = vsyncpa [#allocation9], 1
    %2837 = vsyncpa [#allocation4], 1
    %s2838 = scalar_lea.sflag [#allocation4], 1
    %2839 = vsyncpa %s2838, 1

</llo_original>
